<compile_context>
chip_gen: v7x
topology: tpu7x:2x2x1
jax: 0.10.0
libtpu: 0.0.40
codegen_flags: <defaults>
</compile_context>

<pallas_src>
import functools

import jax
import jax.numpy as jnp
from jax.experimental import pallas as pl
from jax.experimental.pallas import tpu as pltpu


def _round_up(x, m):
    return ((x + m - 1) // m) * m


def rnn_kernel(x2d_ref, wih0w_ref, bw_ref, wbig_ref, w1cat_ref, b1_ref,
               wfc_ref, bfc_ref, out_ref, *, T, B):
    """Wavefront-pipelined 2-layer tanh RNN + final FC, all in-kernel.

    x2d_ref : (T*B, D_in)  time-major, batch-padded, flattened input
    wih0w   : (D_in, 2H)   [wih0 | 0]       bw : (1, 2H)  [b_ih0+b_hh0 | b_ih1+b_hh1]
    wbig    : (2H, 2H)     [[whh0, wih1], [0, whh1]]
    w1cat   : (2H, H)      [wih1 ; whh1]    b1 : (1, H)
    wfc     : (H, C_pad)   bfc : (1, C_pad) (lane-padded to 128)
    out_ref : (B, C_pad)
    """
    H = w1cat_ref.shape[1]

    # Hoisted layer-0 input projection: one big MXU call instead of T tiny ones
    # on the serial critical path.  Left half = x_t @ Wih0 + b0, right half = b1.
    xw = (jnp.dot(x2d_ref[...], wih0w_ref[...],
                  preferred_element_type=jnp.float32)
          + bw_ref[...])                                          # (T*B, 2H)

    wbig = wbig_ref[...]                                          # (2H, 2H)

    # Wavefront init (s = 0):  h0_0 = tanh(xw0_0 + b0),  h1_{-1} = 0.
    carry = jnp.concatenate(
        [jnp.tanh(xw[0:B, :H]), jnp.zeros((B, H), jnp.float32)], axis=1)

    # Wavefront steps s = 1..T-1: one fused MXU call + one tanh computes
    #   carry[:, :H] -> h0_s        (layer-0 state at step s)
    #   carry[:, H:] -> h1_{s-1}    (layer-1 state at step s-1)
    # and the resulting carry feeds the next step directly.
    for s in range(1, T):
        carry = jnp.tanh(
            jnp.dot(carry, wbig, preferred_element_type=jnp.float32)
            + xw[s * B:(s + 1) * B, :])                           # static, aligned slice

    # Final wavefront step (s = T): only layer 1 remains -> h1_{T-1}.
    h1_last = jnp.tanh(jnp.dot(carry, w1cat_ref[...],
                               preferred_element_type=jnp.float32)
                       + b1_ref[...])

    # fc_lh(out[:, -1, :]) : lane-dense (B, C_pad) store.
    out_ref[...] = (jnp.dot(h1_last, wfc_ref[...],
                            preferred_element_type=jnp.float32)
                    + bfc_ref[...])


def rnn_forward(x, params):
    """x: (B, T, D_in) float32, batch_first like the PyTorch module."""
    B, T, D_in = x.shape
    H = params["whh0"].shape[0]          # PyTorch-style: whh0 is (H, H)
    C = params["wfc"].shape[0]           # PyTorch-style: wfc is (C, H)

    B_pad = max(8, _round_up(B, 8))      # fill the 8 f32 sublanes
    C_pad = _round_up(C, 128)            # lane-dense output stores

    # Time-major, batch-padded, flattened to (T*B_pad, D_in).
    x_tm = jnp.transpose(x, (1, 0, 2))                               # (T, B, D_in)
    x_tm = jnp.pad(x_tm, ((0, 0), (0, B_pad - B), (0, 0)))
    x2d = x_tm.reshape(T * B_pad, D_in)

    f32 = jnp.float32
    wih0 = params["wih0"].T.astype(f32)                              # (D_in, H)
    whh0 = params["whh0"].T.astype(f32)                              # (H, H)
    wih1 = params["wih1"].T.astype(f32)                              # (H, H)
    whh1 = params["whh1"].T.astype(f32)                              # (H, H)
    b0 = (params["bih0"] + params["bhh0"]).reshape(1, H).astype(f32)
    b1 = (params["bih1"] + params["bhh1"]).reshape(1, H).astype(f32)

    # Wide layer-0 weight / bias: right half zero so xw[:, H:] == b1.
    wih0w = jnp.concatenate([wih0, jnp.zeros((D_in, H), f32)], axis=1)   # (D_in, 2H)
    bw = jnp.concatenate([b0, b1], axis=1)                               # (1, 2H)

    # Fused recurrent weight for the wavefront step.
    wbig = jnp.concatenate(
        [jnp.concatenate([whh0, wih1], axis=1),
         jnp.concatenate([jnp.zeros((H, H), f32), whh1], axis=1)], axis=0)  # (2H, 2H)

    w1cat = jnp.concatenate([wih1, whh1], axis=0)                        # (2H, H)

    wfc = jnp.pad(params["wfc"].T.astype(f32), ((0, 0), (0, C_pad - C)))  # (H, C_pad)
    bfc = jnp.pad(params["bfc"].reshape(1, C).astype(f32),
                  ((0, 0), (0, C_pad - C)))

    vmem = pl.BlockSpec(memory_space=pltpu.MemorySpace.VMEM)
    out_pad = pl.pallas_call(
        functools.partial(rnn_kernel, T=T, B=B_pad),
        out_shape=jax.ShapeDtypeStruct((B_pad, C_pad), jnp.float32),
        in_specs=[vmem] * 8,
        out_specs=vmem,
    )(x2d, wih0w, bw, wbig, w1cat, b1, wfc, bfc)

    # TODO(synk): if the real batch grows, add a batch grid with
    # dimension_semantics=("parallel",) so v7x's second TensorCore is used.
    return out_pad[:B, :C]


def rnn_reference(x, params):
    """Pure-JAX reference matching PyTorch nn.RNN(tanh) + fc_lh."""
    B, T, _ = x.shape
    H = params["whh0"].shape[0]
    hi = jax.lax.Precision.HIGHEST
    h0 = jnp.zeros((B, H), jnp.float32)
    h1 = jnp.zeros((B, H), jnp.float32)
    for t in range(T):
        xt = x[:, t, :]
        h0 = jnp.tanh(jnp.dot(xt, params["wih0"].T, precision=hi) + params["bih0"]
                      + jnp.dot(h0, params["whh0"].T, precision=hi) + params["bhh0"])
        h1 = jnp.tanh(jnp.dot(h0, params["wih1"].T, precision=hi) + params["bih1"]
                      + jnp.dot(h1, params["whh1"].T, precision=hi) + params["bhh1"])
    return jnp.dot(h1, params["wfc"].T, precision=hi) + params["bfc"]


if __name__ == "__main__":
    # Shapes from the module spec: input_size=28, hidden_size=256,
    # num_classes=10, num_layers=2, sequence_length=28, small batch.
    B, T, D_in, H, C = 2, 28, 28, 256, 10

    key = jax.random.PRNGKey(0)
    keys = jax.random.split(key, 11)
    bound = float(1.0 / (H ** 0.5))      # PyTorch nn.RNN / nn.Linear init range

    def u(k, shape):
        return jax.random.uniform(k, shape, jnp.float32, -bound, bound)

    params = {
        # layer 0
        "wih0": u(keys[0], (H, D_in)),
        "whh0": u(keys[1], (H, H)),
        "bih0": u(keys[2], (H,)),
        "bhh0": u(keys[3], (H,)),
        # layer 1
        "wih1": u(keys[4], (H, H)),
        "whh1": u(keys[5], (H, H)),
        "bih1": u(keys[6], (H,)),
        "bhh1": u(keys[7], (H,)),
        # fc_lh
        "wfc": u(keys[8], (C, H)),
        "bfc": u(keys[9], (C,)),
    }

    x = jax.random.normal(keys[10], (B, T, D_in), jnp.float32)

    out = jax.jit(rnn_forward)(x, params)
    jax.block_until_ready(out)
    assert out.shape == (B, C) and out.dtype == jnp.float32

    ref = rnn_reference(x, params)
    max_err = float(jnp.max(jnp.abs(out - ref)))
    assert max_err < 1e-2, f"kernel/reference mismatch: max abs err {max_err}"

    print("KERNEL_OK")
</pallas_src>

<mosaic_0001>
module attributes {stable_mosaic.version = 11 : i64} {
  func.func @rnn_kernel(%arg0: memref<224x28xf32, #tpu.memory_space<vmem>>, %arg1: memref<28x512xf32, #tpu.memory_space<vmem>>, %arg2: memref<1x512xf32, #tpu.memory_space<vmem>>, %arg3: memref<512x512xf32, #tpu.memory_space<vmem>>, %arg4: memref<512x256xf32, #tpu.memory_space<vmem>>, %arg5: memref<1x256xf32, #tpu.memory_space<vmem>>, %arg6: memref<256x128xf32, #tpu.memory_space<vmem>>, %arg7: memref<1x128xf32, #tpu.memory_space<vmem>>, %arg8: memref<8x128xf32, #tpu.memory_space<vmem>>) attributes {dimension_semantics = [], scalar_prefetch = 0 : i64, scratch_operands = 0 : i64, tpu.core_type = #tpu.core_type<tc>} {
    %c0 = arith.constant 0 : index
    %c0_0 = arith.constant 0 : index
    %0 = vector.load %arg0[%c0, %c0_0] : memref<224x28xf32, #tpu.memory_space<vmem>>, vector<224x28xf32>
    %c0_1 = arith.constant 0 : index
    %c0_2 = arith.constant 0 : index
    %1 = vector.load %arg1[%c0_1, %c0_2] : memref<28x512xf32, #tpu.memory_space<vmem>>, vector<28x512xf32>
    %cst = arith.constant dense<0.000000e+00> : vector<224x512xf32>
    %2 = tpu.matmul %0, %1, %cst {dimension_numbers = #tpu.dot_dimension_numbers<[1], [0], [0], [1], [0, 0, 1, 1], [], []>} : vector<224x28xf32>, vector<28x512xf32>, vector<224x512xf32> -> vector<224x512xf32>
    %c0_3 = arith.constant 0 : index
    %c0_4 = arith.constant 0 : index
    %3 = vector.load %arg2[%c0_3, %c0_4] : memref<1x512xf32, #tpu.memory_space<vmem>>, vector<1x512xf32>
    %4 = vector.broadcast %3 : vector<1x512xf32> to vector<224x512xf32>
    %5 = arith.addf %2, %4 : vector<224x512xf32>
    %c0_5 = arith.constant 0 : index
    %c0_6 = arith.constant 0 : index
    %6 = vector.load %arg3[%c0_5, %c0_6] : memref<512x512xf32, #tpu.memory_space<vmem>>, vector<512x512xf32>
    %7 = vector.extract_strided_slice %5 {offsets = [0, 0], sizes = [8, 256], strides = [1, 1]} : vector<224x512xf32> to vector<8x256xf32>
    %8 = math.tanh %7 : vector<8x256xf32>
    %cst_7 = arith.constant 0.000000e+00 : f32
    %9 = vector.broadcast %cst_7 : f32 to vector<8x256xf32>
    %10 = tpu.concatenate %8, %9 in 1 : vector<8x256xf32>, vector<8x256xf32> -> vector<8x512xf32>
    %cst_8 = arith.constant dense<0.000000e+00> : vector<8x512xf32>
    %11 = tpu.matmul %10, %6, %cst_8 {dimension_numbers = #tpu.dot_dimension_numbers<[1], [0], [0], [1], [0, 0, 1, 1], [], []>} : vector<8x512xf32>, vector<512x512xf32>, vector<8x512xf32> -> vector<8x512xf32>
    %12 = vector.extract_strided_slice %5 {offsets = [8, 0], sizes = [8, 512], strides = [1, 1]} : vector<224x512xf32> to vector<8x512xf32>
    %13 = arith.addf %11, %12 : vector<8x512xf32>
    %14 = math.tanh %13 : vector<8x512xf32>
    %cst_9 = arith.constant dense<0.000000e+00> : vector<8x512xf32>
    %15 = tpu.matmul %14, %6, %cst_9 {dimension_numbers = #tpu.dot_dimension_numbers<[1], [0], [0], [1], [0, 0, 1, 1], [], []>} : vector<8x512xf32>, vector<512x512xf32>, vector<8x512xf32> -> vector<8x512xf32>
    %16 = vector.extract_strided_slice %5 {offsets = [16, 0], sizes = [8, 512], strides = [1, 1]} : vector<224x512xf32> to vector<8x512xf32>
    %17 = arith.addf %15, %16 : vector<8x512xf32>
    %18 = math.tanh %17 : vector<8x512xf32>
    %cst_10 = arith.constant dense<0.000000e+00> : vector<8x512xf32>
    %19 = tpu.matmul %18, %6, %cst_10 {dimension_numbers = #tpu.dot_dimension_numbers<[1], [0], [0], [1], [0, 0, 1, 1], [], []>} : vector<8x512xf32>, vector<512x512xf32>, vector<8x512xf32> -> vector<8x512xf32>
    %20 = vector.extract_strided_slice %5 {offsets = [24, 0], sizes = [8, 512], strides = [1, 1]} : vector<224x512xf32> to vector<8x512xf32>
    %21 = arith.addf %19, %20 : vector<8x512xf32>
    %22 = math.tanh %21 : vector<8x512xf32>
    %cst_11 = arith.constant dense<0.000000e+00> : vector<8x512xf32>
    %23 = tpu.matmul %22, %6, %cst_11 {dimension_numbers = #tpu.dot_dimension_numbers<[1], [0], [0], [1], [0, 0, 1, 1], [], []>} : vector<8x512xf32>, vector<512x512xf32>, vector<8x512xf32> -> vector<8x512xf32>
    %24 = vector.extract_strided_slice %5 {offsets = [32, 0], sizes = [8, 512], strides = [1, 1]} : vector<224x512xf32> to vector<8x512xf32>
    %25 = arith.addf %23, %24 : vector<8x512xf32>
    %26 = math.tanh %25 : vector<8x512xf32>
    %cst_12 = arith.constant dense<0.000000e+00> : vector<8x512xf32>
    %27 = tpu.matmul %26, %6, %cst_12 {dimension_numbers = #tpu.dot_dimension_numbers<[1], [0], [0], [1], [0, 0, 1, 1], [], []>} : vector<8x512xf32>, vector<512x512xf32>, vector<8x512xf32> -> vector<8x512xf32>
    %28 = vector.extract_strided_slice %5 {offsets = [40, 0], sizes = [8, 512], strides = [1, 1]} : vector<224x512xf32> to vector<8x512xf32>
    %29 = arith.addf %27, %28 : vector<8x512xf32>
    %30 = math.tanh %29 : vector<8x512xf32>
    %cst_13 = arith.constant dense<0.000000e+00> : vector<8x512xf32>
    %31 = tpu.matmul %30, %6, %cst_13 {dimension_numbers = #tpu.dot_dimension_numbers<[1], [0], [0], [1], [0, 0, 1, 1], [], []>} : vector<8x512xf32>, vector<512x512xf32>, vector<8x512xf32> -> vector<8x512xf32>
    %32 = vector.extract_strided_slice %5 {offsets = [48, 0], sizes = [8, 512], strides = [1, 1]} : vector<224x512xf32> to vector<8x512xf32>
    %33 = arith.addf %31, %32 : vector<8x512xf32>
    %34 = math.tanh %33 : vector<8x512xf32>
    %cst_14 = arith.constant dense<0.000000e+00> : vector<8x512xf32>
    %35 = tpu.matmul %34, %6, %cst_14 {dimension_numbers = #tpu.dot_dimension_numbers<[1], [0], [0], [1], [0, 0, 1, 1], [], []>} : vector<8x512xf32>, vector<512x512xf32>, vector<8x512xf32> -> vector<8x512xf32>
    %36 = vector.extract_strided_slice %5 {offsets = [56, 0], sizes = [8, 512], strides = [1, 1]} : vector<224x512xf32> to vector<8x512xf32>
    %37 = arith.addf %35, %36 : vector<8x512xf32>
    %38 = math.tanh %37 : vector<8x512xf32>
    %cst_15 = arith.constant dense<0.000000e+00> : vector<8x512xf32>
    %39 = tpu.matmul %38, %6, %cst_15 {dimension_numbers = #tpu.dot_dimension_numbers<[1], [0], [0], [1], [0, 0, 1, 1], [], []>} : vector<8x512xf32>, vector<512x512xf32>, vector<8x512xf32> -> vector<8x512xf32>
    %40 = vector.extract_strided_slice %5 {offsets = [64, 0], sizes = [8, 512], strides = [1, 1]} : vector<224x512xf32> to vector<8x512xf32>
    %41 = arith.addf %39, %40 : vector<8x512xf32>
    %42 = math.tanh %41 : vector<8x512xf32>
    %cst_16 = arith.constant dense<0.000000e+00> : vector<8x512xf32>
    %43 = tpu.matmul %42, %6, %cst_16 {dimension_numbers = #tpu.dot_dimension_numbers<[1], [0], [0], [1], [0, 0, 1, 1], [], []>} : vector<8x512xf32>, vector<512x512xf32>, vector<8x512xf32> -> vector<8x512xf32>
    %44 = vector.extract_strided_slice %5 {offsets = [72, 0], sizes = [8, 512], strides = [1, 1]} : vector<224x512xf32> to vector<8x512xf32>
    %45 = arith.addf %43, %44 : vector<8x512xf32>
    %46 = math.tanh %45 : vector<8x512xf32>
    %cst_17 = arith.constant dense<0.000000e+00> : vector<8x512xf32>
    %47 = tpu.matmul %46, %6, %cst_17 {dimension_numbers = #tpu.dot_dimension_numbers<[1], [0], [0], [1], [0, 0, 1, 1], [], []>} : vector<8x512xf32>, vector<512x512xf32>, vector<8x512xf32> -> vector<8x512xf32>
    %48 = vector.extract_strided_slice %5 {offsets = [80, 0], sizes = [8, 512], strides = [1, 1]} : vector<224x512xf32> to vector<8x512xf32>
    %49 = arith.addf %47, %48 : vector<8x512xf32>
    %50 = math.tanh %49 : vector<8x512xf32>
    %cst_18 = arith.constant dense<0.000000e+00> : vector<8x512xf32>
    %51 = tpu.matmul %50, %6, %cst_18 {dimension_numbers = #tpu.dot_dimension_numbers<[1], [0], [0], [1], [0, 0, 1, 1], [], []>} : vector<8x512xf32>, vector<512x512xf32>, vector<8x512xf32> -> vector<8x512xf32>
    %52 = vector.extract_strided_slice %5 {offsets = [88, 0], sizes = [8, 512], strides = [1, 1]} : vector<224x512xf32> to vector<8x512xf32>
    %53 = arith.addf %51, %52 : vector<8x512xf32>
    %54 = math.tanh %53 : vector<8x512xf32>
    %cst_19 = arith.constant dense<0.000000e+00> : vector<8x512xf32>
    %55 = tpu.matmul %54, %6, %cst_19 {dimension_numbers = #tpu.dot_dimension_numbers<[1], [0], [0], [1], [0, 0, 1, 1], [], []>} : vector<8x512xf32>, vector<512x512xf32>, vector<8x512xf32> -> vector<8x512xf32>
    %56 = vector.extract_strided_slice %5 {offsets = [96, 0], sizes = [8, 512], strides = [1, 1]} : vector<224x512xf32> to vector<8x512xf32>
    %57 = arith.addf %55, %56 : vector<8x512xf32>
    %58 = math.tanh %57 : vector<8x512xf32>
    %cst_20 = arith.constant dense<0.000000e+00> : vector<8x512xf32>
    %59 = tpu.matmul %58, %6, %cst_20 {dimension_numbers = #tpu.dot_dimension_numbers<[1], [0], [0], [1], [0, 0, 1, 1], [], []>} : vector<8x512xf32>, vector<512x512xf32>, vector<8x512xf32> -> vector<8x512xf32>
    %60 = vector.extract_strided_slice %5 {offsets = [104, 0], sizes = [8, 512], strides = [1, 1]} : vector<224x512xf32> to vector<8x512xf32>
    %61 = arith.addf %59, %60 : vector<8x512xf32>
    %62 = math.tanh %61 : vector<8x512xf32>
    %cst_21 = arith.constant dense<0.000000e+00> : vector<8x512xf32>
    %63 = tpu.matmul %62, %6, %cst_21 {dimension_numbers = #tpu.dot_dimension_numbers<[1], [0], [0], [1], [0, 0, 1, 1], [], []>} : vector<8x512xf32>, vector<512x512xf32>, vector<8x512xf32> -> vector<8x512xf32>
    %64 = vector.extract_strided_slice %5 {offsets = [112, 0], sizes = [8, 512], strides = [1, 1]} : vector<224x512xf32> to vector<8x512xf32>
    %65 = arith.addf %63, %64 : vector<8x512xf32>
    %66 = math.tanh %65 : vector<8x512xf32>
    %cst_22 = arith.constant dense<0.000000e+00> : vector<8x512xf32>
    %67 = tpu.matmul %66, %6, %cst_22 {dimension_numbers = #tpu.dot_dimension_numbers<[1], [0], [0], [1], [0, 0, 1, 1], [], []>} : vector<8x512xf32>, vector<512x512xf32>, vector<8x512xf32> -> vector<8x512xf32>
    %68 = vector.extract_strided_slice %5 {offsets = [120, 0], sizes = [8, 512], strides = [1, 1]} : vector<224x512xf32> to vector<8x512xf32>
    %69 = arith.addf %67, %68 : vector<8x512xf32>
    %70 = math.tanh %69 : vector<8x512xf32>
    %cst_23 = arith.constant dense<0.000000e+00> : vector<8x512xf32>
    %71 = tpu.matmul %70, %6, %cst_23 {dimension_numbers = #tpu.dot_dimension_numbers<[1], [0], [0], [1], [0, 0, 1, 1], [], []>} : vector<8x512xf32>, vector<512x512xf32>, vector<8x512xf32> -> vector<8x512xf32>
    %72 = vector.extract_strided_slice %5 {offsets = [128, 0], sizes = [8, 512], strides = [1, 1]} : vector<224x512xf32> to vector<8x512xf32>
    %73 = arith.addf %71, %72 : vector<8x512xf32>
    %74 = math.tanh %73 : vector<8x512xf32>
    %cst_24 = arith.constant dense<0.000000e+00> : vector<8x512xf32>
    %75 = tpu.matmul %74, %6, %cst_24 {dimension_numbers = #tpu.dot_dimension_numbers<[1], [0], [0], [1], [0, 0, 1, 1], [], []>} : vector<8x512xf32>, vector<512x512xf32>, vector<8x512xf32> -> vector<8x512xf32>
    %76 = vector.extract_strided_slice %5 {offsets = [136, 0], sizes = [8, 512], strides = [1, 1]} : vector<224x512xf32> to vector<8x512xf32>
    %77 = arith.addf %75, %76 : vector<8x512xf32>
    %78 = math.tanh %77 : vector<8x512xf32>
    %cst_25 = arith.constant dense<0.000000e+00> : vector<8x512xf32>
    %79 = tpu.matmul %78, %6, %cst_25 {dimension_numbers = #tpu.dot_dimension_numbers<[1], [0], [0], [1], [0, 0, 1, 1], [], []>} : vector<8x512xf32>, vector<512x512xf32>, vector<8x512xf32> -> vector<8x512xf32>
    %80 = vector.extract_strided_slice %5 {offsets = [144, 0], sizes = [8, 512], strides = [1, 1]} : vector<224x512xf32> to vector<8x512xf32>
    %81 = arith.addf %79, %80 : vector<8x512xf32>
    %82 = math.tanh %81 : vector<8x512xf32>
    %cst_26 = arith.constant dense<0.000000e+00> : vector<8x512xf32>
    %83 = tpu.matmul %82, %6, %cst_26 {dimension_numbers = #tpu.dot_dimension_numbers<[1], [0], [0], [1], [0, 0, 1, 1], [], []>} : vector<8x512xf32>, vector<512x512xf32>, vector<8x512xf32> -> vector<8x512xf32>
    %84 = vector.extract_strided_slice %5 {offsets = [152, 0], sizes = [8, 512], strides = [1, 1]} : vector<224x512xf32> to vector<8x512xf32>
    %85 = arith.addf %83, %84 : vector<8x512xf32>
    %86 = math.tanh %85 : vector<8x512xf32>
    %cst_27 = arith.constant dense<0.000000e+00> : vector<8x512xf32>
    %87 = tpu.matmul %86, %6, %cst_27 {dimension_numbers = #tpu.dot_dimension_numbers<[1], [0], [0], [1], [0, 0, 1, 1], [], []>} : vector<8x512xf32>, vector<512x512xf32>, vector<8x512xf32> -> vector<8x512xf32>
    %88 = vector.extract_strided_slice %5 {offsets = [160, 0], sizes = [8, 512], strides = [1, 1]} : vector<224x512xf32> to vector<8x512xf32>
    %89 = arith.addf %87, %88 : vector<8x512xf32>
    %90 = math.tanh %89 : vector<8x512xf32>
    %cst_28 = arith.constant dense<0.000000e+00> : vector<8x512xf32>
    %91 = tpu.matmul %90, %6, %cst_28 {dimension_numbers = #tpu.dot_dimension_numbers<[1], [0], [0], [1], [0, 0, 1, 1], [], []>} : vector<8x512xf32>, vector<512x512xf32>, vector<8x512xf32> -> vector<8x512xf32>
    %92 = vector.extract_strided_slice %5 {offsets = [168, 0], sizes = [8, 512], strides = [1, 1]} : vector<224x512xf32> to vector<8x512xf32>
    %93 = arith.addf %91, %92 : vector<8x512xf32>
    %94 = math.tanh %93 : vector<8x512xf32>
    %cst_29 = arith.constant dense<0.000000e+00> : vector<8x512xf32>
    %95 = tpu.matmul %94, %6, %cst_29 {dimension_numbers = #tpu.dot_dimension_numbers<[1], [0], [0], [1], [0, 0, 1, 1], [], []>} : vector<8x512xf32>, vector<512x512xf32>, vector<8x512xf32> -> vector<8x512xf32>
    %96 = vector.extract_strided_slice %5 {offsets = [176, 0], sizes = [8, 512], strides = [1, 1]} : vector<224x512xf32> to vector<8x512xf32>
    %97 = arith.addf %95, %96 : vector<8x512xf32>
    %98 = math.tanh %97 : vector<8x512xf32>
    %cst_30 = arith.constant dense<0.000000e+00> : vector<8x512xf32>
    %99 = tpu.matmul %98, %6, %cst_30 {dimension_numbers = #tpu.dot_dimension_numbers<[1], [0], [0], [1], [0, 0, 1, 1], [], []>} : vector<8x512xf32>, vector<512x512xf32>, vector<8x512xf32> -> vector<8x512xf32>
    %100 = vector.extract_strided_slice %5 {offsets = [184, 0], sizes = [8, 512], strides = [1, 1]} : vector<224x512xf32> to vector<8x512xf32>
    %101 = arith.addf %99, %100 : vector<8x512xf32>
    %102 = math.tanh %101 : vector<8x512xf32>
    %cst_31 = arith.constant dense<0.000000e+00> : vector<8x512xf32>
    %103 = tpu.matmul %102, %6, %cst_31 {dimension_numbers = #tpu.dot_dimension_numbers<[1], [0], [0], [1], [0, 0, 1, 1], [], []>} : vector<8x512xf32>, vector<512x512xf32>, vector<8x512xf32> -> vector<8x512xf32>
    %104 = vector.extract_strided_slice %5 {offsets = [192, 0], sizes = [8, 512], strides = [1, 1]} : vector<224x512xf32> to vector<8x512xf32>
    %105 = arith.addf %103, %104 : vector<8x512xf32>
    %106 = math.tanh %105 : vector<8x512xf32>
    %cst_32 = arith.constant dense<0.000000e+00> : vector<8x512xf32>
    %107 = tpu.matmul %106, %6, %cst_32 {dimension_numbers = #tpu.dot_dimension_numbers<[1], [0], [0], [1], [0, 0, 1, 1], [], []>} : vector<8x512xf32>, vector<512x512xf32>, vector<8x512xf32> -> vector<8x512xf32>
    %108 = vector.extract_strided_slice %5 {offsets = [200, 0], sizes = [8, 512], strides = [1, 1]} : vector<224x512xf32> to vector<8x512xf32>
    %109 = arith.addf %107, %108 : vector<8x512xf32>
    %110 = math.tanh %109 : vector<8x512xf32>
    %cst_33 = arith.constant dense<0.000000e+00> : vector<8x512xf32>
    %111 = tpu.matmul %110, %6, %cst_33 {dimension_numbers = #tpu.dot_dimension_numbers<[1], [0], [0], [1], [0, 0, 1, 1], [], []>} : vector<8x512xf32>, vector<512x512xf32>, vector<8x512xf32> -> vector<8x512xf32>
    %112 = vector.extract_strided_slice %5 {offsets = [208, 0], sizes = [8, 512], strides = [1, 1]} : vector<224x512xf32> to vector<8x512xf32>
    %113 = arith.addf %111, %112 : vector<8x512xf32>
    %114 = math.tanh %113 : vector<8x512xf32>
    %cst_34 = arith.constant dense<0.000000e+00> : vector<8x512xf32>
    %115 = tpu.matmul %114, %6, %cst_34 {dimension_numbers = #tpu.dot_dimension_numbers<[1], [0], [0], [1], [0, 0, 1, 1], [], []>} : vector<8x512xf32>, vector<512x512xf32>, vector<8x512xf32> -> vector<8x512xf32>
    %116 = vector.extract_strided_slice %5 {offsets = [216, 0], sizes = [8, 512], strides = [1, 1]} : vector<224x512xf32> to vector<8x512xf32>
    %117 = arith.addf %115, %116 : vector<8x512xf32>
    %118 = math.tanh %117 : vector<8x512xf32>
    %c0_35 = arith.constant 0 : index
    %c0_36 = arith.constant 0 : index
    %119 = vector.load %arg4[%c0_35, %c0_36] : memref<512x256xf32, #tpu.memory_space<vmem>>, vector<512x256xf32>
    %cst_37 = arith.constant dense<0.000000e+00> : vector<8x256xf32>
    %120 = tpu.matmul %118, %119, %cst_37 {dimension_numbers = #tpu.dot_dimension_numbers<[1], [0], [0], [1], [0, 0, 1, 1], [], []>} : vector<8x512xf32>, vector<512x256xf32>, vector<8x256xf32> -> vector<8x256xf32>
    %c0_38 = arith.constant 0 : index
    %c0_39 = arith.constant 0 : index
    %121 = vector.load %arg5[%c0_38, %c0_39] : memref<1x256xf32, #tpu.memory_space<vmem>>, vector<1x256xf32>
    %122 = vector.broadcast %121 : vector<1x256xf32> to vector<8x256xf32>
    %123 = arith.addf %120, %122 : vector<8x256xf32>
    %124 = math.tanh %123 : vector<8x256xf32>
    %c0_40 = arith.constant 0 : index
    %c0_41 = arith.constant 0 : index
    %125 = vector.load %arg6[%c0_40, %c0_41] : memref<256x128xf32, #tpu.memory_space<vmem>>, vector<256x128xf32>
    %cst_42 = arith.constant dense<0.000000e+00> : vector<8x128xf32>
    %126 = tpu.matmul %124, %125, %cst_42 {dimension_numbers = #tpu.dot_dimension_numbers<[1], [0], [0], [1], [0, 0, 1, 1], [], []>} : vector<8x256xf32>, vector<256x128xf32>, vector<8x128xf32> -> vector<8x128xf32>
    %c0_43 = arith.constant 0 : index
    %c0_44 = arith.constant 0 : index
    %127 = vector.load %arg7[%c0_43, %c0_44] : memref<1x128xf32, #tpu.memory_space<vmem>>, vector<1x128xf32>
    %128 = vector.broadcast %127 : vector<1x128xf32> to vector<8x128xf32>
    %129 = arith.addf %126, %128 : vector<8x128xf32>
    %c0_45 = arith.constant 0 : index
    %c0_46 = arith.constant 0 : index
    %130 = vector.load %arg8[%c0_45, %c0_46] : memref<8x128xf32, #tpu.memory_space<vmem>>, vector<8x128xf32>
    tpu.vector_store %arg8[%c0_45, %c0_46], %129 {strides = array<i32>} : memref<8x128xf32, #tpu.memory_space<vmem>>, vector<8x128xf32>,
    return
  }
}

</mosaic_0001>

<llo_original>
// kernel: rnn_forward.1
$region0: #{rnn_forward.1}
  #allocation0 [shape = 'u32[]', space=smem, size = 0x4, offset = 0x4, fixed_abs, tag = 'smem constant byte address 0x4 - core index']
  #allocation1 [shape = 'u32[144,128]{1,0:T(1,128)}', space=vmem, size = 0x12000, scoped, tag = 'internal scratch']
  %s0 = inlined_call_operand.vmem [shape: f32[224,28], index: 0, kind: input, shape index: {}]
  %s1 = inlined_call_operand.vmem [shape: f32[28,512], index: 1, kind: input, shape index: {}]
  %s2 = inlined_call_operand.vmem [shape: f32[1,512], index: 2, kind: input, shape index: {}]
  %s3 = inlined_call_operand.vmem [shape: f32[512,512], index: 3, kind: input, shape index: {}]
  %s4 = inlined_call_operand.vmem [shape: f32[512,256], index: 4, kind: input, shape index: {}]
  %s5 = inlined_call_operand.vmem [shape: f32[1,256], index: 5, kind: input, shape index: {}]
  %s6 = inlined_call_operand.vmem [shape: f32[256,128], index: 6, kind: input, shape index: {}]
  %s7 = inlined_call_operand.vmem [shape: f32[1,128], index: 7, kind: input, shape index: {}]
  %s8 = inlined_call_operand.vmem [shape: f32[8,128], index: 8, kind: output, shape index: {}]
  %s9 = sld [smem:[#allocation0]]
  $region42: #{rnn_forward.1} parent=0
    _
  %s11 = ssub.s32 1, %s9
  %s12 = scalar_select 0, %s11, %s9
  // Predicated region
  $region2: #{rnn_forward.1} parent=0 // pred_check
    _
  $region3: #{rnn_forward.1} parent=0 // pred_check_branch
    %14 = sbr.rel (0) target = $region5
  $region4: #{rnn_forward.1} parent=0 // pred_region
    _
  $region5: #{rnn_forward.1} parent=0 // pred_fallthru
    _
  // Predicated region
  $region6: #{rnn_forward.1} parent=0 // pred_check
    _
  $region7: #{rnn_forward.1} parent=0 // pred_check_branch
    %16 = sbr.rel (0) target = $region9
  $region8: #{rnn_forward.1} parent=0 // pred_region
    _
  $region9: #{rnn_forward.1} parent=0 // pred_fallthru
    _
  // Predicated region
  $region10: #{rnn_forward.1} parent=0 // pred_check
    _
  $region11: #{rnn_forward.1} parent=0 // pred_check_branch
    %18 = sbr.rel (0) target = $region13
  $region12: #{rnn_forward.1} parent=0 // pred_region
    _
  $region13: #{rnn_forward.1} parent=0 // pred_fallthru
    _
  // Predicated region
  $region14: #{rnn_forward.1} parent=0 // pred_check
    _
  $region15: #{rnn_forward.1} parent=0 // pred_check_branch
    %20 = sbr.rel (0) target = $region17
  $region16: #{rnn_forward.1} parent=0 // pred_region
    _
  $region17: #{rnn_forward.1} parent=0 // pred_fallthru
    _
  // Predicated region
  $region18: #{rnn_forward.1} parent=0 // pred_check
    _
  $region19: #{rnn_forward.1} parent=0 // pred_check_branch
    %22 = sbr.rel (0) target = $region21
  $region20: #{rnn_forward.1} parent=0 // pred_region
    _
  $region21: #{rnn_forward.1} parent=0 // pred_fallthru
    _
  // Predicated region
  $region22: #{rnn_forward.1} parent=0 // pred_check
    _
  $region23: #{rnn_forward.1} parent=0 // pred_check_branch
    %24 = sbr.rel (0) target = $region25
  $region24: #{rnn_forward.1} parent=0 // pred_region
    _
  $region25: #{rnn_forward.1} parent=0 // pred_fallthru
    _
  // Predicated region
  $region26: #{rnn_forward.1} parent=0 // pred_check
    _
  $region27: #{rnn_forward.1} parent=0 // pred_check_branch
    %26 = sbr.rel (0) target = $region29
  $region28: #{rnn_forward.1} parent=0 // pred_region
    _
  $region29: #{rnn_forward.1} parent=0 // pred_fallthru
    _
  // Predicated region
  $region30: #{rnn_forward.1} parent=0 // pred_check
    _
  $region31: #{rnn_forward.1} parent=0 // pred_check_branch
    %28 = sbr.rel (0) target = $region33
  $region32: #{rnn_forward.1} parent=0 // pred_region
    _
  $region33: #{rnn_forward.1} parent=0 // pred_fallthru
    _
  %v29 = vld [vmem:[%s0] sm:$0xff]
  %v30 = vld [vmem:[%s0 + $0x8] sm:$0xff]
  %v31 = vld [vmem:[%s0 + $0x10] sm:$0xff]
  %v32 = vld [vmem:[%s0 + $0x18] sm:$0xff]
  %v33 = vld [vmem:[%s0 + $0x20] sm:$0xff]
  %v34 = vld [vmem:[%s0 + $0x28] sm:$0xff]
  %v35 = vld [vmem:[%s0 + $0x30] sm:$0xff]
  %v36 = vld [vmem:[%s0 + $0x38] sm:$0xff]
  %v37 = vld [vmem:[%s0 + $0x40] sm:$0xff]
  %v38 = vld [vmem:[%s0 + $0x48] sm:$0xff]
  %v39 = vld [vmem:[%s0 + $0x50] sm:$0xff]
  %v40 = vld [vmem:[%s0 + $0x58] sm:$0xff]
  %v41 = vld [vmem:[%s0 + $0x60] sm:$0xff]
  %v42 = vld [vmem:[%s0 + $0x68] sm:$0xff]
  %v43 = vld [vmem:[%s0 + $0x70] sm:$0xff]
  %v44 = vld [vmem:[%s0 + $0x78] sm:$0xff]
  %v45 = vld [vmem:[%s0 + $0x80] sm:$0xff]
  %v46 = vld [vmem:[%s0 + $0x88] sm:$0xff]
  %v47 = vld [vmem:[%s0 + $0x90] sm:$0xff]
  %v48 = vld [vmem:[%s0 + $0x98] sm:$0xff]
  %v49 = vld [vmem:[%s0 + $0xa0] sm:$0xff]
  %v50 = vld [vmem:[%s0 + $0xa8] sm:$0xff]
  %v51 = vld [vmem:[%s0 + $0xb0] sm:$0xff]
  %v52 = vld [vmem:[%s0 + $0xb8] sm:$0xff]
  %v53 = vld [vmem:[%s0 + $0xc0] sm:$0xff]
  %v54 = vld [vmem:[%s0 + $0xc8] sm:$0xff]
  %v55 = vld [vmem:[%s0 + $0xd0] sm:$0xff]
  %v56 = vld [vmem:[%s0 + $0xd8] sm:$0xff]
  %v57 = vld [vmem:[%s1] sm:$0xff]
  %v58 = vld [vmem:[%s1 + $0x8] sm:$0xff]
  %v59 = vld [vmem:[%s1 + $0x10] sm:$0xff]
  %v60 = vld [vmem:[%s1 + $0x18] sm:$0xff]
  %v61 = vld [vmem:[%s1 + $0x20] sm:$0xff]
  %v62 = vld [vmem:[%s1 + $0x28] sm:$0xff]
  %v63 = vld [vmem:[%s1 + $0x30] sm:$0xff]
  %v64 = vld [vmem:[%s1 + $0x38] sm:$0xff]
  %v65 = vld [vmem:[%s1 + $0x40] sm:$0xff]
  %v66 = vld [vmem:[%s1 + $0x48] sm:$0xff]
  %v67 = vld [vmem:[%s1 + $0x50] sm:$0xff]
  %v68 = vld [vmem:[%s1 + $0x58] sm:$0xff]
  %v69 = vld [vmem:[%s1 + $0x60] sm:$0xf]
  %v70 = vld [vmem:[%s1 + $0x68] sm:$0xf]
  %v71 = vld [vmem:[%s1 + $0x70] sm:$0xf]
  %v72 = vld [vmem:[%s1 + $0x78] sm:$0xf]
  %v73 = vld [vmem:[%s2] sm:$0xf]
  %v75 = vlaneseq
  %v76 = vshrl.u32 %v75, 7
  %v77 = vsub.s32 0, %v76
  %v78 = vrot.slane %v73, %v77
  %v79 = vlaneseq
  %v80 = vshrl.u32 %v79, 7
  %v81 = vsub.s32 1, %v80
  %v82 = vrot.slane %v73, %v81
  %v83 = vlaneseq
  %v84 = vshrl.u32 %v83, 7
  %v85 = vsub.s32 2, %v84
  %v86 = vrot.slane %v73, %v85
  %v87 = vlaneseq
  %v88 = vshrl.u32 %v87, 7
  %v89 = vsub.s32 3, %v88
  %v90 = vrot.slane %v73, %v89
  %vm95 = vcmask 228352
  %v97 = vsel %vm95, %v29, 0
  %v100 = vsel %vm95, %v30, 0
  %v103 = vsel %vm95, %v31, 0
  %v106 = vsel %vm95, %v32, 0
  %v109 = vsel %vm95, %v33, 0
  %v112 = vsel %vm95, %v34, 0
  %v115 = vsel %vm95, %v35, 0
  %v118 = vsel %vm95, %v36, 0
  %v121 = vsel %vm95, %v37, 0
  %v124 = vsel %vm95, %v38, 0
  %v127 = vsel %vm95, %v39, 0
  %v130 = vsel %vm95, %v40, 0
  %v133 = vsel %vm95, %v41, 0
  %v136 = vsel %vm95, %v42, 0
  %v139 = vsel %vm95, %v43, 0
  %v142 = vsel %vm95, %v44, 0
  %v145 = vsel %vm95, %v45, 0
  %v148 = vsel %vm95, %v46, 0
  %v151 = vsel %vm95, %v47, 0
  %v154 = vsel %vm95, %v48, 0
  %v157 = vsel %vm95, %v49, 0
  %v160 = vsel %vm95, %v50, 0
  %v163 = vsel %vm95, %v51, 0
  %v166 = vsel %vm95, %v52, 0
  %v169 = vsel %vm95, %v53, 0
  %v172 = vsel %vm95, %v54, 0
  %v175 = vsel %vm95, %v55, 0
  %v178 = vsel %vm95, %v56, 0
  %vm180 = vcmask 1043456
  %v182 = vsel %vm180, %v69, 0
  %v185 = vsel %vm180, %v70, 0
  %v188 = vsel %vm180, %v71, 0
  %v191 = vsel %vm180, %v72, 0
  %193 = vmatprep.subr.mxu0 %v58
  %194 = vmatpush1.msra.mxu0 %v57
  %195 = vmatprep.subr.mxu0 %v62
  %196 = vmatpush1.msra.mxu0 %v61
  %197 = vmatprep.subr.mxu0 %v66
  %198 = vmatpush1.msra.mxu0 %v65
  %199 = vmatprep.subr.mxu0 %v185
  %200 = vmatpush1.msra.mxu0 %v182
  %201 = vmatprep.subr.mxu0 0.0
  %202 = vmatpush1.msra.mxu0 0.0
  %203 = vmatprep.subr.mxu0 0.0
  %204 = vmatpush1.msra.mxu0 0.0
  %205 = vmatprep.subr.mxu0 0.0
  %206 = vmatpush1.msra.mxu0 0.0
  %207 = vmatprep.subr.mxu0 0.0
  %208 = vmatpush1.msra.mxu0 0.0
  %209 = vmatprep.subr.mxu0 0.0
  %210 = vmatpush1.msra.mxu0 0.0
  %211 = vmatprep.subr.mxu0 0.0
  %212 = vmatpush1.msra.mxu0 0.0
  %213 = vmatprep.subr.mxu0 0.0
  %214 = vmatpush1.msra.mxu0 0.0
  %215 = vmatprep.subr.mxu0 0.0
  %216 = vmatpush1.msra.mxu0 0.0
  %217 = vmatprep.subr.mxu0 0.0
  %218 = vmatpush1.msra.mxu0 0.0
  %219 = vmatprep.subr.mxu0 0.0
  %220 = vmatpush1.msra.mxu0 0.0
  %221 = vmatprep.subr.mxu0 0.0
  %222 = vmatpush1.msra.mxu0 0.0
  %223 = vmatprep.subr.mxu0 0.0
  %224 = vmatpush1.msra.mxu0 0.0
  %225 = vmatprep.subr.mxu0 0.0
  %226 = vmatpush1.msra.mxu0 0.0
  %227 = vmatprep.subr.mxu0 0.0
  %228 = vmatpush1.msra.mxu0 0.0
  %229 = vmatprep.subr.mxu0 0.0
  %230 = vmatpush1.msra.mxu0 0.0
  %231 = vmatprep.subr.mxu0 0.0
  %232 = vmatpush1.msra.mxu0 0.0
  %233 = vmatprep.subr.mxu0 0.0
  %234 = vmatpush1.msra.mxu0 0.0
  %235 = vmatprep.subr.mxu0 0.0
  %236 = vmatpush1.msra.mxu0 0.0
  %237 = vmatprep.subr.mxu0 0.0
  %238 = vmatpush1.msra.mxu0 0.0
  %239 = vmatprep.subr.mxu0 0.0
  %240 = vmatpush1.msra.mxu0 0.0
  %241 = vmatprep.subr.mxu0 0.0
  %242 = vmatpush1.msra.mxu0 0.0
  %243 = vmatprep.subr.mxu0 0.0
  %244 = vmatpush1.msra.mxu0 0.0
  %245 = vmatprep.subr.mxu0 0.0
  %246 = vmatpush1.msra.mxu0 0.0
  %247 = vmatprep.subr.mxu0 0.0
  %248 = vmatpush1.msra.mxu0 0.0
  %249 = vmatprep.subr.mxu0 0.0
  %250 = vmatpush1.msra.mxu0 0.0
  %251 = vmatprep.subr.mxu0 0.0
  %252 = vmatpush1.msra.mxu0 0.0
  %253 = vmatprep.subr.mxu0 0.0
  %254 = vmatpush1.msra.mxu0 0.0
  %255 = vmatprep.subr.mxu0 0.0
  %256 = vmatpush1.msra.mxu0 0.0
  %257 = vmatprep.mubr.f32.mxu0 0.0
  %258 = vmatmul.mubr.f32.gmra.mrb[0].mxu0 %v97
  %v259 = vpop.f32.mrb[0].mxu0
  %v260 = vadd.f32 %v78, %v259
  %v261 = vpop.f32.mrb[0].mxu0
  %v262 = vadd.f32 %v82, %v261
  %263 = vmatprep.mubr.f32.mxu0 0.0
  %264 = vmatmul.mubr.f32.gmra.mrb[0].mxu0 %v100
  %v265 = vpop.f32.mrb[0].mxu0
  %v266 = vadd.f32 %v78, %v265
  %v267 = vpop.f32.mrb[0].mxu0
  %v268 = vadd.f32 %v82, %v267
  %269 = vmatprep.mubr.f32.mxu0 0.0
  %270 = vmatmul.mubr.f32.gmra.mrb[0].mxu0 %v103
  %v271 = vpop.f32.mrb[0].mxu0
  %v272 = vadd.f32 %v78, %v271
  %v273 = vpop.f32.mrb[0].mxu0
  %v274 = vadd.f32 %v82, %v273
  %275 = vmatprep.mubr.f32.mxu0 0.0
  %276 = vmatmul.mubr.f32.gmra.mrb[0].mxu0 %v106
  %v277 = vpop.f32.mrb[0].mxu0
  %v278 = vadd.f32 %v78, %v277
  %v279 = vpop.f32.mrb[0].mxu0
  %v280 = vadd.f32 %v82, %v279
  %281 = vmatprep.mubr.f32.mxu0 0.0
  %282 = vmatmul.mubr.f32.gmra.mrb[0].mxu0 %v109
  %v283 = vpop.f32.mrb[0].mxu0
  %v284 = vadd.f32 %v78, %v283
  %v285 = vpop.f32.mrb[0].mxu0
  %v286 = vadd.f32 %v82, %v285
  %287 = vmatprep.mubr.f32.mxu0 0.0
  %288 = vmatmul.mubr.f32.gmra.mrb[0].mxu0 %v112
  %v289 = vpop.f32.mrb[0].mxu0
  %v290 = vadd.f32 %v78, %v289
  %v291 = vpop.f32.mrb[0].mxu0
  %v292 = vadd.f32 %v82, %v291
  %293 = vmatprep.mubr.f32.mxu0 0.0
  %294 = vmatmul.mubr.f32.gmra.mrb[0].mxu0 %v115
  %v295 = vpop.f32.mrb[0].mxu0
  %v296 = vadd.f32 %v78, %v295
  %v297 = vpop.f32.mrb[0].mxu0
  %v298 = vadd.f32 %v82, %v297
  %299 = vmatprep.mubr.f32.mxu0 0.0
  %300 = vmatmul.mubr.f32.gmra.mrb[0].mxu0 %v118
  %v301 = vpop.f32.mrb[0].mxu0
  %v302 = vadd.f32 %v78, %v301
  %v303 = vpop.f32.mrb[0].mxu0
  %v304 = vadd.f32 %v82, %v303
  %305 = vmatprep.mubr.f32.mxu0 0.0
  %306 = vmatmul.mubr.f32.gmra.mrb[0].mxu0 %v121
  %v307 = vpop.f32.mrb[0].mxu0
  %v308 = vadd.f32 %v78, %v307
  %v309 = vpop.f32.mrb[0].mxu0
  %v310 = vadd.f32 %v82, %v309
  %311 = vmatprep.mubr.f32.mxu0 0.0
  %312 = vmatmul.mubr.f32.gmra.mrb[0].mxu0 %v124
  %v313 = vpop.f32.mrb[0].mxu0
  %v314 = vadd.f32 %v78, %v313
  %v315 = vpop.f32.mrb[0].mxu0
  %v316 = vadd.f32 %v82, %v315
  %317 = vmatprep.mubr.f32.mxu0 0.0
  %318 = vmatmul.mubr.f32.gmra.mrb[0].mxu0 %v127
  %v319 = vpop.f32.mrb[0].mxu0
  %v320 = vadd.f32 %v78, %v319
  %v321 = vpop.f32.mrb[0].mxu0
  %v322 = vadd.f32 %v82, %v321
  %323 = vmatprep.mubr.f32.mxu0 0.0
  %324 = vmatmul.mubr.f32.gmra.mrb[0].mxu0 %v130
  %v325 = vpop.f32.mrb[0].mxu0
  %v326 = vadd.f32 %v78, %v325
  %v327 = vpop.f32.mrb[0].mxu0
  %v328 = vadd.f32 %v82, %v327
  %329 = vmatprep.mubr.f32.mxu0 0.0
  %330 = vmatmul.mubr.f32.gmra.mrb[0].mxu0 %v133
  %v331 = vpop.f32.mrb[0].mxu0
  %v332 = vadd.f32 %v78, %v331
  %v333 = vpop.f32.mrb[0].mxu0
  %v334 = vadd.f32 %v82, %v333
  %335 = vmatprep.mubr.f32.mxu0 0.0
  %336 = vmatmul.mubr.f32.gmra.mrb[0].mxu0 %v136
  %v337 = vpop.f32.mrb[0].mxu0
  %v338 = vadd.f32 %v78, %v337
  %v339 = vpop.f32.mrb[0].mxu0
  %v340 = vadd.f32 %v82, %v339
  %341 = vmatprep.mubr.f32.mxu0 0.0
  %342 = vmatmul.mubr.f32.gmra.mrb[0].mxu0 %v139
  %v343 = vpop.f32.mrb[0].mxu0
  %v344 = vadd.f32 %v78, %v343
  %v345 = vpop.f32.mrb[0].mxu0
  %v346 = vadd.f32 %v82, %v345
  %347 = vmatprep.mubr.f32.mxu0 0.0
  %348 = vmatmul.mubr.f32.gmra.mrb[0].mxu0 %v142
  %v349 = vpop.f32.mrb[0].mxu0
  %v350 = vadd.f32 %v78, %v349
  %v351 = vpop.f32.mrb[0].mxu0
  %v352 = vadd.f32 %v82, %v351
  %353 = vmatprep.mubr.f32.mxu0 0.0
  %354 = vmatmul.mubr.f32.gmra.mrb[0].mxu0 %v145
  %v355 = vpop.f32.mrb[0].mxu0
  %v356 = vadd.f32 %v78, %v355
  %v357 = vpop.f32.mrb[0].mxu0
  %v358 = vadd.f32 %v82, %v357
  %359 = vmatprep.mubr.f32.mxu0 0.0
  %360 = vmatmul.mubr.f32.gmra.mrb[0].mxu0 %v148
  %v361 = vpop.f32.mrb[0].mxu0
  %v362 = vadd.f32 %v78, %v361
  %v363 = vpop.f32.mrb[0].mxu0
  %v364 = vadd.f32 %v82, %v363
  %365 = vmatprep.mubr.f32.mxu0 0.0
  %366 = vmatmul.mubr.f32.gmra.mrb[0].mxu0 %v151
  %v367 = vpop.f32.mrb[0].mxu0
  %v368 = vadd.f32 %v78, %v367
  %v369 = vpop.f32.mrb[0].mxu0
  %v370 = vadd.f32 %v82, %v369
  %371 = vmatprep.mubr.f32.mxu0 0.0
  %372 = vmatmul.mubr.f32.gmra.mrb[0].mxu0 %v154
  %v373 = vpop.f32.mrb[0].mxu0
  %v374 = vadd.f32 %v78, %v373
  %v375 = vpop.f32.mrb[0].mxu0
  %v376 = vadd.f32 %v82, %v375
  %377 = vmatprep.mubr.f32.mxu0 0.0
  %378 = vmatmul.mubr.f32.gmra.mrb[0].mxu0 %v157
  %v379 = vpop.f32.mrb[0].mxu0
  %v380 = vadd.f32 %v78, %v379
  %v381 = vpop.f32.mrb[0].mxu0
  %v382 = vadd.f32 %v82, %v381
  %383 = vmatprep.mubr.f32.mxu0 0.0
  %384 = vmatmul.mubr.f32.gmra.mrb[0].mxu0 %v160
  %v385 = vpop.f32.mrb[0].mxu0
  %v386 = vadd.f32 %v78, %v385
  %v387 = vpop.f32.mrb[0].mxu0
  %v388 = vadd.f32 %v82, %v387
  %389 = vmatprep.mubr.f32.mxu0 0.0
  %390 = vmatmul.mubr.f32.gmra.mrb[0].mxu0 %v163
  %v391 = vpop.f32.mrb[0].mxu0
  %v392 = vadd.f32 %v78, %v391
  %v393 = vpop.f32.mrb[0].mxu0
  %v394 = vadd.f32 %v82, %v393
  %395 = vmatprep.mubr.f32.mxu0 0.0
  %396 = vmatmul.mubr.f32.gmra.mrb[0].mxu0 %v166
  %v397 = vpop.f32.mrb[0].mxu0
  %v398 = vadd.f32 %v78, %v397
  %v399 = vpop.f32.mrb[0].mxu0
  %v400 = vadd.f32 %v82, %v399
  %401 = vmatprep.mubr.f32.mxu0 0.0
  %402 = vmatmul.mubr.f32.gmra.mrb[0].mxu0 %v169
  %v403 = vpop.f32.mrb[0].mxu0
  %v404 = vadd.f32 %v78, %v403
  %v405 = vpop.f32.mrb[0].mxu0
  %v406 = vadd.f32 %v82, %v405
  %407 = vmatprep.mubr.f32.mxu0 0.0
  %408 = vmatmul.mubr.f32.gmra.mrb[0].mxu0 %v172
  %v409 = vpop.f32.mrb[0].mxu0
  %v410 = vadd.f32 %v78, %v409
  %v411 = vpop.f32.mrb[0].mxu0
  %v412 = vadd.f32 %v82, %v411
  %413 = vmatprep.mubr.f32.mxu0 0.0
  %414 = vmatmul.mubr.f32.gmra.mrb[0].mxu0 %v175
  %v415 = vpop.f32.mrb[0].mxu0
  %v416 = vadd.f32 %v78, %v415
  %v417 = vpop.f32.mrb[0].mxu0
  %v418 = vadd.f32 %v82, %v417
  %419 = vmatprep.mubr.f32.mxu0 0.0
  %420 = vmatmul.mubr.f32.gmra.mrb[0].mxu0 %v178
  %v421 = vpop.f32.mrb[0].mxu0
  %v422 = vadd.f32 %v78, %v421
  %v423 = vpop.f32.mrb[0].mxu0
  %v424 = vadd.f32 %v82, %v423
  %425 = vdwg.mxu0
  %426 = vmatprep.subr.mxu0 %v60
  %427 = vmatpush1.msra.mxu0 %v59
  %428 = vmatprep.subr.mxu0 %v64
  %429 = vmatpush1.msra.mxu0 %v63
  %430 = vmatprep.subr.mxu0 %v68
  %431 = vmatpush1.msra.mxu0 %v67
  %432 = vmatprep.subr.mxu0 %v191
  %433 = vmatpush1.msra.mxu0 %v188
  %434 = vmatprep.subr.mxu0 0.0
  %435 = vmatpush1.msra.mxu0 0.0
  %436 = vmatprep.subr.mxu0 0.0
  %437 = vmatpush1.msra.mxu0 0.0
  %438 = vmatprep.subr.mxu0 0.0
  %439 = vmatpush1.msra.mxu0 0.0
  %440 = vmatprep.subr.mxu0 0.0
  %441 = vmatpush1.msra.mxu0 0.0
  %442 = vmatprep.subr.mxu0 0.0
  %443 = vmatpush1.msra.mxu0 0.0
  %444 = vmatprep.subr.mxu0 0.0
  %445 = vmatpush1.msra.mxu0 0.0
  %446 = vmatprep.subr.mxu0 0.0
  %447 = vmatpush1.msra.mxu0 0.0
  %448 = vmatprep.subr.mxu0 0.0
  %449 = vmatpush1.msra.mxu0 0.0
  %450 = vmatprep.subr.mxu0 0.0
  %451 = vmatpush1.msra.mxu0 0.0
  %452 = vmatprep.subr.mxu0 0.0
  %453 = vmatpush1.msra.mxu0 0.0
  %454 = vmatprep.subr.mxu0 0.0
  %455 = vmatpush1.msra.mxu0 0.0
  %456 = vmatprep.subr.mxu0 0.0
  %457 = vmatpush1.msra.mxu0 0.0
  %458 = vmatprep.subr.mxu0 0.0
  %459 = vmatpush1.msra.mxu0 0.0
  %460 = vmatprep.subr.mxu0 0.0
  %461 = vmatpush1.msra.mxu0 0.0
  %462 = vmatprep.subr.mxu0 0.0
  %463 = vmatpush1.msra.mxu0 0.0
  %464 = vmatprep.subr.mxu0 0.0
  %465 = vmatpush1.msra.mxu0 0.0
  %466 = vmatprep.subr.mxu0 0.0
  %467 = vmatpush1.msra.mxu0 0.0
  %468 = vmatprep.subr.mxu0 0.0
  %469 = vmatpush1.msra.mxu0 0.0
  %470 = vmatprep.subr.mxu0 0.0
  %471 = vmatpush1.msra.mxu0 0.0
  %472 = vmatprep.subr.mxu0 0.0
  %473 = vmatpush1.msra.mxu0 0.0
  %474 = vmatprep.subr.mxu0 0.0
  %475 = vmatpush1.msra.mxu0 0.0
  %476 = vmatprep.subr.mxu0 0.0
  %477 = vmatpush1.msra.mxu0 0.0
  %478 = vmatprep.subr.mxu0 0.0
  %479 = vmatpush1.msra.mxu0 0.0
  %480 = vmatprep.subr.mxu0 0.0
  %481 = vmatpush1.msra.mxu0 0.0
  %482 = vmatprep.subr.mxu0 0.0
  %483 = vmatpush1.msra.mxu0 0.0
  %484 = vmatprep.subr.mxu0 0.0
  %485 = vmatpush1.msra.mxu0 0.0
  %486 = vmatprep.subr.mxu0 0.0
  %487 = vmatpush1.msra.mxu0 0.0
  %488 = vmatprep.subr.mxu0 0.0
  %489 = vmatpush1.msra.mxu0 0.0
  %490 = vmatprep.mubr.f32.mxu0 0.0
  %491 = vmatmul.mubr.f32.gmra.mrb[0].mxu0 %v97
  %v492 = vpop.f32.mrb[0].mxu0
  %v493 = vpop.f32.mrb[0].mxu0
  %494 = vmatprep.mubr.f32.mxu0 0.0
  %495 = vmatmul.mubr.f32.gmra.mrb[0].mxu0 %v100
  %v496 = vpop.f32.mrb[0].mxu0
  %v497 = vadd.f32 %v86, %v496
  %v498 = vpop.f32.mrb[0].mxu0
  %v499 = vadd.f32 %v90, %v498
  %500 = vmatprep.mubr.f32.mxu0 0.0
  %501 = vmatmul.mubr.f32.gmra.mrb[0].mxu0 %v103
  %v502 = vpop.f32.mrb[0].mxu0
  %v503 = vadd.f32 %v86, %v502
  %v504 = vpop.f32.mrb[0].mxu0
  %v505 = vadd.f32 %v90, %v504
  %506 = vmatprep.mubr.f32.mxu0 0.0
  %507 = vmatmul.mubr.f32.gmra.mrb[0].mxu0 %v106
  %v508 = vpop.f32.mrb[0].mxu0
  %v509 = vadd.f32 %v86, %v508
  %v510 = vpop.f32.mrb[0].mxu0
  %v511 = vadd.f32 %v90, %v510
  %512 = vmatprep.mubr.f32.mxu0 0.0
  %513 = vmatmul.mubr.f32.gmra.mrb[0].mxu0 %v109
  %v514 = vpop.f32.mrb[0].mxu0
  %v515 = vadd.f32 %v86, %v514
  %v516 = vpop.f32.mrb[0].mxu0
  %v517 = vadd.f32 %v90, %v516
  %518 = vmatprep.mubr.f32.mxu0 0.0
  %519 = vmatmul.mubr.f32.gmra.mrb[0].mxu0 %v112
  %v520 = vpop.f32.mrb[0].mxu0
  %v521 = vadd.f32 %v86, %v520
  %v522 = vpop.f32.mrb[0].mxu0
  %v523 = vadd.f32 %v90, %v522
  %524 = vmatprep.mubr.f32.mxu0 0.0
  %525 = vmatmul.mubr.f32.gmra.mrb[0].mxu0 %v115
  %v526 = vpop.f32.mrb[0].mxu0
  %v527 = vadd.f32 %v86, %v526
  %v528 = vpop.f32.mrb[0].mxu0
  %v529 = vadd.f32 %v90, %v528
  %530 = vmatprep.mubr.f32.mxu0 0.0
  %531 = vmatmul.mubr.f32.gmra.mrb[0].mxu0 %v118
  %v532 = vpop.f32.mrb[0].mxu0
  %v533 = vadd.f32 %v86, %v532
  %v534 = vpop.f32.mrb[0].mxu0
  %v535 = vadd.f32 %v90, %v534
  %536 = vmatprep.mubr.f32.mxu0 0.0
  %537 = vmatmul.mubr.f32.gmra.mrb[0].mxu0 %v121
  %v538 = vpop.f32.mrb[0].mxu0
  %v539 = vadd.f32 %v86, %v538
  %v540 = vpop.f32.mrb[0].mxu0
  %v541 = vadd.f32 %v90, %v540
  %542 = vmatprep.mubr.f32.mxu0 0.0
  %543 = vmatmul.mubr.f32.gmra.mrb[0].mxu0 %v124
  %v544 = vpop.f32.mrb[0].mxu0
  %v545 = vadd.f32 %v86, %v544
  %v546 = vpop.f32.mrb[0].mxu0
  %v547 = vadd.f32 %v90, %v546
  %548 = vmatprep.mubr.f32.mxu0 0.0
  %549 = vmatmul.mubr.f32.gmra.mrb[0].mxu0 %v127
  %v550 = vpop.f32.mrb[0].mxu0
  %v551 = vadd.f32 %v86, %v550
  %v552 = vpop.f32.mrb[0].mxu0
  %v553 = vadd.f32 %v90, %v552
  %554 = vmatprep.mubr.f32.mxu0 0.0
  %555 = vmatmul.mubr.f32.gmra.mrb[0].mxu0 %v130
  %v556 = vpop.f32.mrb[0].mxu0
  %v557 = vadd.f32 %v86, %v556
  %v558 = vpop.f32.mrb[0].mxu0
  %v559 = vadd.f32 %v90, %v558
  %560 = vmatprep.mubr.f32.mxu0 0.0
  %561 = vmatmul.mubr.f32.gmra.mrb[0].mxu0 %v133
  %v562 = vpop.f32.mrb[0].mxu0
  %v563 = vadd.f32 %v86, %v562
  %v564 = vpop.f32.mrb[0].mxu0
  %v565 = vadd.f32 %v90, %v564
  %566 = vmatprep.mubr.f32.mxu0 0.0
  %567 = vmatmul.mubr.f32.gmra.mrb[0].mxu0 %v136
  %v568 = vpop.f32.mrb[0].mxu0
  %v569 = vadd.f32 %v86, %v568
  %v570 = vpop.f32.mrb[0].mxu0
  %v571 = vadd.f32 %v90, %v570
  %572 = vmatprep.mubr.f32.mxu0 0.0
  %573 = vmatmul.mubr.f32.gmra.mrb[0].mxu0 %v139
  %v574 = vpop.f32.mrb[0].mxu0
  %v575 = vadd.f32 %v86, %v574
  %v576 = vpop.f32.mrb[0].mxu0
  %v577 = vadd.f32 %v90, %v576
  %578 = vmatprep.mubr.f32.mxu0 0.0
  %579 = vmatmul.mubr.f32.gmra.mrb[0].mxu0 %v142
  %v580 = vpop.f32.mrb[0].mxu0
  %v581 = vadd.f32 %v86, %v580
  %v582 = vpop.f32.mrb[0].mxu0
  %v583 = vadd.f32 %v90, %v582
  %584 = vmatprep.mubr.f32.mxu0 0.0
  %585 = vmatmul.mubr.f32.gmra.mrb[0].mxu0 %v145
  %v586 = vpop.f32.mrb[0].mxu0
  %v587 = vadd.f32 %v86, %v586
  %v588 = vpop.f32.mrb[0].mxu0
  %v589 = vadd.f32 %v90, %v588
  %590 = vmatprep.mubr.f32.mxu0 0.0
  %591 = vmatmul.mubr.f32.gmra.mrb[0].mxu0 %v148
  %v592 = vpop.f32.mrb[0].mxu0
  %v593 = vadd.f32 %v86, %v592
  %v594 = vpop.f32.mrb[0].mxu0
  %v595 = vadd.f32 %v90, %v594
  %596 = vmatprep.mubr.f32.mxu0 0.0
  %597 = vmatmul.mubr.f32.gmra.mrb[0].mxu0 %v151
  %v598 = vpop.f32.mrb[0].mxu0
  %v599 = vadd.f32 %v86, %v598
  %v600 = vpop.f32.mrb[0].mxu0
  %v601 = vadd.f32 %v90, %v600
  %602 = vmatprep.mubr.f32.mxu0 0.0
  %603 = vmatmul.mubr.f32.gmra.mrb[0].mxu0 %v154
  %v604 = vpop.f32.mrb[0].mxu0
  %v605 = vadd.f32 %v86, %v604
  %v606 = vpop.f32.mrb[0].mxu0
  %v607 = vadd.f32 %v90, %v606
  %608 = vmatprep.mubr.f32.mxu0 0.0
  %609 = vmatmul.mubr.f32.gmra.mrb[0].mxu0 %v157
  %v610 = vpop.f32.mrb[0].mxu0
  %v611 = vadd.f32 %v86, %v610
  %v612 = vpop.f32.mrb[0].mxu0
  %v613 = vadd.f32 %v90, %v612
  %614 = vmatprep.mubr.f32.mxu0 0.0
  %615 = vmatmul.mubr.f32.gmra.mrb[0].mxu0 %v160
  %v616 = vpop.f32.mrb[0].mxu0
  %v617 = vadd.f32 %v86, %v616
  %v618 = vpop.f32.mrb[0].mxu0
  %v619 = vadd.f32 %v90, %v618
  %620 = vmatprep.mubr.f32.mxu0 0.0
  %621 = vmatmul.mubr.f32.gmra.mrb[0].mxu0 %v163
  %v622 = vpop.f32.mrb[0].mxu0
  %v623 = vadd.f32 %v86, %v622
  %v624 = vpop.f32.mrb[0].mxu0
  %v625 = vadd.f32 %v90, %v624
  %626 = vmatprep.mubr.f32.mxu0 0.0
  %627 = vmatmul.mubr.f32.gmra.mrb[0].mxu0 %v166
  %v628 = vpop.f32.mrb[0].mxu0
  %v629 = vadd.f32 %v86, %v628
  %v630 = vpop.f32.mrb[0].mxu0
  %v631 = vadd.f32 %v90, %v630
  %632 = vmatprep.mubr.f32.mxu0 0.0
  %633 = vmatmul.mubr.f32.gmra.mrb[0].mxu0 %v169
  %v634 = vpop.f32.mrb[0].mxu0
  %v635 = vadd.f32 %v86, %v634
  %v636 = vpop.f32.mrb[0].mxu0
  %v637 = vadd.f32 %v90, %v636
  %638 = vmatprep.mubr.f32.mxu0 0.0
  %639 = vmatmul.mubr.f32.gmra.mrb[0].mxu0 %v172
  %v640 = vpop.f32.mrb[0].mxu0
  %v641 = vadd.f32 %v86, %v640
  %v642 = vpop.f32.mrb[0].mxu0
  %v643 = vadd.f32 %v90, %v642
  %644 = vmatprep.mubr.f32.mxu0 0.0
  %645 = vmatmul.mubr.f32.gmra.mrb[0].mxu0 %v175
  %v646 = vpop.f32.mrb[0].mxu0
  %v647 = vadd.f32 %v86, %v646
  %v648 = vpop.f32.mrb[0].mxu0
  %v649 = vadd.f32 %v90, %v648
  %650 = vmatprep.mubr.f32.mxu0 0.0
  %651 = vmatmul.mubr.f32.gmra.mrb[0].mxu0 %v178
  %v652 = vpop.f32.mrb[0].mxu0
  %v653 = vadd.f32 %v86, %v652
  %v654 = vpop.f32.mrb[0].mxu0
  %v655 = vadd.f32 %v90, %v654
  %656 = vdwg.mxu0
  %v657 = vld [vmem:[%s3] sm:$0xff]
  %v658 = vld [vmem:[%s3 + $0x8] sm:$0xff]
  %v659 = vld [vmem:[%s3 + $0x10] sm:$0xff]
  %v660 = vld [vmem:[%s3 + $0x18] sm:$0xff]
  %v661 = vld [vmem:[%s3 + $0x20] sm:$0xff]
  %v662 = vld [vmem:[%s3 + $0x28] sm:$0xff]
  %v663 = vld [vmem:[%s3 + $0x30] sm:$0xff]
  %v664 = vld [vmem:[%s3 + $0x38] sm:$0xff]
  %v665 = vld [vmem:[%s3 + $0x40] sm:$0xff]
  %v666 = vld [vmem:[%s3 + $0x48] sm:$0xff]
  %v667 = vld [vmem:[%s3 + $0x50] sm:$0xff]
  %v668 = vld [vmem:[%s3 + $0x58] sm:$0xff]
  %v669 = vld [vmem:[%s3 + $0x60] sm:$0xff]
  %v670 = vld [vmem:[%s3 + $0x68] sm:$0xff]
  %v671 = vld [vmem:[%s3 + $0x70] sm:$0xff]
  %v672 = vld [vmem:[%s3 + $0x78] sm:$0xff]
  %v673 = vld [vmem:[%s3 + $0x80] sm:$0xff]
  %v674 = vld [vmem:[%s3 + $0x88] sm:$0xff]
  %v675 = vld [vmem:[%s3 + $0x90] sm:$0xff]
  %v676 = vld [vmem:[%s3 + $0x98] sm:$0xff]
  %v677 = vld [vmem:[%s3 + $0xa0] sm:$0xff]
  %v678 = vld [vmem:[%s3 + $0xa8] sm:$0xff]
  %v679 = vld [vmem:[%s3 + $0xb0] sm:$0xff]
  %v680 = vld [vmem:[%s3 + $0xb8] sm:$0xff]
  %v681 = vld [vmem:[%s3 + $0xc0] sm:$0xff]
  %v682 = vld [vmem:[%s3 + $0xc8] sm:$0xff]
  %v683 = vld [vmem:[%s3 + $0xd0] sm:$0xff]
  %v684 = vld [vmem:[%s3 + $0xd8] sm:$0xff]
  %v685 = vld [vmem:[%s3 + $0xe0] sm:$0xff]
  %v686 = vld [vmem:[%s3 + $0xe8] sm:$0xff]
  %v687 = vld [vmem:[%s3 + $0xf0] sm:$0xff]
  %v688 = vld [vmem:[%s3 + $0xf8] sm:$0xff]
  %v689 = vld [vmem:[%s3 + $0x100] sm:$0xff]
  %v690 = vld [vmem:[%s3 + $0x108] sm:$0xff]
  %v691 = vld [vmem:[%s3 + $0x110] sm:$0xff]
  %v692 = vld [vmem:[%s3 + $0x118] sm:$0xff]
  %v693 = vld [vmem:[%s3 + $0x120] sm:$0xff]
  %v694 = vld [vmem:[%s3 + $0x128] sm:$0xff]
  %v695 = vld [vmem:[%s3 + $0x130] sm:$0xff]
  %v696 = vld [vmem:[%s3 + $0x138] sm:$0xff]
  %v697 = vld [vmem:[%s3 + $0x140] sm:$0xff]
  %v698 = vld [vmem:[%s3 + $0x148] sm:$0xff]
  %v699 = vld [vmem:[%s3 + $0x150] sm:$0xff]
  %v700 = vld [vmem:[%s3 + $0x158] sm:$0xff]
  %v701 = vld [vmem:[%s3 + $0x160] sm:$0xff]
  %v702 = vld [vmem:[%s3 + $0x168] sm:$0xff]
  %v703 = vld [vmem:[%s3 + $0x170] sm:$0xff]
  %v704 = vld [vmem:[%s3 + $0x178] sm:$0xff]
  %v705 = vld [vmem:[%s3 + $0x180] sm:$0xff]
  %v706 = vld [vmem:[%s3 + $0x188] sm:$0xff]
  %v707 = vld [vmem:[%s3 + $0x190] sm:$0xff]
  %v708 = vld [vmem:[%s3 + $0x198] sm:$0xff]
  %v709 = vld [vmem:[%s3 + $0x1a0] sm:$0xff]
  %v710 = vld [vmem:[%s3 + $0x1a8] sm:$0xff]
  %v711 = vld [vmem:[%s3 + $0x1b0] sm:$0xff]
  %v712 = vld [vmem:[%s3 + $0x1b8] sm:$0xff]
  %v713 = vld [vmem:[%s3 + $0x1c0] sm:$0xff]
  %v714 = vld [vmem:[%s3 + $0x1c8] sm:$0xff]
  %v715 = vld [vmem:[%s3 + $0x1d0] sm:$0xff]
  %v716 = vld [vmem:[%s3 + $0x1d8] sm:$0xff]
  %v717 = vld [vmem:[%s3 + $0x1e0] sm:$0xff]
  %v718 = vld [vmem:[%s3 + $0x1e8] sm:$0xff]
  %v719 = vld [vmem:[%s3 + $0x1f0] sm:$0xff]
  %v720 = vld [vmem:[%s3 + $0x1f8] sm:$0xff]
  %v721 = vld [vmem:[%s3 + $0x200] sm:$0xff]
  %v722 = vld [vmem:[%s3 + $0x208] sm:$0xff]
  %v723 = vld [vmem:[%s3 + $0x210] sm:$0xff]
  %v724 = vld [vmem:[%s3 + $0x218] sm:$0xff]
  %v725 = vld [vmem:[%s3 + $0x220] sm:$0xff]
  %v726 = vld [vmem:[%s3 + $0x228] sm:$0xff]
  %v727 = vld [vmem:[%s3 + $0x230] sm:$0xff]
  %v728 = vld [vmem:[%s3 + $0x238] sm:$0xff]
  %v729 = vld [vmem:[%s3 + $0x240] sm:$0xff]
  %v730 = vld [vmem:[%s3 + $0x248] sm:$0xff]
  %v731 = vld [vmem:[%s3 + $0x250] sm:$0xff]
  %v732 = vld [vmem:[%s3 + $0x258] sm:$0xff]
  %v733 = vld [vmem:[%s3 + $0x260] sm:$0xff]
  %v734 = vld [vmem:[%s3 + $0x268] sm:$0xff]
  %v735 = vld [vmem:[%s3 + $0x270] sm:$0xff]
  %v736 = vld [vmem:[%s3 + $0x278] sm:$0xff]
  %v737 = vld [vmem:[%s3 + $0x280] sm:$0xff]
  %v738 = vld [vmem:[%s3 + $0x288] sm:$0xff]
  %v739 = vld [vmem:[%s3 + $0x290] sm:$0xff]
  %v740 = vld [vmem:[%s3 + $0x298] sm:$0xff]
  %v741 = vld [vmem:[%s3 + $0x2a0] sm:$0xff]
  %v742 = vld [vmem:[%s3 + $0x2a8] sm:$0xff]
  %v743 = vld [vmem:[%s3 + $0x2b0] sm:$0xff]
  %v744 = vld [vmem:[%s3 + $0x2b8] sm:$0xff]
  %v745 = vld [vmem:[%s3 + $0x2c0] sm:$0xff]
  %v746 = vld [vmem:[%s3 + $0x2c8] sm:$0xff]
  %v747 = vld [vmem:[%s3 + $0x2d0] sm:$0xff]
  %v748 = vld [vmem:[%s3 + $0x2d8] sm:$0xff]
  %v749 = vld [vmem:[%s3 + $0x2e0] sm:$0xff]
  %v750 = vld [vmem:[%s3 + $0x2e8] sm:$0xff]
  %v751 = vld [vmem:[%s3 + $0x2f0] sm:$0xff]
  %v752 = vld [vmem:[%s3 + $0x2f8] sm:$0xff]
  %v753 = vld [vmem:[%s3 + $0x300] sm:$0xff]
  %v754 = vld [vmem:[%s3 + $0x308] sm:$0xff]
  %v755 = vld [vmem:[%s3 + $0x310] sm:$0xff]
  %v756 = vld [vmem:[%s3 + $0x318] sm:$0xff]
  %v757 = vld [vmem:[%s3 + $0x320] sm:$0xff]
  %v758 = vld [vmem:[%s3 + $0x328] sm:$0xff]
  %v759 = vld [vmem:[%s3 + $0x330] sm:$0xff]
  %v760 = vld [vmem:[%s3 + $0x338] sm:$0xff]
  %v761 = vld [vmem:[%s3 + $0x340] sm:$0xff]
  %v762 = vld [vmem:[%s3 + $0x348] sm:$0xff]
  %v763 = vld [vmem:[%s3 + $0x350] sm:$0xff]
  %v764 = vld [vmem:[%s3 + $0x358] sm:$0xff]
  %v765 = vld [vmem:[%s3 + $0x360] sm:$0xff]
  %v766 = vld [vmem:[%s3 + $0x368] sm:$0xff]
  %v767 = vld [vmem:[%s3 + $0x370] sm:$0xff]
  %v768 = vld [vmem:[%s3 + $0x378] sm:$0xff]
  %v769 = vld [vmem:[%s3 + $0x380] sm:$0xff]
  %v770 = vld [vmem:[%s3 + $0x388] sm:$0xff]
  %v771 = vld [vmem:[%s3 + $0x390] sm:$0xff]
  %v772 = vld [vmem:[%s3 + $0x398] sm:$0xff]
  %v773 = vld [vmem:[%s3 + $0x3a0] sm:$0xff]
  %v774 = vld [vmem:[%s3 + $0x3a8] sm:$0xff]
  %v775 = vld [vmem:[%s3 + $0x3b0] sm:$0xff]
  %v776 = vld [vmem:[%s3 + $0x3b8] sm:$0xff]
  %v777 = vld [vmem:[%s3 + $0x3c0] sm:$0xff]
  %v778 = vld [vmem:[%s3 + $0x3c8] sm:$0xff]
  %v779 = vld [vmem:[%s3 + $0x3d0] sm:$0xff]
  %v780 = vld [vmem:[%s3 + $0x3d8] sm:$0xff]
  %v781 = vld [vmem:[%s3 + $0x3e0] sm:$0xff]
  %v782 = vld [vmem:[%s3 + $0x3e8] sm:$0xff]
  %v783 = vld [vmem:[%s3 + $0x3f0] sm:$0xff]
  %v784 = vld [vmem:[%s3 + $0x3f8] sm:$0xff]
  %v785 = vld [vmem:[%s3 + $0x400] sm:$0xff]
  %v786 = vld [vmem:[%s3 + $0x408] sm:$0xff]
  %v787 = vld [vmem:[%s3 + $0x410] sm:$0xff]
  %v788 = vld [vmem:[%s3 + $0x418] sm:$0xff]
  %v789 = vld [vmem:[%s3 + $0x420] sm:$0xff]
  %v790 = vld [vmem:[%s3 + $0x428] sm:$0xff]
  %v791 = vld [vmem:[%s3 + $0x430] sm:$0xff]
  %v792 = vld [vmem:[%s3 + $0x438] sm:$0xff]
  %v793 = vld [vmem:[%s3 + $0x440] sm:$0xff]
  %v794 = vld [vmem:[%s3 + $0x448] sm:$0xff]
  %v795 = vld [vmem:[%s3 + $0x450] sm:$0xff]
  %v796 = vld [vmem:[%s3 + $0x458] sm:$0xff]
  %v797 = vld [vmem:[%s3 + $0x460] sm:$0xff]
  %v798 = vld [vmem:[%s3 + $0x468] sm:$0xff]
  %v799 = vld [vmem:[%s3 + $0x470] sm:$0xff]
  %v800 = vld [vmem:[%s3 + $0x478] sm:$0xff]
  %v801 = vld [vmem:[%s3 + $0x480] sm:$0xff]
  %v802 = vld [vmem:[%s3 + $0x488] sm:$0xff]
  %v803 = vld [vmem:[%s3 + $0x490] sm:$0xff]
  %v804 = vld [vmem:[%s3 + $0x498] sm:$0xff]
  %v805 = vld [vmem:[%s3 + $0x4a0] sm:$0xff]
  %v806 = vld [vmem:[%s3 + $0x4a8] sm:$0xff]
  %v807 = vld [vmem:[%s3 + $0x4b0] sm:$0xff]
  %v808 = vld [vmem:[%s3 + $0x4b8] sm:$0xff]
  %v809 = vld [vmem:[%s3 + $0x4c0] sm:$0xff]
  %v810 = vld [vmem:[%s3 + $0x4c8] sm:$0xff]
  %v811 = vld [vmem:[%s3 + $0x4d0] sm:$0xff]
  %v812 = vld [vmem:[%s3 + $0x4d8] sm:$0xff]
  %v813 = vld [vmem:[%s3 + $0x4e0] sm:$0xff]
  %v814 = vld [vmem:[%s3 + $0x4e8] sm:$0xff]
  %v815 = vld [vmem:[%s3 + $0x4f0] sm:$0xff]
  %v816 = vld [vmem:[%s3 + $0x4f8] sm:$0xff]
  %v817 = vld [vmem:[%s3 + $0x500] sm:$0xff]
  %v818 = vld [vmem:[%s3 + $0x508] sm:$0xff]
  %v819 = vld [vmem:[%s3 + $0x510] sm:$0xff]
  %v820 = vld [vmem:[%s3 + $0x518] sm:$0xff]
  %v821 = vld [vmem:[%s3 + $0x520] sm:$0xff]
  %v822 = vld [vmem:[%s3 + $0x528] sm:$0xff]
  %v823 = vld [vmem:[%s3 + $0x530] sm:$0xff]
  %v824 = vld [vmem:[%s3 + $0x538] sm:$0xff]
  %v825 = vld [vmem:[%s3 + $0x540] sm:$0xff]
  %v826 = vld [vmem:[%s3 + $0x548] sm:$0xff]
  %v827 = vld [vmem:[%s3 + $0x550] sm:$0xff]
  %v828 = vld [vmem:[%s3 + $0x558] sm:$0xff]
  %v829 = vld [vmem:[%s3 + $0x560] sm:$0xff]
  %v830 = vld [vmem:[%s3 + $0x568] sm:$0xff]
  %v831 = vld [vmem:[%s3 + $0x570] sm:$0xff]
  %v832 = vld [vmem:[%s3 + $0x578] sm:$0xff]
  %v833 = vld [vmem:[%s3 + $0x580] sm:$0xff]
  %v834 = vld [vmem:[%s3 + $0x588] sm:$0xff]
  %v835 = vld [vmem:[%s3 + $0x590] sm:$0xff]
  %v836 = vld [vmem:[%s3 + $0x598] sm:$0xff]
  %v837 = vld [vmem:[%s3 + $0x5a0] sm:$0xff]
  %v838 = vld [vmem:[%s3 + $0x5a8] sm:$0xff]
  %v839 = vld [vmem:[%s3 + $0x5b0] sm:$0xff]
  %v840 = vld [vmem:[%s3 + $0x5b8] sm:$0xff]
  %v841 = vld [vmem:[%s3 + $0x5c0] sm:$0xff]
  %v842 = vld [vmem:[%s3 + $0x5c8] sm:$0xff]
  %v843 = vld [vmem:[%s3 + $0x5d0] sm:$0xff]
  %v844 = vld [vmem:[%s3 + $0x5d8] sm:$0xff]
  %v845 = vld [vmem:[%s3 + $0x5e0] sm:$0xff]
  %v846 = vld [vmem:[%s3 + $0x5e8] sm:$0xff]
  %v847 = vld [vmem:[%s3 + $0x5f0] sm:$0xff]
  %v848 = vld [vmem:[%s3 + $0x5f8] sm:$0xff]
  %v849 = vld [vmem:[%s3 + $0x600] sm:$0xff]
  %v850 = vld [vmem:[%s3 + $0x608] sm:$0xff]
  %v851 = vld [vmem:[%s3 + $0x610] sm:$0xff]
  %v852 = vld [vmem:[%s3 + $0x618] sm:$0xff]
  %v853 = vld [vmem:[%s3 + $0x620] sm:$0xff]
  %v854 = vld [vmem:[%s3 + $0x628] sm:$0xff]
  %v855 = vld [vmem:[%s3 + $0x630] sm:$0xff]
  %v856 = vld [vmem:[%s3 + $0x638] sm:$0xff]
  %v857 = vld [vmem:[%s3 + $0x640] sm:$0xff]
  %v858 = vld [vmem:[%s3 + $0x648] sm:$0xff]
  %v859 = vld [vmem:[%s3 + $0x650] sm:$0xff]
  %v860 = vld [vmem:[%s3 + $0x658] sm:$0xff]
  %v861 = vld [vmem:[%s3 + $0x660] sm:$0xff]
  %v862 = vld [vmem:[%s3 + $0x668] sm:$0xff]
  %v863 = vld [vmem:[%s3 + $0x670] sm:$0xff]
  %v864 = vld [vmem:[%s3 + $0x678] sm:$0xff]
  %v865 = vld [vmem:[%s3 + $0x680] sm:$0xff]
  %v866 = vld [vmem:[%s3 + $0x688] sm:$0xff]
  %v867 = vld [vmem:[%s3 + $0x690] sm:$0xff]
  %v868 = vld [vmem:[%s3 + $0x698] sm:$0xff]
  %v869 = vld [vmem:[%s3 + $0x6a0] sm:$0xff]
  %v870 = vld [vmem:[%s3 + $0x6a8] sm:$0xff]
  %v871 = vld [vmem:[%s3 + $0x6b0] sm:$0xff]
  %v872 = vld [vmem:[%s3 + $0x6b8] sm:$0xff]
  %v873 = vld [vmem:[%s3 + $0x6c0] sm:$0xff]
  %v874 = vld [vmem:[%s3 + $0x6c8] sm:$0xff]
  %v875 = vld [vmem:[%s3 + $0x6d0] sm:$0xff]
  %v876 = vld [vmem:[%s3 + $0x6d8] sm:$0xff]
  %v877 = vld [vmem:[%s3 + $0x6e0] sm:$0xff]
  %v878 = vld [vmem:[%s3 + $0x6e8] sm:$0xff]
  %v879 = vld [vmem:[%s3 + $0x6f0] sm:$0xff]
  %v880 = vld [vmem:[%s3 + $0x6f8] sm:$0xff]
  %v881 = vld [vmem:[%s3 + $0x700] sm:$0xff]
  %v882 = vld [vmem:[%s3 + $0x708] sm:$0xff]
  %v883 = vld [vmem:[%s3 + $0x710] sm:$0xff]
  %v884 = vld [vmem:[%s3 + $0x718] sm:$0xff]
  %v885 = vld [vmem:[%s3 + $0x720] sm:$0xff]
  %v886 = vld [vmem:[%s3 + $0x728] sm:$0xff]
  %v887 = vld [vmem:[%s3 + $0x730] sm:$0xff]
  %v888 = vld [vmem:[%s3 + $0x738] sm:$0xff]
  %v889 = vld [vmem:[%s3 + $0x740] sm:$0xff]
  %v890 = vld [vmem:[%s3 + $0x748] sm:$0xff]
  %v891 = vld [vmem:[%s3 + $0x750] sm:$0xff]
  %v892 = vld [vmem:[%s3 + $0x758] sm:$0xff]
  %v893 = vld [vmem:[%s3 + $0x760] sm:$0xff]
  %v894 = vld [vmem:[%s3 + $0x768] sm:$0xff]
  %v895 = vld [vmem:[%s3 + $0x770] sm:$0xff]
  %v896 = vld [vmem:[%s3 + $0x778] sm:$0xff]
  %v897 = vld [vmem:[%s3 + $0x780] sm:$0xff]
  %v898 = vld [vmem:[%s3 + $0x788] sm:$0xff]
  %v899 = vld [vmem:[%s3 + $0x790] sm:$0xff]
  %v900 = vld [vmem:[%s3 + $0x798] sm:$0xff]
  %v901 = vld [vmem:[%s3 + $0x7a0] sm:$0xff]
  %v902 = vld [vmem:[%s3 + $0x7a8] sm:$0xff]
  %v903 = vld [vmem:[%s3 + $0x7b0] sm:$0xff]
  %v904 = vld [vmem:[%s3 + $0x7b8] sm:$0xff]
  %v905 = vld [vmem:[%s3 + $0x7c0] sm:$0xff]
  %v906 = vld [vmem:[%s3 + $0x7c8] sm:$0xff]
  %v907 = vld [vmem:[%s3 + $0x7d0] sm:$0xff]
  %v908 = vld [vmem:[%s3 + $0x7d8] sm:$0xff]
  %v909 = vld [vmem:[%s3 + $0x7e0] sm:$0xff]
  %v910 = vld [vmem:[%s3 + $0x7e8] sm:$0xff]
  %v911 = vld [vmem:[%s3 + $0x7f0] sm:$0xff]
  %v912 = vld [vmem:[%s3 + $0x7f8] sm:$0xff]
  %v913 = vtanh.pop %v260
  %v914 = vtanh.pop %v262
  %915 = vmatprep.subr.mxu0 %v658
  %916 = vmatpush1.msra.mxu0 %v657
  %917 = vmatprep.subr.mxu0 %v662
  %918 = vmatpush1.msra.mxu0 %v661
  %919 = vmatprep.subr.mxu0 %v666
  %920 = vmatpush1.msra.mxu0 %v665
  %921 = vmatprep.subr.mxu0 %v670
  %922 = vmatpush1.msra.mxu0 %v669
  %923 = vmatprep.subr.mxu0 %v674
  %924 = vmatpush1.msra.mxu0 %v673
  %925 = vmatprep.subr.mxu0 %v678
  %926 = vmatpush1.msra.mxu0 %v677
  %927 = vmatprep.subr.mxu0 %v682
  %928 = vmatpush1.msra.mxu0 %v681
  %929 = vmatprep.subr.mxu0 %v686
  %930 = vmatpush1.msra.mxu0 %v685
  %931 = vmatprep.subr.mxu0 %v690
  %932 = vmatpush1.msra.mxu0 %v689
  %933 = vmatprep.subr.mxu0 %v694
  %934 = vmatpush1.msra.mxu0 %v693
  %935 = vmatprep.subr.mxu0 %v698
  %936 = vmatpush1.msra.mxu0 %v697
  %937 = vmatprep.subr.mxu0 %v702
  %938 = vmatpush1.msra.mxu0 %v701
  %939 = vmatprep.subr.mxu0 %v706
  %940 = vmatpush1.msra.mxu0 %v705
  %941 = vmatprep.subr.mxu0 %v710
  %942 = vmatpush1.msra.mxu0 %v709
  %943 = vmatprep.subr.mxu0 %v714
  %944 = vmatpush1.msra.mxu0 %v713
  %945 = vmatprep.subr.mxu0 %v718
  %946 = vmatpush1.msra.mxu0 %v717
  %947 = vmatprep.subr.mxu0 %v722
  %948 = vmatpush1.msra.mxu0 %v721
  %949 = vmatprep.subr.mxu0 %v726
  %950 = vmatpush1.msra.mxu0 %v725
  %951 = vmatprep.subr.mxu0 %v730
  %952 = vmatpush1.msra.mxu0 %v729
  %953 = vmatprep.subr.mxu0 %v734
  %954 = vmatpush1.msra.mxu0 %v733
  %955 = vmatprep.subr.mxu0 %v738
  %956 = vmatpush1.msra.mxu0 %v737
  %957 = vmatprep.subr.mxu0 %v742
  %958 = vmatpush1.msra.mxu0 %v741
  %959 = vmatprep.subr.mxu0 %v746
  %960 = vmatpush1.msra.mxu0 %v745
  %961 = vmatprep.subr.mxu0 %v750
  %962 = vmatpush1.msra.mxu0 %v749
  %963 = vmatprep.subr.mxu0 %v754
  %964 = vmatpush1.msra.mxu0 %v753
  %965 = vmatprep.subr.mxu0 %v758
  %966 = vmatpush1.msra.mxu0 %v757
  %967 = vmatprep.subr.mxu0 %v762
  %968 = vmatpush1.msra.mxu0 %v761
  %969 = vmatprep.subr.mxu0 %v766
  %970 = vmatpush1.msra.mxu0 %v765
  %971 = vmatprep.subr.mxu0 %v770
  %972 = vmatpush1.msra.mxu0 %v769
  %973 = vmatprep.subr.mxu0 %v774
  %974 = vmatpush1.msra.mxu0 %v773
  %975 = vmatprep.subr.mxu0 %v778
  %976 = vmatpush1.msra.mxu0 %v777
  %977 = vmatprep.subr.mxu0 %v782
  %978 = vmatpush1.msra.mxu0 %v781
  %979 = vmatprep.mubr.f32.mxu0 %v914
  %980 = vmatmul.mubr.f32.gmra.mrb[0].mxu0 %v913
  %v981 = vpop.f32.mrb[0].mxu0
  %v982 = vadd.f32 %v266, %v981
  %v983 = vpop.f32.mrb[0].mxu0
  %v984 = vadd.f32 %v268, %v983
  %985 = vdwg.mxu0
  %986 = vmatprep.subr.mxu0 %v786
  %987 = vmatpush1.msra.mxu0 %v785
  %988 = vmatprep.subr.mxu0 %v790
  %989 = vmatpush1.msra.mxu0 %v789
  %990 = vmatprep.subr.mxu0 %v794
  %991 = vmatpush1.msra.mxu0 %v793
  %992 = vmatprep.subr.mxu0 %v798
  %993 = vmatpush1.msra.mxu0 %v797
  %994 = vmatprep.subr.mxu0 %v802
  %995 = vmatpush1.msra.mxu0 %v801
  %996 = vmatprep.subr.mxu0 %v806
  %997 = vmatpush1.msra.mxu0 %v805
  %998 = vmatprep.subr.mxu0 %v810
  %999 = vmatpush1.msra.mxu0 %v809
  %1000 = vmatprep.subr.mxu0 %v814
  %1001 = vmatpush1.msra.mxu0 %v813
  %1002 = vmatprep.subr.mxu0 %v818
  %1003 = vmatpush1.msra.mxu0 %v817
  %1004 = vmatprep.subr.mxu0 %v822
  %1005 = vmatpush1.msra.mxu0 %v821
  %1006 = vmatprep.subr.mxu0 %v826
  %1007 = vmatpush1.msra.mxu0 %v825
  %1008 = vmatprep.subr.mxu0 %v830
  %1009 = vmatpush1.msra.mxu0 %v829
  %1010 = vmatprep.subr.mxu0 %v834
  %1011 = vmatpush1.msra.mxu0 %v833
  %1012 = vmatprep.subr.mxu0 %v838
  %1013 = vmatpush1.msra.mxu0 %v837
  %1014 = vmatprep.subr.mxu0 %v842
  %1015 = vmatpush1.msra.mxu0 %v841
  %1016 = vmatprep.subr.mxu0 %v846
  %1017 = vmatpush1.msra.mxu0 %v845
  %1018 = vmatprep.subr.mxu0 %v850
  %1019 = vmatpush1.msra.mxu0 %v849
  %1020 = vmatprep.subr.mxu0 %v854
  %1021 = vmatpush1.msra.mxu0 %v853
  %1022 = vmatprep.subr.mxu0 %v858
  %1023 = vmatpush1.msra.mxu0 %v857
  %1024 = vmatprep.subr.mxu0 %v862
  %1025 = vmatpush1.msra.mxu0 %v861
  %1026 = vmatprep.subr.mxu0 %v866
  %1027 = vmatpush1.msra.mxu0 %v865
  %1028 = vmatprep.subr.mxu0 %v870
  %1029 = vmatpush1.msra.mxu0 %v869
  %1030 = vmatprep.subr.mxu0 %v874
  %1031 = vmatpush1.msra.mxu0 %v873
  %1032 = vmatprep.subr.mxu0 %v878
  %1033 = vmatpush1.msra.mxu0 %v877
  %1034 = vmatprep.subr.mxu0 %v882
  %1035 = vmatpush1.msra.mxu0 %v881
  %1036 = vmatprep.subr.mxu0 %v886
  %1037 = vmatpush1.msra.mxu0 %v885
  %1038 = vmatprep.subr.mxu0 %v890
  %1039 = vmatpush1.msra.mxu0 %v889
  %1040 = vmatprep.subr.mxu0 %v894
  %1041 = vmatpush1.msra.mxu0 %v893
  %1042 = vmatprep.subr.mxu0 %v898
  %1043 = vmatpush1.msra.mxu0 %v897
  %1044 = vmatprep.subr.mxu0 %v902
  %1045 = vmatpush1.msra.mxu0 %v901
  %1046 = vmatprep.subr.mxu0 %v906
  %1047 = vmatpush1.msra.mxu0 %v905
  %1048 = vmatprep.subr.mxu0 %v910
  %1049 = vmatpush1.msra.mxu0 %v909
  %1050 = vmatprep.mubr.f32.mxu0 0.0
  %1051 = vmatmul.mubr.f32.gmra.mrb[0].mxu0 0.0
  %v1052 = vpop.f32.mrb[0].mxu0
  %v1053 = vadd.f32 %v982, %v1052
  %v1054 = vpop.f32.mrb[0].mxu0
  %v1055 = vadd.f32 %v984, %v1054
  %1056 = vdwg.mxu0
  %1057 = vmatprep.subr.mxu0 %v660
  %1058 = vmatpush1.msra.mxu0 %v659
  %1059 = vmatprep.subr.mxu0 %v664
  %1060 = vmatpush1.msra.mxu0 %v663
  %1061 = vmatprep.subr.mxu0 %v668
  %1062 = vmatpush1.msra.mxu0 %v667
  %1063 = vmatprep.subr.mxu0 %v672
  %1064 = vmatpush1.msra.mxu0 %v671
  %1065 = vmatprep.subr.mxu0 %v676
  %1066 = vmatpush1.msra.mxu0 %v675
  %1067 = vmatprep.subr.mxu0 %v680
  %1068 = vmatpush1.msra.mxu0 %v679
  %1069 = vmatprep.subr.mxu0 %v684
  %1070 = vmatpush1.msra.mxu0 %v683
  %1071 = vmatprep.subr.mxu0 %v688
  %1072 = vmatpush1.msra.mxu0 %v687
  %1073 = vmatprep.subr.mxu0 %v692
  %1074 = vmatpush1.msra.mxu0 %v691
  %1075 = vmatprep.subr.mxu0 %v696
  %1076 = vmatpush1.msra.mxu0 %v695
  %1077 = vmatprep.subr.mxu0 %v700
  %1078 = vmatpush1.msra.mxu0 %v699
  %1079 = vmatprep.subr.mxu0 %v704
  %1080 = vmatpush1.msra.mxu0 %v703
  %1081 = vmatprep.subr.mxu0 %v708
  %1082 = vmatpush1.msra.mxu0 %v707
  %1083 = vmatprep.subr.mxu0 %v712
  %1084 = vmatpush1.msra.mxu0 %v711
  %1085 = vmatprep.subr.mxu0 %v716
  %1086 = vmatpush1.msra.mxu0 %v715
  %1087 = vmatprep.subr.mxu0 %v720
  %1088 = vmatpush1.msra.mxu0 %v719
  %1089 = vmatprep.subr.mxu0 %v724
  %1090 = vmatpush1.msra.mxu0 %v723
  %1091 = vmatprep.subr.mxu0 %v728
  %1092 = vmatpush1.msra.mxu0 %v727
  %1093 = vmatprep.subr.mxu0 %v732
  %1094 = vmatpush1.msra.mxu0 %v731
  %1095 = vmatprep.subr.mxu0 %v736
  %1096 = vmatpush1.msra.mxu0 %v735
  %1097 = vmatprep.subr.mxu0 %v740
  %1098 = vmatpush1.msra.mxu0 %v739
  %1099 = vmatprep.subr.mxu0 %v744
  %1100 = vmatpush1.msra.mxu0 %v743
  %1101 = vmatprep.subr.mxu0 %v748
  %1102 = vmatpush1.msra.mxu0 %v747
  %1103 = vmatprep.subr.mxu0 %v752
  %1104 = vmatpush1.msra.mxu0 %v751
  %1105 = vmatprep.subr.mxu0 %v756
  %1106 = vmatpush1.msra.mxu0 %v755
  %1107 = vmatprep.subr.mxu0 %v760
  %1108 = vmatpush1.msra.mxu0 %v759
  %1109 = vmatprep.subr.mxu0 %v764
  %1110 = vmatpush1.msra.mxu0 %v763
  %1111 = vmatprep.subr.mxu0 %v768
  %1112 = vmatpush1.msra.mxu0 %v767
  %1113 = vmatprep.subr.mxu0 %v772
  %1114 = vmatpush1.msra.mxu0 %v771
  %1115 = vmatprep.subr.mxu0 %v776
  %1116 = vmatpush1.msra.mxu0 %v775
  %1117 = vmatprep.subr.mxu0 %v780
  %1118 = vmatpush1.msra.mxu0 %v779
  %1119 = vmatprep.subr.mxu0 %v784
  %1120 = vmatpush1.msra.mxu0 %v783
  %1121 = vmatprep.mubr.f32.mxu0 %v914
  %1122 = vmatmul.mubr.f32.gmra.mrb[0].mxu0 %v913
  %v1123 = vpop.f32.mrb[0].mxu0
  %v1124 = vadd.f32 %v497, %v1123
  %v1125 = vpop.f32.mrb[0].mxu0
  %v1126 = vadd.f32 %v499, %v1125
  %1127 = vdwg.mxu0
  %1128 = vmatprep.subr.mxu0 %v788
  %1129 = vmatpush1.msra.mxu0 %v787
  %1130 = vmatprep.subr.mxu0 %v792
  %1131 = vmatpush1.msra.mxu0 %v791
  %1132 = vmatprep.subr.mxu0 %v796
  %1133 = vmatpush1.msra.mxu0 %v795
  %1134 = vmatprep.subr.mxu0 %v800
  %1135 = vmatpush1.msra.mxu0 %v799
  %1136 = vmatprep.subr.mxu0 %v804
  %1137 = vmatpush1.msra.mxu0 %v803
  %1138 = vmatprep.subr.mxu0 %v808
  %1139 = vmatpush1.msra.mxu0 %v807
  %1140 = vmatprep.subr.mxu0 %v812
  %1141 = vmatpush1.msra.mxu0 %v811
  %1142 = vmatprep.subr.mxu0 %v816
  %1143 = vmatpush1.msra.mxu0 %v815
  %1144 = vmatprep.subr.mxu0 %v820
  %1145 = vmatpush1.msra.mxu0 %v819
  %1146 = vmatprep.subr.mxu0 %v824
  %1147 = vmatpush1.msra.mxu0 %v823
  %1148 = vmatprep.subr.mxu0 %v828
  %1149 = vmatpush1.msra.mxu0 %v827
  %1150 = vmatprep.subr.mxu0 %v832
  %1151 = vmatpush1.msra.mxu0 %v831
  %1152 = vmatprep.subr.mxu0 %v836
  %1153 = vmatpush1.msra.mxu0 %v835
  %1154 = vmatprep.subr.mxu0 %v840
  %1155 = vmatpush1.msra.mxu0 %v839
  %1156 = vmatprep.subr.mxu0 %v844
  %1157 = vmatpush1.msra.mxu0 %v843
  %1158 = vmatprep.subr.mxu0 %v848
  %1159 = vmatpush1.msra.mxu0 %v847
  %1160 = vmatprep.subr.mxu0 %v852
  %1161 = vmatpush1.msra.mxu0 %v851
  %1162 = vmatprep.subr.mxu0 %v856
  %1163 = vmatpush1.msra.mxu0 %v855
  %1164 = vmatprep.subr.mxu0 %v860
  %1165 = vmatpush1.msra.mxu0 %v859
  %1166 = vmatprep.subr.mxu0 %v864
  %1167 = vmatpush1.msra.mxu0 %v863
  %1168 = vmatprep.subr.mxu0 %v868
  %1169 = vmatpush1.msra.mxu0 %v867
  %1170 = vmatprep.subr.mxu0 %v872
  %1171 = vmatpush1.msra.mxu0 %v871
  %1172 = vmatprep.subr.mxu0 %v876
  %1173 = vmatpush1.msra.mxu0 %v875
  %1174 = vmatprep.subr.mxu0 %v880
  %1175 = vmatpush1.msra.mxu0 %v879
  %1176 = vmatprep.subr.mxu0 %v884
  %1177 = vmatpush1.msra.mxu0 %v883
  %1178 = vmatprep.subr.mxu0 %v888
  %1179 = vmatpush1.msra.mxu0 %v887
  %1180 = vmatprep.subr.mxu0 %v892
  %1181 = vmatpush1.msra.mxu0 %v891
  %1182 = vmatprep.subr.mxu0 %v896
  %1183 = vmatpush1.msra.mxu0 %v895
  %1184 = vmatprep.subr.mxu0 %v900
  %1185 = vmatpush1.msra.mxu0 %v899
  %1186 = vmatprep.subr.mxu0 %v904
  %1187 = vmatpush1.msra.mxu0 %v903
  %1188 = vmatprep.subr.mxu0 %v908
  %1189 = vmatpush1.msra.mxu0 %v907
  %1190 = vmatprep.subr.mxu0 %v912
  %1191 = vmatpush1.msra.mxu0 %v911
  %1192 = vmatprep.mubr.f32.mxu0 0.0
  %1193 = vmatmul.mubr.f32.gmra.mrb[0].mxu0 0.0
  %v1194 = vpop.f32.mrb[0].mxu0
  %v1195 = vadd.f32 %v1124, %v1194
  %v1196 = vpop.f32.mrb[0].mxu0
  %v1197 = vadd.f32 %v1126, %v1196
  %1198 = vdwg.mxu0
  %v1199 = vtanh.pop %v1053
  %v1200 = vtanh.pop %v1055
  %v1201 = vtanh.pop %v1195
  %v1202 = vtanh.pop %v1197
  %1203 = vmatprep.subr.mxu0 %v658
  %1204 = vmatpush1.msra.mxu0 %v657
  %1205 = vmatprep.subr.mxu0 %v662
  %1206 = vmatpush1.msra.mxu0 %v661
  %1207 = vmatprep.subr.mxu0 %v666
  %1208 = vmatpush1.msra.mxu0 %v665
  %1209 = vmatprep.subr.mxu0 %v670
  %1210 = vmatpush1.msra.mxu0 %v669
  %1211 = vmatprep.subr.mxu0 %v674
  %1212 = vmatpush1.msra.mxu0 %v673
  %1213 = vmatprep.subr.mxu0 %v678
  %1214 = vmatpush1.msra.mxu0 %v677
  %1215 = vmatprep.subr.mxu0 %v682
  %1216 = vmatpush1.msra.mxu0 %v681
  %1217 = vmatprep.subr.mxu0 %v686
  %1218 = vmatpush1.msra.mxu0 %v685
  %1219 = vmatprep.subr.mxu0 %v690
  %1220 = vmatpush1.msra.mxu0 %v689
  %1221 = vmatprep.subr.mxu0 %v694
  %1222 = vmatpush1.msra.mxu0 %v693
  %1223 = vmatprep.subr.mxu0 %v698
  %1224 = vmatpush1.msra.mxu0 %v697
  %1225 = vmatprep.subr.mxu0 %v702
  %1226 = vmatpush1.msra.mxu0 %v701
  %1227 = vmatprep.subr.mxu0 %v706
  %1228 = vmatpush1.msra.mxu0 %v705
  %1229 = vmatprep.subr.mxu0 %v710
  %1230 = vmatpush1.msra.mxu0 %v709
  %1231 = vmatprep.subr.mxu0 %v714
  %1232 = vmatpush1.msra.mxu0 %v713
  %1233 = vmatprep.subr.mxu0 %v718
  %1234 = vmatpush1.msra.mxu0 %v717
  %1235 = vmatprep.subr.mxu0 %v722
  %1236 = vmatpush1.msra.mxu0 %v721
  %1237 = vmatprep.subr.mxu0 %v726
  %1238 = vmatpush1.msra.mxu0 %v725
  %1239 = vmatprep.subr.mxu0 %v730
  %1240 = vmatpush1.msra.mxu0 %v729
  %1241 = vmatprep.subr.mxu0 %v734
  %1242 = vmatpush1.msra.mxu0 %v733
  %1243 = vmatprep.subr.mxu0 %v738
  %1244 = vmatpush1.msra.mxu0 %v737
  %1245 = vmatprep.subr.mxu0 %v742
  %1246 = vmatpush1.msra.mxu0 %v741
  %1247 = vmatprep.subr.mxu0 %v746
  %1248 = vmatpush1.msra.mxu0 %v745
  %1249 = vmatprep.subr.mxu0 %v750
  %1250 = vmatpush1.msra.mxu0 %v749
  %1251 = vmatprep.subr.mxu0 %v754
  %1252 = vmatpush1.msra.mxu0 %v753
  %1253 = vmatprep.subr.mxu0 %v758
  %1254 = vmatpush1.msra.mxu0 %v757
  %1255 = vmatprep.subr.mxu0 %v762
  %1256 = vmatpush1.msra.mxu0 %v761
  %1257 = vmatprep.subr.mxu0 %v766
  %1258 = vmatpush1.msra.mxu0 %v765
  %1259 = vmatprep.subr.mxu0 %v770
  %1260 = vmatpush1.msra.mxu0 %v769
  %1261 = vmatprep.subr.mxu0 %v774
  %1262 = vmatpush1.msra.mxu0 %v773
  %1263 = vmatprep.subr.mxu0 %v778
  %1264 = vmatpush1.msra.mxu0 %v777
  %1265 = vmatprep.subr.mxu0 %v782
  %1266 = vmatpush1.msra.mxu0 %v781
  %1267 = vmatprep.mubr.f32.mxu0 %v1200
  %1268 = vmatmul.mubr.f32.gmra.mrb[0].mxu0 %v1199
  %v1269 = vpop.f32.mrb[0].mxu0
  %v1270 = vadd.f32 %v272, %v1269
  %v1271 = vpop.f32.mrb[0].mxu0
  %v1272 = vadd.f32 %v274, %v1271
  %1273 = vdwg.mxu0
  %1274 = vmatprep.subr.mxu0 %v786
  %1275 = vmatpush1.msra.mxu0 %v785
  %1276 = vmatprep.subr.mxu0 %v790
  %1277 = vmatpush1.msra.mxu0 %v789
  %1278 = vmatprep.subr.mxu0 %v794
  %1279 = vmatpush1.msra.mxu0 %v793
  %1280 = vmatprep.subr.mxu0 %v798
  %1281 = vmatpush1.msra.mxu0 %v797
  %1282 = vmatprep.subr.mxu0 %v802
  %1283 = vmatpush1.msra.mxu0 %v801
  %1284 = vmatprep.subr.mxu0 %v806
  %1285 = vmatpush1.msra.mxu0 %v805
  %1286 = vmatprep.subr.mxu0 %v810
  %1287 = vmatpush1.msra.mxu0 %v809
  %1288 = vmatprep.subr.mxu0 %v814
  %1289 = vmatpush1.msra.mxu0 %v813
  %1290 = vmatprep.subr.mxu0 %v818
  %1291 = vmatpush1.msra.mxu0 %v817
  %1292 = vmatprep.subr.mxu0 %v822
  %1293 = vmatpush1.msra.mxu0 %v821
  %1294 = vmatprep.subr.mxu0 %v826
  %1295 = vmatpush1.msra.mxu0 %v825
  %1296 = vmatprep.subr.mxu0 %v830
  %1297 = vmatpush1.msra.mxu0 %v829
  %1298 = vmatprep.subr.mxu0 %v834
  %1299 = vmatpush1.msra.mxu0 %v833
  %1300 = vmatprep.subr.mxu0 %v838
  %1301 = vmatpush1.msra.mxu0 %v837
  %1302 = vmatprep.subr.mxu0 %v842
  %1303 = vmatpush1.msra.mxu0 %v841
  %1304 = vmatprep.subr.mxu0 %v846
  %1305 = vmatpush1.msra.mxu0 %v845
  %1306 = vmatprep.subr.mxu0 %v850
  %1307 = vmatpush1.msra.mxu0 %v849
  %1308 = vmatprep.subr.mxu0 %v854
  %1309 = vmatpush1.msra.mxu0 %v853
  %1310 = vmatprep.subr.mxu0 %v858
  %1311 = vmatpush1.msra.mxu0 %v857
  %1312 = vmatprep.subr.mxu0 %v862
  %1313 = vmatpush1.msra.mxu0 %v861
  %1314 = vmatprep.subr.mxu0 %v866
  %1315 = vmatpush1.msra.mxu0 %v865
  %1316 = vmatprep.subr.mxu0 %v870
  %1317 = vmatpush1.msra.mxu0 %v869
  %1318 = vmatprep.subr.mxu0 %v874
  %1319 = vmatpush1.msra.mxu0 %v873
  %1320 = vmatprep.subr.mxu0 %v878
  %1321 = vmatpush1.msra.mxu0 %v877
  %1322 = vmatprep.subr.mxu0 %v882
  %1323 = vmatpush1.msra.mxu0 %v881
  %1324 = vmatprep.subr.mxu0 %v886
  %1325 = vmatpush1.msra.mxu0 %v885
  %1326 = vmatprep.subr.mxu0 %v890
  %1327 = vmatpush1.msra.mxu0 %v889
  %1328 = vmatprep.subr.mxu0 %v894
  %1329 = vmatpush1.msra.mxu0 %v893
  %1330 = vmatprep.subr.mxu0 %v898
  %1331 = vmatpush1.msra.mxu0 %v897
  %1332 = vmatprep.subr.mxu0 %v902
  %1333 = vmatpush1.msra.mxu0 %v901
  %1334 = vmatprep.subr.mxu0 %v906
  %1335 = vmatpush1.msra.mxu0 %v905
  %1336 = vmatprep.subr.mxu0 %v910
  %1337 = vmatpush1.msra.mxu0 %v909
  %1338 = vmatprep.mubr.f32.mxu0 %v1202
  %1339 = vmatmul.mubr.f32.gmra.mrb[0].mxu0 %v1201
  %v1340 = vpop.f32.mrb[0].mxu0
  %v1341 = vadd.f32 %v1270, %v1340
  %v1342 = vpop.f32.mrb[0].mxu0
  %v1343 = vadd.f32 %v1272, %v1342
  %1344 = vdwg.mxu0
  %1345 = vmatprep.subr.mxu0 %v660
  %1346 = vmatpush1.msra.mxu0 %v659
  %1347 = vmatprep.subr.mxu0 %v664
  %1348 = vmatpush1.msra.mxu0 %v663
  %1349 = vmatprep.subr.mxu0 %v668
  %1350 = vmatpush1.msra.mxu0 %v667
  %1351 = vmatprep.subr.mxu0 %v672
  %1352 = vmatpush1.msra.mxu0 %v671
  %1353 = vmatprep.subr.mxu0 %v676
  %1354 = vmatpush1.msra.mxu0 %v675
  %1355 = vmatprep.subr.mxu0 %v680
  %1356 = vmatpush1.msra.mxu0 %v679
  %1357 = vmatprep.subr.mxu0 %v684
  %1358 = vmatpush1.msra.mxu0 %v683
  %1359 = vmatprep.subr.mxu0 %v688
  %1360 = vmatpush1.msra.mxu0 %v687
  %1361 = vmatprep.subr.mxu0 %v692
  %1362 = vmatpush1.msra.mxu0 %v691
  %1363 = vmatprep.subr.mxu0 %v696
  %1364 = vmatpush1.msra.mxu0 %v695
  %1365 = vmatprep.subr.mxu0 %v700
  %1366 = vmatpush1.msra.mxu0 %v699
  %1367 = vmatprep.subr.mxu0 %v704
  %1368 = vmatpush1.msra.mxu0 %v703
  %1369 = vmatprep.subr.mxu0 %v708
  %1370 = vmatpush1.msra.mxu0 %v707
  %1371 = vmatprep.subr.mxu0 %v712
  %1372 = vmatpush1.msra.mxu0 %v711
  %1373 = vmatprep.subr.mxu0 %v716
  %1374 = vmatpush1.msra.mxu0 %v715
  %1375 = vmatprep.subr.mxu0 %v720
  %1376 = vmatpush1.msra.mxu0 %v719
  %1377 = vmatprep.subr.mxu0 %v724
  %1378 = vmatpush1.msra.mxu0 %v723
  %1379 = vmatprep.subr.mxu0 %v728
  %1380 = vmatpush1.msra.mxu0 %v727
  %1381 = vmatprep.subr.mxu0 %v732
  %1382 = vmatpush1.msra.mxu0 %v731
  %1383 = vmatprep.subr.mxu0 %v736
  %1384 = vmatpush1.msra.mxu0 %v735
  %1385 = vmatprep.subr.mxu0 %v740
  %1386 = vmatpush1.msra.mxu0 %v739
  %1387 = vmatprep.subr.mxu0 %v744
  %1388 = vmatpush1.msra.mxu0 %v743
  %1389 = vmatprep.subr.mxu0 %v748
  %1390 = vmatpush1.msra.mxu0 %v747
  %1391 = vmatprep.subr.mxu0 %v752
  %1392 = vmatpush1.msra.mxu0 %v751
  %1393 = vmatprep.subr.mxu0 %v756
  %1394 = vmatpush1.msra.mxu0 %v755
  %1395 = vmatprep.subr.mxu0 %v760
  %1396 = vmatpush1.msra.mxu0 %v759
  %1397 = vmatprep.subr.mxu0 %v764
  %1398 = vmatpush1.msra.mxu0 %v763
  %1399 = vmatprep.subr.mxu0 %v768
  %1400 = vmatpush1.msra.mxu0 %v767
  %1401 = vmatprep.subr.mxu0 %v772
  %1402 = vmatpush1.msra.mxu0 %v771
  %1403 = vmatprep.subr.mxu0 %v776
  %1404 = vmatpush1.msra.mxu0 %v775
  %1405 = vmatprep.subr.mxu0 %v780
  %1406 = vmatpush1.msra.mxu0 %v779
  %1407 = vmatprep.subr.mxu0 %v784
  %1408 = vmatpush1.msra.mxu0 %v783
  %1409 = vmatprep.mubr.f32.mxu0 %v1200
  %1410 = vmatmul.mubr.f32.gmra.mrb[0].mxu0 %v1199
  %v1411 = vpop.f32.mrb[0].mxu0
  %v1412 = vadd.f32 %v503, %v1411
  %v1413 = vpop.f32.mrb[0].mxu0
  %v1414 = vadd.f32 %v505, %v1413
  %1415 = vdwg.mxu0
  %1416 = vmatprep.subr.mxu0 %v788
  %1417 = vmatpush1.msra.mxu0 %v787
  %1418 = vmatprep.subr.mxu0 %v792
  %1419 = vmatpush1.msra.mxu0 %v791
  %1420 = vmatprep.subr.mxu0 %v796
  %1421 = vmatpush1.msra.mxu0 %v795
  %1422 = vmatprep.subr.mxu0 %v800
  %1423 = vmatpush1.msra.mxu0 %v799
  %1424 = vmatprep.subr.mxu0 %v804
  %1425 = vmatpush1.msra.mxu0 %v803
  %1426 = vmatprep.subr.mxu0 %v808
  %1427 = vmatpush1.msra.mxu0 %v807
  %1428 = vmatprep.subr.mxu0 %v812
  %1429 = vmatpush1.msra.mxu0 %v811
  %1430 = vmatprep.subr.mxu0 %v816
  %1431 = vmatpush1.msra.mxu0 %v815
  %1432 = vmatprep.subr.mxu0 %v820
  %1433 = vmatpush1.msra.mxu0 %v819
  %1434 = vmatprep.subr.mxu0 %v824
  %1435 = vmatpush1.msra.mxu0 %v823
  %1436 = vmatprep.subr.mxu0 %v828
  %1437 = vmatpush1.msra.mxu0 %v827
  %1438 = vmatprep.subr.mxu0 %v832
  %1439 = vmatpush1.msra.mxu0 %v831
  %1440 = vmatprep.subr.mxu0 %v836
  %1441 = vmatpush1.msra.mxu0 %v835
  %1442 = vmatprep.subr.mxu0 %v840
  %1443 = vmatpush1.msra.mxu0 %v839
  %1444 = vmatprep.subr.mxu0 %v844
  %1445 = vmatpush1.msra.mxu0 %v843
  %1446 = vmatprep.subr.mxu0 %v848
  %1447 = vmatpush1.msra.mxu0 %v847
  %1448 = vmatprep.subr.mxu0 %v852
  %1449 = vmatpush1.msra.mxu0 %v851
  %1450 = vmatprep.subr.mxu0 %v856
  %1451 = vmatpush1.msra.mxu0 %v855
  %1452 = vmatprep.subr.mxu0 %v860
  %1453 = vmatpush1.msra.mxu0 %v859
  %1454 = vmatprep.subr.mxu0 %v864
  %1455 = vmatpush1.msra.mxu0 %v863
  %1456 = vmatprep.subr.mxu0 %v868
  %1457 = vmatpush1.msra.mxu0 %v867
  %1458 = vmatprep.subr.mxu0 %v872
  %1459 = vmatpush1.msra.mxu0 %v871
  %1460 = vmatprep.subr.mxu0 %v876
  %1461 = vmatpush1.msra.mxu0 %v875
  %1462 = vmatprep.subr.mxu0 %v880
  %1463 = vmatpush1.msra.mxu0 %v879
  %1464 = vmatprep.subr.mxu0 %v884
  %1465 = vmatpush1.msra.mxu0 %v883
  %1466 = vmatprep.subr.mxu0 %v888
  %1467 = vmatpush1.msra.mxu0 %v887
  %1468 = vmatprep.subr.mxu0 %v892
  %1469 = vmatpush1.msra.mxu0 %v891
  %1470 = vmatprep.subr.mxu0 %v896
  %1471 = vmatpush1.msra.mxu0 %v895
  %1472 = vmatprep.subr.mxu0 %v900
  %1473 = vmatpush1.msra.mxu0 %v899
  %1474 = vmatprep.subr.mxu0 %v904
  %1475 = vmatpush1.msra.mxu0 %v903
  %1476 = vmatprep.subr.mxu0 %v908
  %1477 = vmatpush1.msra.mxu0 %v907
  %1478 = vmatprep.subr.mxu0 %v912
  %1479 = vmatpush1.msra.mxu0 %v911
  %1480 = vmatprep.mubr.f32.mxu0 %v1202
  %1481 = vmatmul.mubr.f32.gmra.mrb[0].mxu0 %v1201
  %v1482 = vpop.f32.mrb[0].mxu0
  %v1483 = vadd.f32 %v1412, %v1482
  %v1484 = vpop.f32.mrb[0].mxu0
  %v1485 = vadd.f32 %v1414, %v1484
  %1486 = vdwg.mxu0
  %v1487 = vtanh.pop %v1341
  %v1488 = vtanh.pop %v1343
  %v1489 = vtanh.pop %v1483
  %v1490 = vtanh.pop %v1485
  %1491 = vmatprep.subr.mxu0 %v658
  %1492 = vmatpush1.msra.mxu0 %v657
  %1493 = vmatprep.subr.mxu0 %v662
  %1494 = vmatpush1.msra.mxu0 %v661
  %1495 = vmatprep.subr.mxu0 %v666
  %1496 = vmatpush1.msra.mxu0 %v665
  %1497 = vmatprep.subr.mxu0 %v670
  %1498 = vmatpush1.msra.mxu0 %v669
  %1499 = vmatprep.subr.mxu0 %v674
  %1500 = vmatpush1.msra.mxu0 %v673
  %1501 = vmatprep.subr.mxu0 %v678
  %1502 = vmatpush1.msra.mxu0 %v677
  %1503 = vmatprep.subr.mxu0 %v682
  %1504 = vmatpush1.msra.mxu0 %v681
  %1505 = vmatprep.subr.mxu0 %v686
  %1506 = vmatpush1.msra.mxu0 %v685
  %1507 = vmatprep.subr.mxu0 %v690
  %1508 = vmatpush1.msra.mxu0 %v689
  %1509 = vmatprep.subr.mxu0 %v694
  %1510 = vmatpush1.msra.mxu0 %v693
  %1511 = vmatprep.subr.mxu0 %v698
  %1512 = vmatpush1.msra.mxu0 %v697
  %1513 = vmatprep.subr.mxu0 %v702
  %1514 = vmatpush1.msra.mxu0 %v701
  %1515 = vmatprep.subr.mxu0 %v706
  %1516 = vmatpush1.msra.mxu0 %v705
  %1517 = vmatprep.subr.mxu0 %v710
  %1518 = vmatpush1.msra.mxu0 %v709
  %1519 = vmatprep.subr.mxu0 %v714
  %1520 = vmatpush1.msra.mxu0 %v713
  %1521 = vmatprep.subr.mxu0 %v718
  %1522 = vmatpush1.msra.mxu0 %v717
  %1523 = vmatprep.subr.mxu0 %v722
  %1524 = vmatpush1.msra.mxu0 %v721
  %1525 = vmatprep.subr.mxu0 %v726
  %1526 = vmatpush1.msra.mxu0 %v725
  %1527 = vmatprep.subr.mxu0 %v730
  %1528 = vmatpush1.msra.mxu0 %v729
  %1529 = vmatprep.subr.mxu0 %v734
  %1530 = vmatpush1.msra.mxu0 %v733
  %1531 = vmatprep.subr.mxu0 %v738
  %1532 = vmatpush1.msra.mxu0 %v737
  %1533 = vmatprep.subr.mxu0 %v742
  %1534 = vmatpush1.msra.mxu0 %v741
  %1535 = vmatprep.subr.mxu0 %v746
  %1536 = vmatpush1.msra.mxu0 %v745
  %1537 = vmatprep.subr.mxu0 %v750
  %1538 = vmatpush1.msra.mxu0 %v749
  %1539 = vmatprep.subr.mxu0 %v754
  %1540 = vmatpush1.msra.mxu0 %v753
  %1541 = vmatprep.subr.mxu0 %v758
  %1542 = vmatpush1.msra.mxu0 %v757
  %1543 = vmatprep.subr.mxu0 %v762
  %1544 = vmatpush1.msra.mxu0 %v761
  %1545 = vmatprep.subr.mxu0 %v766
  %1546 = vmatpush1.msra.mxu0 %v765
  %1547 = vmatprep.subr.mxu0 %v770
  %1548 = vmatpush1.msra.mxu0 %v769
  %1549 = vmatprep.subr.mxu0 %v774
  %1550 = vmatpush1.msra.mxu0 %v773
  %1551 = vmatprep.subr.mxu0 %v778
  %1552 = vmatpush1.msra.mxu0 %v777
  %1553 = vmatprep.subr.mxu0 %v782
  %1554 = vmatpush1.msra.mxu0 %v781
  %1555 = vmatprep.mubr.f32.mxu0 %v1488
  %1556 = vmatmul.mubr.f32.gmra.mrb[0].mxu0 %v1487
  %v1557 = vpop.f32.mrb[0].mxu0
  %v1558 = vadd.f32 %v278, %v1557
  %v1559 = vpop.f32.mrb[0].mxu0
  %v1560 = vadd.f32 %v280, %v1559
  %1561 = vdwg.mxu0
  %1562 = vmatprep.subr.mxu0 %v786
  %1563 = vmatpush1.msra.mxu0 %v785
  %1564 = vmatprep.subr.mxu0 %v790
  %1565 = vmatpush1.msra.mxu0 %v789
  %1566 = vmatprep.subr.mxu0 %v794
  %1567 = vmatpush1.msra.mxu0 %v793
  %1568 = vmatprep.subr.mxu0 %v798
  %1569 = vmatpush1.msra.mxu0 %v797
  %1570 = vmatprep.subr.mxu0 %v802
  %1571 = vmatpush1.msra.mxu0 %v801
  %1572 = vmatprep.subr.mxu0 %v806
  %1573 = vmatpush1.msra.mxu0 %v805
  %1574 = vmatprep.subr.mxu0 %v810
  %1575 = vmatpush1.msra.mxu0 %v809
  %1576 = vmatprep.subr.mxu0 %v814
  %1577 = vmatpush1.msra.mxu0 %v813
  %1578 = vmatprep.subr.mxu0 %v818
  %1579 = vmatpush1.msra.mxu0 %v817
  %1580 = vmatprep.subr.mxu0 %v822
  %1581 = vmatpush1.msra.mxu0 %v821
  %1582 = vmatprep.subr.mxu0 %v826
  %1583 = vmatpush1.msra.mxu0 %v825
  %1584 = vmatprep.subr.mxu0 %v830
  %1585 = vmatpush1.msra.mxu0 %v829
  %1586 = vmatprep.subr.mxu0 %v834
  %1587 = vmatpush1.msra.mxu0 %v833
  %1588 = vmatprep.subr.mxu0 %v838
  %1589 = vmatpush1.msra.mxu0 %v837
  %1590 = vmatprep.subr.mxu0 %v842
  %1591 = vmatpush1.msra.mxu0 %v841
  %1592 = vmatprep.subr.mxu0 %v846
  %1593 = vmatpush1.msra.mxu0 %v845
  %1594 = vmatprep.subr.mxu0 %v850
  %1595 = vmatpush1.msra.mxu0 %v849
  %1596 = vmatprep.subr.mxu0 %v854
  %1597 = vmatpush1.msra.mxu0 %v853
  %1598 = vmatprep.subr.mxu0 %v858
  %1599 = vmatpush1.msra.mxu0 %v857
  %1600 = vmatprep.subr.mxu0 %v862
  %1601 = vmatpush1.msra.mxu0 %v861
  %1602 = vmatprep.subr.mxu0 %v866
  %1603 = vmatpush1.msra.mxu0 %v865
  %1604 = vmatprep.subr.mxu0 %v870
  %1605 = vmatpush1.msra.mxu0 %v869
  %1606 = vmatprep.subr.mxu0 %v874
  %1607 = vmatpush1.msra.mxu0 %v873
  %1608 = vmatprep.subr.mxu0 %v878
  %1609 = vmatpush1.msra.mxu0 %v877
  %1610 = vmatprep.subr.mxu0 %v882
  %1611 = vmatpush1.msra.mxu0 %v881
  %1612 = vmatprep.subr.mxu0 %v886
  %1613 = vmatpush1.msra.mxu0 %v885
  %1614 = vmatprep.subr.mxu0 %v890
  %1615 = vmatpush1.msra.mxu0 %v889
  %1616 = vmatprep.subr.mxu0 %v894
  %1617 = vmatpush1.msra.mxu0 %v893
  %1618 = vmatprep.subr.mxu0 %v898
  %1619 = vmatpush1.msra.mxu0 %v897
  %1620 = vmatprep.subr.mxu0 %v902
  %1621 = vmatpush1.msra.mxu0 %v901
  %1622 = vmatprep.subr.mxu0 %v906
  %1623 = vmatpush1.msra.mxu0 %v905
  %1624 = vmatprep.subr.mxu0 %v910
  %1625 = vmatpush1.msra.mxu0 %v909
  %1626 = vmatprep.mubr.f32.mxu0 %v1490
  %1627 = vmatmul.mubr.f32.gmra.mrb[0].mxu0 %v1489
  %v1628 = vpop.f32.mrb[0].mxu0
  %v1629 = vadd.f32 %v1558, %v1628
  %v1630 = vpop.f32.mrb[0].mxu0
  %v1631 = vadd.f32 %v1560, %v1630
  %1632 = vdwg.mxu0
  %1633 = vmatprep.subr.mxu0 %v660
  %1634 = vmatpush1.msra.mxu0 %v659
  %1635 = vmatprep.subr.mxu0 %v664
  %1636 = vmatpush1.msra.mxu0 %v663
  %1637 = vmatprep.subr.mxu0 %v668
  %1638 = vmatpush1.msra.mxu0 %v667
  %1639 = vmatprep.subr.mxu0 %v672
  %1640 = vmatpush1.msra.mxu0 %v671
  %1641 = vmatprep.subr.mxu0 %v676
  %1642 = vmatpush1.msra.mxu0 %v675
  %1643 = vmatprep.subr.mxu0 %v680
  %1644 = vmatpush1.msra.mxu0 %v679
  %1645 = vmatprep.subr.mxu0 %v684
  %1646 = vmatpush1.msra.mxu0 %v683
  %1647 = vmatprep.subr.mxu0 %v688
  %1648 = vmatpush1.msra.mxu0 %v687
  %1649 = vmatprep.subr.mxu0 %v692
  %1650 = vmatpush1.msra.mxu0 %v691
  %1651 = vmatprep.subr.mxu0 %v696
  %1652 = vmatpush1.msra.mxu0 %v695
  %1653 = vmatprep.subr.mxu0 %v700
  %1654 = vmatpush1.msra.mxu0 %v699
  %1655 = vmatprep.subr.mxu0 %v704
  %1656 = vmatpush1.msra.mxu0 %v703
  %1657 = vmatprep.subr.mxu0 %v708
  %1658 = vmatpush1.msra.mxu0 %v707
  %1659 = vmatprep.subr.mxu0 %v712
  %1660 = vmatpush1.msra.mxu0 %v711
  %1661 = vmatprep.subr.mxu0 %v716
  %1662 = vmatpush1.msra.mxu0 %v715
  %1663 = vmatprep.subr.mxu0 %v720
  %1664 = vmatpush1.msra.mxu0 %v719
  %1665 = vmatprep.subr.mxu0 %v724
  %1666 = vmatpush1.msra.mxu0 %v723
  %1667 = vmatprep.subr.mxu0 %v728
  %1668 = vmatpush1.msra.mxu0 %v727
  %1669 = vmatprep.subr.mxu0 %v732
  %1670 = vmatpush1.msra.mxu0 %v731
  %1671 = vmatprep.subr.mxu0 %v736
  %1672 = vmatpush1.msra.mxu0 %v735
  %1673 = vmatprep.subr.mxu0 %v740
  %1674 = vmatpush1.msra.mxu0 %v739
  %1675 = vmatprep.subr.mxu0 %v744
  %1676 = vmatpush1.msra.mxu0 %v743
  %1677 = vmatprep.subr.mxu0 %v748
  %1678 = vmatpush1.msra.mxu0 %v747
  %1679 = vmatprep.subr.mxu0 %v752
  %1680 = vmatpush1.msra.mxu0 %v751
  %1681 = vmatprep.subr.mxu0 %v756
  %1682 = vmatpush1.msra.mxu0 %v755
  %1683 = vmatprep.subr.mxu0 %v760
  %1684 = vmatpush1.msra.mxu0 %v759
  %1685 = vmatprep.subr.mxu0 %v764
  %1686 = vmatpush1.msra.mxu0 %v763
  %1687 = vmatprep.subr.mxu0 %v768
  %1688 = vmatpush1.msra.mxu0 %v767
  %1689 = vmatprep.subr.mxu0 %v772
  %1690 = vmatpush1.msra.mxu0 %v771
  %1691 = vmatprep.subr.mxu0 %v776
  %1692 = vmatpush1.msra.mxu0 %v775
  %1693 = vmatprep.subr.mxu0 %v780
  %1694 = vmatpush1.msra.mxu0 %v779
  %1695 = vmatprep.subr.mxu0 %v784
  %1696 = vmatpush1.msra.mxu0 %v783
  %1697 = vmatprep.mubr.f32.mxu0 %v1488
  %1698 = vmatmul.mubr.f32.gmra.mrb[0].mxu0 %v1487
  %v1699 = vpop.f32.mrb[0].mxu0
  %v1700 = vadd.f32 %v509, %v1699
  %v1701 = vpop.f32.mrb[0].mxu0
  %v1702 = vadd.f32 %v511, %v1701
  %1703 = vdwg.mxu0
  %1704 = vmatprep.subr.mxu0 %v788
  %1705 = vmatpush1.msra.mxu0 %v787
  %1706 = vmatprep.subr.mxu0 %v792
  %1707 = vmatpush1.msra.mxu0 %v791
  %1708 = vmatprep.subr.mxu0 %v796
  %1709 = vmatpush1.msra.mxu0 %v795
  %1710 = vmatprep.subr.mxu0 %v800
  %1711 = vmatpush1.msra.mxu0 %v799
  %1712 = vmatprep.subr.mxu0 %v804
  %1713 = vmatpush1.msra.mxu0 %v803
  %1714 = vmatprep.subr.mxu0 %v808
  %1715 = vmatpush1.msra.mxu0 %v807
  %1716 = vmatprep.subr.mxu0 %v812
  %1717 = vmatpush1.msra.mxu0 %v811
  %1718 = vmatprep.subr.mxu0 %v816
  %1719 = vmatpush1.msra.mxu0 %v815
  %1720 = vmatprep.subr.mxu0 %v820
  %1721 = vmatpush1.msra.mxu0 %v819
  %1722 = vmatprep.subr.mxu0 %v824
  %1723 = vmatpush1.msra.mxu0 %v823
  %1724 = vmatprep.subr.mxu0 %v828
  %1725 = vmatpush1.msra.mxu0 %v827
  %1726 = vmatprep.subr.mxu0 %v832
  %1727 = vmatpush1.msra.mxu0 %v831
  %1728 = vmatprep.subr.mxu0 %v836
  %1729 = vmatpush1.msra.mxu0 %v835
  %1730 = vmatprep.subr.mxu0 %v840
  %1731 = vmatpush1.msra.mxu0 %v839
  %1732 = vmatprep.subr.mxu0 %v844
  %1733 = vmatpush1.msra.mxu0 %v843
  %1734 = vmatprep.subr.mxu0 %v848
  %1735 = vmatpush1.msra.mxu0 %v847
  %1736 = vmatprep.subr.mxu0 %v852
  %1737 = vmatpush1.msra.mxu0 %v851
  %1738 = vmatprep.subr.mxu0 %v856
  %1739 = vmatpush1.msra.mxu0 %v855
  %1740 = vmatprep.subr.mxu0 %v860
  %1741 = vmatpush1.msra.mxu0 %v859
  %1742 = vmatprep.subr.mxu0 %v864
  %1743 = vmatpush1.msra.mxu0 %v863
  %1744 = vmatprep.subr.mxu0 %v868
  %1745 = vmatpush1.msra.mxu0 %v867
  %1746 = vmatprep.subr.mxu0 %v872
  %1747 = vmatpush1.msra.mxu0 %v871
  %1748 = vmatprep.subr.mxu0 %v876
  %1749 = vmatpush1.msra.mxu0 %v875
  %1750 = vmatprep.subr.mxu0 %v880
  %1751 = vmatpush1.msra.mxu0 %v879
  %1752 = vmatprep.subr.mxu0 %v884
  %1753 = vmatpush1.msra.mxu0 %v883
  %1754 = vmatprep.subr.mxu0 %v888
  %1755 = vmatpush1.msra.mxu0 %v887
  %1756 = vmatprep.subr.mxu0 %v892
  %1757 = vmatpush1.msra.mxu0 %v891
  %1758 = vmatprep.subr.mxu0 %v896
  %1759 = vmatpush1.msra.mxu0 %v895
  %1760 = vmatprep.subr.mxu0 %v900
  %1761 = vmatpush1.msra.mxu0 %v899
  %1762 = vmatprep.subr.mxu0 %v904
  %1763 = vmatpush1.msra.mxu0 %v903
  %1764 = vmatprep.subr.mxu0 %v908
  %1765 = vmatpush1.msra.mxu0 %v907
  %1766 = vmatprep.subr.mxu0 %v912
  %1767 = vmatpush1.msra.mxu0 %v911
  %1768 = vmatprep.mubr.f32.mxu0 %v1490
  %1769 = vmatmul.mubr.f32.gmra.mrb[0].mxu0 %v1489
  %v1770 = vpop.f32.mrb[0].mxu0
  %v1771 = vadd.f32 %v1700, %v1770
  %v1772 = vpop.f32.mrb[0].mxu0
  %v1773 = vadd.f32 %v1702, %v1772
  %1774 = vdwg.mxu0
  %v1775 = vtanh.pop %v1629
  %v1776 = vtanh.pop %v1631
  %v1777 = vtanh.pop %v1771
  %v1778 = vtanh.pop %v1773
  %1779 = vmatprep.subr.mxu0 %v658
  %1780 = vmatpush1.msra.mxu0 %v657
  %1781 = vmatprep.subr.mxu0 %v662
  %1782 = vmatpush1.msra.mxu0 %v661
  %1783 = vmatprep.subr.mxu0 %v666
  %1784 = vmatpush1.msra.mxu0 %v665
  %1785 = vmatprep.subr.mxu0 %v670
  %1786 = vmatpush1.msra.mxu0 %v669
  %1787 = vmatprep.subr.mxu0 %v674
  %1788 = vmatpush1.msra.mxu0 %v673
  %1789 = vmatprep.subr.mxu0 %v678
  %1790 = vmatpush1.msra.mxu0 %v677
  %1791 = vmatprep.subr.mxu0 %v682
  %1792 = vmatpush1.msra.mxu0 %v681
  %1793 = vmatprep.subr.mxu0 %v686
  %1794 = vmatpush1.msra.mxu0 %v685
  %1795 = vmatprep.subr.mxu0 %v690
  %1796 = vmatpush1.msra.mxu0 %v689
  %1797 = vmatprep.subr.mxu0 %v694
  %1798 = vmatpush1.msra.mxu0 %v693
  %1799 = vmatprep.subr.mxu0 %v698
  %1800 = vmatpush1.msra.mxu0 %v697
  %1801 = vmatprep.subr.mxu0 %v702
  %1802 = vmatpush1.msra.mxu0 %v701
  %1803 = vmatprep.subr.mxu0 %v706
  %1804 = vmatpush1.msra.mxu0 %v705
  %1805 = vmatprep.subr.mxu0 %v710
  %1806 = vmatpush1.msra.mxu0 %v709
  %1807 = vmatprep.subr.mxu0 %v714
  %1808 = vmatpush1.msra.mxu0 %v713
  %1809 = vmatprep.subr.mxu0 %v718
  %1810 = vmatpush1.msra.mxu0 %v717
  %1811 = vmatprep.subr.mxu0 %v722
  %1812 = vmatpush1.msra.mxu0 %v721
  %1813 = vmatprep.subr.mxu0 %v726
  %1814 = vmatpush1.msra.mxu0 %v725
  %1815 = vmatprep.subr.mxu0 %v730
  %1816 = vmatpush1.msra.mxu0 %v729
  %1817 = vmatprep.subr.mxu0 %v734
  %1818 = vmatpush1.msra.mxu0 %v733
  %1819 = vmatprep.subr.mxu0 %v738
  %1820 = vmatpush1.msra.mxu0 %v737
  %1821 = vmatprep.subr.mxu0 %v742
  %1822 = vmatpush1.msra.mxu0 %v741
  %1823 = vmatprep.subr.mxu0 %v746
  %1824 = vmatpush1.msra.mxu0 %v745
  %1825 = vmatprep.subr.mxu0 %v750
  %1826 = vmatpush1.msra.mxu0 %v749
  %1827 = vmatprep.subr.mxu0 %v754
  %1828 = vmatpush1.msra.mxu0 %v753
  %1829 = vmatprep.subr.mxu0 %v758
  %1830 = vmatpush1.msra.mxu0 %v757
  %1831 = vmatprep.subr.mxu0 %v762
  %1832 = vmatpush1.msra.mxu0 %v761
  %1833 = vmatprep.subr.mxu0 %v766
  %1834 = vmatpush1.msra.mxu0 %v765
  %1835 = vmatprep.subr.mxu0 %v770
  %1836 = vmatpush1.msra.mxu0 %v769
  %1837 = vmatprep.subr.mxu0 %v774
  %1838 = vmatpush1.msra.mxu0 %v773
  %1839 = vmatprep.subr.mxu0 %v778
  %1840 = vmatpush1.msra.mxu0 %v777
  %1841 = vmatprep.subr.mxu0 %v782
  %1842 = vmatpush1.msra.mxu0 %v781
  %1843 = vmatprep.mubr.f32.mxu0 %v1776
  %1844 = vmatmul.mubr.f32.gmra.mrb[0].mxu0 %v1775
  %v1845 = vpop.f32.mrb[0].mxu0
  %v1846 = vadd.f32 %v284, %v1845
  %v1847 = vpop.f32.mrb[0].mxu0
  %v1848 = vadd.f32 %v286, %v1847
  %1849 = vdwg.mxu0
  %1850 = vmatprep.subr.mxu0 %v786
  %1851 = vmatpush1.msra.mxu0 %v785
  %1852 = vmatprep.subr.mxu0 %v790
  %1853 = vmatpush1.msra.mxu0 %v789
  %1854 = vmatprep.subr.mxu0 %v794
  %1855 = vmatpush1.msra.mxu0 %v793
  %1856 = vmatprep.subr.mxu0 %v798
  %1857 = vmatpush1.msra.mxu0 %v797
  %1858 = vmatprep.subr.mxu0 %v802
  %1859 = vmatpush1.msra.mxu0 %v801
  %1860 = vmatprep.subr.mxu0 %v806
  %1861 = vmatpush1.msra.mxu0 %v805
  %1862 = vmatprep.subr.mxu0 %v810
  %1863 = vmatpush1.msra.mxu0 %v809
  %1864 = vmatprep.subr.mxu0 %v814
  %1865 = vmatpush1.msra.mxu0 %v813
  %1866 = vmatprep.subr.mxu0 %v818
  %1867 = vmatpush1.msra.mxu0 %v817
  %1868 = vmatprep.subr.mxu0 %v822
  %1869 = vmatpush1.msra.mxu0 %v821
  %1870 = vmatprep.subr.mxu0 %v826
  %1871 = vmatpush1.msra.mxu0 %v825
  %1872 = vmatprep.subr.mxu0 %v830
  %1873 = vmatpush1.msra.mxu0 %v829
  %1874 = vmatprep.subr.mxu0 %v834
  %1875 = vmatpush1.msra.mxu0 %v833
  %1876 = vmatprep.subr.mxu0 %v838
  %1877 = vmatpush1.msra.mxu0 %v837
  %1878 = vmatprep.subr.mxu0 %v842
  %1879 = vmatpush1.msra.mxu0 %v841
  %1880 = vmatprep.subr.mxu0 %v846
  %1881 = vmatpush1.msra.mxu0 %v845
  %1882 = vmatprep.subr.mxu0 %v850
  %1883 = vmatpush1.msra.mxu0 %v849
  %1884 = vmatprep.subr.mxu0 %v854
  %1885 = vmatpush1.msra.mxu0 %v853
  %1886 = vmatprep.subr.mxu0 %v858
  %1887 = vmatpush1.msra.mxu0 %v857
  %1888 = vmatprep.subr.mxu0 %v862
  %1889 = vmatpush1.msra.mxu0 %v861
  %1890 = vmatprep.subr.mxu0 %v866
  %1891 = vmatpush1.msra.mxu0 %v865
  %1892 = vmatprep.subr.mxu0 %v870
  %1893 = vmatpush1.msra.mxu0 %v869
  %1894 = vmatprep.subr.mxu0 %v874
  %1895 = vmatpush1.msra.mxu0 %v873
  %1896 = vmatprep.subr.mxu0 %v878
  %1897 = vmatpush1.msra.mxu0 %v877
  %1898 = vmatprep.subr.mxu0 %v882
  %1899 = vmatpush1.msra.mxu0 %v881
  %1900 = vmatprep.subr.mxu0 %v886
  %1901 = vmatpush1.msra.mxu0 %v885
  %1902 = vmatprep.subr.mxu0 %v890
  %1903 = vmatpush1.msra.mxu0 %v889
  %1904 = vmatprep.subr.mxu0 %v894
  %1905 = vmatpush1.msra.mxu0 %v893
  %1906 = vmatprep.subr.mxu0 %v898
  %1907 = vmatpush1.msra.mxu0 %v897
  %1908 = vmatprep.subr.mxu0 %v902
  %1909 = vmatpush1.msra.mxu0 %v901
  %1910 = vmatprep.subr.mxu0 %v906
  %1911 = vmatpush1.msra.mxu0 %v905
  %1912 = vmatprep.subr.mxu0 %v910
  %1913 = vmatpush1.msra.mxu0 %v909
  %1914 = vmatprep.mubr.f32.mxu0 %v1778
  %1915 = vmatmul.mubr.f32.gmra.mrb[0].mxu0 %v1777
  %v1916 = vpop.f32.mrb[0].mxu0
  %v1917 = vadd.f32 %v1846, %v1916
  %v1918 = vpop.f32.mrb[0].mxu0
  %v1919 = vadd.f32 %v1848, %v1918
  %1920 = vdwg.mxu0
  %1921 = vmatprep.subr.mxu0 %v660
  %1922 = vmatpush1.msra.mxu0 %v659
  %1923 = vmatprep.subr.mxu0 %v664
  %1924 = vmatpush1.msra.mxu0 %v663
  %1925 = vmatprep.subr.mxu0 %v668
  %1926 = vmatpush1.msra.mxu0 %v667
  %1927 = vmatprep.subr.mxu0 %v672
  %1928 = vmatpush1.msra.mxu0 %v671
  %1929 = vmatprep.subr.mxu0 %v676
  %1930 = vmatpush1.msra.mxu0 %v675
  %1931 = vmatprep.subr.mxu0 %v680
  %1932 = vmatpush1.msra.mxu0 %v679
  %1933 = vmatprep.subr.mxu0 %v684
  %1934 = vmatpush1.msra.mxu0 %v683
  %1935 = vmatprep.subr.mxu0 %v688
  %1936 = vmatpush1.msra.mxu0 %v687
  %1937 = vmatprep.subr.mxu0 %v692
  %1938 = vmatpush1.msra.mxu0 %v691
  %1939 = vmatprep.subr.mxu0 %v696
  %1940 = vmatpush1.msra.mxu0 %v695
  %1941 = vmatprep.subr.mxu0 %v700
  %1942 = vmatpush1.msra.mxu0 %v699
  %1943 = vmatprep.subr.mxu0 %v704
  %1944 = vmatpush1.msra.mxu0 %v703
  %1945 = vmatprep.subr.mxu0 %v708
  %1946 = vmatpush1.msra.mxu0 %v707
  %1947 = vmatprep.subr.mxu0 %v712
  %1948 = vmatpush1.msra.mxu0 %v711
  %1949 = vmatprep.subr.mxu0 %v716
  %1950 = vmatpush1.msra.mxu0 %v715
  %1951 = vmatprep.subr.mxu0 %v720
  %1952 = vmatpush1.msra.mxu0 %v719
  %1953 = vmatprep.subr.mxu0 %v724
  %1954 = vmatpush1.msra.mxu0 %v723
  %1955 = vmatprep.subr.mxu0 %v728
  %1956 = vmatpush1.msra.mxu0 %v727
  %1957 = vmatprep.subr.mxu0 %v732
  %1958 = vmatpush1.msra.mxu0 %v731
  %1959 = vmatprep.subr.mxu0 %v736
  %1960 = vmatpush1.msra.mxu0 %v735
  %1961 = vmatprep.subr.mxu0 %v740
  %1962 = vmatpush1.msra.mxu0 %v739
  %1963 = vmatprep.subr.mxu0 %v744
  %1964 = vmatpush1.msra.mxu0 %v743
  %1965 = vmatprep.subr.mxu0 %v748
  %1966 = vmatpush1.msra.mxu0 %v747
  %1967 = vmatprep.subr.mxu0 %v752
  %1968 = vmatpush1.msra.mxu0 %v751
  %1969 = vmatprep.subr.mxu0 %v756
  %1970 = vmatpush1.msra.mxu0 %v755
  %1971 = vmatprep.subr.mxu0 %v760
  %1972 = vmatpush1.msra.mxu0 %v759
  %1973 = vmatprep.subr.mxu0 %v764
  %1974 = vmatpush1.msra.mxu0 %v763
  %1975 = vmatprep.subr.mxu0 %v768
  %1976 = vmatpush1.msra.mxu0 %v767
  %1977 = vmatprep.subr.mxu0 %v772
  %1978 = vmatpush1.msra.mxu0 %v771
  %1979 = vmatprep.subr.mxu0 %v776
  %1980 = vmatpush1.msra.mxu0 %v775
  %1981 = vmatprep.subr.mxu0 %v780
  %1982 = vmatpush1.msra.mxu0 %v779
  %1983 = vmatprep.subr.mxu0 %v784
  %1984 = vmatpush1.msra.mxu0 %v783
  %1985 = vmatprep.mubr.f32.mxu0 %v1776
  %1986 = vmatmul.mubr.f32.gmra.mrb[0].mxu0 %v1775
  %v1987 = vpop.f32.mrb[0].mxu0
  %v1988 = vadd.f32 %v515, %v1987
  %v1989 = vpop.f32.mrb[0].mxu0
  %v1990 = vadd.f32 %v517, %v1989
  %1991 = vdwg.mxu0
  %1992 = vmatprep.subr.mxu0 %v788
  %1993 = vmatpush1.msra.mxu0 %v787
  %1994 = vmatprep.subr.mxu0 %v792
  %1995 = vmatpush1.msra.mxu0 %v791
  %1996 = vmatprep.subr.mxu0 %v796
  %1997 = vmatpush1.msra.mxu0 %v795
  %1998 = vmatprep.subr.mxu0 %v800
  %1999 = vmatpush1.msra.mxu0 %v799
  %2000 = vmatprep.subr.mxu0 %v804
  %2001 = vmatpush1.msra.mxu0 %v803
  %2002 = vmatprep.subr.mxu0 %v808
  %2003 = vmatpush1.msra.mxu0 %v807
  %2004 = vmatprep.subr.mxu0 %v812
  %2005 = vmatpush1.msra.mxu0 %v811
  %2006 = vmatprep.subr.mxu0 %v816
  %2007 = vmatpush1.msra.mxu0 %v815
  %2008 = vmatprep.subr.mxu0 %v820
  %2009 = vmatpush1.msra.mxu0 %v819
  %2010 = vmatprep.subr.mxu0 %v824
  %2011 = vmatpush1.msra.mxu0 %v823
  %2012 = vmatprep.subr.mxu0 %v828
  %2013 = vmatpush1.msra.mxu0 %v827
  %2014 = vmatprep.subr.mxu0 %v832
  %2015 = vmatpush1.msra.mxu0 %v831
  %2016 = vmatprep.subr.mxu0 %v836
  %2017 = vmatpush1.msra.mxu0 %v835
  %2018 = vmatprep.subr.mxu0 %v840
  %2019 = vmatpush1.msra.mxu0 %v839
  %2020 = vmatprep.subr.mxu0 %v844
  %2021 = vmatpush1.msra.mxu0 %v843
  %2022 = vmatprep.subr.mxu0 %v848
  %2023 = vmatpush1.msra.mxu0 %v847
  %2024 = vmatprep.subr.mxu0 %v852
  %2025 = vmatpush1.msra.mxu0 %v851
  %2026 = vmatprep.subr.mxu0 %v856
  %2027 = vmatpush1.msra.mxu0 %v855
  %2028 = vmatprep.subr.mxu0 %v860
  %2029 = vmatpush1.msra.mxu0 %v859
  %2030 = vmatprep.subr.mxu0 %v864
  %2031 = vmatpush1.msra.mxu0 %v863
  %2032 = vmatprep.subr.mxu0 %v868
  %2033 = vmatpush1.msra.mxu0 %v867
  %2034 = vmatprep.subr.mxu0 %v872
  %2035 = vmatpush1.msra.mxu0 %v871
  %2036 = vmatprep.subr.mxu0 %v876
  %2037 = vmatpush1.msra.mxu0 %v875
  %2038 = vmatprep.subr.mxu0 %v880
  %2039 = vmatpush1.msra.mxu0 %v879
  %2040 = vmatprep.subr.mxu0 %v884
  %2041 = vmatpush1.msra.mxu0 %v883
  %2042 = vmatprep.subr.mxu0 %v888
  %2043 = vmatpush1.msra.mxu0 %v887
  %2044 = vmatprep.subr.mxu0 %v892
  %2045 = vmatpush1.msra.mxu0 %v891
  %2046 = vmatprep.subr.mxu0 %v896
  %2047 = vmatpush1.msra.mxu0 %v895
  %2048 = vmatprep.subr.mxu0 %v900
  %2049 = vmatpush1.msra.mxu0 %v899
  %2050 = vmatprep.subr.mxu0 %v904
  %2051 = vmatpush1.msra.mxu0 %v903
  %2052 = vmatprep.subr.mxu0 %v908
  %2053 = vmatpush1.msra.mxu0 %v907
  %2054 = vmatprep.subr.mxu0 %v912
  %2055 = vmatpush1.msra.mxu0 %v911
  %2056 = vmatprep.mubr.f32.mxu0 %v1778
  %2057 = vmatmul.mubr.f32.gmra.mrb[0].mxu0 %v1777
  %v2058 = vpop.f32.mrb[0].mxu0
  %v2059 = vadd.f32 %v1988, %v2058
  %v2060 = vpop.f32.mrb[0].mxu0
  %v2061 = vadd.f32 %v1990, %v2060
  %2062 = vdwg.mxu0
  %v2063 = vtanh.pop %v1917
  %v2064 = vtanh.pop %v1919
  %v2065 = vtanh.pop %v2059
  %v2066 = vtanh.pop %v2061
  %2067 = vmatprep.subr.mxu0 %v658
  %2068 = vmatpush1.msra.mxu0 %v657
  %2069 = vmatprep.subr.mxu0 %v662
  %2070 = vmatpush1.msra.mxu0 %v661
  %2071 = vmatprep.subr.mxu0 %v666
  %2072 = vmatpush1.msra.mxu0 %v665
  %2073 = vmatprep.subr.mxu0 %v670
  %2074 = vmatpush1.msra.mxu0 %v669
  %2075 = vmatprep.subr.mxu0 %v674
  %2076 = vmatpush1.msra.mxu0 %v673
  %2077 = vmatprep.subr.mxu0 %v678
  %2078 = vmatpush1.msra.mxu0 %v677
  %2079 = vmatprep.subr.mxu0 %v682
  %2080 = vmatpush1.msra.mxu0 %v681
  %2081 = vmatprep.subr.mxu0 %v686
  %2082 = vmatpush1.msra.mxu0 %v685
  %2083 = vmatprep.subr.mxu0 %v690
  %2084 = vmatpush1.msra.mxu0 %v689
  %2085 = vmatprep.subr.mxu0 %v694
  %2086 = vmatpush1.msra.mxu0 %v693
  %2087 = vmatprep.subr.mxu0 %v698
  %2088 = vmatpush1.msra.mxu0 %v697
  %2089 = vmatprep.subr.mxu0 %v702
  %2090 = vmatpush1.msra.mxu0 %v701
  %2091 = vmatprep.subr.mxu0 %v706
  %2092 = vmatpush1.msra.mxu0 %v705
  %2093 = vmatprep.subr.mxu0 %v710
  %2094 = vmatpush1.msra.mxu0 %v709
  %2095 = vmatprep.subr.mxu0 %v714
  %2096 = vmatpush1.msra.mxu0 %v713
  %2097 = vmatprep.subr.mxu0 %v718
  %2098 = vmatpush1.msra.mxu0 %v717
  %2099 = vmatprep.subr.mxu0 %v722
  %2100 = vmatpush1.msra.mxu0 %v721
  %2101 = vmatprep.subr.mxu0 %v726
  %2102 = vmatpush1.msra.mxu0 %v725
  %2103 = vmatprep.subr.mxu0 %v730
  %2104 = vmatpush1.msra.mxu0 %v729
  %2105 = vmatprep.subr.mxu0 %v734
  %2106 = vmatpush1.msra.mxu0 %v733
  %2107 = vmatprep.subr.mxu0 %v738
  %2108 = vmatpush1.msra.mxu0 %v737
  %2109 = vmatprep.subr.mxu0 %v742
  %2110 = vmatpush1.msra.mxu0 %v741
  %2111 = vmatprep.subr.mxu0 %v746
  %2112 = vmatpush1.msra.mxu0 %v745
  %2113 = vmatprep.subr.mxu0 %v750
  %2114 = vmatpush1.msra.mxu0 %v749
  %2115 = vmatprep.subr.mxu0 %v754
  %2116 = vmatpush1.msra.mxu0 %v753
  %2117 = vmatprep.subr.mxu0 %v758
  %2118 = vmatpush1.msra.mxu0 %v757
  %2119 = vmatprep.subr.mxu0 %v762
  %2120 = vmatpush1.msra.mxu0 %v761
  %2121 = vmatprep.subr.mxu0 %v766
  %2122 = vmatpush1.msra.mxu0 %v765
  %2123 = vmatprep.subr.mxu0 %v770
  %2124 = vmatpush1.msra.mxu0 %v769
  %2125 = vmatprep.subr.mxu0 %v774
  %2126 = vmatpush1.msra.mxu0 %v773
  %2127 = vmatprep.subr.mxu0 %v778
  %2128 = vmatpush1.msra.mxu0 %v777
  %2129 = vmatprep.subr.mxu0 %v782
  %2130 = vmatpush1.msra.mxu0 %v781
  %2131 = vmatprep.mubr.f32.mxu0 %v2064
  %2132 = vmatmul.mubr.f32.gmra.mrb[0].mxu0 %v2063
  %v2133 = vpop.f32.mrb[0].mxu0
  %v2134 = vadd.f32 %v290, %v2133
  %v2135 = vpop.f32.mrb[0].mxu0
  %v2136 = vadd.f32 %v292, %v2135
  %2137 = vdwg.mxu0
  %2138 = vmatprep.subr.mxu0 %v786
  %2139 = vmatpush1.msra.mxu0 %v785
  %2140 = vmatprep.subr.mxu0 %v790
  %2141 = vmatpush1.msra.mxu0 %v789
  %2142 = vmatprep.subr.mxu0 %v794
  %2143 = vmatpush1.msra.mxu0 %v793
  %2144 = vmatprep.subr.mxu0 %v798
  %2145 = vmatpush1.msra.mxu0 %v797
  %2146 = vmatprep.subr.mxu0 %v802
  %2147 = vmatpush1.msra.mxu0 %v801
  %2148 = vmatprep.subr.mxu0 %v806
  %2149 = vmatpush1.msra.mxu0 %v805
  %2150 = vmatprep.subr.mxu0 %v810
  %2151 = vmatpush1.msra.mxu0 %v809
  %2152 = vmatprep.subr.mxu0 %v814
  %2153 = vmatpush1.msra.mxu0 %v813
  %2154 = vmatprep.subr.mxu0 %v818
  %2155 = vmatpush1.msra.mxu0 %v817
  %2156 = vmatprep.subr.mxu0 %v822
  %2157 = vmatpush1.msra.mxu0 %v821
  %2158 = vmatprep.subr.mxu0 %v826
  %2159 = vmatpush1.msra.mxu0 %v825
  %2160 = vmatprep.subr.mxu0 %v830
  %2161 = vmatpush1.msra.mxu0 %v829
  %2162 = vmatprep.subr.mxu0 %v834
  %2163 = vmatpush1.msra.mxu0 %v833
  %2164 = vmatprep.subr.mxu0 %v838
  %2165 = vmatpush1.msra.mxu0 %v837
  %2166 = vmatprep.subr.mxu0 %v842
  %2167 = vmatpush1.msra.mxu0 %v841
  %2168 = vmatprep.subr.mxu0 %v846
  %2169 = vmatpush1.msra.mxu0 %v845
  %2170 = vmatprep.subr.mxu0 %v850
  %2171 = vmatpush1.msra.mxu0 %v849
  %2172 = vmatprep.subr.mxu0 %v854
  %2173 = vmatpush1.msra.mxu0 %v853
  %2174 = vmatprep.subr.mxu0 %v858
  %2175 = vmatpush1.msra.mxu0 %v857
  %2176 = vmatprep.subr.mxu0 %v862
  %2177 = vmatpush1.msra.mxu0 %v861
  %2178 = vmatprep.subr.mxu0 %v866
  %2179 = vmatpush1.msra.mxu0 %v865
  %2180 = vmatprep.subr.mxu0 %v870
  %2181 = vmatpush1.msra.mxu0 %v869
  %2182 = vmatprep.subr.mxu0 %v874
  %2183 = vmatpush1.msra.mxu0 %v873
  %2184 = vmatprep.subr.mxu0 %v878
  %2185 = vmatpush1.msra.mxu0 %v877
  %2186 = vmatprep.subr.mxu0 %v882
  %2187 = vmatpush1.msra.mxu0 %v881
  %2188 = vmatprep.subr.mxu0 %v886
  %2189 = vmatpush1.msra.mxu0 %v885
  %2190 = vmatprep.subr.mxu0 %v890
  %2191 = vmatpush1.msra.mxu0 %v889
  %2192 = vmatprep.subr.mxu0 %v894
  %2193 = vmatpush1.msra.mxu0 %v893
  %2194 = vmatprep.subr.mxu0 %v898
  %2195 = vmatpush1.msra.mxu0 %v897
  %2196 = vmatprep.subr.mxu0 %v902
  %2197 = vmatpush1.msra.mxu0 %v901
  %2198 = vmatprep.subr.mxu0 %v906
  %2199 = vmatpush1.msra.mxu0 %v905
  %2200 = vmatprep.subr.mxu0 %v910
  %2201 = vmatpush1.msra.mxu0 %v909
  %2202 = vmatprep.mubr.f32.mxu0 %v2066
  %2203 = vmatmul.mubr.f32.gmra.mrb[0].mxu0 %v2065
  %v2204 = vpop.f32.mrb[0].mxu0
  %v2205 = vadd.f32 %v2134, %v2204
  %v2206 = vpop.f32.mrb[0].mxu0
  %v2207 = vadd.f32 %v2136, %v2206
  %2208 = vdwg.mxu0
  %2209 = vmatprep.subr.mxu0 %v660
  %2210 = vmatpush1.msra.mxu0 %v659
  %2211 = vmatprep.subr.mxu0 %v664
  %2212 = vmatpush1.msra.mxu0 %v663
  %2213 = vmatprep.subr.mxu0 %v668
  %2214 = vmatpush1.msra.mxu0 %v667
  %2215 = vmatprep.subr.mxu0 %v672
  %2216 = vmatpush1.msra.mxu0 %v671
  %2217 = vmatprep.subr.mxu0 %v676
  %2218 = vmatpush1.msra.mxu0 %v675
  %2219 = vmatprep.subr.mxu0 %v680
  %2220 = vmatpush1.msra.mxu0 %v679
  %2221 = vmatprep.subr.mxu0 %v684
  %2222 = vmatpush1.msra.mxu0 %v683
  %2223 = vmatprep.subr.mxu0 %v688
  %2224 = vmatpush1.msra.mxu0 %v687
  %2225 = vmatprep.subr.mxu0 %v692
  %2226 = vmatpush1.msra.mxu0 %v691
  %2227 = vmatprep.subr.mxu0 %v696
  %2228 = vmatpush1.msra.mxu0 %v695
  %2229 = vmatprep.subr.mxu0 %v700
  %2230 = vmatpush1.msra.mxu0 %v699
  %2231 = vmatprep.subr.mxu0 %v704
  %2232 = vmatpush1.msra.mxu0 %v703
  %2233 = vmatprep.subr.mxu0 %v708
  %2234 = vmatpush1.msra.mxu0 %v707
  %2235 = vmatprep.subr.mxu0 %v712
  %2236 = vmatpush1.msra.mxu0 %v711
  %2237 = vmatprep.subr.mxu0 %v716
  %2238 = vmatpush1.msra.mxu0 %v715
  %2239 = vmatprep.subr.mxu0 %v720
  %2240 = vmatpush1.msra.mxu0 %v719
  %2241 = vmatprep.subr.mxu0 %v724
  %2242 = vmatpush1.msra.mxu0 %v723
  %2243 = vmatprep.subr.mxu0 %v728
  %2244 = vmatpush1.msra.mxu0 %v727
  %2245 = vmatprep.subr.mxu0 %v732
  %2246 = vmatpush1.msra.mxu0 %v731
  %2247 = vmatprep.subr.mxu0 %v736
  %2248 = vmatpush1.msra.mxu0 %v735
  %2249 = vmatprep.subr.mxu0 %v740
  %2250 = vmatpush1.msra.mxu0 %v739
  %2251 = vmatprep.subr.mxu0 %v744
  %2252 = vmatpush1.msra.mxu0 %v743
  %2253 = vmatprep.subr.mxu0 %v748
  %2254 = vmatpush1.msra.mxu0 %v747
  %2255 = vmatprep.subr.mxu0 %v752
  %2256 = vmatpush1.msra.mxu0 %v751
  %2257 = vmatprep.subr.mxu0 %v756
  %2258 = vmatpush1.msra.mxu0 %v755
  %2259 = vmatprep.subr.mxu0 %v760
  %2260 = vmatpush1.msra.mxu0 %v759
  %2261 = vmatprep.subr.mxu0 %v764
  %2262 = vmatpush1.msra.mxu0 %v763
  %2263 = vmatprep.subr.mxu0 %v768
  %2264 = vmatpush1.msra.mxu0 %v767
  %2265 = vmatprep.subr.mxu0 %v772
  %2266 = vmatpush1.msra.mxu0 %v771
  %2267 = vmatprep.subr.mxu0 %v776
  %2268 = vmatpush1.msra.mxu0 %v775
  %2269 = vmatprep.subr.mxu0 %v780
  %2270 = vmatpush1.msra.mxu0 %v779
  %2271 = vmatprep.subr.mxu0 %v784
  %2272 = vmatpush1.msra.mxu0 %v783
  %2273 = vmatprep.mubr.f32.mxu0 %v2064
  %2274 = vmatmul.mubr.f32.gmra.mrb[0].mxu0 %v2063
  %v2275 = vpop.f32.mrb[0].mxu0
  %v2276 = vadd.f32 %v521, %v2275
  %v2277 = vpop.f32.mrb[0].mxu0
  %v2278 = vadd.f32 %v523, %v2277
  %2279 = vdwg.mxu0
  %2280 = vmatprep.subr.mxu0 %v788
  %2281 = vmatpush1.msra.mxu0 %v787
  %2282 = vmatprep.subr.mxu0 %v792
  %2283 = vmatpush1.msra.mxu0 %v791
  %2284 = vmatprep.subr.mxu0 %v796
  %2285 = vmatpush1.msra.mxu0 %v795
  %2286 = vmatprep.subr.mxu0 %v800
  %2287 = vmatpush1.msra.mxu0 %v799
  %2288 = vmatprep.subr.mxu0 %v804
  %2289 = vmatpush1.msra.mxu0 %v803
  %2290 = vmatprep.subr.mxu0 %v808
  %2291 = vmatpush1.msra.mxu0 %v807
  %2292 = vmatprep.subr.mxu0 %v812
  %2293 = vmatpush1.msra.mxu0 %v811
  %2294 = vmatprep.subr.mxu0 %v816
  %2295 = vmatpush1.msra.mxu0 %v815
  %2296 = vmatprep.subr.mxu0 %v820
  %2297 = vmatpush1.msra.mxu0 %v819
  %2298 = vmatprep.subr.mxu0 %v824
  %2299 = vmatpush1.msra.mxu0 %v823
  %2300 = vmatprep.subr.mxu0 %v828
  %2301 = vmatpush1.msra.mxu0 %v827
  %2302 = vmatprep.subr.mxu0 %v832
  %2303 = vmatpush1.msra.mxu0 %v831
  %2304 = vmatprep.subr.mxu0 %v836
  %2305 = vmatpush1.msra.mxu0 %v835
  %2306 = vmatprep.subr.mxu0 %v840
  %2307 = vmatpush1.msra.mxu0 %v839
  %2308 = vmatprep.subr.mxu0 %v844
  %2309 = vmatpush1.msra.mxu0 %v843
  %2310 = vmatprep.subr.mxu0 %v848
  %2311 = vmatpush1.msra.mxu0 %v847
  %2312 = vmatprep.subr.mxu0 %v852
  %2313 = vmatpush1.msra.mxu0 %v851
  %2314 = vmatprep.subr.mxu0 %v856
  %2315 = vmatpush1.msra.mxu0 %v855
  %2316 = vmatprep.subr.mxu0 %v860
  %2317 = vmatpush1.msra.mxu0 %v859
  %2318 = vmatprep.subr.mxu0 %v864
  %2319 = vmatpush1.msra.mxu0 %v863
  %2320 = vmatprep.subr.mxu0 %v868
  %2321 = vmatpush1.msra.mxu0 %v867
  %2322 = vmatprep.subr.mxu0 %v872
  %2323 = vmatpush1.msra.mxu0 %v871
  %2324 = vmatprep.subr.mxu0 %v876
  %2325 = vmatpush1.msra.mxu0 %v875
  %2326 = vmatprep.subr.mxu0 %v880
  %2327 = vmatpush1.msra.mxu0 %v879
  %2328 = vmatprep.subr.mxu0 %v884
  %2329 = vmatpush1.msra.mxu0 %v883
  %2330 = vmatprep.subr.mxu0 %v888
  %2331 = vmatpush1.msra.mxu0 %v887
  %2332 = vmatprep.subr.mxu0 %v892
  %2333 = vmatpush1.msra.mxu0 %v891
  %2334 = vmatprep.subr.mxu0 %v896
  %2335 = vmatpush1.msra.mxu0 %v895
  %2336 = vmatprep.subr.mxu0 %v900
  %2337 = vmatpush1.msra.mxu0 %v899
  %2338 = vmatprep.subr.mxu0 %v904
  %2339 = vmatpush1.msra.mxu0 %v903
  %2340 = vmatprep.subr.mxu0 %v908
  %2341 = vmatpush1.msra.mxu0 %v907
  %2342 = vmatprep.subr.mxu0 %v912
  %2343 = vmatpush1.msra.mxu0 %v911
  %2344 = vmatprep.mubr.f32.mxu0 %v2066
  %2345 = vmatmul.mubr.f32.gmra.mrb[0].mxu0 %v2065
  %v2346 = vpop.f32.mrb[0].mxu0
  %v2347 = vadd.f32 %v2276, %v2346
  %v2348 = vpop.f32.mrb[0].mxu0
  %v2349 = vadd.f32 %v2278, %v2348
  %2350 = vdwg.mxu0
  %v2351 = vtanh.pop %v2205
  %v2352 = vtanh.pop %v2207
  %v2353 = vtanh.pop %v2347
  %v2354 = vtanh.pop %v2349
  %2355 = vmatprep.subr.mxu0 %v658
  %2356 = vmatpush1.msra.mxu0 %v657
  %2357 = vmatprep.subr.mxu0 %v662
  %2358 = vmatpush1.msra.mxu0 %v661
  %2359 = vmatprep.subr.mxu0 %v666
  %2360 = vmatpush1.msra.mxu0 %v665
  %2361 = vmatprep.subr.mxu0 %v670
  %2362 = vmatpush1.msra.mxu0 %v669
  %2363 = vmatprep.subr.mxu0 %v674
  %2364 = vmatpush1.msra.mxu0 %v673
  %2365 = vmatprep.subr.mxu0 %v678
  %2366 = vmatpush1.msra.mxu0 %v677
  %2367 = vmatprep.subr.mxu0 %v682
  %2368 = vmatpush1.msra.mxu0 %v681
  %2369 = vmatprep.subr.mxu0 %v686
  %2370 = vmatpush1.msra.mxu0 %v685
  %2371 = vmatprep.subr.mxu0 %v690
  %2372 = vmatpush1.msra.mxu0 %v689
  %2373 = vmatprep.subr.mxu0 %v694
  %2374 = vmatpush1.msra.mxu0 %v693
  %2375 = vmatprep.subr.mxu0 %v698
  %2376 = vmatpush1.msra.mxu0 %v697
  %2377 = vmatprep.subr.mxu0 %v702
  %2378 = vmatpush1.msra.mxu0 %v701
  %2379 = vmatprep.subr.mxu0 %v706
  %2380 = vmatpush1.msra.mxu0 %v705
  %2381 = vmatprep.subr.mxu0 %v710
  %2382 = vmatpush1.msra.mxu0 %v709
  %2383 = vmatprep.subr.mxu0 %v714
  %2384 = vmatpush1.msra.mxu0 %v713
  %2385 = vmatprep.subr.mxu0 %v718
  %2386 = vmatpush1.msra.mxu0 %v717
  %2387 = vmatprep.subr.mxu0 %v722
  %2388 = vmatpush1.msra.mxu0 %v721
  %2389 = vmatprep.subr.mxu0 %v726
  %2390 = vmatpush1.msra.mxu0 %v725
  %2391 = vmatprep.subr.mxu0 %v730
  %2392 = vmatpush1.msra.mxu0 %v729
  %2393 = vmatprep.subr.mxu0 %v734
  %2394 = vmatpush1.msra.mxu0 %v733
  %2395 = vmatprep.subr.mxu0 %v738
  %2396 = vmatpush1.msra.mxu0 %v737
  %2397 = vmatprep.subr.mxu0 %v742
  %2398 = vmatpush1.msra.mxu0 %v741
  %2399 = vmatprep.subr.mxu0 %v746
  %2400 = vmatpush1.msra.mxu0 %v745
  %2401 = vmatprep.subr.mxu0 %v750
  %2402 = vmatpush1.msra.mxu0 %v749
  %2403 = vmatprep.subr.mxu0 %v754
  %2404 = vmatpush1.msra.mxu0 %v753
  %2405 = vmatprep.subr.mxu0 %v758
  %2406 = vmatpush1.msra.mxu0 %v757
  %2407 = vmatprep.subr.mxu0 %v762
  %2408 = vmatpush1.msra.mxu0 %v761
  %2409 = vmatprep.subr.mxu0 %v766
  %2410 = vmatpush1.msra.mxu0 %v765
  %2411 = vmatprep.subr.mxu0 %v770
  %2412 = vmatpush1.msra.mxu0 %v769
  %2413 = vmatprep.subr.mxu0 %v774
  %2414 = vmatpush1.msra.mxu0 %v773
  %2415 = vmatprep.subr.mxu0 %v778
  %2416 = vmatpush1.msra.mxu0 %v777
  %2417 = vmatprep.subr.mxu0 %v782
  %2418 = vmatpush1.msra.mxu0 %v781
  %2419 = vmatprep.mubr.f32.mxu0 %v2352
  %2420 = vmatmul.mubr.f32.gmra.mrb[0].mxu0 %v2351
  %v2421 = vpop.f32.mrb[0].mxu0
  %v2422 = vadd.f32 %v296, %v2421
  %v2423 = vpop.f32.mrb[0].mxu0
  %v2424 = vadd.f32 %v298, %v2423
  %2425 = vdwg.mxu0
  %2426 = vmatprep.subr.mxu0 %v786
  %2427 = vmatpush1.msra.mxu0 %v785
  %2428 = vmatprep.subr.mxu0 %v790
  %2429 = vmatpush1.msra.mxu0 %v789
  %2430 = vmatprep.subr.mxu0 %v794
  %2431 = vmatpush1.msra.mxu0 %v793
  %2432 = vmatprep.subr.mxu0 %v798
  %2433 = vmatpush1.msra.mxu0 %v797
  %2434 = vmatprep.subr.mxu0 %v802
  %2435 = vmatpush1.msra.mxu0 %v801
  %2436 = vmatprep.subr.mxu0 %v806
  %2437 = vmatpush1.msra.mxu0 %v805
  %2438 = vmatprep.subr.mxu0 %v810
  %2439 = vmatpush1.msra.mxu0 %v809
  %2440 = vmatprep.subr.mxu0 %v814
  %2441 = vmatpush1.msra.mxu0 %v813
  %2442 = vmatprep.subr.mxu0 %v818
  %2443 = vmatpush1.msra.mxu0 %v817
  %2444 = vmatprep.subr.mxu0 %v822
  %2445 = vmatpush1.msra.mxu0 %v821
  %2446 = vmatprep.subr.mxu0 %v826
  %2447 = vmatpush1.msra.mxu0 %v825
  %2448 = vmatprep.subr.mxu0 %v830
  %2449 = vmatpush1.msra.mxu0 %v829
  %2450 = vmatprep.subr.mxu0 %v834
  %2451 = vmatpush1.msra.mxu0 %v833
  %2452 = vmatprep.subr.mxu0 %v838
  %2453 = vmatpush1.msra.mxu0 %v837
  %2454 = vmatprep.subr.mxu0 %v842
  %2455 = vmatpush1.msra.mxu0 %v841
  %2456 = vmatprep.subr.mxu0 %v846
  %2457 = vmatpush1.msra.mxu0 %v845
  %2458 = vmatprep.subr.mxu0 %v850
  %2459 = vmatpush1.msra.mxu0 %v849
  %2460 = vmatprep.subr.mxu0 %v854
  %2461 = vmatpush1.msra.mxu0 %v853
  %2462 = vmatprep.subr.mxu0 %v858
  %2463 = vmatpush1.msra.mxu0 %v857
  %2464 = vmatprep.subr.mxu0 %v862
  %2465 = vmatpush1.msra.mxu0 %v861
  %2466 = vmatprep.subr.mxu0 %v866
  %2467 = vmatpush1.msra.mxu0 %v865
  %2468 = vmatprep.subr.mxu0 %v870
  %2469 = vmatpush1.msra.mxu0 %v869
  %2470 = vmatprep.subr.mxu0 %v874
  %2471 = vmatpush1.msra.mxu0 %v873
  %2472 = vmatprep.subr.mxu0 %v878
  %2473 = vmatpush1.msra.mxu0 %v877
  %2474 = vmatprep.subr.mxu0 %v882
  %2475 = vmatpush1.msra.mxu0 %v881
  %2476 = vmatprep.subr.mxu0 %v886
  %2477 = vmatpush1.msra.mxu0 %v885
  %2478 = vmatprep.subr.mxu0 %v890
  %2479 = vmatpush1.msra.mxu0 %v889
  %2480 = vmatprep.subr.mxu0 %v894
  %2481 = vmatpush1.msra.mxu0 %v893
  %2482 = vmatprep.subr.mxu0 %v898
  %2483 = vmatpush1.msra.mxu0 %v897
  %2484 = vmatprep.subr.mxu0 %v902
  %2485 = vmatpush1.msra.mxu0 %v901
  %2486 = vmatprep.subr.mxu0 %v906
  %2487 = vmatpush1.msra.mxu0 %v905
  %2488 = vmatprep.subr.mxu0 %v910
  %2489 = vmatpush1.msra.mxu0 %v909
  %2490 = vmatprep.mubr.f32.mxu0 %v2354
  %2491 = vmatmul.mubr.f32.gmra.mrb[0].mxu0 %v2353
  %v2492 = vpop.f32.mrb[0].mxu0
  %v2493 = vadd.f32 %v2422, %v2492
  %v2494 = vpop.f32.mrb[0].mxu0
  %v2495 = vadd.f32 %v2424, %v2494
  %2496 = vdwg.mxu0
  %2497 = vmatprep.subr.mxu0 %v660
  %2498 = vmatpush1.msra.mxu0 %v659
  %2499 = vmatprep.subr.mxu0 %v664
  %2500 = vmatpush1.msra.mxu0 %v663
  %2501 = vmatprep.subr.mxu0 %v668
  %2502 = vmatpush1.msra.mxu0 %v667
  %2503 = vmatprep.subr.mxu0 %v672
  %2504 = vmatpush1.msra.mxu0 %v671
  %2505 = vmatprep.subr.mxu0 %v676
  %2506 = vmatpush1.msra.mxu0 %v675
  %2507 = vmatprep.subr.mxu0 %v680
  %2508 = vmatpush1.msra.mxu0 %v679
  %2509 = vmatprep.subr.mxu0 %v684
  %2510 = vmatpush1.msra.mxu0 %v683
  %2511 = vmatprep.subr.mxu0 %v688
  %2512 = vmatpush1.msra.mxu0 %v687
  %2513 = vmatprep.subr.mxu0 %v692
  %2514 = vmatpush1.msra.mxu0 %v691
  %2515 = vmatprep.subr.mxu0 %v696
  %2516 = vmatpush1.msra.mxu0 %v695
  %2517 = vmatprep.subr.mxu0 %v700
  %2518 = vmatpush1.msra.mxu0 %v699
  %2519 = vmatprep.subr.mxu0 %v704
  %2520 = vmatpush1.msra.mxu0 %v703
  %2521 = vmatprep.subr.mxu0 %v708
  %2522 = vmatpush1.msra.mxu0 %v707
  %2523 = vmatprep.subr.mxu0 %v712
  %2524 = vmatpush1.msra.mxu0 %v711
  %2525 = vmatprep.subr.mxu0 %v716
  %2526 = vmatpush1.msra.mxu0 %v715
  %2527 = vmatprep.subr.mxu0 %v720
  %2528 = vmatpush1.msra.mxu0 %v719
  %2529 = vmatprep.subr.mxu0 %v724
  %2530 = vmatpush1.msra.mxu0 %v723
  %2531 = vmatprep.subr.mxu0 %v728
  %2532 = vmatpush1.msra.mxu0 %v727
  %2533 = vmatprep.subr.mxu0 %v732
  %2534 = vmatpush1.msra.mxu0 %v731
  %2535 = vmatprep.subr.mxu0 %v736
  %2536 = vmatpush1.msra.mxu0 %v735
  %2537 = vmatprep.subr.mxu0 %v740
  %2538 = vmatpush1.msra.mxu0 %v739
  %2539 = vmatprep.subr.mxu0 %v744
  %2540 = vmatpush1.msra.mxu0 %v743
  %2541 = vmatprep.subr.mxu0 %v748
  %2542 = vmatpush1.msra.mxu0 %v747
  %2543 = vmatprep.subr.mxu0 %v752
  %2544 = vmatpush1.msra.mxu0 %v751
  %2545 = vmatprep.subr.mxu0 %v756
  %2546 = vmatpush1.msra.mxu0 %v755
  %2547 = vmatprep.subr.mxu0 %v760
  %2548 = vmatpush1.msra.mxu0 %v759
  %2549 = vmatprep.subr.mxu0 %v764
  %2550 = vmatpush1.msra.mxu0 %v763
  %2551 = vmatprep.subr.mxu0 %v768
  %2552 = vmatpush1.msra.mxu0 %v767
  %2553 = vmatprep.subr.mxu0 %v772
  %2554 = vmatpush1.msra.mxu0 %v771
  %2555 = vmatprep.subr.mxu0 %v776
  %2556 = vmatpush1.msra.mxu0 %v775
  %2557 = vmatprep.subr.mxu0 %v780
  %2558 = vmatpush1.msra.mxu0 %v779
  %2559 = vmatprep.subr.mxu0 %v784
  %2560 = vmatpush1.msra.mxu0 %v783
  %2561 = vmatprep.mubr.f32.mxu0 %v2352
  %2562 = vmatmul.mubr.f32.gmra.mrb[0].mxu0 %v2351
  %v2563 = vpop.f32.mrb[0].mxu0
  %v2564 = vadd.f32 %v527, %v2563
  %v2565 = vpop.f32.mrb[0].mxu0
  %v2566 = vadd.f32 %v529, %v2565
  %2567 = vdwg.mxu0
  %2568 = vmatprep.subr.mxu0 %v788
  %2569 = vmatpush1.msra.mxu0 %v787
  %2570 = vmatprep.subr.mxu0 %v792
  %2571 = vmatpush1.msra.mxu0 %v791
  %2572 = vmatprep.subr.mxu0 %v796
  %2573 = vmatpush1.msra.mxu0 %v795
  %2574 = vmatprep.subr.mxu0 %v800
  %2575 = vmatpush1.msra.mxu0 %v799
  %2576 = vmatprep.subr.mxu0 %v804
  %2577 = vmatpush1.msra.mxu0 %v803
  %2578 = vmatprep.subr.mxu0 %v808
  %2579 = vmatpush1.msra.mxu0 %v807
  %2580 = vmatprep.subr.mxu0 %v812
  %2581 = vmatpush1.msra.mxu0 %v811
  %2582 = vmatprep.subr.mxu0 %v816
  %2583 = vmatpush1.msra.mxu0 %v815
  %2584 = vmatprep.subr.mxu0 %v820
  %2585 = vmatpush1.msra.mxu0 %v819
  %2586 = vmatprep.subr.mxu0 %v824
  %2587 = vmatpush1.msra.mxu0 %v823
  %2588 = vmatprep.subr.mxu0 %v828
  %2589 = vmatpush1.msra.mxu0 %v827
  %2590 = vmatprep.subr.mxu0 %v832
  %2591 = vmatpush1.msra.mxu0 %v831
  %2592 = vmatprep.subr.mxu0 %v836
  %2593 = vmatpush1.msra.mxu0 %v835
  %2594 = vmatprep.subr.mxu0 %v840
  %2595 = vmatpush1.msra.mxu0 %v839
  %2596 = vmatprep.subr.mxu0 %v844
  %2597 = vmatpush1.msra.mxu0 %v843
  %2598 = vmatprep.subr.mxu0 %v848
  %2599 = vmatpush1.msra.mxu0 %v847
  %2600 = vmatprep.subr.mxu0 %v852
  %2601 = vmatpush1.msra.mxu0 %v851
  %2602 = vmatprep.subr.mxu0 %v856
  %2603 = vmatpush1.msra.mxu0 %v855
  %2604 = vmatprep.subr.mxu0 %v860
  %2605 = vmatpush1.msra.mxu0 %v859
  %2606 = vmatprep.subr.mxu0 %v864
  %2607 = vmatpush1.msra.mxu0 %v863
  %2608 = vmatprep.subr.mxu0 %v868
  %2609 = vmatpush1.msra.mxu0 %v867
  %2610 = vmatprep.subr.mxu0 %v872
  %2611 = vmatpush1.msra.mxu0 %v871
  %2612 = vmatprep.subr.mxu0 %v876
  %2613 = vmatpush1.msra.mxu0 %v875
  %2614 = vmatprep.subr.mxu0 %v880
  %2615 = vmatpush1.msra.mxu0 %v879
  %2616 = vmatprep.subr.mxu0 %v884
  %2617 = vmatpush1.msra.mxu0 %v883
  %2618 = vmatprep.subr.mxu0 %v888
  %2619 = vmatpush1.msra.mxu0 %v887
  %2620 = vmatprep.subr.mxu0 %v892
  %2621 = vmatpush1.msra.mxu0 %v891
  %2622 = vmatprep.subr.mxu0 %v896
  %2623 = vmatpush1.msra.mxu0 %v895
  %2624 = vmatprep.subr.mxu0 %v900
  %2625 = vmatpush1.msra.mxu0 %v899
  %2626 = vmatprep.subr.mxu0 %v904
  %2627 = vmatpush1.msra.mxu0 %v903
  %2628 = vmatprep.subr.mxu0 %v908
  %2629 = vmatpush1.msra.mxu0 %v907
  %2630 = vmatprep.subr.mxu0 %v912
  %2631 = vmatpush1.msra.mxu0 %v911
  %2632 = vmatprep.mubr.f32.mxu0 %v2354
  %2633 = vmatmul.mubr.f32.gmra.mrb[0].mxu0 %v2353
  %v2634 = vpop.f32.mrb[0].mxu0
  %v2635 = vadd.f32 %v2564, %v2634
  %v2636 = vpop.f32.mrb[0].mxu0
  %v2637 = vadd.f32 %v2566, %v2636
  %2638 = vdwg.mxu0
  %v2639 = vtanh.pop %v2493
  %v2640 = vtanh.pop %v2495
  %v2641 = vtanh.pop %v2635
  %v2642 = vtanh.pop %v2637
  %2643 = vmatprep.subr.mxu0 %v658
  %2644 = vmatpush1.msra.mxu0 %v657
  %2645 = vmatprep.subr.mxu0 %v662
  %2646 = vmatpush1.msra.mxu0 %v661
  %2647 = vmatprep.subr.mxu0 %v666
  %2648 = vmatpush1.msra.mxu0 %v665
  %2649 = vmatprep.subr.mxu0 %v670
  %2650 = vmatpush1.msra.mxu0 %v669
  %2651 = vmatprep.subr.mxu0 %v674
  %2652 = vmatpush1.msra.mxu0 %v673
  %2653 = vmatprep.subr.mxu0 %v678
  %2654 = vmatpush1.msra.mxu0 %v677
  %2655 = vmatprep.subr.mxu0 %v682
  %2656 = vmatpush1.msra.mxu0 %v681
  %2657 = vmatprep.subr.mxu0 %v686
  %2658 = vmatpush1.msra.mxu0 %v685
  %2659 = vmatprep.subr.mxu0 %v690
  %2660 = vmatpush1.msra.mxu0 %v689
  %2661 = vmatprep.subr.mxu0 %v694
  %2662 = vmatpush1.msra.mxu0 %v693
  %2663 = vmatprep.subr.mxu0 %v698
  %2664 = vmatpush1.msra.mxu0 %v697
  %2665 = vmatprep.subr.mxu0 %v702
  %2666 = vmatpush1.msra.mxu0 %v701
  %2667 = vmatprep.subr.mxu0 %v706
  %2668 = vmatpush1.msra.mxu0 %v705
  %2669 = vmatprep.subr.mxu0 %v710
  %2670 = vmatpush1.msra.mxu0 %v709
  %2671 = vmatprep.subr.mxu0 %v714
  %2672 = vmatpush1.msra.mxu0 %v713
  %2673 = vmatprep.subr.mxu0 %v718
  %2674 = vmatpush1.msra.mxu0 %v717
  %2675 = vmatprep.subr.mxu0 %v722
  %2676 = vmatpush1.msra.mxu0 %v721
  %2677 = vmatprep.subr.mxu0 %v726
  %2678 = vmatpush1.msra.mxu0 %v725
  %2679 = vmatprep.subr.mxu0 %v730
  %2680 = vmatpush1.msra.mxu0 %v729
  %2681 = vmatprep.subr.mxu0 %v734
  %2682 = vmatpush1.msra.mxu0 %v733
  %2683 = vmatprep.subr.mxu0 %v738
  %2684 = vmatpush1.msra.mxu0 %v737
  %2685 = vmatprep.subr.mxu0 %v742
  %2686 = vmatpush1.msra.mxu0 %v741
  %2687 = vmatprep.subr.mxu0 %v746
  %2688 = vmatpush1.msra.mxu0 %v745
  %2689 = vmatprep.subr.mxu0 %v750
  %2690 = vmatpush1.msra.mxu0 %v749
  %2691 = vmatprep.subr.mxu0 %v754
  %2692 = vmatpush1.msra.mxu0 %v753
  %2693 = vmatprep.subr.mxu0 %v758
  %2694 = vmatpush1.msra.mxu0 %v757
  %2695 = vmatprep.subr.mxu0 %v762
  %2696 = vmatpush1.msra.mxu0 %v761
  %2697 = vmatprep.subr.mxu0 %v766
  %2698 = vmatpush1.msra.mxu0 %v765
  %2699 = vmatprep.subr.mxu0 %v770
  %2700 = vmatpush1.msra.mxu0 %v769
  %2701 = vmatprep.subr.mxu0 %v774
  %2702 = vmatpush1.msra.mxu0 %v773
  %2703 = vmatprep.subr.mxu0 %v778
  %2704 = vmatpush1.msra.mxu0 %v777
  %2705 = vmatprep.subr.mxu0 %v782
  %2706 = vmatpush1.msra.mxu0 %v781
  %2707 = vmatprep.mubr.f32.mxu0 %v2640
  %2708 = vmatmul.mubr.f32.gmra.mrb[0].mxu0 %v2639
  %v2709 = vpop.f32.mrb[0].mxu0
  %v2710 = vadd.f32 %v302, %v2709
  %v2711 = vpop.f32.mrb[0].mxu0
  %v2712 = vadd.f32 %v304, %v2711
  %2713 = vdwg.mxu0
  %2714 = vmatprep.subr.mxu0 %v786
  %2715 = vmatpush1.msra.mxu0 %v785
  %2716 = vmatprep.subr.mxu0 %v790
  %2717 = vmatpush1.msra.mxu0 %v789
  %2718 = vmatprep.subr.mxu0 %v794
  %2719 = vmatpush1.msra.mxu0 %v793
  %2720 = vmatprep.subr.mxu0 %v798
  %2721 = vmatpush1.msra.mxu0 %v797
  %2722 = vmatprep.subr.mxu0 %v802
  %2723 = vmatpush1.msra.mxu0 %v801
  %2724 = vmatprep.subr.mxu0 %v806
  %2725 = vmatpush1.msra.mxu0 %v805
  %2726 = vmatprep.subr.mxu0 %v810
  %2727 = vmatpush1.msra.mxu0 %v809
  %2728 = vmatprep.subr.mxu0 %v814
  %2729 = vmatpush1.msra.mxu0 %v813
  %2730 = vmatprep.subr.mxu0 %v818
  %2731 = vmatpush1.msra.mxu0 %v817
  %2732 = vmatprep.subr.mxu0 %v822
  %2733 = vmatpush1.msra.mxu0 %v821
  %2734 = vmatprep.subr.mxu0 %v826
  %2735 = vmatpush1.msra.mxu0 %v825
  %2736 = vmatprep.subr.mxu0 %v830
  %2737 = vmatpush1.msra.mxu0 %v829
  %2738 = vmatprep.subr.mxu0 %v834
  %2739 = vmatpush1.msra.mxu0 %v833
  %2740 = vmatprep.subr.mxu0 %v838
  %2741 = vmatpush1.msra.mxu0 %v837
  %2742 = vmatprep.subr.mxu0 %v842
  %2743 = vmatpush1.msra.mxu0 %v841
  %2744 = vmatprep.subr.mxu0 %v846
  %2745 = vmatpush1.msra.mxu0 %v845
  %2746 = vmatprep.subr.mxu0 %v850
  %2747 = vmatpush1.msra.mxu0 %v849
  %2748 = vmatprep.subr.mxu0 %v854
  %2749 = vmatpush1.msra.mxu0 %v853
  %2750 = vmatprep.subr.mxu0 %v858
  %2751 = vmatpush1.msra.mxu0 %v857
  %2752 = vmatprep.subr.mxu0 %v862
  %2753 = vmatpush1.msra.mxu0 %v861
  %2754 = vmatprep.subr.mxu0 %v866
  %2755 = vmatpush1.msra.mxu0 %v865
  %2756 = vmatprep.subr.mxu0 %v870
  %2757 = vmatpush1.msra.mxu0 %v869
  %2758 = vmatprep.subr.mxu0 %v874
  %2759 = vmatpush1.msra.mxu0 %v873
  %2760 = vmatprep.subr.mxu0 %v878
  %2761 = vmatpush1.msra.mxu0 %v877
  %2762 = vmatprep.subr.mxu0 %v882
  %2763 = vmatpush1.msra.mxu0 %v881
  %2764 = vmatprep.subr.mxu0 %v886
  %2765 = vmatpush1.msra.mxu0 %v885
  %2766 = vmatprep.subr.mxu0 %v890
  %2767 = vmatpush1.msra.mxu0 %v889
  %2768 = vmatprep.subr.mxu0 %v894
  %2769 = vmatpush1.msra.mxu0 %v893
  %2770 = vmatprep.subr.mxu0 %v898
  %2771 = vmatpush1.msra.mxu0 %v897
  %2772 = vmatprep.subr.mxu0 %v902
  %2773 = vmatpush1.msra.mxu0 %v901
  %2774 = vmatprep.subr.mxu0 %v906
  %2775 = vmatpush1.msra.mxu0 %v905
  %2776 = vmatprep.subr.mxu0 %v910
  %2777 = vmatpush1.msra.mxu0 %v909
  %2778 = vmatprep.mubr.f32.mxu0 %v2642
  %2779 = vmatmul.mubr.f32.gmra.mrb[0].mxu0 %v2641
  %v2780 = vpop.f32.mrb[0].mxu0
  %v2781 = vadd.f32 %v2710, %v2780
  %v2782 = vpop.f32.mrb[0].mxu0
  %v2783 = vadd.f32 %v2712, %v2782
  %2784 = vdwg.mxu0
  %2785 = vmatprep.subr.mxu0 %v660
  %2786 = vmatpush1.msra.mxu0 %v659
  %2787 = vmatprep.subr.mxu0 %v664
  %2788 = vmatpush1.msra.mxu0 %v663
  %2789 = vmatprep.subr.mxu0 %v668
  %2790 = vmatpush1.msra.mxu0 %v667
  %2791 = vmatprep.subr.mxu0 %v672
  %2792 = vmatpush1.msra.mxu0 %v671
  %2793 = vmatprep.subr.mxu0 %v676
  %2794 = vmatpush1.msra.mxu0 %v675
  %2795 = vmatprep.subr.mxu0 %v680
  %2796 = vmatpush1.msra.mxu0 %v679
  %2797 = vmatprep.subr.mxu0 %v684
  %2798 = vmatpush1.msra.mxu0 %v683
  %2799 = vmatprep.subr.mxu0 %v688
  %2800 = vmatpush1.msra.mxu0 %v687
  %2801 = vmatprep.subr.mxu0 %v692
  %2802 = vmatpush1.msra.mxu0 %v691
  %2803 = vmatprep.subr.mxu0 %v696
  %2804 = vmatpush1.msra.mxu0 %v695
  %2805 = vmatprep.subr.mxu0 %v700
  %2806 = vmatpush1.msra.mxu0 %v699
  %2807 = vmatprep.subr.mxu0 %v704
  %2808 = vmatpush1.msra.mxu0 %v703
  %2809 = vmatprep.subr.mxu0 %v708
  %2810 = vmatpush1.msra.mxu0 %v707
  %2811 = vmatprep.subr.mxu0 %v712
  %2812 = vmatpush1.msra.mxu0 %v711
  %2813 = vmatprep.subr.mxu0 %v716
  %2814 = vmatpush1.msra.mxu0 %v715
  %2815 = vmatprep.subr.mxu0 %v720
  %2816 = vmatpush1.msra.mxu0 %v719
  %2817 = vmatprep.subr.mxu0 %v724
  %2818 = vmatpush1.msra.mxu0 %v723
  %2819 = vmatprep.subr.mxu0 %v728
  %2820 = vmatpush1.msra.mxu0 %v727
  %2821 = vmatprep.subr.mxu0 %v732
  %2822 = vmatpush1.msra.mxu0 %v731
  %2823 = vmatprep.subr.mxu0 %v736
  %2824 = vmatpush1.msra.mxu0 %v735
  %2825 = vmatprep.subr.mxu0 %v740
  %2826 = vmatpush1.msra.mxu0 %v739
  %2827 = vmatprep.subr.mxu0 %v744
  %2828 = vmatpush1.msra.mxu0 %v743
  %2829 = vmatprep.subr.mxu0 %v748
  %2830 = vmatpush1.msra.mxu0 %v747
  %2831 = vmatprep.subr.mxu0 %v752
  %2832 = vmatpush1.msra.mxu0 %v751
  %2833 = vmatprep.subr.mxu0 %v756
  %2834 = vmatpush1.msra.mxu0 %v755
  %2835 = vmatprep.subr.mxu0 %v760
  %2836 = vmatpush1.msra.mxu0 %v759
  %2837 = vmatprep.subr.mxu0 %v764
  %2838 = vmatpush1.msra.mxu0 %v763
  %2839 = vmatprep.subr.mxu0 %v768
  %2840 = vmatpush1.msra.mxu0 %v767
  %2841 = vmatprep.subr.mxu0 %v772
  %2842 = vmatpush1.msra.mxu0 %v771
  %2843 = vmatprep.subr.mxu0 %v776
  %2844 = vmatpush1.msra.mxu0 %v775
  %2845 = vmatprep.subr.mxu0 %v780
  %2846 = vmatpush1.msra.mxu0 %v779
  %2847 = vmatprep.subr.mxu0 %v784
  %2848 = vmatpush1.msra.mxu0 %v783
  %2849 = vmatprep.mubr.f32.mxu0 %v2640
  %2850 = vmatmul.mubr.f32.gmra.mrb[0].mxu0 %v2639
  %v2851 = vpop.f32.mrb[0].mxu0
  %v2852 = vadd.f32 %v533, %v2851
  %v2853 = vpop.f32.mrb[0].mxu0
  %v2854 = vadd.f32 %v535, %v2853
  %2855 = vdwg.mxu0
  %2856 = vmatprep.subr.mxu0 %v788
  %2857 = vmatpush1.msra.mxu0 %v787
  %2858 = vmatprep.subr.mxu0 %v792
  %2859 = vmatpush1.msra.mxu0 %v791
  %2860 = vmatprep.subr.mxu0 %v796
  %2861 = vmatpush1.msra.mxu0 %v795
  %2862 = vmatprep.subr.mxu0 %v800
  %2863 = vmatpush1.msra.mxu0 %v799
  %2864 = vmatprep.subr.mxu0 %v804
  %2865 = vmatpush1.msra.mxu0 %v803
  %2866 = vmatprep.subr.mxu0 %v808
  %2867 = vmatpush1.msra.mxu0 %v807
  %2868 = vmatprep.subr.mxu0 %v812
  %2869 = vmatpush1.msra.mxu0 %v811
  %2870 = vmatprep.subr.mxu0 %v816
  %2871 = vmatpush1.msra.mxu0 %v815
  %2872 = vmatprep.subr.mxu0 %v820
  %2873 = vmatpush1.msra.mxu0 %v819
  %2874 = vmatprep.subr.mxu0 %v824
  %2875 = vmatpush1.msra.mxu0 %v823
  %2876 = vmatprep.subr.mxu0 %v828
  %2877 = vmatpush1.msra.mxu0 %v827
  %2878 = vmatprep.subr.mxu0 %v832
  %2879 = vmatpush1.msra.mxu0 %v831
  %2880 = vmatprep.subr.mxu0 %v836
  %2881 = vmatpush1.msra.mxu0 %v835
  %2882 = vmatprep.subr.mxu0 %v840
  %2883 = vmatpush1.msra.mxu0 %v839
  %2884 = vmatprep.subr.mxu0 %v844
  %2885 = vmatpush1.msra.mxu0 %v843
  %2886 = vmatprep.subr.mxu0 %v848
  %2887 = vmatpush1.msra.mxu0 %v847
  %2888 = vmatprep.subr.mxu0 %v852
  %2889 = vmatpush1.msra.mxu0 %v851
  %2890 = vmatprep.subr.mxu0 %v856
  %2891 = vmatpush1.msra.mxu0 %v855
  %2892 = vmatprep.subr.mxu0 %v860
  %2893 = vmatpush1.msra.mxu0 %v859
  %2894 = vmatprep.subr.mxu0 %v864
  %2895 = vmatpush1.msra.mxu0 %v863
  %2896 = vmatprep.subr.mxu0 %v868
  %2897 = vmatpush1.msra.mxu0 %v867
  %2898 = vmatprep.subr.mxu0 %v872
  %2899 = vmatpush1.msra.mxu0 %v871
  %2900 = vmatprep.subr.mxu0 %v876
  %2901 = vmatpush1.msra.mxu0 %v875
  %2902 = vmatprep.subr.mxu0 %v880
  %2903 = vmatpush1.msra.mxu0 %v879
  %2904 = vmatprep.subr.mxu0 %v884
  %2905 = vmatpush1.msra.mxu0 %v883
  %2906 = vmatprep.subr.mxu0 %v888
  %2907 = vmatpush1.msra.mxu0 %v887
  %2908 = vmatprep.subr.mxu0 %v892
  %2909 = vmatpush1.msra.mxu0 %v891
  %2910 = vmatprep.subr.mxu0 %v896
  %2911 = vmatpush1.msra.mxu0 %v895
  %2912 = vmatprep.subr.mxu0 %v900
  %2913 = vmatpush1.msra.mxu0 %v899
  %2914 = vmatprep.subr.mxu0 %v904
  %2915 = vmatpush1.msra.mxu0 %v903
  %2916 = vmatprep.subr.mxu0 %v908
  %2917 = vmatpush1.msra.mxu0 %v907
  %2918 = vmatprep.subr.mxu0 %v912
  %2919 = vmatpush1.msra.mxu0 %v911
  %2920 = vmatprep.mubr.f32.mxu0 %v2642
  %2921 = vmatmul.mubr.f32.gmra.mrb[0].mxu0 %v2641
  %v2922 = vpop.f32.mrb[0].mxu0
  %v2923 = vadd.f32 %v2852, %v2922
  %v2924 = vpop.f32.mrb[0].mxu0
  %v2925 = vadd.f32 %v2854, %v2924
  %2926 = vdwg.mxu0
  %v2927 = vtanh.pop %v2781
  %v2928 = vtanh.pop %v2783
  %v2929 = vtanh.pop %v2923
  %v2930 = vtanh.pop %v2925
  %2931 = vmatprep.subr.mxu0 %v658
  %2932 = vmatpush1.msra.mxu0 %v657
  %2933 = vmatprep.subr.mxu0 %v662
  %2934 = vmatpush1.msra.mxu0 %v661
  %2935 = vmatprep.subr.mxu0 %v666
  %2936 = vmatpush1.msra.mxu0 %v665
  %2937 = vmatprep.subr.mxu0 %v670
  %2938 = vmatpush1.msra.mxu0 %v669
  %2939 = vmatprep.subr.mxu0 %v674
  %2940 = vmatpush1.msra.mxu0 %v673
  %2941 = vmatprep.subr.mxu0 %v678
  %2942 = vmatpush1.msra.mxu0 %v677
  %2943 = vmatprep.subr.mxu0 %v682
  %2944 = vmatpush1.msra.mxu0 %v681
  %2945 = vmatprep.subr.mxu0 %v686
  %2946 = vmatpush1.msra.mxu0 %v685
  %2947 = vmatprep.subr.mxu0 %v690
  %2948 = vmatpush1.msra.mxu0 %v689
  %2949 = vmatprep.subr.mxu0 %v694
  %2950 = vmatpush1.msra.mxu0 %v693
  %2951 = vmatprep.subr.mxu0 %v698
  %2952 = vmatpush1.msra.mxu0 %v697
  %2953 = vmatprep.subr.mxu0 %v702
  %2954 = vmatpush1.msra.mxu0 %v701
  %2955 = vmatprep.subr.mxu0 %v706
  %2956 = vmatpush1.msra.mxu0 %v705
  %2957 = vmatprep.subr.mxu0 %v710
  %2958 = vmatpush1.msra.mxu0 %v709
  %2959 = vmatprep.subr.mxu0 %v714
  %2960 = vmatpush1.msra.mxu0 %v713
  %2961 = vmatprep.subr.mxu0 %v718
  %2962 = vmatpush1.msra.mxu0 %v717
  %2963 = vmatprep.subr.mxu0 %v722
  %2964 = vmatpush1.msra.mxu0 %v721
  %2965 = vmatprep.subr.mxu0 %v726
  %2966 = vmatpush1.msra.mxu0 %v725
  %2967 = vmatprep.subr.mxu0 %v730
  %2968 = vmatpush1.msra.mxu0 %v729
  %2969 = vmatprep.subr.mxu0 %v734
  %2970 = vmatpush1.msra.mxu0 %v733
  %2971 = vmatprep.subr.mxu0 %v738
  %2972 = vmatpush1.msra.mxu0 %v737
  %2973 = vmatprep.subr.mxu0 %v742
  %2974 = vmatpush1.msra.mxu0 %v741
  %2975 = vmatprep.subr.mxu0 %v746
  %2976 = vmatpush1.msra.mxu0 %v745
  %2977 = vmatprep.subr.mxu0 %v750
  %2978 = vmatpush1.msra.mxu0 %v749
  %2979 = vmatprep.subr.mxu0 %v754
  %2980 = vmatpush1.msra.mxu0 %v753
  %2981 = vmatprep.subr.mxu0 %v758
  %2982 = vmatpush1.msra.mxu0 %v757
  %2983 = vmatprep.subr.mxu0 %v762
  %2984 = vmatpush1.msra.mxu0 %v761
  %2985 = vmatprep.subr.mxu0 %v766
  %2986 = vmatpush1.msra.mxu0 %v765
  %2987 = vmatprep.subr.mxu0 %v770
  %2988 = vmatpush1.msra.mxu0 %v769
  %2989 = vmatprep.subr.mxu0 %v774
  %2990 = vmatpush1.msra.mxu0 %v773
  %2991 = vmatprep.subr.mxu0 %v778
  %2992 = vmatpush1.msra.mxu0 %v777
  %2993 = vmatprep.subr.mxu0 %v782
  %2994 = vmatpush1.msra.mxu0 %v781
  %2995 = vmatprep.mubr.f32.mxu0 %v2928
  %2996 = vmatmul.mubr.f32.gmra.mrb[0].mxu0 %v2927
  %v2997 = vpop.f32.mrb[0].mxu0
  %v2998 = vadd.f32 %v308, %v2997
  %v2999 = vpop.f32.mrb[0].mxu0
  %v3000 = vadd.f32 %v310, %v2999
  %3001 = vdwg.mxu0
  %3002 = vmatprep.subr.mxu0 %v786
  %3003 = vmatpush1.msra.mxu0 %v785
  %3004 = vmatprep.subr.mxu0 %v790
  %3005 = vmatpush1.msra.mxu0 %v789
  %3006 = vmatprep.subr.mxu0 %v794
  %3007 = vmatpush1.msra.mxu0 %v793
  %3008 = vmatprep.subr.mxu0 %v798
  %3009 = vmatpush1.msra.mxu0 %v797
  %3010 = vmatprep.subr.mxu0 %v802
  %3011 = vmatpush1.msra.mxu0 %v801
  %3012 = vmatprep.subr.mxu0 %v806
  %3013 = vmatpush1.msra.mxu0 %v805
  %3014 = vmatprep.subr.mxu0 %v810
  %3015 = vmatpush1.msra.mxu0 %v809
  %3016 = vmatprep.subr.mxu0 %v814
  %3017 = vmatpush1.msra.mxu0 %v813
  %3018 = vmatprep.subr.mxu0 %v818
  %3019 = vmatpush1.msra.mxu0 %v817
  %3020 = vmatprep.subr.mxu0 %v822
  %3021 = vmatpush1.msra.mxu0 %v821
  %3022 = vmatprep.subr.mxu0 %v826
  %3023 = vmatpush1.msra.mxu0 %v825
  %3024 = vmatprep.subr.mxu0 %v830
  %3025 = vmatpush1.msra.mxu0 %v829
  %3026 = vmatprep.subr.mxu0 %v834
  %3027 = vmatpush1.msra.mxu0 %v833
  %3028 = vmatprep.subr.mxu0 %v838
  %3029 = vmatpush1.msra.mxu0 %v837
  %3030 = vmatprep.subr.mxu0 %v842
  %3031 = vmatpush1.msra.mxu0 %v841
  %3032 = vmatprep.subr.mxu0 %v846
  %3033 = vmatpush1.msra.mxu0 %v845
  %3034 = vmatprep.subr.mxu0 %v850
  %3035 = vmatpush1.msra.mxu0 %v849
  %3036 = vmatprep.subr.mxu0 %v854
  %3037 = vmatpush1.msra.mxu0 %v853
  %3038 = vmatprep.subr.mxu0 %v858
  %3039 = vmatpush1.msra.mxu0 %v857
  %3040 = vmatprep.subr.mxu0 %v862
  %3041 = vmatpush1.msra.mxu0 %v861
  %3042 = vmatprep.subr.mxu0 %v866
  %3043 = vmatpush1.msra.mxu0 %v865
  %3044 = vmatprep.subr.mxu0 %v870
  %3045 = vmatpush1.msra.mxu0 %v869
  %3046 = vmatprep.subr.mxu0 %v874
  %3047 = vmatpush1.msra.mxu0 %v873
  %3048 = vmatprep.subr.mxu0 %v878
  %3049 = vmatpush1.msra.mxu0 %v877
  %3050 = vmatprep.subr.mxu0 %v882
  %3051 = vmatpush1.msra.mxu0 %v881
  %3052 = vmatprep.subr.mxu0 %v886
  %3053 = vmatpush1.msra.mxu0 %v885
  %3054 = vmatprep.subr.mxu0 %v890
  %3055 = vmatpush1.msra.mxu0 %v889
  %3056 = vmatprep.subr.mxu0 %v894
  %3057 = vmatpush1.msra.mxu0 %v893
  %3058 = vmatprep.subr.mxu0 %v898
  %3059 = vmatpush1.msra.mxu0 %v897
  %3060 = vmatprep.subr.mxu0 %v902
  %3061 = vmatpush1.msra.mxu0 %v901
  %3062 = vmatprep.subr.mxu0 %v906
  %3063 = vmatpush1.msra.mxu0 %v905
  %3064 = vmatprep.subr.mxu0 %v910
  %3065 = vmatpush1.msra.mxu0 %v909
  %3066 = vmatprep.mubr.f32.mxu0 %v2930
  %3067 = vmatmul.mubr.f32.gmra.mrb[0].mxu0 %v2929
  %v3068 = vpop.f32.mrb[0].mxu0
  %v3069 = vadd.f32 %v2998, %v3068
  %v3070 = vpop.f32.mrb[0].mxu0
  %v3071 = vadd.f32 %v3000, %v3070
  %3072 = vdwg.mxu0
  %3073 = vmatprep.subr.mxu0 %v660
  %3074 = vmatpush1.msra.mxu0 %v659
  %3075 = vmatprep.subr.mxu0 %v664
  %3076 = vmatpush1.msra.mxu0 %v663
  %3077 = vmatprep.subr.mxu0 %v668
  %3078 = vmatpush1.msra.mxu0 %v667
  %3079 = vmatprep.subr.mxu0 %v672
  %3080 = vmatpush1.msra.mxu0 %v671
  %3081 = vmatprep.subr.mxu0 %v676
  %3082 = vmatpush1.msra.mxu0 %v675
  %3083 = vmatprep.subr.mxu0 %v680
  %3084 = vmatpush1.msra.mxu0 %v679
  %3085 = vmatprep.subr.mxu0 %v684
  %3086 = vmatpush1.msra.mxu0 %v683
  %3087 = vmatprep.subr.mxu0 %v688
  %3088 = vmatpush1.msra.mxu0 %v687
  %3089 = vmatprep.subr.mxu0 %v692
  %3090 = vmatpush1.msra.mxu0 %v691
  %3091 = vmatprep.subr.mxu0 %v696
  %3092 = vmatpush1.msra.mxu0 %v695
  %3093 = vmatprep.subr.mxu0 %v700
  %3094 = vmatpush1.msra.mxu0 %v699
  %3095 = vmatprep.subr.mxu0 %v704
  %3096 = vmatpush1.msra.mxu0 %v703
  %3097 = vmatprep.subr.mxu0 %v708
  %3098 = vmatpush1.msra.mxu0 %v707
  %3099 = vmatprep.subr.mxu0 %v712
  %3100 = vmatpush1.msra.mxu0 %v711
  %3101 = vmatprep.subr.mxu0 %v716
  %3102 = vmatpush1.msra.mxu0 %v715
  %3103 = vmatprep.subr.mxu0 %v720
  %3104 = vmatpush1.msra.mxu0 %v719
  %3105 = vmatprep.subr.mxu0 %v724
  %3106 = vmatpush1.msra.mxu0 %v723
  %3107 = vmatprep.subr.mxu0 %v728
  %3108 = vmatpush1.msra.mxu0 %v727
  %3109 = vmatprep.subr.mxu0 %v732
  %3110 = vmatpush1.msra.mxu0 %v731
  %3111 = vmatprep.subr.mxu0 %v736
  %3112 = vmatpush1.msra.mxu0 %v735
  %3113 = vmatprep.subr.mxu0 %v740
  %3114 = vmatpush1.msra.mxu0 %v739
  %3115 = vmatprep.subr.mxu0 %v744
  %3116 = vmatpush1.msra.mxu0 %v743
  %3117 = vmatprep.subr.mxu0 %v748
  %3118 = vmatpush1.msra.mxu0 %v747
  %3119 = vmatprep.subr.mxu0 %v752
  %3120 = vmatpush1.msra.mxu0 %v751
  %3121 = vmatprep.subr.mxu0 %v756
  %3122 = vmatpush1.msra.mxu0 %v755
  %3123 = vmatprep.subr.mxu0 %v760
  %3124 = vmatpush1.msra.mxu0 %v759
  %3125 = vmatprep.subr.mxu0 %v764
  %3126 = vmatpush1.msra.mxu0 %v763
  %3127 = vmatprep.subr.mxu0 %v768
  %3128 = vmatpush1.msra.mxu0 %v767
  %3129 = vmatprep.subr.mxu0 %v772
  %3130 = vmatpush1.msra.mxu0 %v771
  %3131 = vmatprep.subr.mxu0 %v776
  %3132 = vmatpush1.msra.mxu0 %v775
  %3133 = vmatprep.subr.mxu0 %v780
  %3134 = vmatpush1.msra.mxu0 %v779
  %3135 = vmatprep.subr.mxu0 %v784
  %3136 = vmatpush1.msra.mxu0 %v783
  %3137 = vmatprep.mubr.f32.mxu0 %v2928
  %3138 = vmatmul.mubr.f32.gmra.mrb[0].mxu0 %v2927
  %v3139 = vpop.f32.mrb[0].mxu0
  %v3140 = vadd.f32 %v539, %v3139
  %v3141 = vpop.f32.mrb[0].mxu0
  %v3142 = vadd.f32 %v541, %v3141
  %3143 = vdwg.mxu0
  %3144 = vmatprep.subr.mxu0 %v788
  %3145 = vmatpush1.msra.mxu0 %v787
  %3146 = vmatprep.subr.mxu0 %v792
  %3147 = vmatpush1.msra.mxu0 %v791
  %3148 = vmatprep.subr.mxu0 %v796
  %3149 = vmatpush1.msra.mxu0 %v795
  %3150 = vmatprep.subr.mxu0 %v800
  %3151 = vmatpush1.msra.mxu0 %v799
  %3152 = vmatprep.subr.mxu0 %v804
  %3153 = vmatpush1.msra.mxu0 %v803
  %3154 = vmatprep.subr.mxu0 %v808
  %3155 = vmatpush1.msra.mxu0 %v807
  %3156 = vmatprep.subr.mxu0 %v812
  %3157 = vmatpush1.msra.mxu0 %v811
  %3158 = vmatprep.subr.mxu0 %v816
  %3159 = vmatpush1.msra.mxu0 %v815
  %3160 = vmatprep.subr.mxu0 %v820
  %3161 = vmatpush1.msra.mxu0 %v819
  %3162 = vmatprep.subr.mxu0 %v824
  %3163 = vmatpush1.msra.mxu0 %v823
  %3164 = vmatprep.subr.mxu0 %v828
  %3165 = vmatpush1.msra.mxu0 %v827
  %3166 = vmatprep.subr.mxu0 %v832
  %3167 = vmatpush1.msra.mxu0 %v831
  %3168 = vmatprep.subr.mxu0 %v836
  %3169 = vmatpush1.msra.mxu0 %v835
  %3170 = vmatprep.subr.mxu0 %v840
  %3171 = vmatpush1.msra.mxu0 %v839
  %3172 = vmatprep.subr.mxu0 %v844
  %3173 = vmatpush1.msra.mxu0 %v843
  %3174 = vmatprep.subr.mxu0 %v848
  %3175 = vmatpush1.msra.mxu0 %v847
  %3176 = vmatprep.subr.mxu0 %v852
  %3177 = vmatpush1.msra.mxu0 %v851
  %3178 = vmatprep.subr.mxu0 %v856
  %3179 = vmatpush1.msra.mxu0 %v855
  %3180 = vmatprep.subr.mxu0 %v860
  %3181 = vmatpush1.msra.mxu0 %v859
  %3182 = vmatprep.subr.mxu0 %v864
  %3183 = vmatpush1.msra.mxu0 %v863
  %3184 = vmatprep.subr.mxu0 %v868
  %3185 = vmatpush1.msra.mxu0 %v867
  %3186 = vmatprep.subr.mxu0 %v872
  %3187 = vmatpush1.msra.mxu0 %v871
  %3188 = vmatprep.subr.mxu0 %v876
  %3189 = vmatpush1.msra.mxu0 %v875
  %3190 = vmatprep.subr.mxu0 %v880
  %3191 = vmatpush1.msra.mxu0 %v879
  %3192 = vmatprep.subr.mxu0 %v884
  %3193 = vmatpush1.msra.mxu0 %v883
  %3194 = vmatprep.subr.mxu0 %v888
  %3195 = vmatpush1.msra.mxu0 %v887
  %3196 = vmatprep.subr.mxu0 %v892
  %3197 = vmatpush1.msra.mxu0 %v891
  %3198 = vmatprep.subr.mxu0 %v896
  %3199 = vmatpush1.msra.mxu0 %v895
  %3200 = vmatprep.subr.mxu0 %v900
  %3201 = vmatpush1.msra.mxu0 %v899
  %3202 = vmatprep.subr.mxu0 %v904
  %3203 = vmatpush1.msra.mxu0 %v903
  %3204 = vmatprep.subr.mxu0 %v908
  %3205 = vmatpush1.msra.mxu0 %v907
  %3206 = vmatprep.subr.mxu0 %v912
  %3207 = vmatpush1.msra.mxu0 %v911
  %3208 = vmatprep.mubr.f32.mxu0 %v2930
  %3209 = vmatmul.mubr.f32.gmra.mrb[0].mxu0 %v2929
  %v3210 = vpop.f32.mrb[0].mxu0
  %v3211 = vadd.f32 %v3140, %v3210
  %v3212 = vpop.f32.mrb[0].mxu0
  %v3213 = vadd.f32 %v3142, %v3212
  %3214 = vdwg.mxu0
  %v3215 = vtanh.pop %v3069
  %v3216 = vtanh.pop %v3071
  %v3217 = vtanh.pop %v3211
  %v3218 = vtanh.pop %v3213
  %3219 = vmatprep.subr.mxu0 %v658
  %3220 = vmatpush1.msra.mxu0 %v657
  %3221 = vmatprep.subr.mxu0 %v662
  %3222 = vmatpush1.msra.mxu0 %v661
  %3223 = vmatprep.subr.mxu0 %v666
  %3224 = vmatpush1.msra.mxu0 %v665
  %3225 = vmatprep.subr.mxu0 %v670
  %3226 = vmatpush1.msra.mxu0 %v669
  %3227 = vmatprep.subr.mxu0 %v674
  %3228 = vmatpush1.msra.mxu0 %v673
  %3229 = vmatprep.subr.mxu0 %v678
  %3230 = vmatpush1.msra.mxu0 %v677
  %3231 = vmatprep.subr.mxu0 %v682
  %3232 = vmatpush1.msra.mxu0 %v681
  %3233 = vmatprep.subr.mxu0 %v686
  %3234 = vmatpush1.msra.mxu0 %v685
  %3235 = vmatprep.subr.mxu0 %v690
  %3236 = vmatpush1.msra.mxu0 %v689
  %3237 = vmatprep.subr.mxu0 %v694
  %3238 = vmatpush1.msra.mxu0 %v693
  %3239 = vmatprep.subr.mxu0 %v698
  %3240 = vmatpush1.msra.mxu0 %v697
  %3241 = vmatprep.subr.mxu0 %v702
  %3242 = vmatpush1.msra.mxu0 %v701
  %3243 = vmatprep.subr.mxu0 %v706
  %3244 = vmatpush1.msra.mxu0 %v705
  %3245 = vmatprep.subr.mxu0 %v710
  %3246 = vmatpush1.msra.mxu0 %v709
  %3247 = vmatprep.subr.mxu0 %v714
  %3248 = vmatpush1.msra.mxu0 %v713
  %3249 = vmatprep.subr.mxu0 %v718
  %3250 = vmatpush1.msra.mxu0 %v717
  %3251 = vmatprep.subr.mxu0 %v722
  %3252 = vmatpush1.msra.mxu0 %v721
  %3253 = vmatprep.subr.mxu0 %v726
  %3254 = vmatpush1.msra.mxu0 %v725
  %3255 = vmatprep.subr.mxu0 %v730
  %3256 = vmatpush1.msra.mxu0 %v729
  %3257 = vmatprep.subr.mxu0 %v734
  %3258 = vmatpush1.msra.mxu0 %v733
  %3259 = vmatprep.subr.mxu0 %v738
  %3260 = vmatpush1.msra.mxu0 %v737
  %3261 = vmatprep.subr.mxu0 %v742
  %3262 = vmatpush1.msra.mxu0 %v741
  %3263 = vmatprep.subr.mxu0 %v746
  %3264 = vmatpush1.msra.mxu0 %v745
  %3265 = vmatprep.subr.mxu0 %v750
  %3266 = vmatpush1.msra.mxu0 %v749
  %3267 = vmatprep.subr.mxu0 %v754
  %3268 = vmatpush1.msra.mxu0 %v753
  %3269 = vmatprep.subr.mxu0 %v758
  %3270 = vmatpush1.msra.mxu0 %v757
  %3271 = vmatprep.subr.mxu0 %v762
  %3272 = vmatpush1.msra.mxu0 %v761
  %3273 = vmatprep.subr.mxu0 %v766
  %3274 = vmatpush1.msra.mxu0 %v765
  %3275 = vmatprep.subr.mxu0 %v770
  %3276 = vmatpush1.msra.mxu0 %v769
  %3277 = vmatprep.subr.mxu0 %v774
  %3278 = vmatpush1.msra.mxu0 %v773
  %3279 = vmatprep.subr.mxu0 %v778
  %3280 = vmatpush1.msra.mxu0 %v777
  %3281 = vmatprep.subr.mxu0 %v782
  %3282 = vmatpush1.msra.mxu0 %v781
  %3283 = vmatprep.mubr.f32.mxu0 %v3216
  %3284 = vmatmul.mubr.f32.gmra.mrb[0].mxu0 %v3215
  %v3285 = vpop.f32.mrb[0].mxu0
  %v3286 = vadd.f32 %v314, %v3285
  %v3287 = vpop.f32.mrb[0].mxu0
  %v3288 = vadd.f32 %v316, %v3287
  %3289 = vdwg.mxu0
  %3290 = vmatprep.subr.mxu0 %v786
  %3291 = vmatpush1.msra.mxu0 %v785
  %3292 = vmatprep.subr.mxu0 %v790
  %3293 = vmatpush1.msra.mxu0 %v789
  %3294 = vmatprep.subr.mxu0 %v794
  %3295 = vmatpush1.msra.mxu0 %v793
  %3296 = vmatprep.subr.mxu0 %v798
  %3297 = vmatpush1.msra.mxu0 %v797
  %3298 = vmatprep.subr.mxu0 %v802
  %3299 = vmatpush1.msra.mxu0 %v801
  %3300 = vmatprep.subr.mxu0 %v806
  %3301 = vmatpush1.msra.mxu0 %v805
  %3302 = vmatprep.subr.mxu0 %v810
  %3303 = vmatpush1.msra.mxu0 %v809
  %3304 = vmatprep.subr.mxu0 %v814
  %3305 = vmatpush1.msra.mxu0 %v813
  %3306 = vmatprep.subr.mxu0 %v818
  %3307 = vmatpush1.msra.mxu0 %v817
  %3308 = vmatprep.subr.mxu0 %v822
  %3309 = vmatpush1.msra.mxu0 %v821
  %3310 = vmatprep.subr.mxu0 %v826
  %3311 = vmatpush1.msra.mxu0 %v825
  %3312 = vmatprep.subr.mxu0 %v830
  %3313 = vmatpush1.msra.mxu0 %v829
  %3314 = vmatprep.subr.mxu0 %v834
  %3315 = vmatpush1.msra.mxu0 %v833
  %3316 = vmatprep.subr.mxu0 %v838
  %3317 = vmatpush1.msra.mxu0 %v837
  %3318 = vmatprep.subr.mxu0 %v842
  %3319 = vmatpush1.msra.mxu0 %v841
  %3320 = vmatprep.subr.mxu0 %v846
  %3321 = vmatpush1.msra.mxu0 %v845
  %3322 = vmatprep.subr.mxu0 %v850
  %3323 = vmatpush1.msra.mxu0 %v849
  %3324 = vmatprep.subr.mxu0 %v854
  %3325 = vmatpush1.msra.mxu0 %v853
  %3326 = vmatprep.subr.mxu0 %v858
  %3327 = vmatpush1.msra.mxu0 %v857
  %3328 = vmatprep.subr.mxu0 %v862
  %3329 = vmatpush1.msra.mxu0 %v861
  %3330 = vmatprep.subr.mxu0 %v866
  %3331 = vmatpush1.msra.mxu0 %v865
  %3332 = vmatprep.subr.mxu0 %v870
  %3333 = vmatpush1.msra.mxu0 %v869
  %3334 = vmatprep.subr.mxu0 %v874
  %3335 = vmatpush1.msra.mxu0 %v873
  %3336 = vmatprep.subr.mxu0 %v878
  %3337 = vmatpush1.msra.mxu0 %v877
  %3338 = vmatprep.subr.mxu0 %v882
  %3339 = vmatpush1.msra.mxu0 %v881
  %3340 = vmatprep.subr.mxu0 %v886
  %3341 = vmatpush1.msra.mxu0 %v885
  %3342 = vmatprep.subr.mxu0 %v890
  %3343 = vmatpush1.msra.mxu0 %v889
  %3344 = vmatprep.subr.mxu0 %v894
  %3345 = vmatpush1.msra.mxu0 %v893
  %3346 = vmatprep.subr.mxu0 %v898
  %3347 = vmatpush1.msra.mxu0 %v897
  %3348 = vmatprep.subr.mxu0 %v902
  %3349 = vmatpush1.msra.mxu0 %v901
  %3350 = vmatprep.subr.mxu0 %v906
  %3351 = vmatpush1.msra.mxu0 %v905
  %3352 = vmatprep.subr.mxu0 %v910
  %3353 = vmatpush1.msra.mxu0 %v909
  %3354 = vmatprep.mubr.f32.mxu0 %v3218
  %3355 = vmatmul.mubr.f32.gmra.mrb[0].mxu0 %v3217
  %v3356 = vpop.f32.mrb[0].mxu0
  %v3357 = vadd.f32 %v3286, %v3356
  %v3358 = vpop.f32.mrb[0].mxu0
  %v3359 = vadd.f32 %v3288, %v3358
  %3360 = vdwg.mxu0
  %3361 = vmatprep.subr.mxu0 %v660
  %3362 = vmatpush1.msra.mxu0 %v659
  %3363 = vmatprep.subr.mxu0 %v664
  %3364 = vmatpush1.msra.mxu0 %v663
  %3365 = vmatprep.subr.mxu0 %v668
  %3366 = vmatpush1.msra.mxu0 %v667
  %3367 = vmatprep.subr.mxu0 %v672
  %3368 = vmatpush1.msra.mxu0 %v671
  %3369 = vmatprep.subr.mxu0 %v676
  %3370 = vmatpush1.msra.mxu0 %v675
  %3371 = vmatprep.subr.mxu0 %v680
  %3372 = vmatpush1.msra.mxu0 %v679
  %3373 = vmatprep.subr.mxu0 %v684
  %3374 = vmatpush1.msra.mxu0 %v683
  %3375 = vmatprep.subr.mxu0 %v688
  %3376 = vmatpush1.msra.mxu0 %v687
  %3377 = vmatprep.subr.mxu0 %v692
  %3378 = vmatpush1.msra.mxu0 %v691
  %3379 = vmatprep.subr.mxu0 %v696
  %3380 = vmatpush1.msra.mxu0 %v695
  %3381 = vmatprep.subr.mxu0 %v700
  %3382 = vmatpush1.msra.mxu0 %v699
  %3383 = vmatprep.subr.mxu0 %v704
  %3384 = vmatpush1.msra.mxu0 %v703
  %3385 = vmatprep.subr.mxu0 %v708
  %3386 = vmatpush1.msra.mxu0 %v707
  %3387 = vmatprep.subr.mxu0 %v712
  %3388 = vmatpush1.msra.mxu0 %v711
  %3389 = vmatprep.subr.mxu0 %v716
  %3390 = vmatpush1.msra.mxu0 %v715
  %3391 = vmatprep.subr.mxu0 %v720
  %3392 = vmatpush1.msra.mxu0 %v719
  %3393 = vmatprep.subr.mxu0 %v724
  %3394 = vmatpush1.msra.mxu0 %v723
  %3395 = vmatprep.subr.mxu0 %v728
  %3396 = vmatpush1.msra.mxu0 %v727
  %3397 = vmatprep.subr.mxu0 %v732
  %3398 = vmatpush1.msra.mxu0 %v731
  %3399 = vmatprep.subr.mxu0 %v736
  %3400 = vmatpush1.msra.mxu0 %v735
  %3401 = vmatprep.subr.mxu0 %v740
  %3402 = vmatpush1.msra.mxu0 %v739
  %3403 = vmatprep.subr.mxu0 %v744
  %3404 = vmatpush1.msra.mxu0 %v743
  %3405 = vmatprep.subr.mxu0 %v748
  %3406 = vmatpush1.msra.mxu0 %v747
  %3407 = vmatprep.subr.mxu0 %v752
  %3408 = vmatpush1.msra.mxu0 %v751
  %3409 = vmatprep.subr.mxu0 %v756
  %3410 = vmatpush1.msra.mxu0 %v755
  %3411 = vmatprep.subr.mxu0 %v760
  %3412 = vmatpush1.msra.mxu0 %v759
  %3413 = vmatprep.subr.mxu0 %v764
  %3414 = vmatpush1.msra.mxu0 %v763
  %3415 = vmatprep.subr.mxu0 %v768
  %3416 = vmatpush1.msra.mxu0 %v767
  %3417 = vmatprep.subr.mxu0 %v772
  %3418 = vmatpush1.msra.mxu0 %v771
  %3419 = vmatprep.subr.mxu0 %v776
  %3420 = vmatpush1.msra.mxu0 %v775
  %3421 = vmatprep.subr.mxu0 %v780
  %3422 = vmatpush1.msra.mxu0 %v779
  %3423 = vmatprep.subr.mxu0 %v784
  %3424 = vmatpush1.msra.mxu0 %v783
  %3425 = vmatprep.mubr.f32.mxu0 %v3216
  %3426 = vmatmul.mubr.f32.gmra.mrb[0].mxu0 %v3215
  %v3427 = vpop.f32.mrb[0].mxu0
  %v3428 = vadd.f32 %v545, %v3427
  %v3429 = vpop.f32.mrb[0].mxu0
  %v3430 = vadd.f32 %v547, %v3429
  %3431 = vdwg.mxu0
  %3432 = vmatprep.subr.mxu0 %v788
  %3433 = vmatpush1.msra.mxu0 %v787
  %3434 = vmatprep.subr.mxu0 %v792
  %3435 = vmatpush1.msra.mxu0 %v791
  %3436 = vmatprep.subr.mxu0 %v796
  %3437 = vmatpush1.msra.mxu0 %v795
  %3438 = vmatprep.subr.mxu0 %v800
  %3439 = vmatpush1.msra.mxu0 %v799
  %3440 = vmatprep.subr.mxu0 %v804
  %3441 = vmatpush1.msra.mxu0 %v803
  %3442 = vmatprep.subr.mxu0 %v808
  %3443 = vmatpush1.msra.mxu0 %v807
  %3444 = vmatprep.subr.mxu0 %v812
  %3445 = vmatpush1.msra.mxu0 %v811
  %3446 = vmatprep.subr.mxu0 %v816
  %3447 = vmatpush1.msra.mxu0 %v815
  %3448 = vmatprep.subr.mxu0 %v820
  %3449 = vmatpush1.msra.mxu0 %v819
  %3450 = vmatprep.subr.mxu0 %v824
  %3451 = vmatpush1.msra.mxu0 %v823
  %3452 = vmatprep.subr.mxu0 %v828
  %3453 = vmatpush1.msra.mxu0 %v827
  %3454 = vmatprep.subr.mxu0 %v832
  %3455 = vmatpush1.msra.mxu0 %v831
  %3456 = vmatprep.subr.mxu0 %v836
  %3457 = vmatpush1.msra.mxu0 %v835
  %3458 = vmatprep.subr.mxu0 %v840
  %3459 = vmatpush1.msra.mxu0 %v839
  %3460 = vmatprep.subr.mxu0 %v844
  %3461 = vmatpush1.msra.mxu0 %v843
  %3462 = vmatprep.subr.mxu0 %v848
  %3463 = vmatpush1.msra.mxu0 %v847
  %3464 = vmatprep.subr.mxu0 %v852
  %3465 = vmatpush1.msra.mxu0 %v851
  %3466 = vmatprep.subr.mxu0 %v856
  %3467 = vmatpush1.msra.mxu0 %v855
  %3468 = vmatprep.subr.mxu0 %v860
  %3469 = vmatpush1.msra.mxu0 %v859
  %3470 = vmatprep.subr.mxu0 %v864
  %3471 = vmatpush1.msra.mxu0 %v863
  %3472 = vmatprep.subr.mxu0 %v868
  %3473 = vmatpush1.msra.mxu0 %v867
  %3474 = vmatprep.subr.mxu0 %v872
  %3475 = vmatpush1.msra.mxu0 %v871
  %3476 = vmatprep.subr.mxu0 %v876
  %3477 = vmatpush1.msra.mxu0 %v875
  %3478 = vmatprep.subr.mxu0 %v880
  %3479 = vmatpush1.msra.mxu0 %v879
  %3480 = vmatprep.subr.mxu0 %v884
  %3481 = vmatpush1.msra.mxu0 %v883
  %3482 = vmatprep.subr.mxu0 %v888
  %3483 = vmatpush1.msra.mxu0 %v887
  %3484 = vmatprep.subr.mxu0 %v892
  %3485 = vmatpush1.msra.mxu0 %v891
  %3486 = vmatprep.subr.mxu0 %v896
  %3487 = vmatpush1.msra.mxu0 %v895
  %3488 = vmatprep.subr.mxu0 %v900
  %3489 = vmatpush1.msra.mxu0 %v899
  %3490 = vmatprep.subr.mxu0 %v904
  %3491 = vmatpush1.msra.mxu0 %v903
  %3492 = vmatprep.subr.mxu0 %v908
  %3493 = vmatpush1.msra.mxu0 %v907
  %3494 = vmatprep.subr.mxu0 %v912
  %3495 = vmatpush1.msra.mxu0 %v911
  %3496 = vmatprep.mubr.f32.mxu0 %v3218
  %3497 = vmatmul.mubr.f32.gmra.mrb[0].mxu0 %v3217
  %v3498 = vpop.f32.mrb[0].mxu0
  %v3499 = vadd.f32 %v3428, %v3498
  %v3500 = vpop.f32.mrb[0].mxu0
  %v3501 = vadd.f32 %v3430, %v3500
  %3502 = vdwg.mxu0
  %v3503 = vtanh.pop %v3357
  %v3504 = vtanh.pop %v3359
  %v3505 = vtanh.pop %v3499
  %v3506 = vtanh.pop %v3501
  %3507 = vmatprep.subr.mxu0 %v658
  %3508 = vmatpush1.msra.mxu0 %v657
  %3509 = vmatprep.subr.mxu0 %v662
  %3510 = vmatpush1.msra.mxu0 %v661
  %3511 = vmatprep.subr.mxu0 %v666
  %3512 = vmatpush1.msra.mxu0 %v665
  %3513 = vmatprep.subr.mxu0 %v670
  %3514 = vmatpush1.msra.mxu0 %v669
  %3515 = vmatprep.subr.mxu0 %v674
  %3516 = vmatpush1.msra.mxu0 %v673
  %3517 = vmatprep.subr.mxu0 %v678
  %3518 = vmatpush1.msra.mxu0 %v677
  %3519 = vmatprep.subr.mxu0 %v682
  %3520 = vmatpush1.msra.mxu0 %v681
  %3521 = vmatprep.subr.mxu0 %v686
  %3522 = vmatpush1.msra.mxu0 %v685
  %3523 = vmatprep.subr.mxu0 %v690
  %3524 = vmatpush1.msra.mxu0 %v689
  %3525 = vmatprep.subr.mxu0 %v694
  %3526 = vmatpush1.msra.mxu0 %v693
  %3527 = vmatprep.subr.mxu0 %v698
  %3528 = vmatpush1.msra.mxu0 %v697
  %3529 = vmatprep.subr.mxu0 %v702
  %3530 = vmatpush1.msra.mxu0 %v701
  %3531 = vmatprep.subr.mxu0 %v706
  %3532 = vmatpush1.msra.mxu0 %v705
  %3533 = vmatprep.subr.mxu0 %v710
  %3534 = vmatpush1.msra.mxu0 %v709
  %3535 = vmatprep.subr.mxu0 %v714
  %3536 = vmatpush1.msra.mxu0 %v713
  %3537 = vmatprep.subr.mxu0 %v718
  %3538 = vmatpush1.msra.mxu0 %v717
  %3539 = vmatprep.subr.mxu0 %v722
  %3540 = vmatpush1.msra.mxu0 %v721
  %3541 = vmatprep.subr.mxu0 %v726
  %3542 = vmatpush1.msra.mxu0 %v725
  %3543 = vmatprep.subr.mxu0 %v730
  %3544 = vmatpush1.msra.mxu0 %v729
  %3545 = vmatprep.subr.mxu0 %v734
  %3546 = vmatpush1.msra.mxu0 %v733
  %3547 = vmatprep.subr.mxu0 %v738
  %3548 = vmatpush1.msra.mxu0 %v737
  %3549 = vmatprep.subr.mxu0 %v742
  %3550 = vmatpush1.msra.mxu0 %v741
  %3551 = vmatprep.subr.mxu0 %v746
  %3552 = vmatpush1.msra.mxu0 %v745
  %3553 = vmatprep.subr.mxu0 %v750
  %3554 = vmatpush1.msra.mxu0 %v749
  %3555 = vmatprep.subr.mxu0 %v754
  %3556 = vmatpush1.msra.mxu0 %v753
  %3557 = vmatprep.subr.mxu0 %v758
  %3558 = vmatpush1.msra.mxu0 %v757
  %3559 = vmatprep.subr.mxu0 %v762
  %3560 = vmatpush1.msra.mxu0 %v761
  %3561 = vmatprep.subr.mxu0 %v766
  %3562 = vmatpush1.msra.mxu0 %v765
  %3563 = vmatprep.subr.mxu0 %v770
  %3564 = vmatpush1.msra.mxu0 %v769
  %3565 = vmatprep.subr.mxu0 %v774
  %3566 = vmatpush1.msra.mxu0 %v773
  %3567 = vmatprep.subr.mxu0 %v778
  %3568 = vmatpush1.msra.mxu0 %v777
  %3569 = vmatprep.subr.mxu0 %v782
  %3570 = vmatpush1.msra.mxu0 %v781
  %3571 = vmatprep.mubr.f32.mxu0 %v3504
  %3572 = vmatmul.mubr.f32.gmra.mrb[0].mxu0 %v3503
  %v3573 = vpop.f32.mrb[0].mxu0
  %v3574 = vadd.f32 %v320, %v3573
  %v3575 = vpop.f32.mrb[0].mxu0
  %v3576 = vadd.f32 %v322, %v3575
  %3577 = vdwg.mxu0
  %3578 = vmatprep.subr.mxu0 %v786
  %3579 = vmatpush1.msra.mxu0 %v785
  %3580 = vmatprep.subr.mxu0 %v790
  %3581 = vmatpush1.msra.mxu0 %v789
  %3582 = vmatprep.subr.mxu0 %v794
  %3583 = vmatpush1.msra.mxu0 %v793
  %3584 = vmatprep.subr.mxu0 %v798
  %3585 = vmatpush1.msra.mxu0 %v797
  %3586 = vmatprep.subr.mxu0 %v802
  %3587 = vmatpush1.msra.mxu0 %v801
  %3588 = vmatprep.subr.mxu0 %v806
  %3589 = vmatpush1.msra.mxu0 %v805
  %3590 = vmatprep.subr.mxu0 %v810
  %3591 = vmatpush1.msra.mxu0 %v809
  %3592 = vmatprep.subr.mxu0 %v814
  %3593 = vmatpush1.msra.mxu0 %v813
  %3594 = vmatprep.subr.mxu0 %v818
  %3595 = vmatpush1.msra.mxu0 %v817
  %3596 = vmatprep.subr.mxu0 %v822
  %3597 = vmatpush1.msra.mxu0 %v821
  %3598 = vmatprep.subr.mxu0 %v826
  %3599 = vmatpush1.msra.mxu0 %v825
  %3600 = vmatprep.subr.mxu0 %v830
  %3601 = vmatpush1.msra.mxu0 %v829
  %3602 = vmatprep.subr.mxu0 %v834
  %3603 = vmatpush1.msra.mxu0 %v833
  %3604 = vmatprep.subr.mxu0 %v838
  %3605 = vmatpush1.msra.mxu0 %v837
  %3606 = vmatprep.subr.mxu0 %v842
  %3607 = vmatpush1.msra.mxu0 %v841
  %3608 = vmatprep.subr.mxu0 %v846
  %3609 = vmatpush1.msra.mxu0 %v845
  %3610 = vmatprep.subr.mxu0 %v850
  %3611 = vmatpush1.msra.mxu0 %v849
  %3612 = vmatprep.subr.mxu0 %v854
  %3613 = vmatpush1.msra.mxu0 %v853
  %3614 = vmatprep.subr.mxu0 %v858
  %3615 = vmatpush1.msra.mxu0 %v857
  %3616 = vmatprep.subr.mxu0 %v862
  %3617 = vmatpush1.msra.mxu0 %v861
  %3618 = vmatprep.subr.mxu0 %v866
  %3619 = vmatpush1.msra.mxu0 %v865
  %3620 = vmatprep.subr.mxu0 %v870
  %3621 = vmatpush1.msra.mxu0 %v869
  %3622 = vmatprep.subr.mxu0 %v874
  %3623 = vmatpush1.msra.mxu0 %v873
  %3624 = vmatprep.subr.mxu0 %v878
  %3625 = vmatpush1.msra.mxu0 %v877
  %3626 = vmatprep.subr.mxu0 %v882
  %3627 = vmatpush1.msra.mxu0 %v881
  %3628 = vmatprep.subr.mxu0 %v886
  %3629 = vmatpush1.msra.mxu0 %v885
  %3630 = vmatprep.subr.mxu0 %v890
  %3631 = vmatpush1.msra.mxu0 %v889
  %3632 = vmatprep.subr.mxu0 %v894
  %3633 = vmatpush1.msra.mxu0 %v893
  %3634 = vmatprep.subr.mxu0 %v898
  %3635 = vmatpush1.msra.mxu0 %v897
  %3636 = vmatprep.subr.mxu0 %v902
  %3637 = vmatpush1.msra.mxu0 %v901
  %3638 = vmatprep.subr.mxu0 %v906
  %3639 = vmatpush1.msra.mxu0 %v905
  %3640 = vmatprep.subr.mxu0 %v910
  %3641 = vmatpush1.msra.mxu0 %v909
  %3642 = vmatprep.mubr.f32.mxu0 %v3506
  %3643 = vmatmul.mubr.f32.gmra.mrb[0].mxu0 %v3505
  %v3644 = vpop.f32.mrb[0].mxu0
  %v3645 = vadd.f32 %v3574, %v3644
  %v3646 = vpop.f32.mrb[0].mxu0
  %v3647 = vadd.f32 %v3576, %v3646
  %3648 = vdwg.mxu0
  %3649 = vmatprep.subr.mxu0 %v660
  %3650 = vmatpush1.msra.mxu0 %v659
  %3651 = vmatprep.subr.mxu0 %v664
  %3652 = vmatpush1.msra.mxu0 %v663
  %3653 = vmatprep.subr.mxu0 %v668
  %3654 = vmatpush1.msra.mxu0 %v667
  %3655 = vmatprep.subr.mxu0 %v672
  %3656 = vmatpush1.msra.mxu0 %v671
  %3657 = vmatprep.subr.mxu0 %v676
  %3658 = vmatpush1.msra.mxu0 %v675
  %3659 = vmatprep.subr.mxu0 %v680
  %3660 = vmatpush1.msra.mxu0 %v679
  %3661 = vmatprep.subr.mxu0 %v684
  %3662 = vmatpush1.msra.mxu0 %v683
  %3663 = vmatprep.subr.mxu0 %v688
  %3664 = vmatpush1.msra.mxu0 %v687
  %3665 = vmatprep.subr.mxu0 %v692
  %3666 = vmatpush1.msra.mxu0 %v691
  %3667 = vmatprep.subr.mxu0 %v696
  %3668 = vmatpush1.msra.mxu0 %v695
  %3669 = vmatprep.subr.mxu0 %v700
  %3670 = vmatpush1.msra.mxu0 %v699
  %3671 = vmatprep.subr.mxu0 %v704
  %3672 = vmatpush1.msra.mxu0 %v703
  %3673 = vmatprep.subr.mxu0 %v708
  %3674 = vmatpush1.msra.mxu0 %v707
  %3675 = vmatprep.subr.mxu0 %v712
  %3676 = vmatpush1.msra.mxu0 %v711
  %3677 = vmatprep.subr.mxu0 %v716
  %3678 = vmatpush1.msra.mxu0 %v715
  %3679 = vmatprep.subr.mxu0 %v720
  %3680 = vmatpush1.msra.mxu0 %v719
  %3681 = vmatprep.subr.mxu0 %v724
  %3682 = vmatpush1.msra.mxu0 %v723
  %3683 = vmatprep.subr.mxu0 %v728
  %3684 = vmatpush1.msra.mxu0 %v727
  %3685 = vmatprep.subr.mxu0 %v732
  %3686 = vmatpush1.msra.mxu0 %v731
  %3687 = vmatprep.subr.mxu0 %v736
  %3688 = vmatpush1.msra.mxu0 %v735
  %3689 = vmatprep.subr.mxu0 %v740
  %3690 = vmatpush1.msra.mxu0 %v739
  %3691 = vmatprep.subr.mxu0 %v744
  %3692 = vmatpush1.msra.mxu0 %v743
  %3693 = vmatprep.subr.mxu0 %v748
  %3694 = vmatpush1.msra.mxu0 %v747
  %3695 = vmatprep.subr.mxu0 %v752
  %3696 = vmatpush1.msra.mxu0 %v751
  %3697 = vmatprep.subr.mxu0 %v756
  %3698 = vmatpush1.msra.mxu0 %v755
  %3699 = vmatprep.subr.mxu0 %v760
  %3700 = vmatpush1.msra.mxu0 %v759
  %3701 = vmatprep.subr.mxu0 %v764
  %3702 = vmatpush1.msra.mxu0 %v763
  %3703 = vmatprep.subr.mxu0 %v768
  %3704 = vmatpush1.msra.mxu0 %v767
  %3705 = vmatprep.subr.mxu0 %v772
  %3706 = vmatpush1.msra.mxu0 %v771
  %3707 = vmatprep.subr.mxu0 %v776
  %3708 = vmatpush1.msra.mxu0 %v775
  %3709 = vmatprep.subr.mxu0 %v780
  %3710 = vmatpush1.msra.mxu0 %v779
  %3711 = vmatprep.subr.mxu0 %v784
  %3712 = vmatpush1.msra.mxu0 %v783
  %3713 = vmatprep.mubr.f32.mxu0 %v3504
  %3714 = vmatmul.mubr.f32.gmra.mrb[0].mxu0 %v3503
  %v3715 = vpop.f32.mrb[0].mxu0
  %v3716 = vadd.f32 %v551, %v3715
  %v3717 = vpop.f32.mrb[0].mxu0
  %v3718 = vadd.f32 %v553, %v3717
  %3719 = vdwg.mxu0
  %3720 = vmatprep.subr.mxu0 %v788
  %3721 = vmatpush1.msra.mxu0 %v787
  %3722 = vmatprep.subr.mxu0 %v792
  %3723 = vmatpush1.msra.mxu0 %v791
  %3724 = vmatprep.subr.mxu0 %v796
  %3725 = vmatpush1.msra.mxu0 %v795
  %3726 = vmatprep.subr.mxu0 %v800
  %3727 = vmatpush1.msra.mxu0 %v799
  %3728 = vmatprep.subr.mxu0 %v804
  %3729 = vmatpush1.msra.mxu0 %v803
  %3730 = vmatprep.subr.mxu0 %v808
  %3731 = vmatpush1.msra.mxu0 %v807
  %3732 = vmatprep.subr.mxu0 %v812
  %3733 = vmatpush1.msra.mxu0 %v811
  %3734 = vmatprep.subr.mxu0 %v816
  %3735 = vmatpush1.msra.mxu0 %v815
  %3736 = vmatprep.subr.mxu0 %v820
  %3737 = vmatpush1.msra.mxu0 %v819
  %3738 = vmatprep.subr.mxu0 %v824
  %3739 = vmatpush1.msra.mxu0 %v823
  %3740 = vmatprep.subr.mxu0 %v828
  %3741 = vmatpush1.msra.mxu0 %v827
  %3742 = vmatprep.subr.mxu0 %v832
  %3743 = vmatpush1.msra.mxu0 %v831
  %3744 = vmatprep.subr.mxu0 %v836
  %3745 = vmatpush1.msra.mxu0 %v835
  %3746 = vmatprep.subr.mxu0 %v840
  %3747 = vmatpush1.msra.mxu0 %v839
  %3748 = vmatprep.subr.mxu0 %v844
  %3749 = vmatpush1.msra.mxu0 %v843
  %3750 = vmatprep.subr.mxu0 %v848
  %3751 = vmatpush1.msra.mxu0 %v847
  %3752 = vmatprep.subr.mxu0 %v852
  %3753 = vmatpush1.msra.mxu0 %v851
  %3754 = vmatprep.subr.mxu0 %v856
  %3755 = vmatpush1.msra.mxu0 %v855
  %3756 = vmatprep.subr.mxu0 %v860
  %3757 = vmatpush1.msra.mxu0 %v859
  %3758 = vmatprep.subr.mxu0 %v864
  %3759 = vmatpush1.msra.mxu0 %v863
  %3760 = vmatprep.subr.mxu0 %v868
  %3761 = vmatpush1.msra.mxu0 %v867
  %3762 = vmatprep.subr.mxu0 %v872
  %3763 = vmatpush1.msra.mxu0 %v871
  %3764 = vmatprep.subr.mxu0 %v876
  %3765 = vmatpush1.msra.mxu0 %v875
  %3766 = vmatprep.subr.mxu0 %v880
  %3767 = vmatpush1.msra.mxu0 %v879
  %3768 = vmatprep.subr.mxu0 %v884
  %3769 = vmatpush1.msra.mxu0 %v883
  %3770 = vmatprep.subr.mxu0 %v888
  %3771 = vmatpush1.msra.mxu0 %v887
  %3772 = vmatprep.subr.mxu0 %v892
  %3773 = vmatpush1.msra.mxu0 %v891
  %3774 = vmatprep.subr.mxu0 %v896
  %3775 = vmatpush1.msra.mxu0 %v895
  %3776 = vmatprep.subr.mxu0 %v900
  %3777 = vmatpush1.msra.mxu0 %v899
  %3778 = vmatprep.subr.mxu0 %v904
  %3779 = vmatpush1.msra.mxu0 %v903
  %3780 = vmatprep.subr.mxu0 %v908
  %3781 = vmatpush1.msra.mxu0 %v907
  %3782 = vmatprep.subr.mxu0 %v912
  %3783 = vmatpush1.msra.mxu0 %v911
  %3784 = vmatprep.mubr.f32.mxu0 %v3506
  %3785 = vmatmul.mubr.f32.gmra.mrb[0].mxu0 %v3505
  %v3786 = vpop.f32.mrb[0].mxu0
  %v3787 = vadd.f32 %v3716, %v3786
  %v3788 = vpop.f32.mrb[0].mxu0
  %v3789 = vadd.f32 %v3718, %v3788
  %3790 = vdwg.mxu0
  %v3791 = vtanh.pop %v3645
  %v3792 = vtanh.pop %v3647
  %v3793 = vtanh.pop %v3787
  %v3794 = vtanh.pop %v3789
  %3795 = vmatprep.subr.mxu0 %v658
  %3796 = vmatpush1.msra.mxu0 %v657
  %3797 = vmatprep.subr.mxu0 %v662
  %3798 = vmatpush1.msra.mxu0 %v661
  %3799 = vmatprep.subr.mxu0 %v666
  %3800 = vmatpush1.msra.mxu0 %v665
  %3801 = vmatprep.subr.mxu0 %v670
  %3802 = vmatpush1.msra.mxu0 %v669
  %3803 = vmatprep.subr.mxu0 %v674
  %3804 = vmatpush1.msra.mxu0 %v673
  %3805 = vmatprep.subr.mxu0 %v678
  %3806 = vmatpush1.msra.mxu0 %v677
  %3807 = vmatprep.subr.mxu0 %v682
  %3808 = vmatpush1.msra.mxu0 %v681
  %3809 = vmatprep.subr.mxu0 %v686
  %3810 = vmatpush1.msra.mxu0 %v685
  %3811 = vmatprep.subr.mxu0 %v690
  %3812 = vmatpush1.msra.mxu0 %v689
  %3813 = vmatprep.subr.mxu0 %v694
  %3814 = vmatpush1.msra.mxu0 %v693
  %3815 = vmatprep.subr.mxu0 %v698
  %3816 = vmatpush1.msra.mxu0 %v697
  %3817 = vmatprep.subr.mxu0 %v702
  %3818 = vmatpush1.msra.mxu0 %v701
  %3819 = vmatprep.subr.mxu0 %v706
  %3820 = vmatpush1.msra.mxu0 %v705
  %3821 = vmatprep.subr.mxu0 %v710
  %3822 = vmatpush1.msra.mxu0 %v709
  %3823 = vmatprep.subr.mxu0 %v714
  %3824 = vmatpush1.msra.mxu0 %v713
  %3825 = vmatprep.subr.mxu0 %v718
  %3826 = vmatpush1.msra.mxu0 %v717
  %3827 = vmatprep.subr.mxu0 %v722
  %3828 = vmatpush1.msra.mxu0 %v721
  %3829 = vmatprep.subr.mxu0 %v726
  %3830 = vmatpush1.msra.mxu0 %v725
  %3831 = vmatprep.subr.mxu0 %v730
  %3832 = vmatpush1.msra.mxu0 %v729
  %3833 = vmatprep.subr.mxu0 %v734
  %3834 = vmatpush1.msra.mxu0 %v733
  %3835 = vmatprep.subr.mxu0 %v738
  %3836 = vmatpush1.msra.mxu0 %v737
  %3837 = vmatprep.subr.mxu0 %v742
  %3838 = vmatpush1.msra.mxu0 %v741
  %3839 = vmatprep.subr.mxu0 %v746
  %3840 = vmatpush1.msra.mxu0 %v745
  %3841 = vmatprep.subr.mxu0 %v750
  %3842 = vmatpush1.msra.mxu0 %v749
  %3843 = vmatprep.subr.mxu0 %v754
  %3844 = vmatpush1.msra.mxu0 %v753
  %3845 = vmatprep.subr.mxu0 %v758
  %3846 = vmatpush1.msra.mxu0 %v757
  %3847 = vmatprep.subr.mxu0 %v762
  %3848 = vmatpush1.msra.mxu0 %v761
  %3849 = vmatprep.subr.mxu0 %v766
  %3850 = vmatpush1.msra.mxu0 %v765
  %3851 = vmatprep.subr.mxu0 %v770
  %3852 = vmatpush1.msra.mxu0 %v769
  %3853 = vmatprep.subr.mxu0 %v774
  %3854 = vmatpush1.msra.mxu0 %v773
  %3855 = vmatprep.subr.mxu0 %v778
  %3856 = vmatpush1.msra.mxu0 %v777
  %3857 = vmatprep.subr.mxu0 %v782
  %3858 = vmatpush1.msra.mxu0 %v781
  %3859 = vmatprep.mubr.f32.mxu0 %v3792
  %3860 = vmatmul.mubr.f32.gmra.mrb[0].mxu0 %v3791
  %v3861 = vpop.f32.mrb[0].mxu0
  %v3862 = vadd.f32 %v326, %v3861
  %v3863 = vpop.f32.mrb[0].mxu0
  %v3864 = vadd.f32 %v328, %v3863
  %3865 = vdwg.mxu0
  %3866 = vmatprep.subr.mxu0 %v786
  %3867 = vmatpush1.msra.mxu0 %v785
  %3868 = vmatprep.subr.mxu0 %v790
  %3869 = vmatpush1.msra.mxu0 %v789
  %3870 = vmatprep.subr.mxu0 %v794
  %3871 = vmatpush1.msra.mxu0 %v793
  %3872 = vmatprep.subr.mxu0 %v798
  %3873 = vmatpush1.msra.mxu0 %v797
  %3874 = vmatprep.subr.mxu0 %v802
  %3875 = vmatpush1.msra.mxu0 %v801
  %3876 = vmatprep.subr.mxu0 %v806
  %3877 = vmatpush1.msra.mxu0 %v805
  %3878 = vmatprep.subr.mxu0 %v810
  %3879 = vmatpush1.msra.mxu0 %v809
  %3880 = vmatprep.subr.mxu0 %v814
  %3881 = vmatpush1.msra.mxu0 %v813
  %3882 = vmatprep.subr.mxu0 %v818
  %3883 = vmatpush1.msra.mxu0 %v817
  %3884 = vmatprep.subr.mxu0 %v822
  %3885 = vmatpush1.msra.mxu0 %v821
  %3886 = vmatprep.subr.mxu0 %v826
  %3887 = vmatpush1.msra.mxu0 %v825
  %3888 = vmatprep.subr.mxu0 %v830
  %3889 = vmatpush1.msra.mxu0 %v829
  %3890 = vmatprep.subr.mxu0 %v834
  %3891 = vmatpush1.msra.mxu0 %v833
  %3892 = vmatprep.subr.mxu0 %v838
  %3893 = vmatpush1.msra.mxu0 %v837
  %3894 = vmatprep.subr.mxu0 %v842
  %3895 = vmatpush1.msra.mxu0 %v841
  %3896 = vmatprep.subr.mxu0 %v846
  %3897 = vmatpush1.msra.mxu0 %v845
  %3898 = vmatprep.subr.mxu0 %v850
  %3899 = vmatpush1.msra.mxu0 %v849
  %3900 = vmatprep.subr.mxu0 %v854
  %3901 = vmatpush1.msra.mxu0 %v853
  %3902 = vmatprep.subr.mxu0 %v858
  %3903 = vmatpush1.msra.mxu0 %v857
  %3904 = vmatprep.subr.mxu0 %v862
  %3905 = vmatpush1.msra.mxu0 %v861
  %3906 = vmatprep.subr.mxu0 %v866
  %3907 = vmatpush1.msra.mxu0 %v865
  %3908 = vmatprep.subr.mxu0 %v870
  %3909 = vmatpush1.msra.mxu0 %v869
  %3910 = vmatprep.subr.mxu0 %v874
  %3911 = vmatpush1.msra.mxu0 %v873
  %3912 = vmatprep.subr.mxu0 %v878
  %3913 = vmatpush1.msra.mxu0 %v877
  %3914 = vmatprep.subr.mxu0 %v882
  %3915 = vmatpush1.msra.mxu0 %v881
  %3916 = vmatprep.subr.mxu0 %v886
  %3917 = vmatpush1.msra.mxu0 %v885
  %3918 = vmatprep.subr.mxu0 %v890
  %3919 = vmatpush1.msra.mxu0 %v889
  %3920 = vmatprep.subr.mxu0 %v894
  %3921 = vmatpush1.msra.mxu0 %v893
  %3922 = vmatprep.subr.mxu0 %v898
  %3923 = vmatpush1.msra.mxu0 %v897
  %3924 = vmatprep.subr.mxu0 %v902
  %3925 = vmatpush1.msra.mxu0 %v901
  %3926 = vmatprep.subr.mxu0 %v906
  %3927 = vmatpush1.msra.mxu0 %v905
  %3928 = vmatprep.subr.mxu0 %v910
  %3929 = vmatpush1.msra.mxu0 %v909
  %3930 = vmatprep.mubr.f32.mxu0 %v3794
  %3931 = vmatmul.mubr.f32.gmra.mrb[0].mxu0 %v3793
  %v3932 = vpop.f32.mrb[0].mxu0
  %v3933 = vadd.f32 %v3862, %v3932
  %v3934 = vpop.f32.mrb[0].mxu0
  %v3935 = vadd.f32 %v3864, %v3934
  %3936 = vdwg.mxu0
  %3937 = vmatprep.subr.mxu0 %v660
  %3938 = vmatpush1.msra.mxu0 %v659
  %3939 = vmatprep.subr.mxu0 %v664
  %3940 = vmatpush1.msra.mxu0 %v663
  %3941 = vmatprep.subr.mxu0 %v668
  %3942 = vmatpush1.msra.mxu0 %v667
  %3943 = vmatprep.subr.mxu0 %v672
  %3944 = vmatpush1.msra.mxu0 %v671
  %3945 = vmatprep.subr.mxu0 %v676
  %3946 = vmatpush1.msra.mxu0 %v675
  %3947 = vmatprep.subr.mxu0 %v680
  %3948 = vmatpush1.msra.mxu0 %v679
  %3949 = vmatprep.subr.mxu0 %v684
  %3950 = vmatpush1.msra.mxu0 %v683
  %3951 = vmatprep.subr.mxu0 %v688
  %3952 = vmatpush1.msra.mxu0 %v687
  %3953 = vmatprep.subr.mxu0 %v692
  %3954 = vmatpush1.msra.mxu0 %v691
  %3955 = vmatprep.subr.mxu0 %v696
  %3956 = vmatpush1.msra.mxu0 %v695
  %3957 = vmatprep.subr.mxu0 %v700
  %3958 = vmatpush1.msra.mxu0 %v699
  %3959 = vmatprep.subr.mxu0 %v704
  %3960 = vmatpush1.msra.mxu0 %v703
  %3961 = vmatprep.subr.mxu0 %v708
  %3962 = vmatpush1.msra.mxu0 %v707
  %3963 = vmatprep.subr.mxu0 %v712
  %3964 = vmatpush1.msra.mxu0 %v711
  %3965 = vmatprep.subr.mxu0 %v716
  %3966 = vmatpush1.msra.mxu0 %v715
  %3967 = vmatprep.subr.mxu0 %v720
  %3968 = vmatpush1.msra.mxu0 %v719
  %3969 = vmatprep.subr.mxu0 %v724
  %3970 = vmatpush1.msra.mxu0 %v723
  %3971 = vmatprep.subr.mxu0 %v728
  %3972 = vmatpush1.msra.mxu0 %v727
  %3973 = vmatprep.subr.mxu0 %v732
  %3974 = vmatpush1.msra.mxu0 %v731
  %3975 = vmatprep.subr.mxu0 %v736
  %3976 = vmatpush1.msra.mxu0 %v735
  %3977 = vmatprep.subr.mxu0 %v740
  %3978 = vmatpush1.msra.mxu0 %v739
  %3979 = vmatprep.subr.mxu0 %v744
  %3980 = vmatpush1.msra.mxu0 %v743
  %3981 = vmatprep.subr.mxu0 %v748
  %3982 = vmatpush1.msra.mxu0 %v747
  %3983 = vmatprep.subr.mxu0 %v752
  %3984 = vmatpush1.msra.mxu0 %v751
  %3985 = vmatprep.subr.mxu0 %v756
  %3986 = vmatpush1.msra.mxu0 %v755
  %3987 = vmatprep.subr.mxu0 %v760
  %3988 = vmatpush1.msra.mxu0 %v759
  %3989 = vmatprep.subr.mxu0 %v764
  %3990 = vmatpush1.msra.mxu0 %v763
  %3991 = vmatprep.subr.mxu0 %v768
  %3992 = vmatpush1.msra.mxu0 %v767
  %3993 = vmatprep.subr.mxu0 %v772
  %3994 = vmatpush1.msra.mxu0 %v771
  %3995 = vmatprep.subr.mxu0 %v776
  %3996 = vmatpush1.msra.mxu0 %v775
  %3997 = vmatprep.subr.mxu0 %v780
  %3998 = vmatpush1.msra.mxu0 %v779
  %3999 = vmatprep.subr.mxu0 %v784
  %4000 = vmatpush1.msra.mxu0 %v783
  %4001 = vmatprep.mubr.f32.mxu0 %v3792
  %4002 = vmatmul.mubr.f32.gmra.mrb[0].mxu0 %v3791
  %v4003 = vpop.f32.mrb[0].mxu0
  %v4004 = vadd.f32 %v557, %v4003
  %v4005 = vpop.f32.mrb[0].mxu0
  %v4006 = vadd.f32 %v559, %v4005
  %4007 = vdwg.mxu0
  %4008 = vmatprep.subr.mxu0 %v788
  %4009 = vmatpush1.msra.mxu0 %v787
  %4010 = vmatprep.subr.mxu0 %v792
  %4011 = vmatpush1.msra.mxu0 %v791
  %4012 = vmatprep.subr.mxu0 %v796
  %4013 = vmatpush1.msra.mxu0 %v795
  %4014 = vmatprep.subr.mxu0 %v800
  %4015 = vmatpush1.msra.mxu0 %v799
  %4016 = vmatprep.subr.mxu0 %v804
  %4017 = vmatpush1.msra.mxu0 %v803
  %4018 = vmatprep.subr.mxu0 %v808
  %4019 = vmatpush1.msra.mxu0 %v807
  %4020 = vmatprep.subr.mxu0 %v812
  %4021 = vmatpush1.msra.mxu0 %v811
  %4022 = vmatprep.subr.mxu0 %v816
  %4023 = vmatpush1.msra.mxu0 %v815
  %4024 = vmatprep.subr.mxu0 %v820
  %4025 = vmatpush1.msra.mxu0 %v819
  %4026 = vmatprep.subr.mxu0 %v824
  %4027 = vmatpush1.msra.mxu0 %v823
  %4028 = vmatprep.subr.mxu0 %v828
  %4029 = vmatpush1.msra.mxu0 %v827
  %4030 = vmatprep.subr.mxu0 %v832
  %4031 = vmatpush1.msra.mxu0 %v831
  %4032 = vmatprep.subr.mxu0 %v836
  %4033 = vmatpush1.msra.mxu0 %v835
  %4034 = vmatprep.subr.mxu0 %v840
  %4035 = vmatpush1.msra.mxu0 %v839
  %4036 = vmatprep.subr.mxu0 %v844
  %4037 = vmatpush1.msra.mxu0 %v843
  %4038 = vmatprep.subr.mxu0 %v848
  %4039 = vmatpush1.msra.mxu0 %v847
  %4040 = vmatprep.subr.mxu0 %v852
  %4041 = vmatpush1.msra.mxu0 %v851
  %4042 = vmatprep.subr.mxu0 %v856
  %4043 = vmatpush1.msra.mxu0 %v855
  %4044 = vmatprep.subr.mxu0 %v860
  %4045 = vmatpush1.msra.mxu0 %v859
  %4046 = vmatprep.subr.mxu0 %v864
  %4047 = vmatpush1.msra.mxu0 %v863
  %4048 = vmatprep.subr.mxu0 %v868
  %4049 = vmatpush1.msra.mxu0 %v867
  %4050 = vmatprep.subr.mxu0 %v872
  %4051 = vmatpush1.msra.mxu0 %v871
  %4052 = vmatprep.subr.mxu0 %v876
  %4053 = vmatpush1.msra.mxu0 %v875
  %4054 = vmatprep.subr.mxu0 %v880
  %4055 = vmatpush1.msra.mxu0 %v879
  %4056 = vmatprep.subr.mxu0 %v884
  %4057 = vmatpush1.msra.mxu0 %v883
  %4058 = vmatprep.subr.mxu0 %v888
  %4059 = vmatpush1.msra.mxu0 %v887
  %4060 = vmatprep.subr.mxu0 %v892
  %4061 = vmatpush1.msra.mxu0 %v891
  %4062 = vmatprep.subr.mxu0 %v896
  %4063 = vmatpush1.msra.mxu0 %v895
  %4064 = vmatprep.subr.mxu0 %v900
  %4065 = vmatpush1.msra.mxu0 %v899
  %4066 = vmatprep.subr.mxu0 %v904
  %4067 = vmatpush1.msra.mxu0 %v903
  %4068 = vmatprep.subr.mxu0 %v908
  %4069 = vmatpush1.msra.mxu0 %v907
  %4070 = vmatprep.subr.mxu0 %v912
  %4071 = vmatpush1.msra.mxu0 %v911
  %4072 = vmatprep.mubr.f32.mxu0 %v3794
  %4073 = vmatmul.mubr.f32.gmra.mrb[0].mxu0 %v3793
  %v4074 = vpop.f32.mrb[0].mxu0
  %v4075 = vadd.f32 %v4004, %v4074
  %v4076 = vpop.f32.mrb[0].mxu0
  %v4077 = vadd.f32 %v4006, %v4076
  %4078 = vdwg.mxu0
  %v4079 = vtanh.pop %v3933
  %v4080 = vtanh.pop %v3935
  %v4081 = vtanh.pop %v4075
  %v4082 = vtanh.pop %v4077
  %4083 = vmatprep.subr.mxu0 %v658
  %4084 = vmatpush1.msra.mxu0 %v657
  %4085 = vmatprep.subr.mxu0 %v662
  %4086 = vmatpush1.msra.mxu0 %v661
  %4087 = vmatprep.subr.mxu0 %v666
  %4088 = vmatpush1.msra.mxu0 %v665
  %4089 = vmatprep.subr.mxu0 %v670
  %4090 = vmatpush1.msra.mxu0 %v669
  %4091 = vmatprep.subr.mxu0 %v674
  %4092 = vmatpush1.msra.mxu0 %v673
  %4093 = vmatprep.subr.mxu0 %v678
  %4094 = vmatpush1.msra.mxu0 %v677
  %4095 = vmatprep.subr.mxu0 %v682
  %4096 = vmatpush1.msra.mxu0 %v681
  %4097 = vmatprep.subr.mxu0 %v686
  %4098 = vmatpush1.msra.mxu0 %v685
  %4099 = vmatprep.subr.mxu0 %v690
  %4100 = vmatpush1.msra.mxu0 %v689
  %4101 = vmatprep.subr.mxu0 %v694
  %4102 = vmatpush1.msra.mxu0 %v693
  %4103 = vmatprep.subr.mxu0 %v698
  %4104 = vmatpush1.msra.mxu0 %v697
  %4105 = vmatprep.subr.mxu0 %v702
  %4106 = vmatpush1.msra.mxu0 %v701
  %4107 = vmatprep.subr.mxu0 %v706
  %4108 = vmatpush1.msra.mxu0 %v705
  %4109 = vmatprep.subr.mxu0 %v710
  %4110 = vmatpush1.msra.mxu0 %v709
  %4111 = vmatprep.subr.mxu0 %v714
  %4112 = vmatpush1.msra.mxu0 %v713
  %4113 = vmatprep.subr.mxu0 %v718
  %4114 = vmatpush1.msra.mxu0 %v717
  %4115 = vmatprep.subr.mxu0 %v722
  %4116 = vmatpush1.msra.mxu0 %v721
  %4117 = vmatprep.subr.mxu0 %v726
  %4118 = vmatpush1.msra.mxu0 %v725
  %4119 = vmatprep.subr.mxu0 %v730
  %4120 = vmatpush1.msra.mxu0 %v729
  %4121 = vmatprep.subr.mxu0 %v734
  %4122 = vmatpush1.msra.mxu0 %v733
  %4123 = vmatprep.subr.mxu0 %v738
  %4124 = vmatpush1.msra.mxu0 %v737
  %4125 = vmatprep.subr.mxu0 %v742
  %4126 = vmatpush1.msra.mxu0 %v741
  %4127 = vmatprep.subr.mxu0 %v746
  %4128 = vmatpush1.msra.mxu0 %v745
  %4129 = vmatprep.subr.mxu0 %v750
  %4130 = vmatpush1.msra.mxu0 %v749
  %4131 = vmatprep.subr.mxu0 %v754
  %4132 = vmatpush1.msra.mxu0 %v753
  %4133 = vmatprep.subr.mxu0 %v758
  %4134 = vmatpush1.msra.mxu0 %v757
  %4135 = vmatprep.subr.mxu0 %v762
  %4136 = vmatpush1.msra.mxu0 %v761
  %4137 = vmatprep.subr.mxu0 %v766
  %4138 = vmatpush1.msra.mxu0 %v765
  %4139 = vmatprep.subr.mxu0 %v770
  %4140 = vmatpush1.msra.mxu0 %v769
  %4141 = vmatprep.subr.mxu0 %v774
  %4142 = vmatpush1.msra.mxu0 %v773
  %4143 = vmatprep.subr.mxu0 %v778
  %4144 = vmatpush1.msra.mxu0 %v777
  %4145 = vmatprep.subr.mxu0 %v782
  %4146 = vmatpush1.msra.mxu0 %v781
  %4147 = vmatprep.mubr.f32.mxu0 %v4080
  %4148 = vmatmul.mubr.f32.gmra.mrb[0].mxu0 %v4079
  %v4149 = vpop.f32.mrb[0].mxu0
  %v4150 = vadd.f32 %v332, %v4149
  %v4151 = vpop.f32.mrb[0].mxu0
  %v4152 = vadd.f32 %v334, %v4151
  %4153 = vdwg.mxu0
  %4154 = vmatprep.subr.mxu0 %v786
  %4155 = vmatpush1.msra.mxu0 %v785
  %4156 = vmatprep.subr.mxu0 %v790
  %4157 = vmatpush1.msra.mxu0 %v789
  %4158 = vmatprep.subr.mxu0 %v794
  %4159 = vmatpush1.msra.mxu0 %v793
  %4160 = vmatprep.subr.mxu0 %v798
  %4161 = vmatpush1.msra.mxu0 %v797
  %4162 = vmatprep.subr.mxu0 %v802
  %4163 = vmatpush1.msra.mxu0 %v801
  %4164 = vmatprep.subr.mxu0 %v806
  %4165 = vmatpush1.msra.mxu0 %v805
  %4166 = vmatprep.subr.mxu0 %v810
  %4167 = vmatpush1.msra.mxu0 %v809
  %4168 = vmatprep.subr.mxu0 %v814
  %4169 = vmatpush1.msra.mxu0 %v813
  %4170 = vmatprep.subr.mxu0 %v818
  %4171 = vmatpush1.msra.mxu0 %v817
  %4172 = vmatprep.subr.mxu0 %v822
  %4173 = vmatpush1.msra.mxu0 %v821
  %4174 = vmatprep.subr.mxu0 %v826
  %4175 = vmatpush1.msra.mxu0 %v825
  %4176 = vmatprep.subr.mxu0 %v830
  %4177 = vmatpush1.msra.mxu0 %v829
  %4178 = vmatprep.subr.mxu0 %v834
  %4179 = vmatpush1.msra.mxu0 %v833
  %4180 = vmatprep.subr.mxu0 %v838
  %4181 = vmatpush1.msra.mxu0 %v837
  %4182 = vmatprep.subr.mxu0 %v842
  %4183 = vmatpush1.msra.mxu0 %v841
  %4184 = vmatprep.subr.mxu0 %v846
  %4185 = vmatpush1.msra.mxu0 %v845
  %4186 = vmatprep.subr.mxu0 %v850
  %4187 = vmatpush1.msra.mxu0 %v849
  %4188 = vmatprep.subr.mxu0 %v854
  %4189 = vmatpush1.msra.mxu0 %v853
  %4190 = vmatprep.subr.mxu0 %v858
  %4191 = vmatpush1.msra.mxu0 %v857
  %4192 = vmatprep.subr.mxu0 %v862
  %4193 = vmatpush1.msra.mxu0 %v861
  %4194 = vmatprep.subr.mxu0 %v866
  %4195 = vmatpush1.msra.mxu0 %v865
  %4196 = vmatprep.subr.mxu0 %v870
  %4197 = vmatpush1.msra.mxu0 %v869
  %4198 = vmatprep.subr.mxu0 %v874
  %4199 = vmatpush1.msra.mxu0 %v873
  %4200 = vmatprep.subr.mxu0 %v878
  %4201 = vmatpush1.msra.mxu0 %v877
  %4202 = vmatprep.subr.mxu0 %v882
  %4203 = vmatpush1.msra.mxu0 %v881
  %4204 = vmatprep.subr.mxu0 %v886
  %4205 = vmatpush1.msra.mxu0 %v885
  %4206 = vmatprep.subr.mxu0 %v890
  %4207 = vmatpush1.msra.mxu0 %v889
  %4208 = vmatprep.subr.mxu0 %v894
  %4209 = vmatpush1.msra.mxu0 %v893
  %4210 = vmatprep.subr.mxu0 %v898
  %4211 = vmatpush1.msra.mxu0 %v897
  %4212 = vmatprep.subr.mxu0 %v902
  %4213 = vmatpush1.msra.mxu0 %v901
  %4214 = vmatprep.subr.mxu0 %v906
  %4215 = vmatpush1.msra.mxu0 %v905
  %4216 = vmatprep.subr.mxu0 %v910
  %4217 = vmatpush1.msra.mxu0 %v909
  %4218 = vmatprep.mubr.f32.mxu0 %v4082
  %4219 = vmatmul.mubr.f32.gmra.mrb[0].mxu0 %v4081
  %v4220 = vpop.f32.mrb[0].mxu0
  %v4221 = vadd.f32 %v4150, %v4220
  %v4222 = vpop.f32.mrb[0].mxu0
  %v4223 = vadd.f32 %v4152, %v4222
  %4224 = vdwg.mxu0
  %4225 = vmatprep.subr.mxu0 %v660
  %4226 = vmatpush1.msra.mxu0 %v659
  %4227 = vmatprep.subr.mxu0 %v664
  %4228 = vmatpush1.msra.mxu0 %v663
  %4229 = vmatprep.subr.mxu0 %v668
  %4230 = vmatpush1.msra.mxu0 %v667
  %4231 = vmatprep.subr.mxu0 %v672
  %4232 = vmatpush1.msra.mxu0 %v671
  %4233 = vmatprep.subr.mxu0 %v676
  %4234 = vmatpush1.msra.mxu0 %v675
  %4235 = vmatprep.subr.mxu0 %v680
  %4236 = vmatpush1.msra.mxu0 %v679
  %4237 = vmatprep.subr.mxu0 %v684
  %4238 = vmatpush1.msra.mxu0 %v683
  %4239 = vmatprep.subr.mxu0 %v688
  %4240 = vmatpush1.msra.mxu0 %v687
  %4241 = vmatprep.subr.mxu0 %v692
  %4242 = vmatpush1.msra.mxu0 %v691
  %4243 = vmatprep.subr.mxu0 %v696
  %4244 = vmatpush1.msra.mxu0 %v695
  %4245 = vmatprep.subr.mxu0 %v700
  %4246 = vmatpush1.msra.mxu0 %v699
  %4247 = vmatprep.subr.mxu0 %v704
  %4248 = vmatpush1.msra.mxu0 %v703
  %4249 = vmatprep.subr.mxu0 %v708
  %4250 = vmatpush1.msra.mxu0 %v707
  %4251 = vmatprep.subr.mxu0 %v712
  %4252 = vmatpush1.msra.mxu0 %v711
  %4253 = vmatprep.subr.mxu0 %v716
  %4254 = vmatpush1.msra.mxu0 %v715
  %4255 = vmatprep.subr.mxu0 %v720
  %4256 = vmatpush1.msra.mxu0 %v719
  %4257 = vmatprep.subr.mxu0 %v724
  %4258 = vmatpush1.msra.mxu0 %v723
  %4259 = vmatprep.subr.mxu0 %v728
  %4260 = vmatpush1.msra.mxu0 %v727
  %4261 = vmatprep.subr.mxu0 %v732
  %4262 = vmatpush1.msra.mxu0 %v731
  %4263 = vmatprep.subr.mxu0 %v736
  %4264 = vmatpush1.msra.mxu0 %v735
  %4265 = vmatprep.subr.mxu0 %v740
  %4266 = vmatpush1.msra.mxu0 %v739
  %4267 = vmatprep.subr.mxu0 %v744
  %4268 = vmatpush1.msra.mxu0 %v743
  %4269 = vmatprep.subr.mxu0 %v748
  %4270 = vmatpush1.msra.mxu0 %v747
  %4271 = vmatprep.subr.mxu0 %v752
  %4272 = vmatpush1.msra.mxu0 %v751
  %4273 = vmatprep.subr.mxu0 %v756
  %4274 = vmatpush1.msra.mxu0 %v755
  %4275 = vmatprep.subr.mxu0 %v760
  %4276 = vmatpush1.msra.mxu0 %v759
  %4277 = vmatprep.subr.mxu0 %v764
  %4278 = vmatpush1.msra.mxu0 %v763
  %4279 = vmatprep.subr.mxu0 %v768
  %4280 = vmatpush1.msra.mxu0 %v767
  %4281 = vmatprep.subr.mxu0 %v772
  %4282 = vmatpush1.msra.mxu0 %v771
  %4283 = vmatprep.subr.mxu0 %v776
  %4284 = vmatpush1.msra.mxu0 %v775
  %4285 = vmatprep.subr.mxu0 %v780
  %4286 = vmatpush1.msra.mxu0 %v779
  %4287 = vmatprep.subr.mxu0 %v784
  %4288 = vmatpush1.msra.mxu0 %v783
  %4289 = vmatprep.mubr.f32.mxu0 %v4080
  %4290 = vmatmul.mubr.f32.gmra.mrb[0].mxu0 %v4079
  %v4291 = vpop.f32.mrb[0].mxu0
  %v4292 = vadd.f32 %v563, %v4291
  %v4293 = vpop.f32.mrb[0].mxu0
  %v4294 = vadd.f32 %v565, %v4293
  %4295 = vdwg.mxu0
  %4296 = vmatprep.subr.mxu0 %v788
  %4297 = vmatpush1.msra.mxu0 %v787
  %4298 = vmatprep.subr.mxu0 %v792
  %4299 = vmatpush1.msra.mxu0 %v791
  %4300 = vmatprep.subr.mxu0 %v796
  %4301 = vmatpush1.msra.mxu0 %v795
  %4302 = vmatprep.subr.mxu0 %v800
  %4303 = vmatpush1.msra.mxu0 %v799
  %4304 = vmatprep.subr.mxu0 %v804
  %4305 = vmatpush1.msra.mxu0 %v803
  %4306 = vmatprep.subr.mxu0 %v808
  %4307 = vmatpush1.msra.mxu0 %v807
  %4308 = vmatprep.subr.mxu0 %v812
  %4309 = vmatpush1.msra.mxu0 %v811
  %4310 = vmatprep.subr.mxu0 %v816
  %4311 = vmatpush1.msra.mxu0 %v815
  %4312 = vmatprep.subr.mxu0 %v820
  %4313 = vmatpush1.msra.mxu0 %v819
  %4314 = vmatprep.subr.mxu0 %v824
  %4315 = vmatpush1.msra.mxu0 %v823
  %4316 = vmatprep.subr.mxu0 %v828
  %4317 = vmatpush1.msra.mxu0 %v827
  %4318 = vmatprep.subr.mxu0 %v832
  %4319 = vmatpush1.msra.mxu0 %v831
  %4320 = vmatprep.subr.mxu0 %v836
  %4321 = vmatpush1.msra.mxu0 %v835
  %4322 = vmatprep.subr.mxu0 %v840
  %4323 = vmatpush1.msra.mxu0 %v839
  %4324 = vmatprep.subr.mxu0 %v844
  %4325 = vmatpush1.msra.mxu0 %v843
  %4326 = vmatprep.subr.mxu0 %v848
  %4327 = vmatpush1.msra.mxu0 %v847
  %4328 = vmatprep.subr.mxu0 %v852
  %4329 = vmatpush1.msra.mxu0 %v851
  %4330 = vmatprep.subr.mxu0 %v856
  %4331 = vmatpush1.msra.mxu0 %v855
  %4332 = vmatprep.subr.mxu0 %v860
  %4333 = vmatpush1.msra.mxu0 %v859
  %4334 = vmatprep.subr.mxu0 %v864
  %4335 = vmatpush1.msra.mxu0 %v863
  %4336 = vmatprep.subr.mxu0 %v868
  %4337 = vmatpush1.msra.mxu0 %v867
  %4338 = vmatprep.subr.mxu0 %v872
  %4339 = vmatpush1.msra.mxu0 %v871
  %4340 = vmatprep.subr.mxu0 %v876
  %4341 = vmatpush1.msra.mxu0 %v875
  %4342 = vmatprep.subr.mxu0 %v880
  %4343 = vmatpush1.msra.mxu0 %v879
  %4344 = vmatprep.subr.mxu0 %v884
  %4345 = vmatpush1.msra.mxu0 %v883
  %4346 = vmatprep.subr.mxu0 %v888
  %4347 = vmatpush1.msra.mxu0 %v887
  %4348 = vmatprep.subr.mxu0 %v892
  %4349 = vmatpush1.msra.mxu0 %v891
  %4350 = vmatprep.subr.mxu0 %v896
  %4351 = vmatpush1.msra.mxu0 %v895
  %4352 = vmatprep.subr.mxu0 %v900
  %4353 = vmatpush1.msra.mxu0 %v899
  %4354 = vmatprep.subr.mxu0 %v904
  %4355 = vmatpush1.msra.mxu0 %v903
  %4356 = vmatprep.subr.mxu0 %v908
  %4357 = vmatpush1.msra.mxu0 %v907
  %4358 = vmatprep.subr.mxu0 %v912
  %4359 = vmatpush1.msra.mxu0 %v911
  %4360 = vmatprep.mubr.f32.mxu0 %v4082
  %4361 = vmatmul.mubr.f32.gmra.mrb[0].mxu0 %v4081
  %v4362 = vpop.f32.mrb[0].mxu0
  %v4363 = vadd.f32 %v4292, %v4362
  %v4364 = vpop.f32.mrb[0].mxu0
  %v4365 = vadd.f32 %v4294, %v4364
  %4366 = vdwg.mxu0
  %v4367 = vtanh.pop %v4221
  %v4368 = vtanh.pop %v4223
  %v4369 = vtanh.pop %v4363
  %v4370 = vtanh.pop %v4365
  %4371 = vmatprep.subr.mxu0 %v658
  %4372 = vmatpush1.msra.mxu0 %v657
  %4373 = vmatprep.subr.mxu0 %v662
  %4374 = vmatpush1.msra.mxu0 %v661
  %4375 = vmatprep.subr.mxu0 %v666
  %4376 = vmatpush1.msra.mxu0 %v665
  %4377 = vmatprep.subr.mxu0 %v670
  %4378 = vmatpush1.msra.mxu0 %v669
  %4379 = vmatprep.subr.mxu0 %v674
  %4380 = vmatpush1.msra.mxu0 %v673
  %4381 = vmatprep.subr.mxu0 %v678
  %4382 = vmatpush1.msra.mxu0 %v677
  %4383 = vmatprep.subr.mxu0 %v682
  %4384 = vmatpush1.msra.mxu0 %v681
  %4385 = vmatprep.subr.mxu0 %v686
  %4386 = vmatpush1.msra.mxu0 %v685
  %4387 = vmatprep.subr.mxu0 %v690
  %4388 = vmatpush1.msra.mxu0 %v689
  %4389 = vmatprep.subr.mxu0 %v694
  %4390 = vmatpush1.msra.mxu0 %v693
  %4391 = vmatprep.subr.mxu0 %v698
  %4392 = vmatpush1.msra.mxu0 %v697
  %4393 = vmatprep.subr.mxu0 %v702
  %4394 = vmatpush1.msra.mxu0 %v701
  %4395 = vmatprep.subr.mxu0 %v706
  %4396 = vmatpush1.msra.mxu0 %v705
  %4397 = vmatprep.subr.mxu0 %v710
  %4398 = vmatpush1.msra.mxu0 %v709
  %4399 = vmatprep.subr.mxu0 %v714
  %4400 = vmatpush1.msra.mxu0 %v713
  %4401 = vmatprep.subr.mxu0 %v718
  %4402 = vmatpush1.msra.mxu0 %v717
  %4403 = vmatprep.subr.mxu0 %v722
  %4404 = vmatpush1.msra.mxu0 %v721
  %4405 = vmatprep.subr.mxu0 %v726
  %4406 = vmatpush1.msra.mxu0 %v725
  %4407 = vmatprep.subr.mxu0 %v730
  %4408 = vmatpush1.msra.mxu0 %v729
  %4409 = vmatprep.subr.mxu0 %v734
  %4410 = vmatpush1.msra.mxu0 %v733
  %4411 = vmatprep.subr.mxu0 %v738
  %4412 = vmatpush1.msra.mxu0 %v737
  %4413 = vmatprep.subr.mxu0 %v742
  %4414 = vmatpush1.msra.mxu0 %v741
  %4415 = vmatprep.subr.mxu0 %v746
  %4416 = vmatpush1.msra.mxu0 %v745
  %4417 = vmatprep.subr.mxu0 %v750
  %4418 = vmatpush1.msra.mxu0 %v749
  %4419 = vmatprep.subr.mxu0 %v754
  %4420 = vmatpush1.msra.mxu0 %v753
  %4421 = vmatprep.subr.mxu0 %v758
  %4422 = vmatpush1.msra.mxu0 %v757
  %4423 = vmatprep.subr.mxu0 %v762
  %4424 = vmatpush1.msra.mxu0 %v761
  %4425 = vmatprep.subr.mxu0 %v766
  %4426 = vmatpush1.msra.mxu0 %v765
  %4427 = vmatprep.subr.mxu0 %v770
  %4428 = vmatpush1.msra.mxu0 %v769
  %4429 = vmatprep.subr.mxu0 %v774
  %4430 = vmatpush1.msra.mxu0 %v773
  %4431 = vmatprep.subr.mxu0 %v778
  %4432 = vmatpush1.msra.mxu0 %v777
  %4433 = vmatprep.subr.mxu0 %v782
  %4434 = vmatpush1.msra.mxu0 %v781
  %4435 = vmatprep.mubr.f32.mxu0 %v4368
  %4436 = vmatmul.mubr.f32.gmra.mrb[0].mxu0 %v4367
  %v4437 = vpop.f32.mrb[0].mxu0
  %v4438 = vadd.f32 %v338, %v4437
  %v4439 = vpop.f32.mrb[0].mxu0
  %v4440 = vadd.f32 %v340, %v4439
  %4441 = vdwg.mxu0
  %4442 = vmatprep.subr.mxu0 %v786
  %4443 = vmatpush1.msra.mxu0 %v785
  %4444 = vmatprep.subr.mxu0 %v790
  %4445 = vmatpush1.msra.mxu0 %v789
  %4446 = vmatprep.subr.mxu0 %v794
  %4447 = vmatpush1.msra.mxu0 %v793
  %4448 = vmatprep.subr.mxu0 %v798
  %4449 = vmatpush1.msra.mxu0 %v797
  %4450 = vmatprep.subr.mxu0 %v802
  %4451 = vmatpush1.msra.mxu0 %v801
  %4452 = vmatprep.subr.mxu0 %v806
  %4453 = vmatpush1.msra.mxu0 %v805
  %4454 = vmatprep.subr.mxu0 %v810
  %4455 = vmatpush1.msra.mxu0 %v809
  %4456 = vmatprep.subr.mxu0 %v814
  %4457 = vmatpush1.msra.mxu0 %v813
  %4458 = vmatprep.subr.mxu0 %v818
  %4459 = vmatpush1.msra.mxu0 %v817
  %4460 = vmatprep.subr.mxu0 %v822
  %4461 = vmatpush1.msra.mxu0 %v821
  %4462 = vmatprep.subr.mxu0 %v826
  %4463 = vmatpush1.msra.mxu0 %v825
  %4464 = vmatprep.subr.mxu0 %v830
  %4465 = vmatpush1.msra.mxu0 %v829
  %4466 = vmatprep.subr.mxu0 %v834
  %4467 = vmatpush1.msra.mxu0 %v833
  %4468 = vmatprep.subr.mxu0 %v838
  %4469 = vmatpush1.msra.mxu0 %v837
  %4470 = vmatprep.subr.mxu0 %v842
  %4471 = vmatpush1.msra.mxu0 %v841
  %4472 = vmatprep.subr.mxu0 %v846
  %4473 = vmatpush1.msra.mxu0 %v845
  %4474 = vmatprep.subr.mxu0 %v850
  %4475 = vmatpush1.msra.mxu0 %v849
  %4476 = vmatprep.subr.mxu0 %v854
  %4477 = vmatpush1.msra.mxu0 %v853
  %4478 = vmatprep.subr.mxu0 %v858
  %4479 = vmatpush1.msra.mxu0 %v857
  %4480 = vmatprep.subr.mxu0 %v862
  %4481 = vmatpush1.msra.mxu0 %v861
  %4482 = vmatprep.subr.mxu0 %v866
  %4483 = vmatpush1.msra.mxu0 %v865
  %4484 = vmatprep.subr.mxu0 %v870
  %4485 = vmatpush1.msra.mxu0 %v869
  %4486 = vmatprep.subr.mxu0 %v874
  %4487 = vmatpush1.msra.mxu0 %v873
  %4488 = vmatprep.subr.mxu0 %v878
  %4489 = vmatpush1.msra.mxu0 %v877
  %4490 = vmatprep.subr.mxu0 %v882
  %4491 = vmatpush1.msra.mxu0 %v881
  %4492 = vmatprep.subr.mxu0 %v886
  %4493 = vmatpush1.msra.mxu0 %v885
  %4494 = vmatprep.subr.mxu0 %v890
  %4495 = vmatpush1.msra.mxu0 %v889
  %4496 = vmatprep.subr.mxu0 %v894
  %4497 = vmatpush1.msra.mxu0 %v893
  %4498 = vmatprep.subr.mxu0 %v898
  %4499 = vmatpush1.msra.mxu0 %v897
  %4500 = vmatprep.subr.mxu0 %v902
  %4501 = vmatpush1.msra.mxu0 %v901
  %4502 = vmatprep.subr.mxu0 %v906
  %4503 = vmatpush1.msra.mxu0 %v905
  %4504 = vmatprep.subr.mxu0 %v910
  %4505 = vmatpush1.msra.mxu0 %v909
  %4506 = vmatprep.mubr.f32.mxu0 %v4370
  %4507 = vmatmul.mubr.f32.gmra.mrb[0].mxu0 %v4369
  %v4508 = vpop.f32.mrb[0].mxu0
  %v4509 = vadd.f32 %v4438, %v4508
  %v4510 = vpop.f32.mrb[0].mxu0
  %v4511 = vadd.f32 %v4440, %v4510
  %4512 = vdwg.mxu0
  %4513 = vmatprep.subr.mxu0 %v660
  %4514 = vmatpush1.msra.mxu0 %v659
  %4515 = vmatprep.subr.mxu0 %v664
  %4516 = vmatpush1.msra.mxu0 %v663
  %4517 = vmatprep.subr.mxu0 %v668
  %4518 = vmatpush1.msra.mxu0 %v667
  %4519 = vmatprep.subr.mxu0 %v672
  %4520 = vmatpush1.msra.mxu0 %v671
  %4521 = vmatprep.subr.mxu0 %v676
  %4522 = vmatpush1.msra.mxu0 %v675
  %4523 = vmatprep.subr.mxu0 %v680
  %4524 = vmatpush1.msra.mxu0 %v679
  %4525 = vmatprep.subr.mxu0 %v684
  %4526 = vmatpush1.msra.mxu0 %v683
  %4527 = vmatprep.subr.mxu0 %v688
  %4528 = vmatpush1.msra.mxu0 %v687
  %4529 = vmatprep.subr.mxu0 %v692
  %4530 = vmatpush1.msra.mxu0 %v691
  %4531 = vmatprep.subr.mxu0 %v696
  %4532 = vmatpush1.msra.mxu0 %v695
  %4533 = vmatprep.subr.mxu0 %v700
  %4534 = vmatpush1.msra.mxu0 %v699
  %4535 = vmatprep.subr.mxu0 %v704
  %4536 = vmatpush1.msra.mxu0 %v703
  %4537 = vmatprep.subr.mxu0 %v708
  %4538 = vmatpush1.msra.mxu0 %v707
  %4539 = vmatprep.subr.mxu0 %v712
  %4540 = vmatpush1.msra.mxu0 %v711
  %4541 = vmatprep.subr.mxu0 %v716
  %4542 = vmatpush1.msra.mxu0 %v715
  %4543 = vmatprep.subr.mxu0 %v720
  %4544 = vmatpush1.msra.mxu0 %v719
  %4545 = vmatprep.subr.mxu0 %v724
  %4546 = vmatpush1.msra.mxu0 %v723
  %4547 = vmatprep.subr.mxu0 %v728
  %4548 = vmatpush1.msra.mxu0 %v727
  %4549 = vmatprep.subr.mxu0 %v732
  %4550 = vmatpush1.msra.mxu0 %v731
  %4551 = vmatprep.subr.mxu0 %v736
  %4552 = vmatpush1.msra.mxu0 %v735
  %4553 = vmatprep.subr.mxu0 %v740
  %4554 = vmatpush1.msra.mxu0 %v739
  %4555 = vmatprep.subr.mxu0 %v744
  %4556 = vmatpush1.msra.mxu0 %v743
  %4557 = vmatprep.subr.mxu0 %v748
  %4558 = vmatpush1.msra.mxu0 %v747
  %4559 = vmatprep.subr.mxu0 %v752
  %4560 = vmatpush1.msra.mxu0 %v751
  %4561 = vmatprep.subr.mxu0 %v756
  %4562 = vmatpush1.msra.mxu0 %v755
  %4563 = vmatprep.subr.mxu0 %v760
  %4564 = vmatpush1.msra.mxu0 %v759
  %4565 = vmatprep.subr.mxu0 %v764
  %4566 = vmatpush1.msra.mxu0 %v763
  %4567 = vmatprep.subr.mxu0 %v768
  %4568 = vmatpush1.msra.mxu0 %v767
  %4569 = vmatprep.subr.mxu0 %v772
  %4570 = vmatpush1.msra.mxu0 %v771
  %4571 = vmatprep.subr.mxu0 %v776
  %4572 = vmatpush1.msra.mxu0 %v775
  %4573 = vmatprep.subr.mxu0 %v780
  %4574 = vmatpush1.msra.mxu0 %v779
  %4575 = vmatprep.subr.mxu0 %v784
  %4576 = vmatpush1.msra.mxu0 %v783
  %4577 = vmatprep.mubr.f32.mxu0 %v4368
  %4578 = vmatmul.mubr.f32.gmra.mrb[0].mxu0 %v4367
  %v4579 = vpop.f32.mrb[0].mxu0
  %v4580 = vadd.f32 %v569, %v4579
  %v4581 = vpop.f32.mrb[0].mxu0
  %v4582 = vadd.f32 %v571, %v4581
  %4583 = vdwg.mxu0
  %4584 = vmatprep.subr.mxu0 %v788
  %4585 = vmatpush1.msra.mxu0 %v787
  %4586 = vmatprep.subr.mxu0 %v792
  %4587 = vmatpush1.msra.mxu0 %v791
  %4588 = vmatprep.subr.mxu0 %v796
  %4589 = vmatpush1.msra.mxu0 %v795
  %4590 = vmatprep.subr.mxu0 %v800
  %4591 = vmatpush1.msra.mxu0 %v799
  %4592 = vmatprep.subr.mxu0 %v804
  %4593 = vmatpush1.msra.mxu0 %v803
  %4594 = vmatprep.subr.mxu0 %v808
  %4595 = vmatpush1.msra.mxu0 %v807
  %4596 = vmatprep.subr.mxu0 %v812
  %4597 = vmatpush1.msra.mxu0 %v811
  %4598 = vmatprep.subr.mxu0 %v816
  %4599 = vmatpush1.msra.mxu0 %v815
  %4600 = vmatprep.subr.mxu0 %v820
  %4601 = vmatpush1.msra.mxu0 %v819
  %4602 = vmatprep.subr.mxu0 %v824
  %4603 = vmatpush1.msra.mxu0 %v823
  %4604 = vmatprep.subr.mxu0 %v828
  %4605 = vmatpush1.msra.mxu0 %v827
  %4606 = vmatprep.subr.mxu0 %v832
  %4607 = vmatpush1.msra.mxu0 %v831
  %4608 = vmatprep.subr.mxu0 %v836
  %4609 = vmatpush1.msra.mxu0 %v835
  %4610 = vmatprep.subr.mxu0 %v840
  %4611 = vmatpush1.msra.mxu0 %v839
  %4612 = vmatprep.subr.mxu0 %v844
  %4613 = vmatpush1.msra.mxu0 %v843
  %4614 = vmatprep.subr.mxu0 %v848
  %4615 = vmatpush1.msra.mxu0 %v847
  %4616 = vmatprep.subr.mxu0 %v852
  %4617 = vmatpush1.msra.mxu0 %v851
  %4618 = vmatprep.subr.mxu0 %v856
  %4619 = vmatpush1.msra.mxu0 %v855
  %4620 = vmatprep.subr.mxu0 %v860
  %4621 = vmatpush1.msra.mxu0 %v859
  %4622 = vmatprep.subr.mxu0 %v864
  %4623 = vmatpush1.msra.mxu0 %v863
  %4624 = vmatprep.subr.mxu0 %v868
  %4625 = vmatpush1.msra.mxu0 %v867
  %4626 = vmatprep.subr.mxu0 %v872
  %4627 = vmatpush1.msra.mxu0 %v871
  %4628 = vmatprep.subr.mxu0 %v876
  %4629 = vmatpush1.msra.mxu0 %v875
  %4630 = vmatprep.subr.mxu0 %v880
  %4631 = vmatpush1.msra.mxu0 %v879
  %4632 = vmatprep.subr.mxu0 %v884
  %4633 = vmatpush1.msra.mxu0 %v883
  %4634 = vmatprep.subr.mxu0 %v888
  %4635 = vmatpush1.msra.mxu0 %v887
  %4636 = vmatprep.subr.mxu0 %v892
  %4637 = vmatpush1.msra.mxu0 %v891
  %4638 = vmatprep.subr.mxu0 %v896
  %4639 = vmatpush1.msra.mxu0 %v895
  %4640 = vmatprep.subr.mxu0 %v900
  %4641 = vmatpush1.msra.mxu0 %v899
  %4642 = vmatprep.subr.mxu0 %v904
  %4643 = vmatpush1.msra.mxu0 %v903
  %4644 = vmatprep.subr.mxu0 %v908
  %4645 = vmatpush1.msra.mxu0 %v907
  %4646 = vmatprep.subr.mxu0 %v912
  %4647 = vmatpush1.msra.mxu0 %v911
  %4648 = vmatprep.mubr.f32.mxu0 %v4370
  %4649 = vmatmul.mubr.f32.gmra.mrb[0].mxu0 %v4369
  %v4650 = vpop.f32.mrb[0].mxu0
  %v4651 = vadd.f32 %v4580, %v4650
  %v4652 = vpop.f32.mrb[0].mxu0
  %v4653 = vadd.f32 %v4582, %v4652
  %4654 = vdwg.mxu0
  %v4655 = vtanh.pop %v4509
  %v4656 = vtanh.pop %v4511
  %v4657 = vtanh.pop %v4651
  %v4658 = vtanh.pop %v4653
  %4659 = vmatprep.subr.mxu0 %v658
  %4660 = vmatpush1.msra.mxu0 %v657
  %4661 = vmatprep.subr.mxu0 %v662
  %4662 = vmatpush1.msra.mxu0 %v661
  %4663 = vmatprep.subr.mxu0 %v666
  %4664 = vmatpush1.msra.mxu0 %v665
  %4665 = vmatprep.subr.mxu0 %v670
  %4666 = vmatpush1.msra.mxu0 %v669
  %4667 = vmatprep.subr.mxu0 %v674
  %4668 = vmatpush1.msra.mxu0 %v673
  %4669 = vmatprep.subr.mxu0 %v678
  %4670 = vmatpush1.msra.mxu0 %v677
  %4671 = vmatprep.subr.mxu0 %v682
  %4672 = vmatpush1.msra.mxu0 %v681
  %4673 = vmatprep.subr.mxu0 %v686
  %4674 = vmatpush1.msra.mxu0 %v685
  %4675 = vmatprep.subr.mxu0 %v690
  %4676 = vmatpush1.msra.mxu0 %v689
  %4677 = vmatprep.subr.mxu0 %v694
  %4678 = vmatpush1.msra.mxu0 %v693
  %4679 = vmatprep.subr.mxu0 %v698
  %4680 = vmatpush1.msra.mxu0 %v697
  %4681 = vmatprep.subr.mxu0 %v702
  %4682 = vmatpush1.msra.mxu0 %v701
  %4683 = vmatprep.subr.mxu0 %v706
  %4684 = vmatpush1.msra.mxu0 %v705
  %4685 = vmatprep.subr.mxu0 %v710
  %4686 = vmatpush1.msra.mxu0 %v709
  %4687 = vmatprep.subr.mxu0 %v714
  %4688 = vmatpush1.msra.mxu0 %v713
  %4689 = vmatprep.subr.mxu0 %v718
  %4690 = vmatpush1.msra.mxu0 %v717
  %4691 = vmatprep.subr.mxu0 %v722
  %4692 = vmatpush1.msra.mxu0 %v721
  %4693 = vmatprep.subr.mxu0 %v726
  %4694 = vmatpush1.msra.mxu0 %v725
  %4695 = vmatprep.subr.mxu0 %v730
  %4696 = vmatpush1.msra.mxu0 %v729
  %4697 = vmatprep.subr.mxu0 %v734
  %4698 = vmatpush1.msra.mxu0 %v733
  %4699 = vmatprep.subr.mxu0 %v738
  %4700 = vmatpush1.msra.mxu0 %v737
  %4701 = vmatprep.subr.mxu0 %v742
  %4702 = vmatpush1.msra.mxu0 %v741
  %4703 = vmatprep.subr.mxu0 %v746
  %4704 = vmatpush1.msra.mxu0 %v745
  %4705 = vmatprep.subr.mxu0 %v750
  %4706 = vmatpush1.msra.mxu0 %v749
  %4707 = vmatprep.subr.mxu0 %v754
  %4708 = vmatpush1.msra.mxu0 %v753
  %4709 = vmatprep.subr.mxu0 %v758
  %4710 = vmatpush1.msra.mxu0 %v757
  %4711 = vmatprep.subr.mxu0 %v762
  %4712 = vmatpush1.msra.mxu0 %v761
  %4713 = vmatprep.subr.mxu0 %v766
  %4714 = vmatpush1.msra.mxu0 %v765
  %4715 = vmatprep.subr.mxu0 %v770
  %4716 = vmatpush1.msra.mxu0 %v769
  %4717 = vmatprep.subr.mxu0 %v774
  %4718 = vmatpush1.msra.mxu0 %v773
  %4719 = vmatprep.subr.mxu0 %v778
  %4720 = vmatpush1.msra.mxu0 %v777
  %4721 = vmatprep.subr.mxu0 %v782
  %4722 = vmatpush1.msra.mxu0 %v781
  %4723 = vmatprep.mubr.f32.mxu0 %v4656
  %4724 = vmatmul.mubr.f32.gmra.mrb[0].mxu0 %v4655
  %v4725 = vpop.f32.mrb[0].mxu0
  %v4726 = vadd.f32 %v344, %v4725
  %v4727 = vpop.f32.mrb[0].mxu0
  %v4728 = vadd.f32 %v346, %v4727
  %4729 = vdwg.mxu0
  %4730 = vmatprep.subr.mxu0 %v786
  %4731 = vmatpush1.msra.mxu0 %v785
  %4732 = vmatprep.subr.mxu0 %v790
  %4733 = vmatpush1.msra.mxu0 %v789
  %4734 = vmatprep.subr.mxu0 %v794
  %4735 = vmatpush1.msra.mxu0 %v793
  %4736 = vmatprep.subr.mxu0 %v798
  %4737 = vmatpush1.msra.mxu0 %v797
  %4738 = vmatprep.subr.mxu0 %v802
  %4739 = vmatpush1.msra.mxu0 %v801
  %4740 = vmatprep.subr.mxu0 %v806
  %4741 = vmatpush1.msra.mxu0 %v805
  %4742 = vmatprep.subr.mxu0 %v810
  %4743 = vmatpush1.msra.mxu0 %v809
  %4744 = vmatprep.subr.mxu0 %v814
  %4745 = vmatpush1.msra.mxu0 %v813
  %4746 = vmatprep.subr.mxu0 %v818
  %4747 = vmatpush1.msra.mxu0 %v817
  %4748 = vmatprep.subr.mxu0 %v822
  %4749 = vmatpush1.msra.mxu0 %v821
  %4750 = vmatprep.subr.mxu0 %v826
  %4751 = vmatpush1.msra.mxu0 %v825
  %4752 = vmatprep.subr.mxu0 %v830
  %4753 = vmatpush1.msra.mxu0 %v829
  %4754 = vmatprep.subr.mxu0 %v834
  %4755 = vmatpush1.msra.mxu0 %v833
  %4756 = vmatprep.subr.mxu0 %v838
  %4757 = vmatpush1.msra.mxu0 %v837
  %4758 = vmatprep.subr.mxu0 %v842
  %4759 = vmatpush1.msra.mxu0 %v841
  %4760 = vmatprep.subr.mxu0 %v846
  %4761 = vmatpush1.msra.mxu0 %v845
  %4762 = vmatprep.subr.mxu0 %v850
  %4763 = vmatpush1.msra.mxu0 %v849
  %4764 = vmatprep.subr.mxu0 %v854
  %4765 = vmatpush1.msra.mxu0 %v853
  %4766 = vmatprep.subr.mxu0 %v858
  %4767 = vmatpush1.msra.mxu0 %v857
  %4768 = vmatprep.subr.mxu0 %v862
  %4769 = vmatpush1.msra.mxu0 %v861
  %4770 = vmatprep.subr.mxu0 %v866
  %4771 = vmatpush1.msra.mxu0 %v865
  %4772 = vmatprep.subr.mxu0 %v870
  %4773 = vmatpush1.msra.mxu0 %v869
  %4774 = vmatprep.subr.mxu0 %v874
  %4775 = vmatpush1.msra.mxu0 %v873
  %4776 = vmatprep.subr.mxu0 %v878
  %4777 = vmatpush1.msra.mxu0 %v877
  %4778 = vmatprep.subr.mxu0 %v882
  %4779 = vmatpush1.msra.mxu0 %v881
  %4780 = vmatprep.subr.mxu0 %v886
  %4781 = vmatpush1.msra.mxu0 %v885
  %4782 = vmatprep.subr.mxu0 %v890
  %4783 = vmatpush1.msra.mxu0 %v889
  %4784 = vmatprep.subr.mxu0 %v894
  %4785 = vmatpush1.msra.mxu0 %v893
  %4786 = vmatprep.subr.mxu0 %v898
  %4787 = vmatpush1.msra.mxu0 %v897
  %4788 = vmatprep.subr.mxu0 %v902
  %4789 = vmatpush1.msra.mxu0 %v901
  %4790 = vmatprep.subr.mxu0 %v906
  %4791 = vmatpush1.msra.mxu0 %v905
  %4792 = vmatprep.subr.mxu0 %v910
  %4793 = vmatpush1.msra.mxu0 %v909
  %4794 = vmatprep.mubr.f32.mxu0 %v4658
  %4795 = vmatmul.mubr.f32.gmra.mrb[0].mxu0 %v4657
  %v4796 = vpop.f32.mrb[0].mxu0
  %v4797 = vadd.f32 %v4726, %v4796
  %v4798 = vpop.f32.mrb[0].mxu0
  %v4799 = vadd.f32 %v4728, %v4798
  %4800 = vdwg.mxu0
  %4801 = vmatprep.subr.mxu0 %v660
  %4802 = vmatpush1.msra.mxu0 %v659
  %4803 = vmatprep.subr.mxu0 %v664
  %4804 = vmatpush1.msra.mxu0 %v663
  %4805 = vmatprep.subr.mxu0 %v668
  %4806 = vmatpush1.msra.mxu0 %v667
  %4807 = vmatprep.subr.mxu0 %v672
  %4808 = vmatpush1.msra.mxu0 %v671
  %4809 = vmatprep.subr.mxu0 %v676
  %4810 = vmatpush1.msra.mxu0 %v675
  %4811 = vmatprep.subr.mxu0 %v680
  %4812 = vmatpush1.msra.mxu0 %v679
  %4813 = vmatprep.subr.mxu0 %v684
  %4814 = vmatpush1.msra.mxu0 %v683
  %4815 = vmatprep.subr.mxu0 %v688
  %4816 = vmatpush1.msra.mxu0 %v687
  %4817 = vmatprep.subr.mxu0 %v692
  %4818 = vmatpush1.msra.mxu0 %v691
  %4819 = vmatprep.subr.mxu0 %v696
  %4820 = vmatpush1.msra.mxu0 %v695
  %4821 = vmatprep.subr.mxu0 %v700
  %4822 = vmatpush1.msra.mxu0 %v699
  %4823 = vmatprep.subr.mxu0 %v704
  %4824 = vmatpush1.msra.mxu0 %v703
  %4825 = vmatprep.subr.mxu0 %v708
  %4826 = vmatpush1.msra.mxu0 %v707
  %4827 = vmatprep.subr.mxu0 %v712
  %4828 = vmatpush1.msra.mxu0 %v711
  %4829 = vmatprep.subr.mxu0 %v716
  %4830 = vmatpush1.msra.mxu0 %v715
  %4831 = vmatprep.subr.mxu0 %v720
  %4832 = vmatpush1.msra.mxu0 %v719
  %4833 = vmatprep.subr.mxu0 %v724
  %4834 = vmatpush1.msra.mxu0 %v723
  %4835 = vmatprep.subr.mxu0 %v728
  %4836 = vmatpush1.msra.mxu0 %v727
  %4837 = vmatprep.subr.mxu0 %v732
  %4838 = vmatpush1.msra.mxu0 %v731
  %4839 = vmatprep.subr.mxu0 %v736
  %4840 = vmatpush1.msra.mxu0 %v735
  %4841 = vmatprep.subr.mxu0 %v740
  %4842 = vmatpush1.msra.mxu0 %v739
  %4843 = vmatprep.subr.mxu0 %v744
  %4844 = vmatpush1.msra.mxu0 %v743
  %4845 = vmatprep.subr.mxu0 %v748
  %4846 = vmatpush1.msra.mxu0 %v747
  %4847 = vmatprep.subr.mxu0 %v752
  %4848 = vmatpush1.msra.mxu0 %v751
  %4849 = vmatprep.subr.mxu0 %v756
  %4850 = vmatpush1.msra.mxu0 %v755
  %4851 = vmatprep.subr.mxu0 %v760
  %4852 = vmatpush1.msra.mxu0 %v759
  %4853 = vmatprep.subr.mxu0 %v764
  %4854 = vmatpush1.msra.mxu0 %v763
  %4855 = vmatprep.subr.mxu0 %v768
  %4856 = vmatpush1.msra.mxu0 %v767
  %4857 = vmatprep.subr.mxu0 %v772
  %4858 = vmatpush1.msra.mxu0 %v771
  %4859 = vmatprep.subr.mxu0 %v776
  %4860 = vmatpush1.msra.mxu0 %v775
  %4861 = vmatprep.subr.mxu0 %v780
  %4862 = vmatpush1.msra.mxu0 %v779
  %4863 = vmatprep.subr.mxu0 %v784
  %4864 = vmatpush1.msra.mxu0 %v783
  %4865 = vmatprep.mubr.f32.mxu0 %v4656
  %4866 = vmatmul.mubr.f32.gmra.mrb[0].mxu0 %v4655
  %v4867 = vpop.f32.mrb[0].mxu0
  %v4868 = vadd.f32 %v575, %v4867
  %v4869 = vpop.f32.mrb[0].mxu0
  %v4870 = vadd.f32 %v577, %v4869
  %4871 = vdwg.mxu0
  %4872 = vmatprep.subr.mxu0 %v788
  %4873 = vmatpush1.msra.mxu0 %v787
  %4874 = vmatprep.subr.mxu0 %v792
  %4875 = vmatpush1.msra.mxu0 %v791
  %4876 = vmatprep.subr.mxu0 %v796
  %4877 = vmatpush1.msra.mxu0 %v795
  %4878 = vmatprep.subr.mxu0 %v800
  %4879 = vmatpush1.msra.mxu0 %v799
  %4880 = vmatprep.subr.mxu0 %v804
  %4881 = vmatpush1.msra.mxu0 %v803
  %4882 = vmatprep.subr.mxu0 %v808
  %4883 = vmatpush1.msra.mxu0 %v807
  %4884 = vmatprep.subr.mxu0 %v812
  %4885 = vmatpush1.msra.mxu0 %v811
  %4886 = vmatprep.subr.mxu0 %v816
  %4887 = vmatpush1.msra.mxu0 %v815
  %4888 = vmatprep.subr.mxu0 %v820
  %4889 = vmatpush1.msra.mxu0 %v819
  %4890 = vmatprep.subr.mxu0 %v824
  %4891 = vmatpush1.msra.mxu0 %v823
  %4892 = vmatprep.subr.mxu0 %v828
  %4893 = vmatpush1.msra.mxu0 %v827
  %4894 = vmatprep.subr.mxu0 %v832
  %4895 = vmatpush1.msra.mxu0 %v831
  %4896 = vmatprep.subr.mxu0 %v836
  %4897 = vmatpush1.msra.mxu0 %v835
  %4898 = vmatprep.subr.mxu0 %v840
  %4899 = vmatpush1.msra.mxu0 %v839
  %4900 = vmatprep.subr.mxu0 %v844
  %4901 = vmatpush1.msra.mxu0 %v843
  %4902 = vmatprep.subr.mxu0 %v848
  %4903 = vmatpush1.msra.mxu0 %v847
  %4904 = vmatprep.subr.mxu0 %v852
  %4905 = vmatpush1.msra.mxu0 %v851
  %4906 = vmatprep.subr.mxu0 %v856
  %4907 = vmatpush1.msra.mxu0 %v855
  %4908 = vmatprep.subr.mxu0 %v860
  %4909 = vmatpush1.msra.mxu0 %v859
  %4910 = vmatprep.subr.mxu0 %v864
  %4911 = vmatpush1.msra.mxu0 %v863
  %4912 = vmatprep.subr.mxu0 %v868
  %4913 = vmatpush1.msra.mxu0 %v867
  %4914 = vmatprep.subr.mxu0 %v872
  %4915 = vmatpush1.msra.mxu0 %v871
  %4916 = vmatprep.subr.mxu0 %v876
  %4917 = vmatpush1.msra.mxu0 %v875
  %4918 = vmatprep.subr.mxu0 %v880
  %4919 = vmatpush1.msra.mxu0 %v879
  %4920 = vmatprep.subr.mxu0 %v884
  %4921 = vmatpush1.msra.mxu0 %v883
  %4922 = vmatprep.subr.mxu0 %v888
  %4923 = vmatpush1.msra.mxu0 %v887
  %4924 = vmatprep.subr.mxu0 %v892
  %4925 = vmatpush1.msra.mxu0 %v891
  %4926 = vmatprep.subr.mxu0 %v896
  %4927 = vmatpush1.msra.mxu0 %v895
  %4928 = vmatprep.subr.mxu0 %v900
  %4929 = vmatpush1.msra.mxu0 %v899
  %4930 = vmatprep.subr.mxu0 %v904
  %4931 = vmatpush1.msra.mxu0 %v903
  %4932 = vmatprep.subr.mxu0 %v908
  %4933 = vmatpush1.msra.mxu0 %v907
  %4934 = vmatprep.subr.mxu0 %v912
  %4935 = vmatpush1.msra.mxu0 %v911
  %4936 = vmatprep.mubr.f32.mxu0 %v4658
  %4937 = vmatmul.mubr.f32.gmra.mrb[0].mxu0 %v4657
  %v4938 = vpop.f32.mrb[0].mxu0
  %v4939 = vadd.f32 %v4868, %v4938
  %v4940 = vpop.f32.mrb[0].mxu0
  %v4941 = vadd.f32 %v4870, %v4940
  %4942 = vdwg.mxu0
  %v4943 = vtanh.pop %v4797
  %v4944 = vtanh.pop %v4799
  %v4945 = vtanh.pop %v4939
  %v4946 = vtanh.pop %v4941
  %4947 = vmatprep.subr.mxu0 %v658
  %4948 = vmatpush1.msra.mxu0 %v657
  %4949 = vmatprep.subr.mxu0 %v662
  %4950 = vmatpush1.msra.mxu0 %v661
  %4951 = vmatprep.subr.mxu0 %v666
  %4952 = vmatpush1.msra.mxu0 %v665
  %4953 = vmatprep.subr.mxu0 %v670
  %4954 = vmatpush1.msra.mxu0 %v669
  %4955 = vmatprep.subr.mxu0 %v674
  %4956 = vmatpush1.msra.mxu0 %v673
  %4957 = vmatprep.subr.mxu0 %v678
  %4958 = vmatpush1.msra.mxu0 %v677
  %4959 = vmatprep.subr.mxu0 %v682
  %4960 = vmatpush1.msra.mxu0 %v681
  %4961 = vmatprep.subr.mxu0 %v686
  %4962 = vmatpush1.msra.mxu0 %v685
  %4963 = vmatprep.subr.mxu0 %v690
  %4964 = vmatpush1.msra.mxu0 %v689
  %4965 = vmatprep.subr.mxu0 %v694
  %4966 = vmatpush1.msra.mxu0 %v693
  %4967 = vmatprep.subr.mxu0 %v698
  %4968 = vmatpush1.msra.mxu0 %v697
  %4969 = vmatprep.subr.mxu0 %v702
  %4970 = vmatpush1.msra.mxu0 %v701
  %4971 = vmatprep.subr.mxu0 %v706
  %4972 = vmatpush1.msra.mxu0 %v705
  %4973 = vmatprep.subr.mxu0 %v710
  %4974 = vmatpush1.msra.mxu0 %v709
  %4975 = vmatprep.subr.mxu0 %v714
  %4976 = vmatpush1.msra.mxu0 %v713
  %4977 = vmatprep.subr.mxu0 %v718
  %4978 = vmatpush1.msra.mxu0 %v717
  %4979 = vmatprep.subr.mxu0 %v722
  %4980 = vmatpush1.msra.mxu0 %v721
  %4981 = vmatprep.subr.mxu0 %v726
  %4982 = vmatpush1.msra.mxu0 %v725
  %4983 = vmatprep.subr.mxu0 %v730
  %4984 = vmatpush1.msra.mxu0 %v729
  %4985 = vmatprep.subr.mxu0 %v734
  %4986 = vmatpush1.msra.mxu0 %v733
  %4987 = vmatprep.subr.mxu0 %v738
  %4988 = vmatpush1.msra.mxu0 %v737
  %4989 = vmatprep.subr.mxu0 %v742
  %4990 = vmatpush1.msra.mxu0 %v741
  %4991 = vmatprep.subr.mxu0 %v746
  %4992 = vmatpush1.msra.mxu0 %v745
  %4993 = vmatprep.subr.mxu0 %v750
  %4994 = vmatpush1.msra.mxu0 %v749
  %4995 = vmatprep.subr.mxu0 %v754
  %4996 = vmatpush1.msra.mxu0 %v753
  %4997 = vmatprep.subr.mxu0 %v758
  %4998 = vmatpush1.msra.mxu0 %v757
  %4999 = vmatprep.subr.mxu0 %v762
  %5000 = vmatpush1.msra.mxu0 %v761
  %5001 = vmatprep.subr.mxu0 %v766
  %5002 = vmatpush1.msra.mxu0 %v765
  %5003 = vmatprep.subr.mxu0 %v770
  %5004 = vmatpush1.msra.mxu0 %v769
  %5005 = vmatprep.subr.mxu0 %v774
  %5006 = vmatpush1.msra.mxu0 %v773
  %5007 = vmatprep.subr.mxu0 %v778
  %5008 = vmatpush1.msra.mxu0 %v777
  %5009 = vmatprep.subr.mxu0 %v782
  %5010 = vmatpush1.msra.mxu0 %v781
  %5011 = vmatprep.mubr.f32.mxu0 %v4944
  %5012 = vmatmul.mubr.f32.gmra.mrb[0].mxu0 %v4943
  %v5013 = vpop.f32.mrb[0].mxu0
  %v5014 = vadd.f32 %v350, %v5013
  %v5015 = vpop.f32.mrb[0].mxu0
  %v5016 = vadd.f32 %v352, %v5015
  %5017 = vdwg.mxu0
  %5018 = vmatprep.subr.mxu0 %v786
  %5019 = vmatpush1.msra.mxu0 %v785
  %5020 = vmatprep.subr.mxu0 %v790
  %5021 = vmatpush1.msra.mxu0 %v789
  %5022 = vmatprep.subr.mxu0 %v794
  %5023 = vmatpush1.msra.mxu0 %v793
  %5024 = vmatprep.subr.mxu0 %v798
  %5025 = vmatpush1.msra.mxu0 %v797
  %5026 = vmatprep.subr.mxu0 %v802
  %5027 = vmatpush1.msra.mxu0 %v801
  %5028 = vmatprep.subr.mxu0 %v806
  %5029 = vmatpush1.msra.mxu0 %v805
  %5030 = vmatprep.subr.mxu0 %v810
  %5031 = vmatpush1.msra.mxu0 %v809
  %5032 = vmatprep.subr.mxu0 %v814
  %5033 = vmatpush1.msra.mxu0 %v813
  %5034 = vmatprep.subr.mxu0 %v818
  %5035 = vmatpush1.msra.mxu0 %v817
  %5036 = vmatprep.subr.mxu0 %v822
  %5037 = vmatpush1.msra.mxu0 %v821
  %5038 = vmatprep.subr.mxu0 %v826
  %5039 = vmatpush1.msra.mxu0 %v825
  %5040 = vmatprep.subr.mxu0 %v830
  %5041 = vmatpush1.msra.mxu0 %v829
  %5042 = vmatprep.subr.mxu0 %v834
  %5043 = vmatpush1.msra.mxu0 %v833
  %5044 = vmatprep.subr.mxu0 %v838
  %5045 = vmatpush1.msra.mxu0 %v837
  %5046 = vmatprep.subr.mxu0 %v842
  %5047 = vmatpush1.msra.mxu0 %v841
  %5048 = vmatprep.subr.mxu0 %v846
  %5049 = vmatpush1.msra.mxu0 %v845
  %5050 = vmatprep.subr.mxu0 %v850
  %5051 = vmatpush1.msra.mxu0 %v849
  %5052 = vmatprep.subr.mxu0 %v854
  %5053 = vmatpush1.msra.mxu0 %v853
  %5054 = vmatprep.subr.mxu0 %v858
  %5055 = vmatpush1.msra.mxu0 %v857
  %5056 = vmatprep.subr.mxu0 %v862
  %5057 = vmatpush1.msra.mxu0 %v861
  %5058 = vmatprep.subr.mxu0 %v866
  %5059 = vmatpush1.msra.mxu0 %v865
  %5060 = vmatprep.subr.mxu0 %v870
  %5061 = vmatpush1.msra.mxu0 %v869
  %5062 = vmatprep.subr.mxu0 %v874
  %5063 = vmatpush1.msra.mxu0 %v873
  %5064 = vmatprep.subr.mxu0 %v878
  %5065 = vmatpush1.msra.mxu0 %v877
  %5066 = vmatprep.subr.mxu0 %v882
  %5067 = vmatpush1.msra.mxu0 %v881
  %5068 = vmatprep.subr.mxu0 %v886
  %5069 = vmatpush1.msra.mxu0 %v885
  %5070 = vmatprep.subr.mxu0 %v890
  %5071 = vmatpush1.msra.mxu0 %v889
  %5072 = vmatprep.subr.mxu0 %v894
  %5073 = vmatpush1.msra.mxu0 %v893
  %5074 = vmatprep.subr.mxu0 %v898
  %5075 = vmatpush1.msra.mxu0 %v897
  %5076 = vmatprep.subr.mxu0 %v902
  %5077 = vmatpush1.msra.mxu0 %v901
  %5078 = vmatprep.subr.mxu0 %v906
  %5079 = vmatpush1.msra.mxu0 %v905
  %5080 = vmatprep.subr.mxu0 %v910
  %5081 = vmatpush1.msra.mxu0 %v909
  %5082 = vmatprep.mubr.f32.mxu0 %v4946
  %5083 = vmatmul.mubr.f32.gmra.mrb[0].mxu0 %v4945
  %v5084 = vpop.f32.mrb[0].mxu0
  %v5085 = vadd.f32 %v5014, %v5084
  %v5086 = vpop.f32.mrb[0].mxu0
  %v5087 = vadd.f32 %v5016, %v5086
  %5088 = vdwg.mxu0
  %5089 = vmatprep.subr.mxu0 %v660
  %5090 = vmatpush1.msra.mxu0 %v659
  %5091 = vmatprep.subr.mxu0 %v664
  %5092 = vmatpush1.msra.mxu0 %v663
  %5093 = vmatprep.subr.mxu0 %v668
  %5094 = vmatpush1.msra.mxu0 %v667
  %5095 = vmatprep.subr.mxu0 %v672
  %5096 = vmatpush1.msra.mxu0 %v671
  %5097 = vmatprep.subr.mxu0 %v676
  %5098 = vmatpush1.msra.mxu0 %v675
  %5099 = vmatprep.subr.mxu0 %v680
  %5100 = vmatpush1.msra.mxu0 %v679
  %5101 = vmatprep.subr.mxu0 %v684
  %5102 = vmatpush1.msra.mxu0 %v683
  %5103 = vmatprep.subr.mxu0 %v688
  %5104 = vmatpush1.msra.mxu0 %v687
  %5105 = vmatprep.subr.mxu0 %v692
  %5106 = vmatpush1.msra.mxu0 %v691
  %5107 = vmatprep.subr.mxu0 %v696
  %5108 = vmatpush1.msra.mxu0 %v695
  %5109 = vmatprep.subr.mxu0 %v700
  %5110 = vmatpush1.msra.mxu0 %v699
  %5111 = vmatprep.subr.mxu0 %v704
  %5112 = vmatpush1.msra.mxu0 %v703
  %5113 = vmatprep.subr.mxu0 %v708
  %5114 = vmatpush1.msra.mxu0 %v707
  %5115 = vmatprep.subr.mxu0 %v712
  %5116 = vmatpush1.msra.mxu0 %v711
  %5117 = vmatprep.subr.mxu0 %v716
  %5118 = vmatpush1.msra.mxu0 %v715
  %5119 = vmatprep.subr.mxu0 %v720
  %5120 = vmatpush1.msra.mxu0 %v719
  %5121 = vmatprep.subr.mxu0 %v724
  %5122 = vmatpush1.msra.mxu0 %v723
  %5123 = vmatprep.subr.mxu0 %v728
  %5124 = vmatpush1.msra.mxu0 %v727
  %5125 = vmatprep.subr.mxu0 %v732
  %5126 = vmatpush1.msra.mxu0 %v731
  %5127 = vmatprep.subr.mxu0 %v736
  %5128 = vmatpush1.msra.mxu0 %v735
  %5129 = vmatprep.subr.mxu0 %v740
  %5130 = vmatpush1.msra.mxu0 %v739
  %5131 = vmatprep.subr.mxu0 %v744
  %5132 = vmatpush1.msra.mxu0 %v743
  %5133 = vmatprep.subr.mxu0 %v748
  %5134 = vmatpush1.msra.mxu0 %v747
  %5135 = vmatprep.subr.mxu0 %v752
  %5136 = vmatpush1.msra.mxu0 %v751
  %5137 = vmatprep.subr.mxu0 %v756
  %5138 = vmatpush1.msra.mxu0 %v755
  %5139 = vmatprep.subr.mxu0 %v760
  %5140 = vmatpush1.msra.mxu0 %v759
  %5141 = vmatprep.subr.mxu0 %v764
  %5142 = vmatpush1.msra.mxu0 %v763
  %5143 = vmatprep.subr.mxu0 %v768
  %5144 = vmatpush1.msra.mxu0 %v767
  %5145 = vmatprep.subr.mxu0 %v772
  %5146 = vmatpush1.msra.mxu0 %v771
  %5147 = vmatprep.subr.mxu0 %v776
  %5148 = vmatpush1.msra.mxu0 %v775
  %5149 = vmatprep.subr.mxu0 %v780
  %5150 = vmatpush1.msra.mxu0 %v779
  %5151 = vmatprep.subr.mxu0 %v784
  %5152 = vmatpush1.msra.mxu0 %v783
  %5153 = vmatprep.mubr.f32.mxu0 %v4944
  %5154 = vmatmul.mubr.f32.gmra.mrb[0].mxu0 %v4943
  %v5155 = vpop.f32.mrb[0].mxu0
  %v5156 = vadd.f32 %v581, %v5155
  %v5157 = vpop.f32.mrb[0].mxu0
  %v5158 = vadd.f32 %v583, %v5157
  %5159 = vdwg.mxu0
  %5160 = vmatprep.subr.mxu0 %v788
  %5161 = vmatpush1.msra.mxu0 %v787
  %5162 = vmatprep.subr.mxu0 %v792
  %5163 = vmatpush1.msra.mxu0 %v791
  %5164 = vmatprep.subr.mxu0 %v796
  %5165 = vmatpush1.msra.mxu0 %v795
  %5166 = vmatprep.subr.mxu0 %v800
  %5167 = vmatpush1.msra.mxu0 %v799
  %5168 = vmatprep.subr.mxu0 %v804
  %5169 = vmatpush1.msra.mxu0 %v803
  %5170 = vmatprep.subr.mxu0 %v808
  %5171 = vmatpush1.msra.mxu0 %v807
  %5172 = vmatprep.subr.mxu0 %v812
  %5173 = vmatpush1.msra.mxu0 %v811
  %5174 = vmatprep.subr.mxu0 %v816
  %5175 = vmatpush1.msra.mxu0 %v815
  %5176 = vmatprep.subr.mxu0 %v820
  %5177 = vmatpush1.msra.mxu0 %v819
  %5178 = vmatprep.subr.mxu0 %v824
  %5179 = vmatpush1.msra.mxu0 %v823
  %5180 = vmatprep.subr.mxu0 %v828
  %5181 = vmatpush1.msra.mxu0 %v827
  %5182 = vmatprep.subr.mxu0 %v832
  %5183 = vmatpush1.msra.mxu0 %v831
  %5184 = vmatprep.subr.mxu0 %v836
  %5185 = vmatpush1.msra.mxu0 %v835
  %5186 = vmatprep.subr.mxu0 %v840
  %5187 = vmatpush1.msra.mxu0 %v839
  %5188 = vmatprep.subr.mxu0 %v844
  %5189 = vmatpush1.msra.mxu0 %v843
  %5190 = vmatprep.subr.mxu0 %v848
  %5191 = vmatpush1.msra.mxu0 %v847
  %5192 = vmatprep.subr.mxu0 %v852
  %5193 = vmatpush1.msra.mxu0 %v851
  %5194 = vmatprep.subr.mxu0 %v856
  %5195 = vmatpush1.msra.mxu0 %v855
  %5196 = vmatprep.subr.mxu0 %v860
  %5197 = vmatpush1.msra.mxu0 %v859
  %5198 = vmatprep.subr.mxu0 %v864
  %5199 = vmatpush1.msra.mxu0 %v863
  %5200 = vmatprep.subr.mxu0 %v868
  %5201 = vmatpush1.msra.mxu0 %v867
  %5202 = vmatprep.subr.mxu0 %v872
  %5203 = vmatpush1.msra.mxu0 %v871
  %5204 = vmatprep.subr.mxu0 %v876
  %5205 = vmatpush1.msra.mxu0 %v875
  %5206 = vmatprep.subr.mxu0 %v880
  %5207 = vmatpush1.msra.mxu0 %v879
  %5208 = vmatprep.subr.mxu0 %v884
  %5209 = vmatpush1.msra.mxu0 %v883
  %5210 = vmatprep.subr.mxu0 %v888
  %5211 = vmatpush1.msra.mxu0 %v887
  %5212 = vmatprep.subr.mxu0 %v892
  %5213 = vmatpush1.msra.mxu0 %v891
  %5214 = vmatprep.subr.mxu0 %v896
  %5215 = vmatpush1.msra.mxu0 %v895
  %5216 = vmatprep.subr.mxu0 %v900
  %5217 = vmatpush1.msra.mxu0 %v899
  %5218 = vmatprep.subr.mxu0 %v904
  %5219 = vmatpush1.msra.mxu0 %v903
  %5220 = vmatprep.subr.mxu0 %v908
  %5221 = vmatpush1.msra.mxu0 %v907
  %5222 = vmatprep.subr.mxu0 %v912
  %5223 = vmatpush1.msra.mxu0 %v911
  %5224 = vmatprep.mubr.f32.mxu0 %v4946
  %5225 = vmatmul.mubr.f32.gmra.mrb[0].mxu0 %v4945
  %v5226 = vpop.f32.mrb[0].mxu0
  %v5227 = vadd.f32 %v5156, %v5226
  %v5228 = vpop.f32.mrb[0].mxu0
  %v5229 = vadd.f32 %v5158, %v5228
  %5230 = vdwg.mxu0
  %v5231 = vtanh.pop %v5085
  %v5232 = vtanh.pop %v5087
  %v5233 = vtanh.pop %v5227
  %v5234 = vtanh.pop %v5229
  %5235 = vmatprep.subr.mxu0 %v658
  %5236 = vmatpush1.msra.mxu0 %v657
  %5237 = vmatprep.subr.mxu0 %v662
  %5238 = vmatpush1.msra.mxu0 %v661
  %5239 = vmatprep.subr.mxu0 %v666
  %5240 = vmatpush1.msra.mxu0 %v665
  %5241 = vmatprep.subr.mxu0 %v670
  %5242 = vmatpush1.msra.mxu0 %v669
  %5243 = vmatprep.subr.mxu0 %v674
  %5244 = vmatpush1.msra.mxu0 %v673
  %5245 = vmatprep.subr.mxu0 %v678
  %5246 = vmatpush1.msra.mxu0 %v677
  %5247 = vmatprep.subr.mxu0 %v682
  %5248 = vmatpush1.msra.mxu0 %v681
  %5249 = vmatprep.subr.mxu0 %v686
  %5250 = vmatpush1.msra.mxu0 %v685
  %5251 = vmatprep.subr.mxu0 %v690
  %5252 = vmatpush1.msra.mxu0 %v689
  %5253 = vmatprep.subr.mxu0 %v694
  %5254 = vmatpush1.msra.mxu0 %v693
  %5255 = vmatprep.subr.mxu0 %v698
  %5256 = vmatpush1.msra.mxu0 %v697
  %5257 = vmatprep.subr.mxu0 %v702
  %5258 = vmatpush1.msra.mxu0 %v701
  %5259 = vmatprep.subr.mxu0 %v706
  %5260 = vmatpush1.msra.mxu0 %v705
  %5261 = vmatprep.subr.mxu0 %v710
  %5262 = vmatpush1.msra.mxu0 %v709
  %5263 = vmatprep.subr.mxu0 %v714
  %5264 = vmatpush1.msra.mxu0 %v713
  %5265 = vmatprep.subr.mxu0 %v718
  %5266 = vmatpush1.msra.mxu0 %v717
  %5267 = vmatprep.subr.mxu0 %v722
  %5268 = vmatpush1.msra.mxu0 %v721
  %5269 = vmatprep.subr.mxu0 %v726
  %5270 = vmatpush1.msra.mxu0 %v725
  %5271 = vmatprep.subr.mxu0 %v730
  %5272 = vmatpush1.msra.mxu0 %v729
  %5273 = vmatprep.subr.mxu0 %v734
  %5274 = vmatpush1.msra.mxu0 %v733
  %5275 = vmatprep.subr.mxu0 %v738
  %5276 = vmatpush1.msra.mxu0 %v737
  %5277 = vmatprep.subr.mxu0 %v742
  %5278 = vmatpush1.msra.mxu0 %v741
  %5279 = vmatprep.subr.mxu0 %v746
  %5280 = vmatpush1.msra.mxu0 %v745
  %5281 = vmatprep.subr.mxu0 %v750
  %5282 = vmatpush1.msra.mxu0 %v749
  %5283 = vmatprep.subr.mxu0 %v754
  %5284 = vmatpush1.msra.mxu0 %v753
  %5285 = vmatprep.subr.mxu0 %v758
  %5286 = vmatpush1.msra.mxu0 %v757
  %5287 = vmatprep.subr.mxu0 %v762
  %5288 = vmatpush1.msra.mxu0 %v761
  %5289 = vmatprep.subr.mxu0 %v766
  %5290 = vmatpush1.msra.mxu0 %v765
  %5291 = vmatprep.subr.mxu0 %v770
  %5292 = vmatpush1.msra.mxu0 %v769
  %5293 = vmatprep.subr.mxu0 %v774
  %5294 = vmatpush1.msra.mxu0 %v773
  %5295 = vmatprep.subr.mxu0 %v778
  %5296 = vmatpush1.msra.mxu0 %v777
  %5297 = vmatprep.subr.mxu0 %v782
  %5298 = vmatpush1.msra.mxu0 %v781
  %5299 = vmatprep.mubr.f32.mxu0 %v5232
  %5300 = vmatmul.mubr.f32.gmra.mrb[0].mxu0 %v5231
  %v5301 = vpop.f32.mrb[0].mxu0
  %v5302 = vadd.f32 %v356, %v5301
  %v5303 = vpop.f32.mrb[0].mxu0
  %v5304 = vadd.f32 %v358, %v5303
  %5305 = vdwg.mxu0
  %5306 = vmatprep.subr.mxu0 %v786
  %5307 = vmatpush1.msra.mxu0 %v785
  %5308 = vmatprep.subr.mxu0 %v790
  %5309 = vmatpush1.msra.mxu0 %v789
  %5310 = vmatprep.subr.mxu0 %v794
  %5311 = vmatpush1.msra.mxu0 %v793
  %5312 = vmatprep.subr.mxu0 %v798
  %5313 = vmatpush1.msra.mxu0 %v797
  %5314 = vmatprep.subr.mxu0 %v802
  %5315 = vmatpush1.msra.mxu0 %v801
  %5316 = vmatprep.subr.mxu0 %v806
  %5317 = vmatpush1.msra.mxu0 %v805
  %5318 = vmatprep.subr.mxu0 %v810
  %5319 = vmatpush1.msra.mxu0 %v809
  %5320 = vmatprep.subr.mxu0 %v814
  %5321 = vmatpush1.msra.mxu0 %v813
  %5322 = vmatprep.subr.mxu0 %v818
  %5323 = vmatpush1.msra.mxu0 %v817
  %5324 = vmatprep.subr.mxu0 %v822
  %5325 = vmatpush1.msra.mxu0 %v821
  %5326 = vmatprep.subr.mxu0 %v826
  %5327 = vmatpush1.msra.mxu0 %v825
  %5328 = vmatprep.subr.mxu0 %v830
  %5329 = vmatpush1.msra.mxu0 %v829
  %5330 = vmatprep.subr.mxu0 %v834
  %5331 = vmatpush1.msra.mxu0 %v833
  %5332 = vmatprep.subr.mxu0 %v838
  %5333 = vmatpush1.msra.mxu0 %v837
  %5334 = vmatprep.subr.mxu0 %v842
  %5335 = vmatpush1.msra.mxu0 %v841
  %5336 = vmatprep.subr.mxu0 %v846
  %5337 = vmatpush1.msra.mxu0 %v845
  %5338 = vmatprep.subr.mxu0 %v850
  %5339 = vmatpush1.msra.mxu0 %v849
  %5340 = vmatprep.subr.mxu0 %v854
  %5341 = vmatpush1.msra.mxu0 %v853
  %5342 = vmatprep.subr.mxu0 %v858
  %5343 = vmatpush1.msra.mxu0 %v857
  %5344 = vmatprep.subr.mxu0 %v862
  %5345 = vmatpush1.msra.mxu0 %v861
  %5346 = vmatprep.subr.mxu0 %v866
  %5347 = vmatpush1.msra.mxu0 %v865
  %5348 = vmatprep.subr.mxu0 %v870
  %5349 = vmatpush1.msra.mxu0 %v869
  %5350 = vmatprep.subr.mxu0 %v874
  %5351 = vmatpush1.msra.mxu0 %v873
  %5352 = vmatprep.subr.mxu0 %v878
  %5353 = vmatpush1.msra.mxu0 %v877
  %5354 = vmatprep.subr.mxu0 %v882
  %5355 = vmatpush1.msra.mxu0 %v881
  %5356 = vmatprep.subr.mxu0 %v886
  %5357 = vmatpush1.msra.mxu0 %v885
  %5358 = vmatprep.subr.mxu0 %v890
  %5359 = vmatpush1.msra.mxu0 %v889
  %5360 = vmatprep.subr.mxu0 %v894
  %5361 = vmatpush1.msra.mxu0 %v893
  %5362 = vmatprep.subr.mxu0 %v898
  %5363 = vmatpush1.msra.mxu0 %v897
  %5364 = vmatprep.subr.mxu0 %v902
  %5365 = vmatpush1.msra.mxu0 %v901
  %5366 = vmatprep.subr.mxu0 %v906
  %5367 = vmatpush1.msra.mxu0 %v905
  %5368 = vmatprep.subr.mxu0 %v910
  %5369 = vmatpush1.msra.mxu0 %v909
  %5370 = vmatprep.mubr.f32.mxu0 %v5234
  %5371 = vmatmul.mubr.f32.gmra.mrb[0].mxu0 %v5233
  %v5372 = vpop.f32.mrb[0].mxu0
  %v5373 = vadd.f32 %v5302, %v5372
  %v5374 = vpop.f32.mrb[0].mxu0
  %v5375 = vadd.f32 %v5304, %v5374
  %5376 = vdwg.mxu0
  %5377 = vmatprep.subr.mxu0 %v660
  %5378 = vmatpush1.msra.mxu0 %v659
  %5379 = vmatprep.subr.mxu0 %v664
  %5380 = vmatpush1.msra.mxu0 %v663
  %5381 = vmatprep.subr.mxu0 %v668
  %5382 = vmatpush1.msra.mxu0 %v667
  %5383 = vmatprep.subr.mxu0 %v672
  %5384 = vmatpush1.msra.mxu0 %v671
  %5385 = vmatprep.subr.mxu0 %v676
  %5386 = vmatpush1.msra.mxu0 %v675
  %5387 = vmatprep.subr.mxu0 %v680
  %5388 = vmatpush1.msra.mxu0 %v679
  %5389 = vmatprep.subr.mxu0 %v684
  %5390 = vmatpush1.msra.mxu0 %v683
  %5391 = vmatprep.subr.mxu0 %v688
  %5392 = vmatpush1.msra.mxu0 %v687
  %5393 = vmatprep.subr.mxu0 %v692
  %5394 = vmatpush1.msra.mxu0 %v691
  %5395 = vmatprep.subr.mxu0 %v696
  %5396 = vmatpush1.msra.mxu0 %v695
  %5397 = vmatprep.subr.mxu0 %v700
  %5398 = vmatpush1.msra.mxu0 %v699
  %5399 = vmatprep.subr.mxu0 %v704
  %5400 = vmatpush1.msra.mxu0 %v703
  %5401 = vmatprep.subr.mxu0 %v708
  %5402 = vmatpush1.msra.mxu0 %v707
  %5403 = vmatprep.subr.mxu0 %v712
  %5404 = vmatpush1.msra.mxu0 %v711
  %5405 = vmatprep.subr.mxu0 %v716
  %5406 = vmatpush1.msra.mxu0 %v715
  %5407 = vmatprep.subr.mxu0 %v720
  %5408 = vmatpush1.msra.mxu0 %v719
  %5409 = vmatprep.subr.mxu0 %v724
  %5410 = vmatpush1.msra.mxu0 %v723
  %5411 = vmatprep.subr.mxu0 %v728
  %5412 = vmatpush1.msra.mxu0 %v727
  %5413 = vmatprep.subr.mxu0 %v732
  %5414 = vmatpush1.msra.mxu0 %v731
  %5415 = vmatprep.subr.mxu0 %v736
  %5416 = vmatpush1.msra.mxu0 %v735
  %5417 = vmatprep.subr.mxu0 %v740
  %5418 = vmatpush1.msra.mxu0 %v739
  %5419 = vmatprep.subr.mxu0 %v744
  %5420 = vmatpush1.msra.mxu0 %v743
  %5421 = vmatprep.subr.mxu0 %v748
  %5422 = vmatpush1.msra.mxu0 %v747
  %5423 = vmatprep.subr.mxu0 %v752
  %5424 = vmatpush1.msra.mxu0 %v751
  %5425 = vmatprep.subr.mxu0 %v756
  %5426 = vmatpush1.msra.mxu0 %v755
  %5427 = vmatprep.subr.mxu0 %v760
  %5428 = vmatpush1.msra.mxu0 %v759
  %5429 = vmatprep.subr.mxu0 %v764
  %5430 = vmatpush1.msra.mxu0 %v763
  %5431 = vmatprep.subr.mxu0 %v768
  %5432 = vmatpush1.msra.mxu0 %v767
  %5433 = vmatprep.subr.mxu0 %v772
  %5434 = vmatpush1.msra.mxu0 %v771
  %5435 = vmatprep.subr.mxu0 %v776
  %5436 = vmatpush1.msra.mxu0 %v775
  %5437 = vmatprep.subr.mxu0 %v780
  %5438 = vmatpush1.msra.mxu0 %v779
  %5439 = vmatprep.subr.mxu0 %v784
  %5440 = vmatpush1.msra.mxu0 %v783
  %5441 = vmatprep.mubr.f32.mxu0 %v5232
  %5442 = vmatmul.mubr.f32.gmra.mrb[0].mxu0 %v5231
  %v5443 = vpop.f32.mrb[0].mxu0
  %v5444 = vadd.f32 %v587, %v5443
  %v5445 = vpop.f32.mrb[0].mxu0
  %v5446 = vadd.f32 %v589, %v5445
  %5447 = vdwg.mxu0
  %5448 = vmatprep.subr.mxu0 %v788
  %5449 = vmatpush1.msra.mxu0 %v787
  %5450 = vmatprep.subr.mxu0 %v792
  %5451 = vmatpush1.msra.mxu0 %v791
  %5452 = vmatprep.subr.mxu0 %v796
  %5453 = vmatpush1.msra.mxu0 %v795
  %5454 = vmatprep.subr.mxu0 %v800
  %5455 = vmatpush1.msra.mxu0 %v799
  %5456 = vmatprep.subr.mxu0 %v804
  %5457 = vmatpush1.msra.mxu0 %v803
  %5458 = vmatprep.subr.mxu0 %v808
  %5459 = vmatpush1.msra.mxu0 %v807
  %5460 = vmatprep.subr.mxu0 %v812
  %5461 = vmatpush1.msra.mxu0 %v811
  %5462 = vmatprep.subr.mxu0 %v816
  %5463 = vmatpush1.msra.mxu0 %v815
  %5464 = vmatprep.subr.mxu0 %v820
  %5465 = vmatpush1.msra.mxu0 %v819
  %5466 = vmatprep.subr.mxu0 %v824
  %5467 = vmatpush1.msra.mxu0 %v823
  %5468 = vmatprep.subr.mxu0 %v828
  %5469 = vmatpush1.msra.mxu0 %v827
  %5470 = vmatprep.subr.mxu0 %v832
  %5471 = vmatpush1.msra.mxu0 %v831
  %5472 = vmatprep.subr.mxu0 %v836
  %5473 = vmatpush1.msra.mxu0 %v835
  %5474 = vmatprep.subr.mxu0 %v840
  %5475 = vmatpush1.msra.mxu0 %v839
  %5476 = vmatprep.subr.mxu0 %v844
  %5477 = vmatpush1.msra.mxu0 %v843
  %5478 = vmatprep.subr.mxu0 %v848
  %5479 = vmatpush1.msra.mxu0 %v847
  %5480 = vmatprep.subr.mxu0 %v852
  %5481 = vmatpush1.msra.mxu0 %v851
  %5482 = vmatprep.subr.mxu0 %v856
  %5483 = vmatpush1.msra.mxu0 %v855
  %5484 = vmatprep.subr.mxu0 %v860
  %5485 = vmatpush1.msra.mxu0 %v859
  %5486 = vmatprep.subr.mxu0 %v864
  %5487 = vmatpush1.msra.mxu0 %v863
  %5488 = vmatprep.subr.mxu0 %v868
  %5489 = vmatpush1.msra.mxu0 %v867
  %5490 = vmatprep.subr.mxu0 %v872
  %5491 = vmatpush1.msra.mxu0 %v871
  %5492 = vmatprep.subr.mxu0 %v876
  %5493 = vmatpush1.msra.mxu0 %v875
  %5494 = vmatprep.subr.mxu0 %v880
  %5495 = vmatpush1.msra.mxu0 %v879
  %5496 = vmatprep.subr.mxu0 %v884
  %5497 = vmatpush1.msra.mxu0 %v883
  %5498 = vmatprep.subr.mxu0 %v888
  %5499 = vmatpush1.msra.mxu0 %v887
  %5500 = vmatprep.subr.mxu0 %v892
  %5501 = vmatpush1.msra.mxu0 %v891
  %5502 = vmatprep.subr.mxu0 %v896
  %5503 = vmatpush1.msra.mxu0 %v895
  %5504 = vmatprep.subr.mxu0 %v900
  %5505 = vmatpush1.msra.mxu0 %v899
  %5506 = vmatprep.subr.mxu0 %v904
  %5507 = vmatpush1.msra.mxu0 %v903
  %5508 = vmatprep.subr.mxu0 %v908
  %5509 = vmatpush1.msra.mxu0 %v907
  %5510 = vmatprep.subr.mxu0 %v912
  %5511 = vmatpush1.msra.mxu0 %v911
  %5512 = vmatprep.mubr.f32.mxu0 %v5234
  %5513 = vmatmul.mubr.f32.gmra.mrb[0].mxu0 %v5233
  %v5514 = vpop.f32.mrb[0].mxu0
  %v5515 = vadd.f32 %v5444, %v5514
  %v5516 = vpop.f32.mrb[0].mxu0
  %v5517 = vadd.f32 %v5446, %v5516
  %5518 = vdwg.mxu0
  %v5519 = vtanh.pop %v5373
  %v5520 = vtanh.pop %v5375
  %v5521 = vtanh.pop %v5515
  %v5522 = vtanh.pop %v5517
  %5523 = vmatprep.subr.mxu0 %v658
  %5524 = vmatpush1.msra.mxu0 %v657
  %5525 = vmatprep.subr.mxu0 %v662
  %5526 = vmatpush1.msra.mxu0 %v661
  %5527 = vmatprep.subr.mxu0 %v666
  %5528 = vmatpush1.msra.mxu0 %v665
  %5529 = vmatprep.subr.mxu0 %v670
  %5530 = vmatpush1.msra.mxu0 %v669
  %5531 = vmatprep.subr.mxu0 %v674
  %5532 = vmatpush1.msra.mxu0 %v673
  %5533 = vmatprep.subr.mxu0 %v678
  %5534 = vmatpush1.msra.mxu0 %v677
  %5535 = vmatprep.subr.mxu0 %v682
  %5536 = vmatpush1.msra.mxu0 %v681
  %5537 = vmatprep.subr.mxu0 %v686
  %5538 = vmatpush1.msra.mxu0 %v685
  %5539 = vmatprep.subr.mxu0 %v690
  %5540 = vmatpush1.msra.mxu0 %v689
  %5541 = vmatprep.subr.mxu0 %v694
  %5542 = vmatpush1.msra.mxu0 %v693
  %5543 = vmatprep.subr.mxu0 %v698
  %5544 = vmatpush1.msra.mxu0 %v697
  %5545 = vmatprep.subr.mxu0 %v702
  %5546 = vmatpush1.msra.mxu0 %v701
  %5547 = vmatprep.subr.mxu0 %v706
  %5548 = vmatpush1.msra.mxu0 %v705
  %5549 = vmatprep.subr.mxu0 %v710
  %5550 = vmatpush1.msra.mxu0 %v709
  %5551 = vmatprep.subr.mxu0 %v714
  %5552 = vmatpush1.msra.mxu0 %v713
  %5553 = vmatprep.subr.mxu0 %v718
  %5554 = vmatpush1.msra.mxu0 %v717
  %5555 = vmatprep.subr.mxu0 %v722
  %5556 = vmatpush1.msra.mxu0 %v721
  %5557 = vmatprep.subr.mxu0 %v726
  %5558 = vmatpush1.msra.mxu0 %v725
  %5559 = vmatprep.subr.mxu0 %v730
  %5560 = vmatpush1.msra.mxu0 %v729
  %5561 = vmatprep.subr.mxu0 %v734
  %5562 = vmatpush1.msra.mxu0 %v733
  %5563 = vmatprep.subr.mxu0 %v738
  %5564 = vmatpush1.msra.mxu0 %v737
  %5565 = vmatprep.subr.mxu0 %v742
  %5566 = vmatpush1.msra.mxu0 %v741
  %5567 = vmatprep.subr.mxu0 %v746
  %5568 = vmatpush1.msra.mxu0 %v745
  %5569 = vmatprep.subr.mxu0 %v750
  %5570 = vmatpush1.msra.mxu0 %v749
  %5571 = vmatprep.subr.mxu0 %v754
  %5572 = vmatpush1.msra.mxu0 %v753
  %5573 = vmatprep.subr.mxu0 %v758
  %5574 = vmatpush1.msra.mxu0 %v757
  %5575 = vmatprep.subr.mxu0 %v762
  %5576 = vmatpush1.msra.mxu0 %v761
  %5577 = vmatprep.subr.mxu0 %v766
  %5578 = vmatpush1.msra.mxu0 %v765
  %5579 = vmatprep.subr.mxu0 %v770
  %5580 = vmatpush1.msra.mxu0 %v769
  %5581 = vmatprep.subr.mxu0 %v774
  %5582 = vmatpush1.msra.mxu0 %v773
  %5583 = vmatprep.subr.mxu0 %v778
  %5584 = vmatpush1.msra.mxu0 %v777
  %5585 = vmatprep.subr.mxu0 %v782
  %5586 = vmatpush1.msra.mxu0 %v781
  %5587 = vmatprep.mubr.f32.mxu0 %v5520
  %5588 = vmatmul.mubr.f32.gmra.mrb[0].mxu0 %v5519
  %v5589 = vpop.f32.mrb[0].mxu0
  %v5590 = vadd.f32 %v362, %v5589
  %v5591 = vpop.f32.mrb[0].mxu0
  %v5592 = vadd.f32 %v364, %v5591
  %5593 = vdwg.mxu0
  %5594 = vmatprep.subr.mxu0 %v786
  %5595 = vmatpush1.msra.mxu0 %v785
  %5596 = vmatprep.subr.mxu0 %v790
  %5597 = vmatpush1.msra.mxu0 %v789
  %5598 = vmatprep.subr.mxu0 %v794
  %5599 = vmatpush1.msra.mxu0 %v793
  %5600 = vmatprep.subr.mxu0 %v798
  %5601 = vmatpush1.msra.mxu0 %v797
  %5602 = vmatprep.subr.mxu0 %v802
  %5603 = vmatpush1.msra.mxu0 %v801
  %5604 = vmatprep.subr.mxu0 %v806
  %5605 = vmatpush1.msra.mxu0 %v805
  %5606 = vmatprep.subr.mxu0 %v810
  %5607 = vmatpush1.msra.mxu0 %v809
  %5608 = vmatprep.subr.mxu0 %v814
  %5609 = vmatpush1.msra.mxu0 %v813
  %5610 = vmatprep.subr.mxu0 %v818
  %5611 = vmatpush1.msra.mxu0 %v817
  %5612 = vmatprep.subr.mxu0 %v822
  %5613 = vmatpush1.msra.mxu0 %v821
  %5614 = vmatprep.subr.mxu0 %v826
  %5615 = vmatpush1.msra.mxu0 %v825
  %5616 = vmatprep.subr.mxu0 %v830
  %5617 = vmatpush1.msra.mxu0 %v829
  %5618 = vmatprep.subr.mxu0 %v834
  %5619 = vmatpush1.msra.mxu0 %v833
  %5620 = vmatprep.subr.mxu0 %v838
  %5621 = vmatpush1.msra.mxu0 %v837
  %5622 = vmatprep.subr.mxu0 %v842
  %5623 = vmatpush1.msra.mxu0 %v841
  %5624 = vmatprep.subr.mxu0 %v846
  %5625 = vmatpush1.msra.mxu0 %v845
  %5626 = vmatprep.subr.mxu0 %v850
  %5627 = vmatpush1.msra.mxu0 %v849
  %5628 = vmatprep.subr.mxu0 %v854
  %5629 = vmatpush1.msra.mxu0 %v853
  %5630 = vmatprep.subr.mxu0 %v858
  %5631 = vmatpush1.msra.mxu0 %v857
  %5632 = vmatprep.subr.mxu0 %v862
  %5633 = vmatpush1.msra.mxu0 %v861
  %5634 = vmatprep.subr.mxu0 %v866
  %5635 = vmatpush1.msra.mxu0 %v865
  %5636 = vmatprep.subr.mxu0 %v870
  %5637 = vmatpush1.msra.mxu0 %v869
  %5638 = vmatprep.subr.mxu0 %v874
  %5639 = vmatpush1.msra.mxu0 %v873
  %5640 = vmatprep.subr.mxu0 %v878
  %5641 = vmatpush1.msra.mxu0 %v877
  %5642 = vmatprep.subr.mxu0 %v882
  %5643 = vmatpush1.msra.mxu0 %v881
  %5644 = vmatprep.subr.mxu0 %v886
  %5645 = vmatpush1.msra.mxu0 %v885
  %5646 = vmatprep.subr.mxu0 %v890
  %5647 = vmatpush1.msra.mxu0 %v889
  %5648 = vmatprep.subr.mxu0 %v894
  %5649 = vmatpush1.msra.mxu0 %v893
  %5650 = vmatprep.subr.mxu0 %v898
  %5651 = vmatpush1.msra.mxu0 %v897
  %5652 = vmatprep.subr.mxu0 %v902
  %5653 = vmatpush1.msra.mxu0 %v901
  %5654 = vmatprep.subr.mxu0 %v906
  %5655 = vmatpush1.msra.mxu0 %v905
  %5656 = vmatprep.subr.mxu0 %v910
  %5657 = vmatpush1.msra.mxu0 %v909
  %5658 = vmatprep.mubr.f32.mxu0 %v5522
  %5659 = vmatmul.mubr.f32.gmra.mrb[0].mxu0 %v5521
  %v5660 = vpop.f32.mrb[0].mxu0
  %v5661 = vadd.f32 %v5590, %v5660
  %v5662 = vpop.f32.mrb[0].mxu0
  %v5663 = vadd.f32 %v5592, %v5662
  %5664 = vdwg.mxu0
  %5665 = vmatprep.subr.mxu0 %v660
  %5666 = vmatpush1.msra.mxu0 %v659
  %5667 = vmatprep.subr.mxu0 %v664
  %5668 = vmatpush1.msra.mxu0 %v663
  %5669 = vmatprep.subr.mxu0 %v668
  %5670 = vmatpush1.msra.mxu0 %v667
  %5671 = vmatprep.subr.mxu0 %v672
  %5672 = vmatpush1.msra.mxu0 %v671
  %5673 = vmatprep.subr.mxu0 %v676
  %5674 = vmatpush1.msra.mxu0 %v675
  %5675 = vmatprep.subr.mxu0 %v680
  %5676 = vmatpush1.msra.mxu0 %v679
  %5677 = vmatprep.subr.mxu0 %v684
  %5678 = vmatpush1.msra.mxu0 %v683
  %5679 = vmatprep.subr.mxu0 %v688
  %5680 = vmatpush1.msra.mxu0 %v687
  %5681 = vmatprep.subr.mxu0 %v692
  %5682 = vmatpush1.msra.mxu0 %v691
  %5683 = vmatprep.subr.mxu0 %v696
  %5684 = vmatpush1.msra.mxu0 %v695
  %5685 = vmatprep.subr.mxu0 %v700
  %5686 = vmatpush1.msra.mxu0 %v699
  %5687 = vmatprep.subr.mxu0 %v704
  %5688 = vmatpush1.msra.mxu0 %v703
  %5689 = vmatprep.subr.mxu0 %v708
  %5690 = vmatpush1.msra.mxu0 %v707
  %5691 = vmatprep.subr.mxu0 %v712
  %5692 = vmatpush1.msra.mxu0 %v711
  %5693 = vmatprep.subr.mxu0 %v716
  %5694 = vmatpush1.msra.mxu0 %v715
  %5695 = vmatprep.subr.mxu0 %v720
  %5696 = vmatpush1.msra.mxu0 %v719
  %5697 = vmatprep.subr.mxu0 %v724
  %5698 = vmatpush1.msra.mxu0 %v723
  %5699 = vmatprep.subr.mxu0 %v728
  %5700 = vmatpush1.msra.mxu0 %v727
  %5701 = vmatprep.subr.mxu0 %v732
  %5702 = vmatpush1.msra.mxu0 %v731
  %5703 = vmatprep.subr.mxu0 %v736
  %5704 = vmatpush1.msra.mxu0 %v735
  %5705 = vmatprep.subr.mxu0 %v740
  %5706 = vmatpush1.msra.mxu0 %v739
  %5707 = vmatprep.subr.mxu0 %v744
  %5708 = vmatpush1.msra.mxu0 %v743
  %5709 = vmatprep.subr.mxu0 %v748
  %5710 = vmatpush1.msra.mxu0 %v747
  %5711 = vmatprep.subr.mxu0 %v752
  %5712 = vmatpush1.msra.mxu0 %v751
  %5713 = vmatprep.subr.mxu0 %v756
  %5714 = vmatpush1.msra.mxu0 %v755
  %5715 = vmatprep.subr.mxu0 %v760
  %5716 = vmatpush1.msra.mxu0 %v759
  %5717 = vmatprep.subr.mxu0 %v764
  %5718 = vmatpush1.msra.mxu0 %v763
  %5719 = vmatprep.subr.mxu0 %v768
  %5720 = vmatpush1.msra.mxu0 %v767
  %5721 = vmatprep.subr.mxu0 %v772
  %5722 = vmatpush1.msra.mxu0 %v771
  %5723 = vmatprep.subr.mxu0 %v776
  %5724 = vmatpush1.msra.mxu0 %v775
  %5725 = vmatprep.subr.mxu0 %v780
  %5726 = vmatpush1.msra.mxu0 %v779
  %5727 = vmatprep.subr.mxu0 %v784
  %5728 = vmatpush1.msra.mxu0 %v783
  %5729 = vmatprep.mubr.f32.mxu0 %v5520
  %5730 = vmatmul.mubr.f32.gmra.mrb[0].mxu0 %v5519
  %v5731 = vpop.f32.mrb[0].mxu0
  %v5732 = vadd.f32 %v593, %v5731
  %v5733 = vpop.f32.mrb[0].mxu0
  %v5734 = vadd.f32 %v595, %v5733
  %5735 = vdwg.mxu0
  %5736 = vmatprep.subr.mxu0 %v788
  %5737 = vmatpush1.msra.mxu0 %v787
  %5738 = vmatprep.subr.mxu0 %v792
  %5739 = vmatpush1.msra.mxu0 %v791
  %5740 = vmatprep.subr.mxu0 %v796
  %5741 = vmatpush1.msra.mxu0 %v795
  %5742 = vmatprep.subr.mxu0 %v800
  %5743 = vmatpush1.msra.mxu0 %v799
  %5744 = vmatprep.subr.mxu0 %v804
  %5745 = vmatpush1.msra.mxu0 %v803
  %5746 = vmatprep.subr.mxu0 %v808
  %5747 = vmatpush1.msra.mxu0 %v807
  %5748 = vmatprep.subr.mxu0 %v812
  %5749 = vmatpush1.msra.mxu0 %v811
  %5750 = vmatprep.subr.mxu0 %v816
  %5751 = vmatpush1.msra.mxu0 %v815
  %5752 = vmatprep.subr.mxu0 %v820
  %5753 = vmatpush1.msra.mxu0 %v819
  %5754 = vmatprep.subr.mxu0 %v824
  %5755 = vmatpush1.msra.mxu0 %v823
  %5756 = vmatprep.subr.mxu0 %v828
  %5757 = vmatpush1.msra.mxu0 %v827
  %5758 = vmatprep.subr.mxu0 %v832
  %5759 = vmatpush1.msra.mxu0 %v831
  %5760 = vmatprep.subr.mxu0 %v836
  %5761 = vmatpush1.msra.mxu0 %v835
  %5762 = vmatprep.subr.mxu0 %v840
  %5763 = vmatpush1.msra.mxu0 %v839
  %5764 = vmatprep.subr.mxu0 %v844
  %5765 = vmatpush1.msra.mxu0 %v843
  %5766 = vmatprep.subr.mxu0 %v848
  %5767 = vmatpush1.msra.mxu0 %v847
  %5768 = vmatprep.subr.mxu0 %v852
  %5769 = vmatpush1.msra.mxu0 %v851
  %5770 = vmatprep.subr.mxu0 %v856
  %5771 = vmatpush1.msra.mxu0 %v855
  %5772 = vmatprep.subr.mxu0 %v860
  %5773 = vmatpush1.msra.mxu0 %v859
  %5774 = vmatprep.subr.mxu0 %v864
  %5775 = vmatpush1.msra.mxu0 %v863
  %5776 = vmatprep.subr.mxu0 %v868
  %5777 = vmatpush1.msra.mxu0 %v867
  %5778 = vmatprep.subr.mxu0 %v872
  %5779 = vmatpush1.msra.mxu0 %v871
  %5780 = vmatprep.subr.mxu0 %v876
  %5781 = vmatpush1.msra.mxu0 %v875
  %5782 = vmatprep.subr.mxu0 %v880
  %5783 = vmatpush1.msra.mxu0 %v879
  %5784 = vmatprep.subr.mxu0 %v884
  %5785 = vmatpush1.msra.mxu0 %v883
  %5786 = vmatprep.subr.mxu0 %v888
  %5787 = vmatpush1.msra.mxu0 %v887
  %5788 = vmatprep.subr.mxu0 %v892
  %5789 = vmatpush1.msra.mxu0 %v891
  %5790 = vmatprep.subr.mxu0 %v896
  %5791 = vmatpush1.msra.mxu0 %v895
  %5792 = vmatprep.subr.mxu0 %v900
  %5793 = vmatpush1.msra.mxu0 %v899
  %5794 = vmatprep.subr.mxu0 %v904
  %5795 = vmatpush1.msra.mxu0 %v903
  %5796 = vmatprep.subr.mxu0 %v908
  %5797 = vmatpush1.msra.mxu0 %v907
  %5798 = vmatprep.subr.mxu0 %v912
  %5799 = vmatpush1.msra.mxu0 %v911
  %5800 = vmatprep.mubr.f32.mxu0 %v5522
  %5801 = vmatmul.mubr.f32.gmra.mrb[0].mxu0 %v5521
  %v5802 = vpop.f32.mrb[0].mxu0
  %v5803 = vadd.f32 %v5732, %v5802
  %v5804 = vpop.f32.mrb[0].mxu0
  %v5805 = vadd.f32 %v5734, %v5804
  %5806 = vdwg.mxu0
  %v5807 = vtanh.pop %v5661
  %v5808 = vtanh.pop %v5663
  %v5809 = vtanh.pop %v5803
  %v5810 = vtanh.pop %v5805
  %5811 = vmatprep.subr.mxu0 %v658
  %5812 = vmatpush1.msra.mxu0 %v657
  %5813 = vmatprep.subr.mxu0 %v662
  %5814 = vmatpush1.msra.mxu0 %v661
  %5815 = vmatprep.subr.mxu0 %v666
  %5816 = vmatpush1.msra.mxu0 %v665
  %5817 = vmatprep.subr.mxu0 %v670
  %5818 = vmatpush1.msra.mxu0 %v669
  %5819 = vmatprep.subr.mxu0 %v674
  %5820 = vmatpush1.msra.mxu0 %v673
  %5821 = vmatprep.subr.mxu0 %v678
  %5822 = vmatpush1.msra.mxu0 %v677
  %5823 = vmatprep.subr.mxu0 %v682
  %5824 = vmatpush1.msra.mxu0 %v681
  %5825 = vmatprep.subr.mxu0 %v686
  %5826 = vmatpush1.msra.mxu0 %v685
  %5827 = vmatprep.subr.mxu0 %v690
  %5828 = vmatpush1.msra.mxu0 %v689
  %5829 = vmatprep.subr.mxu0 %v694
  %5830 = vmatpush1.msra.mxu0 %v693
  %5831 = vmatprep.subr.mxu0 %v698
  %5832 = vmatpush1.msra.mxu0 %v697
  %5833 = vmatprep.subr.mxu0 %v702
  %5834 = vmatpush1.msra.mxu0 %v701
  %5835 = vmatprep.subr.mxu0 %v706
  %5836 = vmatpush1.msra.mxu0 %v705
  %5837 = vmatprep.subr.mxu0 %v710
  %5838 = vmatpush1.msra.mxu0 %v709
  %5839 = vmatprep.subr.mxu0 %v714
  %5840 = vmatpush1.msra.mxu0 %v713
  %5841 = vmatprep.subr.mxu0 %v718
  %5842 = vmatpush1.msra.mxu0 %v717
  %5843 = vmatprep.subr.mxu0 %v722
  %5844 = vmatpush1.msra.mxu0 %v721
  %5845 = vmatprep.subr.mxu0 %v726
  %5846 = vmatpush1.msra.mxu0 %v725
  %5847 = vmatprep.subr.mxu0 %v730
  %5848 = vmatpush1.msra.mxu0 %v729
  %5849 = vmatprep.subr.mxu0 %v734
  %5850 = vmatpush1.msra.mxu0 %v733
  %5851 = vmatprep.subr.mxu0 %v738
  %5852 = vmatpush1.msra.mxu0 %v737
  %5853 = vmatprep.subr.mxu0 %v742
  %5854 = vmatpush1.msra.mxu0 %v741
  %5855 = vmatprep.subr.mxu0 %v746
  %5856 = vmatpush1.msra.mxu0 %v745
  %5857 = vmatprep.subr.mxu0 %v750
  %5858 = vmatpush1.msra.mxu0 %v749
  %5859 = vmatprep.subr.mxu0 %v754
  %5860 = vmatpush1.msra.mxu0 %v753
  %5861 = vmatprep.subr.mxu0 %v758
  %5862 = vmatpush1.msra.mxu0 %v757
  %5863 = vmatprep.subr.mxu0 %v762
  %5864 = vmatpush1.msra.mxu0 %v761
  %5865 = vmatprep.subr.mxu0 %v766
  %5866 = vmatpush1.msra.mxu0 %v765
  %5867 = vmatprep.subr.mxu0 %v770
  %5868 = vmatpush1.msra.mxu0 %v769
  %5869 = vmatprep.subr.mxu0 %v774
  %5870 = vmatpush1.msra.mxu0 %v773
  %5871 = vmatprep.subr.mxu0 %v778
  %5872 = vmatpush1.msra.mxu0 %v777
  %5873 = vmatprep.subr.mxu0 %v782
  %5874 = vmatpush1.msra.mxu0 %v781
  %5875 = vmatprep.mubr.f32.mxu0 %v5808
  %5876 = vmatmul.mubr.f32.gmra.mrb[0].mxu0 %v5807
  %v5877 = vpop.f32.mrb[0].mxu0
  %v5878 = vadd.f32 %v368, %v5877
  %v5879 = vpop.f32.mrb[0].mxu0
  %v5880 = vadd.f32 %v370, %v5879
  %5881 = vdwg.mxu0
  %5882 = vmatprep.subr.mxu0 %v786
  %5883 = vmatpush1.msra.mxu0 %v785
  %5884 = vmatprep.subr.mxu0 %v790
  %5885 = vmatpush1.msra.mxu0 %v789
  %5886 = vmatprep.subr.mxu0 %v794
  %5887 = vmatpush1.msra.mxu0 %v793
  %5888 = vmatprep.subr.mxu0 %v798
  %5889 = vmatpush1.msra.mxu0 %v797
  %5890 = vmatprep.subr.mxu0 %v802
  %5891 = vmatpush1.msra.mxu0 %v801
  %5892 = vmatprep.subr.mxu0 %v806
  %5893 = vmatpush1.msra.mxu0 %v805
  %5894 = vmatprep.subr.mxu0 %v810
  %5895 = vmatpush1.msra.mxu0 %v809
  %5896 = vmatprep.subr.mxu0 %v814
  %5897 = vmatpush1.msra.mxu0 %v813
  %5898 = vmatprep.subr.mxu0 %v818
  %5899 = vmatpush1.msra.mxu0 %v817
  %5900 = vmatprep.subr.mxu0 %v822
  %5901 = vmatpush1.msra.mxu0 %v821
  %5902 = vmatprep.subr.mxu0 %v826
  %5903 = vmatpush1.msra.mxu0 %v825
  %5904 = vmatprep.subr.mxu0 %v830
  %5905 = vmatpush1.msra.mxu0 %v829
  %5906 = vmatprep.subr.mxu0 %v834
  %5907 = vmatpush1.msra.mxu0 %v833
  %5908 = vmatprep.subr.mxu0 %v838
  %5909 = vmatpush1.msra.mxu0 %v837
  %5910 = vmatprep.subr.mxu0 %v842
  %5911 = vmatpush1.msra.mxu0 %v841
  %5912 = vmatprep.subr.mxu0 %v846
  %5913 = vmatpush1.msra.mxu0 %v845
  %5914 = vmatprep.subr.mxu0 %v850
  %5915 = vmatpush1.msra.mxu0 %v849
  %5916 = vmatprep.subr.mxu0 %v854
  %5917 = vmatpush1.msra.mxu0 %v853
  %5918 = vmatprep.subr.mxu0 %v858
  %5919 = vmatpush1.msra.mxu0 %v857
  %5920 = vmatprep.subr.mxu0 %v862
  %5921 = vmatpush1.msra.mxu0 %v861
  %5922 = vmatprep.subr.mxu0 %v866
  %5923 = vmatpush1.msra.mxu0 %v865
  %5924 = vmatprep.subr.mxu0 %v870
  %5925 = vmatpush1.msra.mxu0 %v869
  %5926 = vmatprep.subr.mxu0 %v874
  %5927 = vmatpush1.msra.mxu0 %v873
  %5928 = vmatprep.subr.mxu0 %v878
  %5929 = vmatpush1.msra.mxu0 %v877
  %5930 = vmatprep.subr.mxu0 %v882
  %5931 = vmatpush1.msra.mxu0 %v881
  %5932 = vmatprep.subr.mxu0 %v886
  %5933 = vmatpush1.msra.mxu0 %v885
  %5934 = vmatprep.subr.mxu0 %v890
  %5935 = vmatpush1.msra.mxu0 %v889
  %5936 = vmatprep.subr.mxu0 %v894
  %5937 = vmatpush1.msra.mxu0 %v893
  %5938 = vmatprep.subr.mxu0 %v898
  %5939 = vmatpush1.msra.mxu0 %v897
  %5940 = vmatprep.subr.mxu0 %v902
  %5941 = vmatpush1.msra.mxu0 %v901
  %5942 = vmatprep.subr.mxu0 %v906
  %5943 = vmatpush1.msra.mxu0 %v905
  %5944 = vmatprep.subr.mxu0 %v910
  %5945 = vmatpush1.msra.mxu0 %v909
  %5946 = vmatprep.mubr.f32.mxu0 %v5810
  %5947 = vmatmul.mubr.f32.gmra.mrb[0].mxu0 %v5809
  %v5948 = vpop.f32.mrb[0].mxu0
  %v5949 = vadd.f32 %v5878, %v5948
  %v5950 = vpop.f32.mrb[0].mxu0
  %v5951 = vadd.f32 %v5880, %v5950
  %5952 = vdwg.mxu0
  %5953 = vmatprep.subr.mxu0 %v660
  %5954 = vmatpush1.msra.mxu0 %v659
  %5955 = vmatprep.subr.mxu0 %v664
  %5956 = vmatpush1.msra.mxu0 %v663
  %5957 = vmatprep.subr.mxu0 %v668
  %5958 = vmatpush1.msra.mxu0 %v667
  %5959 = vmatprep.subr.mxu0 %v672
  %5960 = vmatpush1.msra.mxu0 %v671
  %5961 = vmatprep.subr.mxu0 %v676
  %5962 = vmatpush1.msra.mxu0 %v675
  %5963 = vmatprep.subr.mxu0 %v680
  %5964 = vmatpush1.msra.mxu0 %v679
  %5965 = vmatprep.subr.mxu0 %v684
  %5966 = vmatpush1.msra.mxu0 %v683
  %5967 = vmatprep.subr.mxu0 %v688
  %5968 = vmatpush1.msra.mxu0 %v687
  %5969 = vmatprep.subr.mxu0 %v692
  %5970 = vmatpush1.msra.mxu0 %v691
  %5971 = vmatprep.subr.mxu0 %v696
  %5972 = vmatpush1.msra.mxu0 %v695
  %5973 = vmatprep.subr.mxu0 %v700
  %5974 = vmatpush1.msra.mxu0 %v699
  %5975 = vmatprep.subr.mxu0 %v704
  %5976 = vmatpush1.msra.mxu0 %v703
  %5977 = vmatprep.subr.mxu0 %v708
  %5978 = vmatpush1.msra.mxu0 %v707
  %5979 = vmatprep.subr.mxu0 %v712
  %5980 = vmatpush1.msra.mxu0 %v711
  %5981 = vmatprep.subr.mxu0 %v716
  %5982 = vmatpush1.msra.mxu0 %v715
  %5983 = vmatprep.subr.mxu0 %v720
  %5984 = vmatpush1.msra.mxu0 %v719
  %5985 = vmatprep.subr.mxu0 %v724
  %5986 = vmatpush1.msra.mxu0 %v723
  %5987 = vmatprep.subr.mxu0 %v728
  %5988 = vmatpush1.msra.mxu0 %v727
  %5989 = vmatprep.subr.mxu0 %v732
  %5990 = vmatpush1.msra.mxu0 %v731
  %5991 = vmatprep.subr.mxu0 %v736
  %5992 = vmatpush1.msra.mxu0 %v735
  %5993 = vmatprep.subr.mxu0 %v740
  %5994 = vmatpush1.msra.mxu0 %v739
  %5995 = vmatprep.subr.mxu0 %v744
  %5996 = vmatpush1.msra.mxu0 %v743
  %5997 = vmatprep.subr.mxu0 %v748
  %5998 = vmatpush1.msra.mxu0 %v747
  %5999 = vmatprep.subr.mxu0 %v752
  %6000 = vmatpush1.msra.mxu0 %v751
  %6001 = vmatprep.subr.mxu0 %v756
  %6002 = vmatpush1.msra.mxu0 %v755
  %6003 = vmatprep.subr.mxu0 %v760
  %6004 = vmatpush1.msra.mxu0 %v759
  %6005 = vmatprep.subr.mxu0 %v764
  %6006 = vmatpush1.msra.mxu0 %v763
  %6007 = vmatprep.subr.mxu0 %v768
  %6008 = vmatpush1.msra.mxu0 %v767
  %6009 = vmatprep.subr.mxu0 %v772
  %6010 = vmatpush1.msra.mxu0 %v771
  %6011 = vmatprep.subr.mxu0 %v776
  %6012 = vmatpush1.msra.mxu0 %v775
  %6013 = vmatprep.subr.mxu0 %v780
  %6014 = vmatpush1.msra.mxu0 %v779
  %6015 = vmatprep.subr.mxu0 %v784
  %6016 = vmatpush1.msra.mxu0 %v783
  %6017 = vmatprep.mubr.f32.mxu0 %v5808
  %6018 = vmatmul.mubr.f32.gmra.mrb[0].mxu0 %v5807
  %v6019 = vpop.f32.mrb[0].mxu0
  %v6020 = vadd.f32 %v599, %v6019
  %v6021 = vpop.f32.mrb[0].mxu0
  %v6022 = vadd.f32 %v601, %v6021
  %6023 = vdwg.mxu0
  %6024 = vmatprep.subr.mxu0 %v788
  %6025 = vmatpush1.msra.mxu0 %v787
  %6026 = vmatprep.subr.mxu0 %v792
  %6027 = vmatpush1.msra.mxu0 %v791
  %6028 = vmatprep.subr.mxu0 %v796
  %6029 = vmatpush1.msra.mxu0 %v795
  %6030 = vmatprep.subr.mxu0 %v800
  %6031 = vmatpush1.msra.mxu0 %v799
  %6032 = vmatprep.subr.mxu0 %v804
  %6033 = vmatpush1.msra.mxu0 %v803
  %6034 = vmatprep.subr.mxu0 %v808
  %6035 = vmatpush1.msra.mxu0 %v807
  %6036 = vmatprep.subr.mxu0 %v812
  %6037 = vmatpush1.msra.mxu0 %v811
  %6038 = vmatprep.subr.mxu0 %v816
  %6039 = vmatpush1.msra.mxu0 %v815
  %6040 = vmatprep.subr.mxu0 %v820
  %6041 = vmatpush1.msra.mxu0 %v819
  %6042 = vmatprep.subr.mxu0 %v824
  %6043 = vmatpush1.msra.mxu0 %v823
  %6044 = vmatprep.subr.mxu0 %v828
  %6045 = vmatpush1.msra.mxu0 %v827
  %6046 = vmatprep.subr.mxu0 %v832
  %6047 = vmatpush1.msra.mxu0 %v831
  %6048 = vmatprep.subr.mxu0 %v836
  %6049 = vmatpush1.msra.mxu0 %v835
  %6050 = vmatprep.subr.mxu0 %v840
  %6051 = vmatpush1.msra.mxu0 %v839
  %6052 = vmatprep.subr.mxu0 %v844
  %6053 = vmatpush1.msra.mxu0 %v843
  %6054 = vmatprep.subr.mxu0 %v848
  %6055 = vmatpush1.msra.mxu0 %v847
  %6056 = vmatprep.subr.mxu0 %v852
  %6057 = vmatpush1.msra.mxu0 %v851
  %6058 = vmatprep.subr.mxu0 %v856
  %6059 = vmatpush1.msra.mxu0 %v855
  %6060 = vmatprep.subr.mxu0 %v860
  %6061 = vmatpush1.msra.mxu0 %v859
  %6062 = vmatprep.subr.mxu0 %v864
  %6063 = vmatpush1.msra.mxu0 %v863
  %6064 = vmatprep.subr.mxu0 %v868
  %6065 = vmatpush1.msra.mxu0 %v867
  %6066 = vmatprep.subr.mxu0 %v872
  %6067 = vmatpush1.msra.mxu0 %v871
  %6068 = vmatprep.subr.mxu0 %v876
  %6069 = vmatpush1.msra.mxu0 %v875
  %6070 = vmatprep.subr.mxu0 %v880
  %6071 = vmatpush1.msra.mxu0 %v879
  %6072 = vmatprep.subr.mxu0 %v884
  %6073 = vmatpush1.msra.mxu0 %v883
  %6074 = vmatprep.subr.mxu0 %v888
  %6075 = vmatpush1.msra.mxu0 %v887
  %6076 = vmatprep.subr.mxu0 %v892
  %6077 = vmatpush1.msra.mxu0 %v891
  %6078 = vmatprep.subr.mxu0 %v896
  %6079 = vmatpush1.msra.mxu0 %v895
  %6080 = vmatprep.subr.mxu0 %v900
  %6081 = vmatpush1.msra.mxu0 %v899
  %6082 = vmatprep.subr.mxu0 %v904
  %6083 = vmatpush1.msra.mxu0 %v903
  %6084 = vmatprep.subr.mxu0 %v908
  %6085 = vmatpush1.msra.mxu0 %v907
  %6086 = vmatprep.subr.mxu0 %v912
  %6087 = vmatpush1.msra.mxu0 %v911
  %6088 = vmatprep.mubr.f32.mxu0 %v5810
  %6089 = vmatmul.mubr.f32.gmra.mrb[0].mxu0 %v5809
  %v6090 = vpop.f32.mrb[0].mxu0
  %v6091 = vadd.f32 %v6020, %v6090
  %v6092 = vpop.f32.mrb[0].mxu0
  %v6093 = vadd.f32 %v6022, %v6092
  %6094 = vdwg.mxu0
  %v6095 = vtanh.pop %v5949
  %v6096 = vtanh.pop %v5951
  %v6097 = vtanh.pop %v6091
  %v6098 = vtanh.pop %v6093
  %6099 = vmatprep.subr.mxu0 %v658
  %6100 = vmatpush1.msra.mxu0 %v657
  %6101 = vmatprep.subr.mxu0 %v662
  %6102 = vmatpush1.msra.mxu0 %v661
  %6103 = vmatprep.subr.mxu0 %v666
  %6104 = vmatpush1.msra.mxu0 %v665
  %6105 = vmatprep.subr.mxu0 %v670
  %6106 = vmatpush1.msra.mxu0 %v669
  %6107 = vmatprep.subr.mxu0 %v674
  %6108 = vmatpush1.msra.mxu0 %v673
  %6109 = vmatprep.subr.mxu0 %v678
  %6110 = vmatpush1.msra.mxu0 %v677
  %6111 = vmatprep.subr.mxu0 %v682
  %6112 = vmatpush1.msra.mxu0 %v681
  %6113 = vmatprep.subr.mxu0 %v686
  %6114 = vmatpush1.msra.mxu0 %v685
  %6115 = vmatprep.subr.mxu0 %v690
  %6116 = vmatpush1.msra.mxu0 %v689
  %6117 = vmatprep.subr.mxu0 %v694
  %6118 = vmatpush1.msra.mxu0 %v693
  %6119 = vmatprep.subr.mxu0 %v698
  %6120 = vmatpush1.msra.mxu0 %v697
  %6121 = vmatprep.subr.mxu0 %v702
  %6122 = vmatpush1.msra.mxu0 %v701
  %6123 = vmatprep.subr.mxu0 %v706
  %6124 = vmatpush1.msra.mxu0 %v705
  %6125 = vmatprep.subr.mxu0 %v710
  %6126 = vmatpush1.msra.mxu0 %v709
  %6127 = vmatprep.subr.mxu0 %v714
  %6128 = vmatpush1.msra.mxu0 %v713
  %6129 = vmatprep.subr.mxu0 %v718
  %6130 = vmatpush1.msra.mxu0 %v717
  %6131 = vmatprep.subr.mxu0 %v722
  %6132 = vmatpush1.msra.mxu0 %v721
  %6133 = vmatprep.subr.mxu0 %v726
  %6134 = vmatpush1.msra.mxu0 %v725
  %6135 = vmatprep.subr.mxu0 %v730
  %6136 = vmatpush1.msra.mxu0 %v729
  %6137 = vmatprep.subr.mxu0 %v734
  %6138 = vmatpush1.msra.mxu0 %v733
  %6139 = vmatprep.subr.mxu0 %v738
  %6140 = vmatpush1.msra.mxu0 %v737
  %6141 = vmatprep.subr.mxu0 %v742
  %6142 = vmatpush1.msra.mxu0 %v741
  %6143 = vmatprep.subr.mxu0 %v746
  %6144 = vmatpush1.msra.mxu0 %v745
  %6145 = vmatprep.subr.mxu0 %v750
  %6146 = vmatpush1.msra.mxu0 %v749
  %6147 = vmatprep.subr.mxu0 %v754
  %6148 = vmatpush1.msra.mxu0 %v753
  %6149 = vmatprep.subr.mxu0 %v758
  %6150 = vmatpush1.msra.mxu0 %v757
  %6151 = vmatprep.subr.mxu0 %v762
  %6152 = vmatpush1.msra.mxu0 %v761
  %6153 = vmatprep.subr.mxu0 %v766
  %6154 = vmatpush1.msra.mxu0 %v765
  %6155 = vmatprep.subr.mxu0 %v770
  %6156 = vmatpush1.msra.mxu0 %v769
  %6157 = vmatprep.subr.mxu0 %v774
  %6158 = vmatpush1.msra.mxu0 %v773
  %6159 = vmatprep.subr.mxu0 %v778
  %6160 = vmatpush1.msra.mxu0 %v777
  %6161 = vmatprep.subr.mxu0 %v782
  %6162 = vmatpush1.msra.mxu0 %v781
  %6163 = vmatprep.mubr.f32.mxu0 %v6096
  %6164 = vmatmul.mubr.f32.gmra.mrb[0].mxu0 %v6095
  %v6165 = vpop.f32.mrb[0].mxu0
  %v6166 = vadd.f32 %v374, %v6165
  %v6167 = vpop.f32.mrb[0].mxu0
  %v6168 = vadd.f32 %v376, %v6167
  %6169 = vdwg.mxu0
  %6170 = vmatprep.subr.mxu0 %v786
  %6171 = vmatpush1.msra.mxu0 %v785
  %6172 = vmatprep.subr.mxu0 %v790
  %6173 = vmatpush1.msra.mxu0 %v789
  %6174 = vmatprep.subr.mxu0 %v794
  %6175 = vmatpush1.msra.mxu0 %v793
  %6176 = vmatprep.subr.mxu0 %v798
  %6177 = vmatpush1.msra.mxu0 %v797
  %6178 = vmatprep.subr.mxu0 %v802
  %6179 = vmatpush1.msra.mxu0 %v801
  %6180 = vmatprep.subr.mxu0 %v806
  %6181 = vmatpush1.msra.mxu0 %v805
  %6182 = vmatprep.subr.mxu0 %v810
  %6183 = vmatpush1.msra.mxu0 %v809
  %6184 = vmatprep.subr.mxu0 %v814
  %6185 = vmatpush1.msra.mxu0 %v813
  %6186 = vmatprep.subr.mxu0 %v818
  %6187 = vmatpush1.msra.mxu0 %v817
  %6188 = vmatprep.subr.mxu0 %v822
  %6189 = vmatpush1.msra.mxu0 %v821
  %6190 = vmatprep.subr.mxu0 %v826
  %6191 = vmatpush1.msra.mxu0 %v825
  %6192 = vmatprep.subr.mxu0 %v830
  %6193 = vmatpush1.msra.mxu0 %v829
  %6194 = vmatprep.subr.mxu0 %v834
  %6195 = vmatpush1.msra.mxu0 %v833
  %6196 = vmatprep.subr.mxu0 %v838
  %6197 = vmatpush1.msra.mxu0 %v837
  %6198 = vmatprep.subr.mxu0 %v842
  %6199 = vmatpush1.msra.mxu0 %v841
  %6200 = vmatprep.subr.mxu0 %v846
  %6201 = vmatpush1.msra.mxu0 %v845
  %6202 = vmatprep.subr.mxu0 %v850
  %6203 = vmatpush1.msra.mxu0 %v849
  %6204 = vmatprep.subr.mxu0 %v854
  %6205 = vmatpush1.msra.mxu0 %v853
  %6206 = vmatprep.subr.mxu0 %v858
  %6207 = vmatpush1.msra.mxu0 %v857
  %6208 = vmatprep.subr.mxu0 %v862
  %6209 = vmatpush1.msra.mxu0 %v861
  %6210 = vmatprep.subr.mxu0 %v866
  %6211 = vmatpush1.msra.mxu0 %v865
  %6212 = vmatprep.subr.mxu0 %v870
  %6213 = vmatpush1.msra.mxu0 %v869
  %6214 = vmatprep.subr.mxu0 %v874
  %6215 = vmatpush1.msra.mxu0 %v873
  %6216 = vmatprep.subr.mxu0 %v878
  %6217 = vmatpush1.msra.mxu0 %v877
  %6218 = vmatprep.subr.mxu0 %v882
  %6219 = vmatpush1.msra.mxu0 %v881
  %6220 = vmatprep.subr.mxu0 %v886
  %6221 = vmatpush1.msra.mxu0 %v885
  %6222 = vmatprep.subr.mxu0 %v890
  %6223 = vmatpush1.msra.mxu0 %v889
  %6224 = vmatprep.subr.mxu0 %v894
  %6225 = vmatpush1.msra.mxu0 %v893
  %6226 = vmatprep.subr.mxu0 %v898
  %6227 = vmatpush1.msra.mxu0 %v897
  %6228 = vmatprep.subr.mxu0 %v902
  %6229 = vmatpush1.msra.mxu0 %v901
  %6230 = vmatprep.subr.mxu0 %v906
  %6231 = vmatpush1.msra.mxu0 %v905
  %6232 = vmatprep.subr.mxu0 %v910
  %6233 = vmatpush1.msra.mxu0 %v909
  %6234 = vmatprep.mubr.f32.mxu0 %v6098
  %6235 = vmatmul.mubr.f32.gmra.mrb[0].mxu0 %v6097
  %v6236 = vpop.f32.mrb[0].mxu0
  %v6237 = vadd.f32 %v6166, %v6236
  %v6238 = vpop.f32.mrb[0].mxu0
  %v6239 = vadd.f32 %v6168, %v6238
  %6240 = vdwg.mxu0
  %6241 = vmatprep.subr.mxu0 %v660
  %6242 = vmatpush1.msra.mxu0 %v659
  %6243 = vmatprep.subr.mxu0 %v664
  %6244 = vmatpush1.msra.mxu0 %v663
  %6245 = vmatprep.subr.mxu0 %v668
  %6246 = vmatpush1.msra.mxu0 %v667
  %6247 = vmatprep.subr.mxu0 %v672
  %6248 = vmatpush1.msra.mxu0 %v671
  %6249 = vmatprep.subr.mxu0 %v676
  %6250 = vmatpush1.msra.mxu0 %v675
  %6251 = vmatprep.subr.mxu0 %v680
  %6252 = vmatpush1.msra.mxu0 %v679
  %6253 = vmatprep.subr.mxu0 %v684
  %6254 = vmatpush1.msra.mxu0 %v683
  %6255 = vmatprep.subr.mxu0 %v688
  %6256 = vmatpush1.msra.mxu0 %v687
  %6257 = vmatprep.subr.mxu0 %v692
  %6258 = vmatpush1.msra.mxu0 %v691
  %6259 = vmatprep.subr.mxu0 %v696
  %6260 = vmatpush1.msra.mxu0 %v695
  %6261 = vmatprep.subr.mxu0 %v700
  %6262 = vmatpush1.msra.mxu0 %v699
  %6263 = vmatprep.subr.mxu0 %v704
  %6264 = vmatpush1.msra.mxu0 %v703
  %6265 = vmatprep.subr.mxu0 %v708
  %6266 = vmatpush1.msra.mxu0 %v707
  %6267 = vmatprep.subr.mxu0 %v712
  %6268 = vmatpush1.msra.mxu0 %v711
  %6269 = vmatprep.subr.mxu0 %v716
  %6270 = vmatpush1.msra.mxu0 %v715
  %6271 = vmatprep.subr.mxu0 %v720
  %6272 = vmatpush1.msra.mxu0 %v719
  %6273 = vmatprep.subr.mxu0 %v724
  %6274 = vmatpush1.msra.mxu0 %v723
  %6275 = vmatprep.subr.mxu0 %v728
  %6276 = vmatpush1.msra.mxu0 %v727
  %6277 = vmatprep.subr.mxu0 %v732
  %6278 = vmatpush1.msra.mxu0 %v731
  %6279 = vmatprep.subr.mxu0 %v736
  %6280 = vmatpush1.msra.mxu0 %v735
  %6281 = vmatprep.subr.mxu0 %v740
  %6282 = vmatpush1.msra.mxu0 %v739
  %6283 = vmatprep.subr.mxu0 %v744
  %6284 = vmatpush1.msra.mxu0 %v743
  %6285 = vmatprep.subr.mxu0 %v748
  %6286 = vmatpush1.msra.mxu0 %v747
  %6287 = vmatprep.subr.mxu0 %v752
  %6288 = vmatpush1.msra.mxu0 %v751
  %6289 = vmatprep.subr.mxu0 %v756
  %6290 = vmatpush1.msra.mxu0 %v755
  %6291 = vmatprep.subr.mxu0 %v760
  %6292 = vmatpush1.msra.mxu0 %v759
  %6293 = vmatprep.subr.mxu0 %v764
  %6294 = vmatpush1.msra.mxu0 %v763
  %6295 = vmatprep.subr.mxu0 %v768
  %6296 = vmatpush1.msra.mxu0 %v767
  %6297 = vmatprep.subr.mxu0 %v772
  %6298 = vmatpush1.msra.mxu0 %v771
  %6299 = vmatprep.subr.mxu0 %v776
  %6300 = vmatpush1.msra.mxu0 %v775
  %6301 = vmatprep.subr.mxu0 %v780
  %6302 = vmatpush1.msra.mxu0 %v779
  %6303 = vmatprep.subr.mxu0 %v784
  %6304 = vmatpush1.msra.mxu0 %v783
  %6305 = vmatprep.mubr.f32.mxu0 %v6096
  %6306 = vmatmul.mubr.f32.gmra.mrb[0].mxu0 %v6095
  %v6307 = vpop.f32.mrb[0].mxu0
  %v6308 = vadd.f32 %v605, %v6307
  %v6309 = vpop.f32.mrb[0].mxu0
  %v6310 = vadd.f32 %v607, %v6309
  %6311 = vdwg.mxu0
  %6312 = vmatprep.subr.mxu0 %v788
  %6313 = vmatpush1.msra.mxu0 %v787
  %6314 = vmatprep.subr.mxu0 %v792
  %6315 = vmatpush1.msra.mxu0 %v791
  %6316 = vmatprep.subr.mxu0 %v796
  %6317 = vmatpush1.msra.mxu0 %v795
  %6318 = vmatprep.subr.mxu0 %v800
  %6319 = vmatpush1.msra.mxu0 %v799
  %6320 = vmatprep.subr.mxu0 %v804
  %6321 = vmatpush1.msra.mxu0 %v803
  %6322 = vmatprep.subr.mxu0 %v808
  %6323 = vmatpush1.msra.mxu0 %v807
  %6324 = vmatprep.subr.mxu0 %v812
  %6325 = vmatpush1.msra.mxu0 %v811
  %6326 = vmatprep.subr.mxu0 %v816
  %6327 = vmatpush1.msra.mxu0 %v815
  %6328 = vmatprep.subr.mxu0 %v820
  %6329 = vmatpush1.msra.mxu0 %v819
  %6330 = vmatprep.subr.mxu0 %v824
  %6331 = vmatpush1.msra.mxu0 %v823
  %6332 = vmatprep.subr.mxu0 %v828
  %6333 = vmatpush1.msra.mxu0 %v827
  %6334 = vmatprep.subr.mxu0 %v832
  %6335 = vmatpush1.msra.mxu0 %v831
  %6336 = vmatprep.subr.mxu0 %v836
  %6337 = vmatpush1.msra.mxu0 %v835
  %6338 = vmatprep.subr.mxu0 %v840
  %6339 = vmatpush1.msra.mxu0 %v839
  %6340 = vmatprep.subr.mxu0 %v844
  %6341 = vmatpush1.msra.mxu0 %v843
  %6342 = vmatprep.subr.mxu0 %v848
  %6343 = vmatpush1.msra.mxu0 %v847
  %6344 = vmatprep.subr.mxu0 %v852
  %6345 = vmatpush1.msra.mxu0 %v851
  %6346 = vmatprep.subr.mxu0 %v856
  %6347 = vmatpush1.msra.mxu0 %v855
  %6348 = vmatprep.subr.mxu0 %v860
  %6349 = vmatpush1.msra.mxu0 %v859
  %6350 = vmatprep.subr.mxu0 %v864
  %6351 = vmatpush1.msra.mxu0 %v863
  %6352 = vmatprep.subr.mxu0 %v868
  %6353 = vmatpush1.msra.mxu0 %v867
  %6354 = vmatprep.subr.mxu0 %v872
  %6355 = vmatpush1.msra.mxu0 %v871
  %6356 = vmatprep.subr.mxu0 %v876
  %6357 = vmatpush1.msra.mxu0 %v875
  %6358 = vmatprep.subr.mxu0 %v880
  %6359 = vmatpush1.msra.mxu0 %v879
  %6360 = vmatprep.subr.mxu0 %v884
  %6361 = vmatpush1.msra.mxu0 %v883
  %6362 = vmatprep.subr.mxu0 %v888
  %6363 = vmatpush1.msra.mxu0 %v887
  %6364 = vmatprep.subr.mxu0 %v892
  %6365 = vmatpush1.msra.mxu0 %v891
  %6366 = vmatprep.subr.mxu0 %v896
  %6367 = vmatpush1.msra.mxu0 %v895
  %6368 = vmatprep.subr.mxu0 %v900
  %6369 = vmatpush1.msra.mxu0 %v899
  %6370 = vmatprep.subr.mxu0 %v904
  %6371 = vmatpush1.msra.mxu0 %v903
  %6372 = vmatprep.subr.mxu0 %v908
  %6373 = vmatpush1.msra.mxu0 %v907
  %6374 = vmatprep.subr.mxu0 %v912
  %6375 = vmatpush1.msra.mxu0 %v911
  %6376 = vmatprep.mubr.f32.mxu0 %v6098
  %6377 = vmatmul.mubr.f32.gmra.mrb[0].mxu0 %v6097
  %v6378 = vpop.f32.mrb[0].mxu0
  %v6379 = vadd.f32 %v6308, %v6378
  %v6380 = vpop.f32.mrb[0].mxu0
  %v6381 = vadd.f32 %v6310, %v6380
  %6382 = vdwg.mxu0
  %v6383 = vtanh.pop %v6237
  %v6384 = vtanh.pop %v6239
  %v6385 = vtanh.pop %v6379
  %v6386 = vtanh.pop %v6381
  %6387 = vmatprep.subr.mxu0 %v658
  %6388 = vmatpush1.msra.mxu0 %v657
  %6389 = vmatprep.subr.mxu0 %v662
  %6390 = vmatpush1.msra.mxu0 %v661
  %6391 = vmatprep.subr.mxu0 %v666
  %6392 = vmatpush1.msra.mxu0 %v665
  %6393 = vmatprep.subr.mxu0 %v670
  %6394 = vmatpush1.msra.mxu0 %v669
  %6395 = vmatprep.subr.mxu0 %v674
  %6396 = vmatpush1.msra.mxu0 %v673
  %6397 = vmatprep.subr.mxu0 %v678
  %6398 = vmatpush1.msra.mxu0 %v677
  %6399 = vmatprep.subr.mxu0 %v682
  %6400 = vmatpush1.msra.mxu0 %v681
  %6401 = vmatprep.subr.mxu0 %v686
  %6402 = vmatpush1.msra.mxu0 %v685
  %6403 = vmatprep.subr.mxu0 %v690
  %6404 = vmatpush1.msra.mxu0 %v689
  %6405 = vmatprep.subr.mxu0 %v694
  %6406 = vmatpush1.msra.mxu0 %v693
  %6407 = vmatprep.subr.mxu0 %v698
  %6408 = vmatpush1.msra.mxu0 %v697
  %6409 = vmatprep.subr.mxu0 %v702
  %6410 = vmatpush1.msra.mxu0 %v701
  %6411 = vmatprep.subr.mxu0 %v706
  %6412 = vmatpush1.msra.mxu0 %v705
  %6413 = vmatprep.subr.mxu0 %v710
  %6414 = vmatpush1.msra.mxu0 %v709
  %6415 = vmatprep.subr.mxu0 %v714
  %6416 = vmatpush1.msra.mxu0 %v713
  %6417 = vmatprep.subr.mxu0 %v718
  %6418 = vmatpush1.msra.mxu0 %v717
  %6419 = vmatprep.subr.mxu0 %v722
  %6420 = vmatpush1.msra.mxu0 %v721
  %6421 = vmatprep.subr.mxu0 %v726
  %6422 = vmatpush1.msra.mxu0 %v725
  %6423 = vmatprep.subr.mxu0 %v730
  %6424 = vmatpush1.msra.mxu0 %v729
  %6425 = vmatprep.subr.mxu0 %v734
  %6426 = vmatpush1.msra.mxu0 %v733
  %6427 = vmatprep.subr.mxu0 %v738
  %6428 = vmatpush1.msra.mxu0 %v737
  %6429 = vmatprep.subr.mxu0 %v742
  %6430 = vmatpush1.msra.mxu0 %v741
  %6431 = vmatprep.subr.mxu0 %v746
  %6432 = vmatpush1.msra.mxu0 %v745
  %6433 = vmatprep.subr.mxu0 %v750
  %6434 = vmatpush1.msra.mxu0 %v749
  %6435 = vmatprep.subr.mxu0 %v754
  %6436 = vmatpush1.msra.mxu0 %v753
  %6437 = vmatprep.subr.mxu0 %v758
  %6438 = vmatpush1.msra.mxu0 %v757
  %6439 = vmatprep.subr.mxu0 %v762
  %6440 = vmatpush1.msra.mxu0 %v761
  %6441 = vmatprep.subr.mxu0 %v766
  %6442 = vmatpush1.msra.mxu0 %v765
  %6443 = vmatprep.subr.mxu0 %v770
  %6444 = vmatpush1.msra.mxu0 %v769
  %6445 = vmatprep.subr.mxu0 %v774
  %6446 = vmatpush1.msra.mxu0 %v773
  %6447 = vmatprep.subr.mxu0 %v778
  %6448 = vmatpush1.msra.mxu0 %v777
  %6449 = vmatprep.subr.mxu0 %v782
  %6450 = vmatpush1.msra.mxu0 %v781
  %6451 = vmatprep.mubr.f32.mxu0 %v6384
  %6452 = vmatmul.mubr.f32.gmra.mrb[0].mxu0 %v6383
  %v6453 = vpop.f32.mrb[0].mxu0
  %v6454 = vadd.f32 %v380, %v6453
  %v6455 = vpop.f32.mrb[0].mxu0
  %v6456 = vadd.f32 %v382, %v6455
  %6457 = vdwg.mxu0
  %6458 = vmatprep.subr.mxu0 %v786
  %6459 = vmatpush1.msra.mxu0 %v785
  %6460 = vmatprep.subr.mxu0 %v790
  %6461 = vmatpush1.msra.mxu0 %v789
  %6462 = vmatprep.subr.mxu0 %v794
  %6463 = vmatpush1.msra.mxu0 %v793
  %6464 = vmatprep.subr.mxu0 %v798
  %6465 = vmatpush1.msra.mxu0 %v797
  %6466 = vmatprep.subr.mxu0 %v802
  %6467 = vmatpush1.msra.mxu0 %v801
  %6468 = vmatprep.subr.mxu0 %v806
  %6469 = vmatpush1.msra.mxu0 %v805
  %6470 = vmatprep.subr.mxu0 %v810
  %6471 = vmatpush1.msra.mxu0 %v809
  %6472 = vmatprep.subr.mxu0 %v814
  %6473 = vmatpush1.msra.mxu0 %v813
  %6474 = vmatprep.subr.mxu0 %v818
  %6475 = vmatpush1.msra.mxu0 %v817
  %6476 = vmatprep.subr.mxu0 %v822
  %6477 = vmatpush1.msra.mxu0 %v821
  %6478 = vmatprep.subr.mxu0 %v826
  %6479 = vmatpush1.msra.mxu0 %v825
  %6480 = vmatprep.subr.mxu0 %v830
  %6481 = vmatpush1.msra.mxu0 %v829
  %6482 = vmatprep.subr.mxu0 %v834
  %6483 = vmatpush1.msra.mxu0 %v833
  %6484 = vmatprep.subr.mxu0 %v838
  %6485 = vmatpush1.msra.mxu0 %v837
  %6486 = vmatprep.subr.mxu0 %v842
  %6487 = vmatpush1.msra.mxu0 %v841
  %6488 = vmatprep.subr.mxu0 %v846
  %6489 = vmatpush1.msra.mxu0 %v845
  %6490 = vmatprep.subr.mxu0 %v850
  %6491 = vmatpush1.msra.mxu0 %v849
  %6492 = vmatprep.subr.mxu0 %v854
  %6493 = vmatpush1.msra.mxu0 %v853
  %6494 = vmatprep.subr.mxu0 %v858
  %6495 = vmatpush1.msra.mxu0 %v857
  %6496 = vmatprep.subr.mxu0 %v862
  %6497 = vmatpush1.msra.mxu0 %v861
  %6498 = vmatprep.subr.mxu0 %v866
  %6499 = vmatpush1.msra.mxu0 %v865
  %6500 = vmatprep.subr.mxu0 %v870
  %6501 = vmatpush1.msra.mxu0 %v869
  %6502 = vmatprep.subr.mxu0 %v874
  %6503 = vmatpush1.msra.mxu0 %v873
  %6504 = vmatprep.subr.mxu0 %v878
  %6505 = vmatpush1.msra.mxu0 %v877
  %6506 = vmatprep.subr.mxu0 %v882
  %6507 = vmatpush1.msra.mxu0 %v881
  %6508 = vmatprep.subr.mxu0 %v886
  %6509 = vmatpush1.msra.mxu0 %v885
  %6510 = vmatprep.subr.mxu0 %v890
  %6511 = vmatpush1.msra.mxu0 %v889
  %6512 = vmatprep.subr.mxu0 %v894
  %6513 = vmatpush1.msra.mxu0 %v893
  %6514 = vmatprep.subr.mxu0 %v898
  %6515 = vmatpush1.msra.mxu0 %v897
  %6516 = vmatprep.subr.mxu0 %v902
  %6517 = vmatpush1.msra.mxu0 %v901
  %6518 = vmatprep.subr.mxu0 %v906
  %6519 = vmatpush1.msra.mxu0 %v905
  %6520 = vmatprep.subr.mxu0 %v910
  %6521 = vmatpush1.msra.mxu0 %v909
  %6522 = vmatprep.mubr.f32.mxu0 %v6386
  %6523 = vmatmul.mubr.f32.gmra.mrb[0].mxu0 %v6385
  %v6524 = vpop.f32.mrb[0].mxu0
  %v6525 = vadd.f32 %v6454, %v6524
  %v6526 = vpop.f32.mrb[0].mxu0
  %v6527 = vadd.f32 %v6456, %v6526
  %6528 = vdwg.mxu0
  %6529 = vmatprep.subr.mxu0 %v660
  %6530 = vmatpush1.msra.mxu0 %v659
  %6531 = vmatprep.subr.mxu0 %v664
  %6532 = vmatpush1.msra.mxu0 %v663
  %6533 = vmatprep.subr.mxu0 %v668
  %6534 = vmatpush1.msra.mxu0 %v667
  %6535 = vmatprep.subr.mxu0 %v672
  %6536 = vmatpush1.msra.mxu0 %v671
  %6537 = vmatprep.subr.mxu0 %v676
  %6538 = vmatpush1.msra.mxu0 %v675
  %6539 = vmatprep.subr.mxu0 %v680
  %6540 = vmatpush1.msra.mxu0 %v679
  %6541 = vmatprep.subr.mxu0 %v684
  %6542 = vmatpush1.msra.mxu0 %v683
  %6543 = vmatprep.subr.mxu0 %v688
  %6544 = vmatpush1.msra.mxu0 %v687
  %6545 = vmatprep.subr.mxu0 %v692
  %6546 = vmatpush1.msra.mxu0 %v691
  %6547 = vmatprep.subr.mxu0 %v696
  %6548 = vmatpush1.msra.mxu0 %v695
  %6549 = vmatprep.subr.mxu0 %v700
  %6550 = vmatpush1.msra.mxu0 %v699
  %6551 = vmatprep.subr.mxu0 %v704
  %6552 = vmatpush1.msra.mxu0 %v703
  %6553 = vmatprep.subr.mxu0 %v708
  %6554 = vmatpush1.msra.mxu0 %v707
  %6555 = vmatprep.subr.mxu0 %v712
  %6556 = vmatpush1.msra.mxu0 %v711
  %6557 = vmatprep.subr.mxu0 %v716
  %6558 = vmatpush1.msra.mxu0 %v715
  %6559 = vmatprep.subr.mxu0 %v720
  %6560 = vmatpush1.msra.mxu0 %v719
  %6561 = vmatprep.subr.mxu0 %v724
  %6562 = vmatpush1.msra.mxu0 %v723
  %6563 = vmatprep.subr.mxu0 %v728
  %6564 = vmatpush1.msra.mxu0 %v727
  %6565 = vmatprep.subr.mxu0 %v732
  %6566 = vmatpush1.msra.mxu0 %v731
  %6567 = vmatprep.subr.mxu0 %v736
  %6568 = vmatpush1.msra.mxu0 %v735
  %6569 = vmatprep.subr.mxu0 %v740
  %6570 = vmatpush1.msra.mxu0 %v739
  %6571 = vmatprep.subr.mxu0 %v744
  %6572 = vmatpush1.msra.mxu0 %v743
  %6573 = vmatprep.subr.mxu0 %v748
  %6574 = vmatpush1.msra.mxu0 %v747
  %6575 = vmatprep.subr.mxu0 %v752
  %6576 = vmatpush1.msra.mxu0 %v751
  %6577 = vmatprep.subr.mxu0 %v756
  %6578 = vmatpush1.msra.mxu0 %v755
  %6579 = vmatprep.subr.mxu0 %v760
  %6580 = vmatpush1.msra.mxu0 %v759
  %6581 = vmatprep.subr.mxu0 %v764
  %6582 = vmatpush1.msra.mxu0 %v763
  %6583 = vmatprep.subr.mxu0 %v768
  %6584 = vmatpush1.msra.mxu0 %v767
  %6585 = vmatprep.subr.mxu0 %v772
  %6586 = vmatpush1.msra.mxu0 %v771
  %6587 = vmatprep.subr.mxu0 %v776
  %6588 = vmatpush1.msra.mxu0 %v775
  %6589 = vmatprep.subr.mxu0 %v780
  %6590 = vmatpush1.msra.mxu0 %v779
  %6591 = vmatprep.subr.mxu0 %v784
  %6592 = vmatpush1.msra.mxu0 %v783
  %6593 = vmatprep.mubr.f32.mxu0 %v6384
  %6594 = vmatmul.mubr.f32.gmra.mrb[0].mxu0 %v6383
  %v6595 = vpop.f32.mrb[0].mxu0
  %v6596 = vadd.f32 %v611, %v6595
  %v6597 = vpop.f32.mrb[0].mxu0
  %v6598 = vadd.f32 %v613, %v6597
  %6599 = vdwg.mxu0
  %6600 = vmatprep.subr.mxu0 %v788
  %6601 = vmatpush1.msra.mxu0 %v787
  %6602 = vmatprep.subr.mxu0 %v792
  %6603 = vmatpush1.msra.mxu0 %v791
  %6604 = vmatprep.subr.mxu0 %v796
  %6605 = vmatpush1.msra.mxu0 %v795
  %6606 = vmatprep.subr.mxu0 %v800
  %6607 = vmatpush1.msra.mxu0 %v799
  %6608 = vmatprep.subr.mxu0 %v804
  %6609 = vmatpush1.msra.mxu0 %v803
  %6610 = vmatprep.subr.mxu0 %v808
  %6611 = vmatpush1.msra.mxu0 %v807
  %6612 = vmatprep.subr.mxu0 %v812
  %6613 = vmatpush1.msra.mxu0 %v811
  %6614 = vmatprep.subr.mxu0 %v816
  %6615 = vmatpush1.msra.mxu0 %v815
  %6616 = vmatprep.subr.mxu0 %v820
  %6617 = vmatpush1.msra.mxu0 %v819
  %6618 = vmatprep.subr.mxu0 %v824
  %6619 = vmatpush1.msra.mxu0 %v823
  %6620 = vmatprep.subr.mxu0 %v828
  %6621 = vmatpush1.msra.mxu0 %v827
  %6622 = vmatprep.subr.mxu0 %v832
  %6623 = vmatpush1.msra.mxu0 %v831
  %6624 = vmatprep.subr.mxu0 %v836
  %6625 = vmatpush1.msra.mxu0 %v835
  %6626 = vmatprep.subr.mxu0 %v840
  %6627 = vmatpush1.msra.mxu0 %v839
  %6628 = vmatprep.subr.mxu0 %v844
  %6629 = vmatpush1.msra.mxu0 %v843
  %6630 = vmatprep.subr.mxu0 %v848
  %6631 = vmatpush1.msra.mxu0 %v847
  %6632 = vmatprep.subr.mxu0 %v852
  %6633 = vmatpush1.msra.mxu0 %v851
  %6634 = vmatprep.subr.mxu0 %v856
  %6635 = vmatpush1.msra.mxu0 %v855
  %6636 = vmatprep.subr.mxu0 %v860
  %6637 = vmatpush1.msra.mxu0 %v859
  %6638 = vmatprep.subr.mxu0 %v864
  %6639 = vmatpush1.msra.mxu0 %v863
  %6640 = vmatprep.subr.mxu0 %v868
  %6641 = vmatpush1.msra.mxu0 %v867
  %6642 = vmatprep.subr.mxu0 %v872
  %6643 = vmatpush1.msra.mxu0 %v871
  %6644 = vmatprep.subr.mxu0 %v876
  %6645 = vmatpush1.msra.mxu0 %v875
  %6646 = vmatprep.subr.mxu0 %v880
  %6647 = vmatpush1.msra.mxu0 %v879
  %6648 = vmatprep.subr.mxu0 %v884
  %6649 = vmatpush1.msra.mxu0 %v883
  %6650 = vmatprep.subr.mxu0 %v888
  %6651 = vmatpush1.msra.mxu0 %v887
  %6652 = vmatprep.subr.mxu0 %v892
  %6653 = vmatpush1.msra.mxu0 %v891
  %6654 = vmatprep.subr.mxu0 %v896
  %6655 = vmatpush1.msra.mxu0 %v895
  %6656 = vmatprep.subr.mxu0 %v900
  %6657 = vmatpush1.msra.mxu0 %v899
  %6658 = vmatprep.subr.mxu0 %v904
  %6659 = vmatpush1.msra.mxu0 %v903
  %6660 = vmatprep.subr.mxu0 %v908
  %6661 = vmatpush1.msra.mxu0 %v907
  %6662 = vmatprep.subr.mxu0 %v912
  %6663 = vmatpush1.msra.mxu0 %v911
  %6664 = vmatprep.mubr.f32.mxu0 %v6386
  %6665 = vmatmul.mubr.f32.gmra.mrb[0].mxu0 %v6385
  %v6666 = vpop.f32.mrb[0].mxu0
  %v6667 = vadd.f32 %v6596, %v6666
  %v6668 = vpop.f32.mrb[0].mxu0
  %v6669 = vadd.f32 %v6598, %v6668
  %6670 = vdwg.mxu0
  %v6671 = vtanh.pop %v6525
  %v6672 = vtanh.pop %v6527
  %v6673 = vtanh.pop %v6667
  %v6674 = vtanh.pop %v6669
  %6675 = vmatprep.subr.mxu0 %v658
  %6676 = vmatpush1.msra.mxu0 %v657
  %6677 = vmatprep.subr.mxu0 %v662
  %6678 = vmatpush1.msra.mxu0 %v661
  %6679 = vmatprep.subr.mxu0 %v666
  %6680 = vmatpush1.msra.mxu0 %v665
  %6681 = vmatprep.subr.mxu0 %v670
  %6682 = vmatpush1.msra.mxu0 %v669
  %6683 = vmatprep.subr.mxu0 %v674
  %6684 = vmatpush1.msra.mxu0 %v673
  %6685 = vmatprep.subr.mxu0 %v678
  %6686 = vmatpush1.msra.mxu0 %v677
  %6687 = vmatprep.subr.mxu0 %v682
  %6688 = vmatpush1.msra.mxu0 %v681
  %6689 = vmatprep.subr.mxu0 %v686
  %6690 = vmatpush1.msra.mxu0 %v685
  %6691 = vmatprep.subr.mxu0 %v690
  %6692 = vmatpush1.msra.mxu0 %v689
  %6693 = vmatprep.subr.mxu0 %v694
  %6694 = vmatpush1.msra.mxu0 %v693
  %6695 = vmatprep.subr.mxu0 %v698
  %6696 = vmatpush1.msra.mxu0 %v697
  %6697 = vmatprep.subr.mxu0 %v702
  %6698 = vmatpush1.msra.mxu0 %v701
  %6699 = vmatprep.subr.mxu0 %v706
  %6700 = vmatpush1.msra.mxu0 %v705
  %6701 = vmatprep.subr.mxu0 %v710
  %6702 = vmatpush1.msra.mxu0 %v709
  %6703 = vmatprep.subr.mxu0 %v714
  %6704 = vmatpush1.msra.mxu0 %v713
  %6705 = vmatprep.subr.mxu0 %v718
  %6706 = vmatpush1.msra.mxu0 %v717
  %6707 = vmatprep.subr.mxu0 %v722
  %6708 = vmatpush1.msra.mxu0 %v721
  %6709 = vmatprep.subr.mxu0 %v726
  %6710 = vmatpush1.msra.mxu0 %v725
  %6711 = vmatprep.subr.mxu0 %v730
  %6712 = vmatpush1.msra.mxu0 %v729
  %6713 = vmatprep.subr.mxu0 %v734
  %6714 = vmatpush1.msra.mxu0 %v733
  %6715 = vmatprep.subr.mxu0 %v738
  %6716 = vmatpush1.msra.mxu0 %v737
  %6717 = vmatprep.subr.mxu0 %v742
  %6718 = vmatpush1.msra.mxu0 %v741
  %6719 = vmatprep.subr.mxu0 %v746
  %6720 = vmatpush1.msra.mxu0 %v745
  %6721 = vmatprep.subr.mxu0 %v750
  %6722 = vmatpush1.msra.mxu0 %v749
  %6723 = vmatprep.subr.mxu0 %v754
  %6724 = vmatpush1.msra.mxu0 %v753
  %6725 = vmatprep.subr.mxu0 %v758
  %6726 = vmatpush1.msra.mxu0 %v757
  %6727 = vmatprep.subr.mxu0 %v762
  %6728 = vmatpush1.msra.mxu0 %v761
  %6729 = vmatprep.subr.mxu0 %v766
  %6730 = vmatpush1.msra.mxu0 %v765
  %6731 = vmatprep.subr.mxu0 %v770
  %6732 = vmatpush1.msra.mxu0 %v769
  %6733 = vmatprep.subr.mxu0 %v774
  %6734 = vmatpush1.msra.mxu0 %v773
  %6735 = vmatprep.subr.mxu0 %v778
  %6736 = vmatpush1.msra.mxu0 %v777
  %6737 = vmatprep.subr.mxu0 %v782
  %6738 = vmatpush1.msra.mxu0 %v781
  %6739 = vmatprep.mubr.f32.mxu0 %v6672
  %6740 = vmatmul.mubr.f32.gmra.mrb[0].mxu0 %v6671
  %v6741 = vpop.f32.mrb[0].mxu0
  %v6742 = vadd.f32 %v386, %v6741
  %v6743 = vpop.f32.mrb[0].mxu0
  %v6744 = vadd.f32 %v388, %v6743
  %6745 = vdwg.mxu0
  %6746 = vmatprep.subr.mxu0 %v786
  %6747 = vmatpush1.msra.mxu0 %v785
  %6748 = vmatprep.subr.mxu0 %v790
  %6749 = vmatpush1.msra.mxu0 %v789
  %6750 = vmatprep.subr.mxu0 %v794
  %6751 = vmatpush1.msra.mxu0 %v793
  %6752 = vmatprep.subr.mxu0 %v798
  %6753 = vmatpush1.msra.mxu0 %v797
  %6754 = vmatprep.subr.mxu0 %v802
  %6755 = vmatpush1.msra.mxu0 %v801
  %6756 = vmatprep.subr.mxu0 %v806
  %6757 = vmatpush1.msra.mxu0 %v805
  %6758 = vmatprep.subr.mxu0 %v810
  %6759 = vmatpush1.msra.mxu0 %v809
  %6760 = vmatprep.subr.mxu0 %v814
  %6761 = vmatpush1.msra.mxu0 %v813
  %6762 = vmatprep.subr.mxu0 %v818
  %6763 = vmatpush1.msra.mxu0 %v817
  %6764 = vmatprep.subr.mxu0 %v822
  %6765 = vmatpush1.msra.mxu0 %v821
  %6766 = vmatprep.subr.mxu0 %v826
  %6767 = vmatpush1.msra.mxu0 %v825
  %6768 = vmatprep.subr.mxu0 %v830
  %6769 = vmatpush1.msra.mxu0 %v829
  %6770 = vmatprep.subr.mxu0 %v834
  %6771 = vmatpush1.msra.mxu0 %v833
  %6772 = vmatprep.subr.mxu0 %v838
  %6773 = vmatpush1.msra.mxu0 %v837
  %6774 = vmatprep.subr.mxu0 %v842
  %6775 = vmatpush1.msra.mxu0 %v841
  %6776 = vmatprep.subr.mxu0 %v846
  %6777 = vmatpush1.msra.mxu0 %v845
  %6778 = vmatprep.subr.mxu0 %v850
  %6779 = vmatpush1.msra.mxu0 %v849
  %6780 = vmatprep.subr.mxu0 %v854
  %6781 = vmatpush1.msra.mxu0 %v853
  %6782 = vmatprep.subr.mxu0 %v858
  %6783 = vmatpush1.msra.mxu0 %v857
  %6784 = vmatprep.subr.mxu0 %v862
  %6785 = vmatpush1.msra.mxu0 %v861
  %6786 = vmatprep.subr.mxu0 %v866
  %6787 = vmatpush1.msra.mxu0 %v865
  %6788 = vmatprep.subr.mxu0 %v870
  %6789 = vmatpush1.msra.mxu0 %v869
  %6790 = vmatprep.subr.mxu0 %v874
  %6791 = vmatpush1.msra.mxu0 %v873
  %6792 = vmatprep.subr.mxu0 %v878
  %6793 = vmatpush1.msra.mxu0 %v877
  %6794 = vmatprep.subr.mxu0 %v882
  %6795 = vmatpush1.msra.mxu0 %v881
  %6796 = vmatprep.subr.mxu0 %v886
  %6797 = vmatpush1.msra.mxu0 %v885
  %6798 = vmatprep.subr.mxu0 %v890
  %6799 = vmatpush1.msra.mxu0 %v889
  %6800 = vmatprep.subr.mxu0 %v894
  %6801 = vmatpush1.msra.mxu0 %v893
  %6802 = vmatprep.subr.mxu0 %v898
  %6803 = vmatpush1.msra.mxu0 %v897
  %6804 = vmatprep.subr.mxu0 %v902
  %6805 = vmatpush1.msra.mxu0 %v901
  %6806 = vmatprep.subr.mxu0 %v906
  %6807 = vmatpush1.msra.mxu0 %v905
  %6808 = vmatprep.subr.mxu0 %v910
  %6809 = vmatpush1.msra.mxu0 %v909
  %6810 = vmatprep.mubr.f32.mxu0 %v6674
  %6811 = vmatmul.mubr.f32.gmra.mrb[0].mxu0 %v6673
  %v6812 = vpop.f32.mrb[0].mxu0
  %v6813 = vadd.f32 %v6742, %v6812
  %v6814 = vpop.f32.mrb[0].mxu0
  %v6815 = vadd.f32 %v6744, %v6814
  %6816 = vdwg.mxu0
  %6817 = vmatprep.subr.mxu0 %v660
  %6818 = vmatpush1.msra.mxu0 %v659
  %6819 = vmatprep.subr.mxu0 %v664
  %6820 = vmatpush1.msra.mxu0 %v663
  %6821 = vmatprep.subr.mxu0 %v668
  %6822 = vmatpush1.msra.mxu0 %v667
  %6823 = vmatprep.subr.mxu0 %v672
  %6824 = vmatpush1.msra.mxu0 %v671
  %6825 = vmatprep.subr.mxu0 %v676
  %6826 = vmatpush1.msra.mxu0 %v675
  %6827 = vmatprep.subr.mxu0 %v680
  %6828 = vmatpush1.msra.mxu0 %v679
  %6829 = vmatprep.subr.mxu0 %v684
  %6830 = vmatpush1.msra.mxu0 %v683
  %6831 = vmatprep.subr.mxu0 %v688
  %6832 = vmatpush1.msra.mxu0 %v687
  %6833 = vmatprep.subr.mxu0 %v692
  %6834 = vmatpush1.msra.mxu0 %v691
  %6835 = vmatprep.subr.mxu0 %v696
  %6836 = vmatpush1.msra.mxu0 %v695
  %6837 = vmatprep.subr.mxu0 %v700
  %6838 = vmatpush1.msra.mxu0 %v699
  %6839 = vmatprep.subr.mxu0 %v704
  %6840 = vmatpush1.msra.mxu0 %v703
  %6841 = vmatprep.subr.mxu0 %v708
  %6842 = vmatpush1.msra.mxu0 %v707
  %6843 = vmatprep.subr.mxu0 %v712
  %6844 = vmatpush1.msra.mxu0 %v711
  %6845 = vmatprep.subr.mxu0 %v716
  %6846 = vmatpush1.msra.mxu0 %v715
  %6847 = vmatprep.subr.mxu0 %v720
  %6848 = vmatpush1.msra.mxu0 %v719
  %6849 = vmatprep.subr.mxu0 %v724
  %6850 = vmatpush1.msra.mxu0 %v723
  %6851 = vmatprep.subr.mxu0 %v728
  %6852 = vmatpush1.msra.mxu0 %v727
  %6853 = vmatprep.subr.mxu0 %v732
  %6854 = vmatpush1.msra.mxu0 %v731
  %6855 = vmatprep.subr.mxu0 %v736
  %6856 = vmatpush1.msra.mxu0 %v735
  %6857 = vmatprep.subr.mxu0 %v740
  %6858 = vmatpush1.msra.mxu0 %v739
  %6859 = vmatprep.subr.mxu0 %v744
  %6860 = vmatpush1.msra.mxu0 %v743
  %6861 = vmatprep.subr.mxu0 %v748
  %6862 = vmatpush1.msra.mxu0 %v747
  %6863 = vmatprep.subr.mxu0 %v752
  %6864 = vmatpush1.msra.mxu0 %v751
  %6865 = vmatprep.subr.mxu0 %v756
  %6866 = vmatpush1.msra.mxu0 %v755
  %6867 = vmatprep.subr.mxu0 %v760
  %6868 = vmatpush1.msra.mxu0 %v759
  %6869 = vmatprep.subr.mxu0 %v764
  %6870 = vmatpush1.msra.mxu0 %v763
  %6871 = vmatprep.subr.mxu0 %v768
  %6872 = vmatpush1.msra.mxu0 %v767
  %6873 = vmatprep.subr.mxu0 %v772
  %6874 = vmatpush1.msra.mxu0 %v771
  %6875 = vmatprep.subr.mxu0 %v776
  %6876 = vmatpush1.msra.mxu0 %v775
  %6877 = vmatprep.subr.mxu0 %v780
  %6878 = vmatpush1.msra.mxu0 %v779
  %6879 = vmatprep.subr.mxu0 %v784
  %6880 = vmatpush1.msra.mxu0 %v783
  %6881 = vmatprep.mubr.f32.mxu0 %v6672
  %6882 = vmatmul.mubr.f32.gmra.mrb[0].mxu0 %v6671
  %v6883 = vpop.f32.mrb[0].mxu0
  %v6884 = vadd.f32 %v617, %v6883
  %v6885 = vpop.f32.mrb[0].mxu0
  %v6886 = vadd.f32 %v619, %v6885
  %6887 = vdwg.mxu0
  %6888 = vmatprep.subr.mxu0 %v788
  %6889 = vmatpush1.msra.mxu0 %v787
  %6890 = vmatprep.subr.mxu0 %v792
  %6891 = vmatpush1.msra.mxu0 %v791
  %6892 = vmatprep.subr.mxu0 %v796
  %6893 = vmatpush1.msra.mxu0 %v795
  %6894 = vmatprep.subr.mxu0 %v800
  %6895 = vmatpush1.msra.mxu0 %v799
  %6896 = vmatprep.subr.mxu0 %v804
  %6897 = vmatpush1.msra.mxu0 %v803
  %6898 = vmatprep.subr.mxu0 %v808
  %6899 = vmatpush1.msra.mxu0 %v807
  %6900 = vmatprep.subr.mxu0 %v812
  %6901 = vmatpush1.msra.mxu0 %v811
  %6902 = vmatprep.subr.mxu0 %v816
  %6903 = vmatpush1.msra.mxu0 %v815
  %6904 = vmatprep.subr.mxu0 %v820
  %6905 = vmatpush1.msra.mxu0 %v819
  %6906 = vmatprep.subr.mxu0 %v824
  %6907 = vmatpush1.msra.mxu0 %v823
  %6908 = vmatprep.subr.mxu0 %v828
  %6909 = vmatpush1.msra.mxu0 %v827
  %6910 = vmatprep.subr.mxu0 %v832
  %6911 = vmatpush1.msra.mxu0 %v831
  %6912 = vmatprep.subr.mxu0 %v836
  %6913 = vmatpush1.msra.mxu0 %v835
  %6914 = vmatprep.subr.mxu0 %v840
  %6915 = vmatpush1.msra.mxu0 %v839
  %6916 = vmatprep.subr.mxu0 %v844
  %6917 = vmatpush1.msra.mxu0 %v843
  %6918 = vmatprep.subr.mxu0 %v848
  %6919 = vmatpush1.msra.mxu0 %v847
  %6920 = vmatprep.subr.mxu0 %v852
  %6921 = vmatpush1.msra.mxu0 %v851
  %6922 = vmatprep.subr.mxu0 %v856
  %6923 = vmatpush1.msra.mxu0 %v855
  %6924 = vmatprep.subr.mxu0 %v860
  %6925 = vmatpush1.msra.mxu0 %v859
  %6926 = vmatprep.subr.mxu0 %v864
  %6927 = vmatpush1.msra.mxu0 %v863
  %6928 = vmatprep.subr.mxu0 %v868
  %6929 = vmatpush1.msra.mxu0 %v867
  %6930 = vmatprep.subr.mxu0 %v872
  %6931 = vmatpush1.msra.mxu0 %v871
  %6932 = vmatprep.subr.mxu0 %v876
  %6933 = vmatpush1.msra.mxu0 %v875
  %6934 = vmatprep.subr.mxu0 %v880
  %6935 = vmatpush1.msra.mxu0 %v879
  %6936 = vmatprep.subr.mxu0 %v884
  %6937 = vmatpush1.msra.mxu0 %v883
  %6938 = vmatprep.subr.mxu0 %v888
  %6939 = vmatpush1.msra.mxu0 %v887
  %6940 = vmatprep.subr.mxu0 %v892
  %6941 = vmatpush1.msra.mxu0 %v891
  %6942 = vmatprep.subr.mxu0 %v896
  %6943 = vmatpush1.msra.mxu0 %v895
  %6944 = vmatprep.subr.mxu0 %v900
  %6945 = vmatpush1.msra.mxu0 %v899
  %6946 = vmatprep.subr.mxu0 %v904
  %6947 = vmatpush1.msra.mxu0 %v903
  %6948 = vmatprep.subr.mxu0 %v908
  %6949 = vmatpush1.msra.mxu0 %v907
  %6950 = vmatprep.subr.mxu0 %v912
  %6951 = vmatpush1.msra.mxu0 %v911
  %6952 = vmatprep.mubr.f32.mxu0 %v6674
  %6953 = vmatmul.mubr.f32.gmra.mrb[0].mxu0 %v6673
  %v6954 = vpop.f32.mrb[0].mxu0
  %v6955 = vadd.f32 %v6884, %v6954
  %v6956 = vpop.f32.mrb[0].mxu0
  %v6957 = vadd.f32 %v6886, %v6956
  %6958 = vdwg.mxu0
  %v6959 = vtanh.pop %v6813
  %v6960 = vtanh.pop %v6815
  %v6961 = vtanh.pop %v6955
  %v6962 = vtanh.pop %v6957
  %6963 = vmatprep.subr.mxu0 %v658
  %6964 = vmatpush1.msra.mxu0 %v657
  %6965 = vmatprep.subr.mxu0 %v662
  %6966 = vmatpush1.msra.mxu0 %v661
  %6967 = vmatprep.subr.mxu0 %v666
  %6968 = vmatpush1.msra.mxu0 %v665
  %6969 = vmatprep.subr.mxu0 %v670
  %6970 = vmatpush1.msra.mxu0 %v669
  %6971 = vmatprep.subr.mxu0 %v674
  %6972 = vmatpush1.msra.mxu0 %v673
  %6973 = vmatprep.subr.mxu0 %v678
  %6974 = vmatpush1.msra.mxu0 %v677
  %6975 = vmatprep.subr.mxu0 %v682
  %6976 = vmatpush1.msra.mxu0 %v681
  %6977 = vmatprep.subr.mxu0 %v686
  %6978 = vmatpush1.msra.mxu0 %v685
  %6979 = vmatprep.subr.mxu0 %v690
  %6980 = vmatpush1.msra.mxu0 %v689
  %6981 = vmatprep.subr.mxu0 %v694
  %6982 = vmatpush1.msra.mxu0 %v693
  %6983 = vmatprep.subr.mxu0 %v698
  %6984 = vmatpush1.msra.mxu0 %v697
  %6985 = vmatprep.subr.mxu0 %v702
  %6986 = vmatpush1.msra.mxu0 %v701
  %6987 = vmatprep.subr.mxu0 %v706
  %6988 = vmatpush1.msra.mxu0 %v705
  %6989 = vmatprep.subr.mxu0 %v710
  %6990 = vmatpush1.msra.mxu0 %v709
  %6991 = vmatprep.subr.mxu0 %v714
  %6992 = vmatpush1.msra.mxu0 %v713
  %6993 = vmatprep.subr.mxu0 %v718
  %6994 = vmatpush1.msra.mxu0 %v717
  %6995 = vmatprep.subr.mxu0 %v722
  %6996 = vmatpush1.msra.mxu0 %v721
  %6997 = vmatprep.subr.mxu0 %v726
  %6998 = vmatpush1.msra.mxu0 %v725
  %6999 = vmatprep.subr.mxu0 %v730
  %7000 = vmatpush1.msra.mxu0 %v729
  %7001 = vmatprep.subr.mxu0 %v734
  %7002 = vmatpush1.msra.mxu0 %v733
  %7003 = vmatprep.subr.mxu0 %v738
  %7004 = vmatpush1.msra.mxu0 %v737
  %7005 = vmatprep.subr.mxu0 %v742
  %7006 = vmatpush1.msra.mxu0 %v741
  %7007 = vmatprep.subr.mxu0 %v746
  %7008 = vmatpush1.msra.mxu0 %v745
  %7009 = vmatprep.subr.mxu0 %v750
  %7010 = vmatpush1.msra.mxu0 %v749
  %7011 = vmatprep.subr.mxu0 %v754
  %7012 = vmatpush1.msra.mxu0 %v753
  %7013 = vmatprep.subr.mxu0 %v758
  %7014 = vmatpush1.msra.mxu0 %v757
  %7015 = vmatprep.subr.mxu0 %v762
  %7016 = vmatpush1.msra.mxu0 %v761
  %7017 = vmatprep.subr.mxu0 %v766
  %7018 = vmatpush1.msra.mxu0 %v765
  %7019 = vmatprep.subr.mxu0 %v770
  %7020 = vmatpush1.msra.mxu0 %v769
  %7021 = vmatprep.subr.mxu0 %v774
  %7022 = vmatpush1.msra.mxu0 %v773
  %7023 = vmatprep.subr.mxu0 %v778
  %7024 = vmatpush1.msra.mxu0 %v777
  %7025 = vmatprep.subr.mxu0 %v782
  %7026 = vmatpush1.msra.mxu0 %v781
  %7027 = vmatprep.mubr.f32.mxu0 %v6960
  %7028 = vmatmul.mubr.f32.gmra.mrb[0].mxu0 %v6959
  %v7029 = vpop.f32.mrb[0].mxu0
  %v7030 = vadd.f32 %v392, %v7029
  %v7031 = vpop.f32.mrb[0].mxu0
  %v7032 = vadd.f32 %v394, %v7031
  %7033 = vdwg.mxu0
  %7034 = vmatprep.subr.mxu0 %v786
  %7035 = vmatpush1.msra.mxu0 %v785
  %7036 = vmatprep.subr.mxu0 %v790
  %7037 = vmatpush1.msra.mxu0 %v789
  %7038 = vmatprep.subr.mxu0 %v794
  %7039 = vmatpush1.msra.mxu0 %v793
  %7040 = vmatprep.subr.mxu0 %v798
  %7041 = vmatpush1.msra.mxu0 %v797
  %7042 = vmatprep.subr.mxu0 %v802
  %7043 = vmatpush1.msra.mxu0 %v801
  %7044 = vmatprep.subr.mxu0 %v806
  %7045 = vmatpush1.msra.mxu0 %v805
  %7046 = vmatprep.subr.mxu0 %v810
  %7047 = vmatpush1.msra.mxu0 %v809
  %7048 = vmatprep.subr.mxu0 %v814
  %7049 = vmatpush1.msra.mxu0 %v813
  %7050 = vmatprep.subr.mxu0 %v818
  %7051 = vmatpush1.msra.mxu0 %v817
  %7052 = vmatprep.subr.mxu0 %v822
  %7053 = vmatpush1.msra.mxu0 %v821
  %7054 = vmatprep.subr.mxu0 %v826
  %7055 = vmatpush1.msra.mxu0 %v825
  %7056 = vmatprep.subr.mxu0 %v830
  %7057 = vmatpush1.msra.mxu0 %v829
  %7058 = vmatprep.subr.mxu0 %v834
  %7059 = vmatpush1.msra.mxu0 %v833
  %7060 = vmatprep.subr.mxu0 %v838
  %7061 = vmatpush1.msra.mxu0 %v837
  %7062 = vmatprep.subr.mxu0 %v842
  %7063 = vmatpush1.msra.mxu0 %v841
  %7064 = vmatprep.subr.mxu0 %v846
  %7065 = vmatpush1.msra.mxu0 %v845
  %7066 = vmatprep.subr.mxu0 %v850
  %7067 = vmatpush1.msra.mxu0 %v849
  %7068 = vmatprep.subr.mxu0 %v854
  %7069 = vmatpush1.msra.mxu0 %v853
  %7070 = vmatprep.subr.mxu0 %v858
  %7071 = vmatpush1.msra.mxu0 %v857
  %7072 = vmatprep.subr.mxu0 %v862
  %7073 = vmatpush1.msra.mxu0 %v861
  %7074 = vmatprep.subr.mxu0 %v866
  %7075 = vmatpush1.msra.mxu0 %v865
  %7076 = vmatprep.subr.mxu0 %v870
  %7077 = vmatpush1.msra.mxu0 %v869
  %7078 = vmatprep.subr.mxu0 %v874
  %7079 = vmatpush1.msra.mxu0 %v873
  %7080 = vmatprep.subr.mxu0 %v878
  %7081 = vmatpush1.msra.mxu0 %v877
  %7082 = vmatprep.subr.mxu0 %v882
  %7083 = vmatpush1.msra.mxu0 %v881
  %7084 = vmatprep.subr.mxu0 %v886
  %7085 = vmatpush1.msra.mxu0 %v885
  %7086 = vmatprep.subr.mxu0 %v890
  %7087 = vmatpush1.msra.mxu0 %v889
  %7088 = vmatprep.subr.mxu0 %v894
  %7089 = vmatpush1.msra.mxu0 %v893
  %7090 = vmatprep.subr.mxu0 %v898
  %7091 = vmatpush1.msra.mxu0 %v897
  %7092 = vmatprep.subr.mxu0 %v902
  %7093 = vmatpush1.msra.mxu0 %v901
  %7094 = vmatprep.subr.mxu0 %v906
  %7095 = vmatpush1.msra.mxu0 %v905
  %7096 = vmatprep.subr.mxu0 %v910
  %7097 = vmatpush1.msra.mxu0 %v909
  %7098 = vmatprep.mubr.f32.mxu0 %v6962
  %7099 = vmatmul.mubr.f32.gmra.mrb[0].mxu0 %v6961
  %v7100 = vpop.f32.mrb[0].mxu0
  %v7101 = vadd.f32 %v7030, %v7100
  %v7102 = vpop.f32.mrb[0].mxu0
  %v7103 = vadd.f32 %v7032, %v7102
  %7104 = vdwg.mxu0
  %7105 = vmatprep.subr.mxu0 %v660
  %7106 = vmatpush1.msra.mxu0 %v659
  %7107 = vmatprep.subr.mxu0 %v664
  %7108 = vmatpush1.msra.mxu0 %v663
  %7109 = vmatprep.subr.mxu0 %v668
  %7110 = vmatpush1.msra.mxu0 %v667
  %7111 = vmatprep.subr.mxu0 %v672
  %7112 = vmatpush1.msra.mxu0 %v671
  %7113 = vmatprep.subr.mxu0 %v676
  %7114 = vmatpush1.msra.mxu0 %v675
  %7115 = vmatprep.subr.mxu0 %v680
  %7116 = vmatpush1.msra.mxu0 %v679
  %7117 = vmatprep.subr.mxu0 %v684
  %7118 = vmatpush1.msra.mxu0 %v683
  %7119 = vmatprep.subr.mxu0 %v688
  %7120 = vmatpush1.msra.mxu0 %v687
  %7121 = vmatprep.subr.mxu0 %v692
  %7122 = vmatpush1.msra.mxu0 %v691
  %7123 = vmatprep.subr.mxu0 %v696
  %7124 = vmatpush1.msra.mxu0 %v695
  %7125 = vmatprep.subr.mxu0 %v700
  %7126 = vmatpush1.msra.mxu0 %v699
  %7127 = vmatprep.subr.mxu0 %v704
  %7128 = vmatpush1.msra.mxu0 %v703
  %7129 = vmatprep.subr.mxu0 %v708
  %7130 = vmatpush1.msra.mxu0 %v707
  %7131 = vmatprep.subr.mxu0 %v712
  %7132 = vmatpush1.msra.mxu0 %v711
  %7133 = vmatprep.subr.mxu0 %v716
  %7134 = vmatpush1.msra.mxu0 %v715
  %7135 = vmatprep.subr.mxu0 %v720
  %7136 = vmatpush1.msra.mxu0 %v719
  %7137 = vmatprep.subr.mxu0 %v724
  %7138 = vmatpush1.msra.mxu0 %v723
  %7139 = vmatprep.subr.mxu0 %v728
  %7140 = vmatpush1.msra.mxu0 %v727
  %7141 = vmatprep.subr.mxu0 %v732
  %7142 = vmatpush1.msra.mxu0 %v731
  %7143 = vmatprep.subr.mxu0 %v736
  %7144 = vmatpush1.msra.mxu0 %v735
  %7145 = vmatprep.subr.mxu0 %v740
  %7146 = vmatpush1.msra.mxu0 %v739
  %7147 = vmatprep.subr.mxu0 %v744
  %7148 = vmatpush1.msra.mxu0 %v743
  %7149 = vmatprep.subr.mxu0 %v748
  %7150 = vmatpush1.msra.mxu0 %v747
  %7151 = vmatprep.subr.mxu0 %v752
  %7152 = vmatpush1.msra.mxu0 %v751
  %7153 = vmatprep.subr.mxu0 %v756
  %7154 = vmatpush1.msra.mxu0 %v755
  %7155 = vmatprep.subr.mxu0 %v760
  %7156 = vmatpush1.msra.mxu0 %v759
  %7157 = vmatprep.subr.mxu0 %v764
  %7158 = vmatpush1.msra.mxu0 %v763
  %7159 = vmatprep.subr.mxu0 %v768
  %7160 = vmatpush1.msra.mxu0 %v767
  %7161 = vmatprep.subr.mxu0 %v772
  %7162 = vmatpush1.msra.mxu0 %v771
  %7163 = vmatprep.subr.mxu0 %v776
  %7164 = vmatpush1.msra.mxu0 %v775
  %7165 = vmatprep.subr.mxu0 %v780
  %7166 = vmatpush1.msra.mxu0 %v779
  %7167 = vmatprep.subr.mxu0 %v784
  %7168 = vmatpush1.msra.mxu0 %v783
  %7169 = vmatprep.mubr.f32.mxu0 %v6960
  %7170 = vmatmul.mubr.f32.gmra.mrb[0].mxu0 %v6959
  %v7171 = vpop.f32.mrb[0].mxu0
  %v7172 = vadd.f32 %v623, %v7171
  %v7173 = vpop.f32.mrb[0].mxu0
  %v7174 = vadd.f32 %v625, %v7173
  %7175 = vdwg.mxu0
  %7176 = vmatprep.subr.mxu0 %v788
  %7177 = vmatpush1.msra.mxu0 %v787
  %7178 = vmatprep.subr.mxu0 %v792
  %7179 = vmatpush1.msra.mxu0 %v791
  %7180 = vmatprep.subr.mxu0 %v796
  %7181 = vmatpush1.msra.mxu0 %v795
  %7182 = vmatprep.subr.mxu0 %v800
  %7183 = vmatpush1.msra.mxu0 %v799
  %7184 = vmatprep.subr.mxu0 %v804
  %7185 = vmatpush1.msra.mxu0 %v803
  %7186 = vmatprep.subr.mxu0 %v808
  %7187 = vmatpush1.msra.mxu0 %v807
  %7188 = vmatprep.subr.mxu0 %v812
  %7189 = vmatpush1.msra.mxu0 %v811
  %7190 = vmatprep.subr.mxu0 %v816
  %7191 = vmatpush1.msra.mxu0 %v815
  %7192 = vmatprep.subr.mxu0 %v820
  %7193 = vmatpush1.msra.mxu0 %v819
  %7194 = vmatprep.subr.mxu0 %v824
  %7195 = vmatpush1.msra.mxu0 %v823
  %7196 = vmatprep.subr.mxu0 %v828
  %7197 = vmatpush1.msra.mxu0 %v827
  %7198 = vmatprep.subr.mxu0 %v832
  %7199 = vmatpush1.msra.mxu0 %v831
  %7200 = vmatprep.subr.mxu0 %v836
  %7201 = vmatpush1.msra.mxu0 %v835
  %7202 = vmatprep.subr.mxu0 %v840
  %7203 = vmatpush1.msra.mxu0 %v839
  %7204 = vmatprep.subr.mxu0 %v844
  %7205 = vmatpush1.msra.mxu0 %v843
  %7206 = vmatprep.subr.mxu0 %v848
  %7207 = vmatpush1.msra.mxu0 %v847
  %7208 = vmatprep.subr.mxu0 %v852
  %7209 = vmatpush1.msra.mxu0 %v851
  %7210 = vmatprep.subr.mxu0 %v856
  %7211 = vmatpush1.msra.mxu0 %v855
  %7212 = vmatprep.subr.mxu0 %v860
  %7213 = vmatpush1.msra.mxu0 %v859
  %7214 = vmatprep.subr.mxu0 %v864
  %7215 = vmatpush1.msra.mxu0 %v863
  %7216 = vmatprep.subr.mxu0 %v868
  %7217 = vmatpush1.msra.mxu0 %v867
  %7218 = vmatprep.subr.mxu0 %v872
  %7219 = vmatpush1.msra.mxu0 %v871
  %7220 = vmatprep.subr.mxu0 %v876
  %7221 = vmatpush1.msra.mxu0 %v875
  %7222 = vmatprep.subr.mxu0 %v880
  %7223 = vmatpush1.msra.mxu0 %v879
  %7224 = vmatprep.subr.mxu0 %v884
  %7225 = vmatpush1.msra.mxu0 %v883
  %7226 = vmatprep.subr.mxu0 %v888
  %7227 = vmatpush1.msra.mxu0 %v887
  %7228 = vmatprep.subr.mxu0 %v892
  %7229 = vmatpush1.msra.mxu0 %v891
  %7230 = vmatprep.subr.mxu0 %v896
  %7231 = vmatpush1.msra.mxu0 %v895
  %7232 = vmatprep.subr.mxu0 %v900
  %7233 = vmatpush1.msra.mxu0 %v899
  %7234 = vmatprep.subr.mxu0 %v904
  %7235 = vmatpush1.msra.mxu0 %v903
  %7236 = vmatprep.subr.mxu0 %v908
  %7237 = vmatpush1.msra.mxu0 %v907
  %7238 = vmatprep.subr.mxu0 %v912
  %7239 = vmatpush1.msra.mxu0 %v911
  %7240 = vmatprep.mubr.f32.mxu0 %v6962
  %7241 = vmatmul.mubr.f32.gmra.mrb[0].mxu0 %v6961
  %v7242 = vpop.f32.mrb[0].mxu0
  %v7243 = vadd.f32 %v7172, %v7242
  %v7244 = vpop.f32.mrb[0].mxu0
  %v7245 = vadd.f32 %v7174, %v7244
  %7246 = vdwg.mxu0
  %v7247 = vtanh.pop %v7101
  %v7248 = vtanh.pop %v7103
  %v7249 = vtanh.pop %v7243
  %v7250 = vtanh.pop %v7245
  %7251 = vmatprep.subr.mxu0 %v658
  %7252 = vmatpush1.msra.mxu0 %v657
  %7253 = vmatprep.subr.mxu0 %v662
  %7254 = vmatpush1.msra.mxu0 %v661
  %7255 = vmatprep.subr.mxu0 %v666
  %7256 = vmatpush1.msra.mxu0 %v665
  %7257 = vmatprep.subr.mxu0 %v670
  %7258 = vmatpush1.msra.mxu0 %v669
  %7259 = vmatprep.subr.mxu0 %v674
  %7260 = vmatpush1.msra.mxu0 %v673
  %7261 = vmatprep.subr.mxu0 %v678
  %7262 = vmatpush1.msra.mxu0 %v677
  %7263 = vmatprep.subr.mxu0 %v682
  %7264 = vmatpush1.msra.mxu0 %v681
  %7265 = vmatprep.subr.mxu0 %v686
  %7266 = vmatpush1.msra.mxu0 %v685
  %7267 = vmatprep.subr.mxu0 %v690
  %7268 = vmatpush1.msra.mxu0 %v689
  %7269 = vmatprep.subr.mxu0 %v694
  %7270 = vmatpush1.msra.mxu0 %v693
  %7271 = vmatprep.subr.mxu0 %v698
  %7272 = vmatpush1.msra.mxu0 %v697
  %7273 = vmatprep.subr.mxu0 %v702
  %7274 = vmatpush1.msra.mxu0 %v701
  %7275 = vmatprep.subr.mxu0 %v706
  %7276 = vmatpush1.msra.mxu0 %v705
  %7277 = vmatprep.subr.mxu0 %v710
  %7278 = vmatpush1.msra.mxu0 %v709
  %7279 = vmatprep.subr.mxu0 %v714
  %7280 = vmatpush1.msra.mxu0 %v713
  %7281 = vmatprep.subr.mxu0 %v718
  %7282 = vmatpush1.msra.mxu0 %v717
  %7283 = vmatprep.subr.mxu0 %v722
  %7284 = vmatpush1.msra.mxu0 %v721
  %7285 = vmatprep.subr.mxu0 %v726
  %7286 = vmatpush1.msra.mxu0 %v725
  %7287 = vmatprep.subr.mxu0 %v730
  %7288 = vmatpush1.msra.mxu0 %v729
  %7289 = vmatprep.subr.mxu0 %v734
  %7290 = vmatpush1.msra.mxu0 %v733
  %7291 = vmatprep.subr.mxu0 %v738
  %7292 = vmatpush1.msra.mxu0 %v737
  %7293 = vmatprep.subr.mxu0 %v742
  %7294 = vmatpush1.msra.mxu0 %v741
  %7295 = vmatprep.subr.mxu0 %v746
  %7296 = vmatpush1.msra.mxu0 %v745
  %7297 = vmatprep.subr.mxu0 %v750
  %7298 = vmatpush1.msra.mxu0 %v749
  %7299 = vmatprep.subr.mxu0 %v754
  %7300 = vmatpush1.msra.mxu0 %v753
  %7301 = vmatprep.subr.mxu0 %v758
  %7302 = vmatpush1.msra.mxu0 %v757
  %7303 = vmatprep.subr.mxu0 %v762
  %7304 = vmatpush1.msra.mxu0 %v761
  %7305 = vmatprep.subr.mxu0 %v766
  %7306 = vmatpush1.msra.mxu0 %v765
  %7307 = vmatprep.subr.mxu0 %v770
  %7308 = vmatpush1.msra.mxu0 %v769
  %7309 = vmatprep.subr.mxu0 %v774
  %7310 = vmatpush1.msra.mxu0 %v773
  %7311 = vmatprep.subr.mxu0 %v778
  %7312 = vmatpush1.msra.mxu0 %v777
  %7313 = vmatprep.subr.mxu0 %v782
  %7314 = vmatpush1.msra.mxu0 %v781
  %7315 = vmatprep.mubr.f32.mxu0 %v7248
  %7316 = vmatmul.mubr.f32.gmra.mrb[0].mxu0 %v7247
  %v7317 = vpop.f32.mrb[0].mxu0
  %v7318 = vadd.f32 %v398, %v7317
  %v7319 = vpop.f32.mrb[0].mxu0
  %v7320 = vadd.f32 %v400, %v7319
  %7321 = vdwg.mxu0
  %7322 = vmatprep.subr.mxu0 %v786
  %7323 = vmatpush1.msra.mxu0 %v785
  %7324 = vmatprep.subr.mxu0 %v790
  %7325 = vmatpush1.msra.mxu0 %v789
  %7326 = vmatprep.subr.mxu0 %v794
  %7327 = vmatpush1.msra.mxu0 %v793
  %7328 = vmatprep.subr.mxu0 %v798
  %7329 = vmatpush1.msra.mxu0 %v797
  %7330 = vmatprep.subr.mxu0 %v802
  %7331 = vmatpush1.msra.mxu0 %v801
  %7332 = vmatprep.subr.mxu0 %v806
  %7333 = vmatpush1.msra.mxu0 %v805
  %7334 = vmatprep.subr.mxu0 %v810
  %7335 = vmatpush1.msra.mxu0 %v809
  %7336 = vmatprep.subr.mxu0 %v814
  %7337 = vmatpush1.msra.mxu0 %v813
  %7338 = vmatprep.subr.mxu0 %v818
  %7339 = vmatpush1.msra.mxu0 %v817
  %7340 = vmatprep.subr.mxu0 %v822
  %7341 = vmatpush1.msra.mxu0 %v821
  %7342 = vmatprep.subr.mxu0 %v826
  %7343 = vmatpush1.msra.mxu0 %v825
  %7344 = vmatprep.subr.mxu0 %v830
  %7345 = vmatpush1.msra.mxu0 %v829
  %7346 = vmatprep.subr.mxu0 %v834
  %7347 = vmatpush1.msra.mxu0 %v833
  %7348 = vmatprep.subr.mxu0 %v838
  %7349 = vmatpush1.msra.mxu0 %v837
  %7350 = vmatprep.subr.mxu0 %v842
  %7351 = vmatpush1.msra.mxu0 %v841
  %7352 = vmatprep.subr.mxu0 %v846
  %7353 = vmatpush1.msra.mxu0 %v845
  %7354 = vmatprep.subr.mxu0 %v850
  %7355 = vmatpush1.msra.mxu0 %v849
  %7356 = vmatprep.subr.mxu0 %v854
  %7357 = vmatpush1.msra.mxu0 %v853
  %7358 = vmatprep.subr.mxu0 %v858
  %7359 = vmatpush1.msra.mxu0 %v857
  %7360 = vmatprep.subr.mxu0 %v862
  %7361 = vmatpush1.msra.mxu0 %v861
  %7362 = vmatprep.subr.mxu0 %v866
  %7363 = vmatpush1.msra.mxu0 %v865
  %7364 = vmatprep.subr.mxu0 %v870
  %7365 = vmatpush1.msra.mxu0 %v869
  %7366 = vmatprep.subr.mxu0 %v874
  %7367 = vmatpush1.msra.mxu0 %v873
  %7368 = vmatprep.subr.mxu0 %v878
  %7369 = vmatpush1.msra.mxu0 %v877
  %7370 = vmatprep.subr.mxu0 %v882
  %7371 = vmatpush1.msra.mxu0 %v881
  %7372 = vmatprep.subr.mxu0 %v886
  %7373 = vmatpush1.msra.mxu0 %v885
  %7374 = vmatprep.subr.mxu0 %v890
  %7375 = vmatpush1.msra.mxu0 %v889
  %7376 = vmatprep.subr.mxu0 %v894
  %7377 = vmatpush1.msra.mxu0 %v893
  %7378 = vmatprep.subr.mxu0 %v898
  %7379 = vmatpush1.msra.mxu0 %v897
  %7380 = vmatprep.subr.mxu0 %v902
  %7381 = vmatpush1.msra.mxu0 %v901
  %7382 = vmatprep.subr.mxu0 %v906
  %7383 = vmatpush1.msra.mxu0 %v905
  %7384 = vmatprep.subr.mxu0 %v910
  %7385 = vmatpush1.msra.mxu0 %v909
  %7386 = vmatprep.mubr.f32.mxu0 %v7250
  %7387 = vmatmul.mubr.f32.gmra.mrb[0].mxu0 %v7249
  %v7388 = vpop.f32.mrb[0].mxu0
  %v7389 = vadd.f32 %v7318, %v7388
  %v7390 = vpop.f32.mrb[0].mxu0
  %v7391 = vadd.f32 %v7320, %v7390
  %7392 = vdwg.mxu0
  %7393 = vmatprep.subr.mxu0 %v660
  %7394 = vmatpush1.msra.mxu0 %v659
  %7395 = vmatprep.subr.mxu0 %v664
  %7396 = vmatpush1.msra.mxu0 %v663
  %7397 = vmatprep.subr.mxu0 %v668
  %7398 = vmatpush1.msra.mxu0 %v667
  %7399 = vmatprep.subr.mxu0 %v672
  %7400 = vmatpush1.msra.mxu0 %v671
  %7401 = vmatprep.subr.mxu0 %v676
  %7402 = vmatpush1.msra.mxu0 %v675
  %7403 = vmatprep.subr.mxu0 %v680
  %7404 = vmatpush1.msra.mxu0 %v679
  %7405 = vmatprep.subr.mxu0 %v684
  %7406 = vmatpush1.msra.mxu0 %v683
  %7407 = vmatprep.subr.mxu0 %v688
  %7408 = vmatpush1.msra.mxu0 %v687
  %7409 = vmatprep.subr.mxu0 %v692
  %7410 = vmatpush1.msra.mxu0 %v691
  %7411 = vmatprep.subr.mxu0 %v696
  %7412 = vmatpush1.msra.mxu0 %v695
  %7413 = vmatprep.subr.mxu0 %v700
  %7414 = vmatpush1.msra.mxu0 %v699
  %7415 = vmatprep.subr.mxu0 %v704
  %7416 = vmatpush1.msra.mxu0 %v703
  %7417 = vmatprep.subr.mxu0 %v708
  %7418 = vmatpush1.msra.mxu0 %v707
  %7419 = vmatprep.subr.mxu0 %v712
  %7420 = vmatpush1.msra.mxu0 %v711
  %7421 = vmatprep.subr.mxu0 %v716
  %7422 = vmatpush1.msra.mxu0 %v715
  %7423 = vmatprep.subr.mxu0 %v720
  %7424 = vmatpush1.msra.mxu0 %v719
  %7425 = vmatprep.subr.mxu0 %v724
  %7426 = vmatpush1.msra.mxu0 %v723
  %7427 = vmatprep.subr.mxu0 %v728
  %7428 = vmatpush1.msra.mxu0 %v727
  %7429 = vmatprep.subr.mxu0 %v732
  %7430 = vmatpush1.msra.mxu0 %v731
  %7431 = vmatprep.subr.mxu0 %v736
  %7432 = vmatpush1.msra.mxu0 %v735
  %7433 = vmatprep.subr.mxu0 %v740
  %7434 = vmatpush1.msra.mxu0 %v739
  %7435 = vmatprep.subr.mxu0 %v744
  %7436 = vmatpush1.msra.mxu0 %v743
  %7437 = vmatprep.subr.mxu0 %v748
  %7438 = vmatpush1.msra.mxu0 %v747
  %7439 = vmatprep.subr.mxu0 %v752
  %7440 = vmatpush1.msra.mxu0 %v751
  %7441 = vmatprep.subr.mxu0 %v756
  %7442 = vmatpush1.msra.mxu0 %v755
  %7443 = vmatprep.subr.mxu0 %v760
  %7444 = vmatpush1.msra.mxu0 %v759
  %7445 = vmatprep.subr.mxu0 %v764
  %7446 = vmatpush1.msra.mxu0 %v763
  %7447 = vmatprep.subr.mxu0 %v768
  %7448 = vmatpush1.msra.mxu0 %v767
  %7449 = vmatprep.subr.mxu0 %v772
  %7450 = vmatpush1.msra.mxu0 %v771
  %7451 = vmatprep.subr.mxu0 %v776
  %7452 = vmatpush1.msra.mxu0 %v775
  %7453 = vmatprep.subr.mxu0 %v780
  %7454 = vmatpush1.msra.mxu0 %v779
  %7455 = vmatprep.subr.mxu0 %v784
  %7456 = vmatpush1.msra.mxu0 %v783
  %7457 = vmatprep.mubr.f32.mxu0 %v7248
  %7458 = vmatmul.mubr.f32.gmra.mrb[0].mxu0 %v7247
  %v7459 = vpop.f32.mrb[0].mxu0
  %v7460 = vadd.f32 %v629, %v7459
  %v7461 = vpop.f32.mrb[0].mxu0
  %v7462 = vadd.f32 %v631, %v7461
  %7463 = vdwg.mxu0
  %7464 = vmatprep.subr.mxu0 %v788
  %7465 = vmatpush1.msra.mxu0 %v787
  %7466 = vmatprep.subr.mxu0 %v792
  %7467 = vmatpush1.msra.mxu0 %v791
  %7468 = vmatprep.subr.mxu0 %v796
  %7469 = vmatpush1.msra.mxu0 %v795
  %7470 = vmatprep.subr.mxu0 %v800
  %7471 = vmatpush1.msra.mxu0 %v799
  %7472 = vmatprep.subr.mxu0 %v804
  %7473 = vmatpush1.msra.mxu0 %v803
  %7474 = vmatprep.subr.mxu0 %v808
  %7475 = vmatpush1.msra.mxu0 %v807
  %7476 = vmatprep.subr.mxu0 %v812
  %7477 = vmatpush1.msra.mxu0 %v811
  %7478 = vmatprep.subr.mxu0 %v816
  %7479 = vmatpush1.msra.mxu0 %v815
  %7480 = vmatprep.subr.mxu0 %v820
  %7481 = vmatpush1.msra.mxu0 %v819
  %7482 = vmatprep.subr.mxu0 %v824
  %7483 = vmatpush1.msra.mxu0 %v823
  %7484 = vmatprep.subr.mxu0 %v828
  %7485 = vmatpush1.msra.mxu0 %v827
  %7486 = vmatprep.subr.mxu0 %v832
  %7487 = vmatpush1.msra.mxu0 %v831
  %7488 = vmatprep.subr.mxu0 %v836
  %7489 = vmatpush1.msra.mxu0 %v835
  %7490 = vmatprep.subr.mxu0 %v840
  %7491 = vmatpush1.msra.mxu0 %v839
  %7492 = vmatprep.subr.mxu0 %v844
  %7493 = vmatpush1.msra.mxu0 %v843
  %7494 = vmatprep.subr.mxu0 %v848
  %7495 = vmatpush1.msra.mxu0 %v847
  %7496 = vmatprep.subr.mxu0 %v852
  %7497 = vmatpush1.msra.mxu0 %v851
  %7498 = vmatprep.subr.mxu0 %v856
  %7499 = vmatpush1.msra.mxu0 %v855
  %7500 = vmatprep.subr.mxu0 %v860
  %7501 = vmatpush1.msra.mxu0 %v859
  %7502 = vmatprep.subr.mxu0 %v864
  %7503 = vmatpush1.msra.mxu0 %v863
  %7504 = vmatprep.subr.mxu0 %v868
  %7505 = vmatpush1.msra.mxu0 %v867
  %7506 = vmatprep.subr.mxu0 %v872
  %7507 = vmatpush1.msra.mxu0 %v871
  %7508 = vmatprep.subr.mxu0 %v876
  %7509 = vmatpush1.msra.mxu0 %v875
  %7510 = vmatprep.subr.mxu0 %v880
  %7511 = vmatpush1.msra.mxu0 %v879
  %7512 = vmatprep.subr.mxu0 %v884
  %7513 = vmatpush1.msra.mxu0 %v883
  %7514 = vmatprep.subr.mxu0 %v888
  %7515 = vmatpush1.msra.mxu0 %v887
  %7516 = vmatprep.subr.mxu0 %v892
  %7517 = vmatpush1.msra.mxu0 %v891
  %7518 = vmatprep.subr.mxu0 %v896
  %7519 = vmatpush1.msra.mxu0 %v895
  %7520 = vmatprep.subr.mxu0 %v900
  %7521 = vmatpush1.msra.mxu0 %v899
  %7522 = vmatprep.subr.mxu0 %v904
  %7523 = vmatpush1.msra.mxu0 %v903
  %7524 = vmatprep.subr.mxu0 %v908
  %7525 = vmatpush1.msra.mxu0 %v907
  %7526 = vmatprep.subr.mxu0 %v912
  %7527 = vmatpush1.msra.mxu0 %v911
  %7528 = vmatprep.mubr.f32.mxu0 %v7250
  %7529 = vmatmul.mubr.f32.gmra.mrb[0].mxu0 %v7249
  %v7530 = vpop.f32.mrb[0].mxu0
  %v7531 = vadd.f32 %v7460, %v7530
  %v7532 = vpop.f32.mrb[0].mxu0
  %v7533 = vadd.f32 %v7462, %v7532
  %7534 = vdwg.mxu0
  %v7535 = vtanh.pop %v7389
  %v7536 = vtanh.pop %v7391
  %v7537 = vtanh.pop %v7531
  %v7538 = vtanh.pop %v7533
  %7539 = vmatprep.subr.mxu0 %v658
  %7540 = vmatpush1.msra.mxu0 %v657
  %7541 = vmatprep.subr.mxu0 %v662
  %7542 = vmatpush1.msra.mxu0 %v661
  %7543 = vmatprep.subr.mxu0 %v666
  %7544 = vmatpush1.msra.mxu0 %v665
  %7545 = vmatprep.subr.mxu0 %v670
  %7546 = vmatpush1.msra.mxu0 %v669
  %7547 = vmatprep.subr.mxu0 %v674
  %7548 = vmatpush1.msra.mxu0 %v673
  %7549 = vmatprep.subr.mxu0 %v678
  %7550 = vmatpush1.msra.mxu0 %v677
  %7551 = vmatprep.subr.mxu0 %v682
  %7552 = vmatpush1.msra.mxu0 %v681
  %7553 = vmatprep.subr.mxu0 %v686
  %7554 = vmatpush1.msra.mxu0 %v685
  %7555 = vmatprep.subr.mxu0 %v690
  %7556 = vmatpush1.msra.mxu0 %v689
  %7557 = vmatprep.subr.mxu0 %v694
  %7558 = vmatpush1.msra.mxu0 %v693
  %7559 = vmatprep.subr.mxu0 %v698
  %7560 = vmatpush1.msra.mxu0 %v697
  %7561 = vmatprep.subr.mxu0 %v702
  %7562 = vmatpush1.msra.mxu0 %v701
  %7563 = vmatprep.subr.mxu0 %v706
  %7564 = vmatpush1.msra.mxu0 %v705
  %7565 = vmatprep.subr.mxu0 %v710
  %7566 = vmatpush1.msra.mxu0 %v709
  %7567 = vmatprep.subr.mxu0 %v714
  %7568 = vmatpush1.msra.mxu0 %v713
  %7569 = vmatprep.subr.mxu0 %v718
  %7570 = vmatpush1.msra.mxu0 %v717
  %7571 = vmatprep.subr.mxu0 %v722
  %7572 = vmatpush1.msra.mxu0 %v721
  %7573 = vmatprep.subr.mxu0 %v726
  %7574 = vmatpush1.msra.mxu0 %v725
  %7575 = vmatprep.subr.mxu0 %v730
  %7576 = vmatpush1.msra.mxu0 %v729
  %7577 = vmatprep.subr.mxu0 %v734
  %7578 = vmatpush1.msra.mxu0 %v733
  %7579 = vmatprep.subr.mxu0 %v738
  %7580 = vmatpush1.msra.mxu0 %v737
  %7581 = vmatprep.subr.mxu0 %v742
  %7582 = vmatpush1.msra.mxu0 %v741
  %7583 = vmatprep.subr.mxu0 %v746
  %7584 = vmatpush1.msra.mxu0 %v745
  %7585 = vmatprep.subr.mxu0 %v750
  %7586 = vmatpush1.msra.mxu0 %v749
  %7587 = vmatprep.subr.mxu0 %v754
  %7588 = vmatpush1.msra.mxu0 %v753
  %7589 = vmatprep.subr.mxu0 %v758
  %7590 = vmatpush1.msra.mxu0 %v757
  %7591 = vmatprep.subr.mxu0 %v762
  %7592 = vmatpush1.msra.mxu0 %v761
  %7593 = vmatprep.subr.mxu0 %v766
  %7594 = vmatpush1.msra.mxu0 %v765
  %7595 = vmatprep.subr.mxu0 %v770
  %7596 = vmatpush1.msra.mxu0 %v769
  %7597 = vmatprep.subr.mxu0 %v774
  %7598 = vmatpush1.msra.mxu0 %v773
  %7599 = vmatprep.subr.mxu0 %v778
  %7600 = vmatpush1.msra.mxu0 %v777
  %7601 = vmatprep.subr.mxu0 %v782
  %7602 = vmatpush1.msra.mxu0 %v781
  %7603 = vmatprep.mubr.f32.mxu0 %v7536
  %7604 = vmatmul.mubr.f32.gmra.mrb[0].mxu0 %v7535
  %v7605 = vpop.f32.mrb[0].mxu0
  %v7606 = vadd.f32 %v404, %v7605
  %v7607 = vpop.f32.mrb[0].mxu0
  %v7608 = vadd.f32 %v406, %v7607
  %7609 = vdwg.mxu0
  %7610 = vmatprep.subr.mxu0 %v786
  %7611 = vmatpush1.msra.mxu0 %v785
  %7612 = vmatprep.subr.mxu0 %v790
  %7613 = vmatpush1.msra.mxu0 %v789
  %7614 = vmatprep.subr.mxu0 %v794
  %7615 = vmatpush1.msra.mxu0 %v793
  %7616 = vmatprep.subr.mxu0 %v798
  %7617 = vmatpush1.msra.mxu0 %v797
  %7618 = vmatprep.subr.mxu0 %v802
  %7619 = vmatpush1.msra.mxu0 %v801
  %7620 = vmatprep.subr.mxu0 %v806
  %7621 = vmatpush1.msra.mxu0 %v805
  %7622 = vmatprep.subr.mxu0 %v810
  %7623 = vmatpush1.msra.mxu0 %v809
  %7624 = vmatprep.subr.mxu0 %v814
  %7625 = vmatpush1.msra.mxu0 %v813
  %7626 = vmatprep.subr.mxu0 %v818
  %7627 = vmatpush1.msra.mxu0 %v817
  %7628 = vmatprep.subr.mxu0 %v822
  %7629 = vmatpush1.msra.mxu0 %v821
  %7630 = vmatprep.subr.mxu0 %v826
  %7631 = vmatpush1.msra.mxu0 %v825
  %7632 = vmatprep.subr.mxu0 %v830
  %7633 = vmatpush1.msra.mxu0 %v829
  %7634 = vmatprep.subr.mxu0 %v834
  %7635 = vmatpush1.msra.mxu0 %v833
  %7636 = vmatprep.subr.mxu0 %v838
  %7637 = vmatpush1.msra.mxu0 %v837
  %7638 = vmatprep.subr.mxu0 %v842
  %7639 = vmatpush1.msra.mxu0 %v841
  %7640 = vmatprep.subr.mxu0 %v846
  %7641 = vmatpush1.msra.mxu0 %v845
  %7642 = vmatprep.subr.mxu0 %v850
  %7643 = vmatpush1.msra.mxu0 %v849
  %7644 = vmatprep.subr.mxu0 %v854
  %7645 = vmatpush1.msra.mxu0 %v853
  %7646 = vmatprep.subr.mxu0 %v858
  %7647 = vmatpush1.msra.mxu0 %v857
  %7648 = vmatprep.subr.mxu0 %v862
  %7649 = vmatpush1.msra.mxu0 %v861
  %7650 = vmatprep.subr.mxu0 %v866
  %7651 = vmatpush1.msra.mxu0 %v865
  %7652 = vmatprep.subr.mxu0 %v870
  %7653 = vmatpush1.msra.mxu0 %v869
  %7654 = vmatprep.subr.mxu0 %v874
  %7655 = vmatpush1.msra.mxu0 %v873
  %7656 = vmatprep.subr.mxu0 %v878
  %7657 = vmatpush1.msra.mxu0 %v877
  %7658 = vmatprep.subr.mxu0 %v882
  %7659 = vmatpush1.msra.mxu0 %v881
  %7660 = vmatprep.subr.mxu0 %v886
  %7661 = vmatpush1.msra.mxu0 %v885
  %7662 = vmatprep.subr.mxu0 %v890
  %7663 = vmatpush1.msra.mxu0 %v889
  %7664 = vmatprep.subr.mxu0 %v894
  %7665 = vmatpush1.msra.mxu0 %v893
  %7666 = vmatprep.subr.mxu0 %v898
  %7667 = vmatpush1.msra.mxu0 %v897
  %7668 = vmatprep.subr.mxu0 %v902
  %7669 = vmatpush1.msra.mxu0 %v901
  %7670 = vmatprep.subr.mxu0 %v906
  %7671 = vmatpush1.msra.mxu0 %v905
  %7672 = vmatprep.subr.mxu0 %v910
  %7673 = vmatpush1.msra.mxu0 %v909
  %7674 = vmatprep.mubr.f32.mxu0 %v7538
  %7675 = vmatmul.mubr.f32.gmra.mrb[0].mxu0 %v7537
  %v7676 = vpop.f32.mrb[0].mxu0
  %v7677 = vadd.f32 %v7606, %v7676
  %v7678 = vpop.f32.mrb[0].mxu0
  %v7679 = vadd.f32 %v7608, %v7678
  %7680 = vdwg.mxu0
  %7681 = vmatprep.subr.mxu0 %v660
  %7682 = vmatpush1.msra.mxu0 %v659
  %7683 = vmatprep.subr.mxu0 %v664
  %7684 = vmatpush1.msra.mxu0 %v663
  %7685 = vmatprep.subr.mxu0 %v668
  %7686 = vmatpush1.msra.mxu0 %v667
  %7687 = vmatprep.subr.mxu0 %v672
  %7688 = vmatpush1.msra.mxu0 %v671
  %7689 = vmatprep.subr.mxu0 %v676
  %7690 = vmatpush1.msra.mxu0 %v675
  %7691 = vmatprep.subr.mxu0 %v680
  %7692 = vmatpush1.msra.mxu0 %v679
  %7693 = vmatprep.subr.mxu0 %v684
  %7694 = vmatpush1.msra.mxu0 %v683
  %7695 = vmatprep.subr.mxu0 %v688
  %7696 = vmatpush1.msra.mxu0 %v687
  %7697 = vmatprep.subr.mxu0 %v692
  %7698 = vmatpush1.msra.mxu0 %v691
  %7699 = vmatprep.subr.mxu0 %v696
  %7700 = vmatpush1.msra.mxu0 %v695
  %7701 = vmatprep.subr.mxu0 %v700
  %7702 = vmatpush1.msra.mxu0 %v699
  %7703 = vmatprep.subr.mxu0 %v704
  %7704 = vmatpush1.msra.mxu0 %v703
  %7705 = vmatprep.subr.mxu0 %v708
  %7706 = vmatpush1.msra.mxu0 %v707
  %7707 = vmatprep.subr.mxu0 %v712
  %7708 = vmatpush1.msra.mxu0 %v711
  %7709 = vmatprep.subr.mxu0 %v716
  %7710 = vmatpush1.msra.mxu0 %v715
  %7711 = vmatprep.subr.mxu0 %v720
  %7712 = vmatpush1.msra.mxu0 %v719
  %7713 = vmatprep.subr.mxu0 %v724
  %7714 = vmatpush1.msra.mxu0 %v723
  %7715 = vmatprep.subr.mxu0 %v728
  %7716 = vmatpush1.msra.mxu0 %v727
  %7717 = vmatprep.subr.mxu0 %v732
  %7718 = vmatpush1.msra.mxu0 %v731
  %7719 = vmatprep.subr.mxu0 %v736
  %7720 = vmatpush1.msra.mxu0 %v735
  %7721 = vmatprep.subr.mxu0 %v740
  %7722 = vmatpush1.msra.mxu0 %v739
  %7723 = vmatprep.subr.mxu0 %v744
  %7724 = vmatpush1.msra.mxu0 %v743
  %7725 = vmatprep.subr.mxu0 %v748
  %7726 = vmatpush1.msra.mxu0 %v747
  %7727 = vmatprep.subr.mxu0 %v752
  %7728 = vmatpush1.msra.mxu0 %v751
  %7729 = vmatprep.subr.mxu0 %v756
  %7730 = vmatpush1.msra.mxu0 %v755
  %7731 = vmatprep.subr.mxu0 %v760
  %7732 = vmatpush1.msra.mxu0 %v759
  %7733 = vmatprep.subr.mxu0 %v764
  %7734 = vmatpush1.msra.mxu0 %v763
  %7735 = vmatprep.subr.mxu0 %v768
  %7736 = vmatpush1.msra.mxu0 %v767
  %7737 = vmatprep.subr.mxu0 %v772
  %7738 = vmatpush1.msra.mxu0 %v771
  %7739 = vmatprep.subr.mxu0 %v776
  %7740 = vmatpush1.msra.mxu0 %v775
  %7741 = vmatprep.subr.mxu0 %v780
  %7742 = vmatpush1.msra.mxu0 %v779
  %7743 = vmatprep.subr.mxu0 %v784
  %7744 = vmatpush1.msra.mxu0 %v783
  %7745 = vmatprep.mubr.f32.mxu0 %v7536
  %7746 = vmatmul.mubr.f32.gmra.mrb[0].mxu0 %v7535
  %v7747 = vpop.f32.mrb[0].mxu0
  %v7748 = vadd.f32 %v635, %v7747
  %v7749 = vpop.f32.mrb[0].mxu0
  %v7750 = vadd.f32 %v637, %v7749
  %7751 = vdwg.mxu0
  %7752 = vmatprep.subr.mxu0 %v788
  %7753 = vmatpush1.msra.mxu0 %v787
  %7754 = vmatprep.subr.mxu0 %v792
  %7755 = vmatpush1.msra.mxu0 %v791
  %7756 = vmatprep.subr.mxu0 %v796
  %7757 = vmatpush1.msra.mxu0 %v795
  %7758 = vmatprep.subr.mxu0 %v800
  %7759 = vmatpush1.msra.mxu0 %v799
  %7760 = vmatprep.subr.mxu0 %v804
  %7761 = vmatpush1.msra.mxu0 %v803
  %7762 = vmatprep.subr.mxu0 %v808
  %7763 = vmatpush1.msra.mxu0 %v807
  %7764 = vmatprep.subr.mxu0 %v812
  %7765 = vmatpush1.msra.mxu0 %v811
  %7766 = vmatprep.subr.mxu0 %v816
  %7767 = vmatpush1.msra.mxu0 %v815
  %7768 = vmatprep.subr.mxu0 %v820
  %7769 = vmatpush1.msra.mxu0 %v819
  %7770 = vmatprep.subr.mxu0 %v824
  %7771 = vmatpush1.msra.mxu0 %v823
  %7772 = vmatprep.subr.mxu0 %v828
  %7773 = vmatpush1.msra.mxu0 %v827
  %7774 = vmatprep.subr.mxu0 %v832
  %7775 = vmatpush1.msra.mxu0 %v831
  %7776 = vmatprep.subr.mxu0 %v836
  %7777 = vmatpush1.msra.mxu0 %v835
  %7778 = vmatprep.subr.mxu0 %v840
  %7779 = vmatpush1.msra.mxu0 %v839
  %7780 = vmatprep.subr.mxu0 %v844
  %7781 = vmatpush1.msra.mxu0 %v843
  %7782 = vmatprep.subr.mxu0 %v848
  %7783 = vmatpush1.msra.mxu0 %v847
  %7784 = vmatprep.subr.mxu0 %v852
  %7785 = vmatpush1.msra.mxu0 %v851
  %7786 = vmatprep.subr.mxu0 %v856
  %7787 = vmatpush1.msra.mxu0 %v855
  %7788 = vmatprep.subr.mxu0 %v860
  %7789 = vmatpush1.msra.mxu0 %v859
  %7790 = vmatprep.subr.mxu0 %v864
  %7791 = vmatpush1.msra.mxu0 %v863
  %7792 = vmatprep.subr.mxu0 %v868
  %7793 = vmatpush1.msra.mxu0 %v867
  %7794 = vmatprep.subr.mxu0 %v872
  %7795 = vmatpush1.msra.mxu0 %v871
  %7796 = vmatprep.subr.mxu0 %v876
  %7797 = vmatpush1.msra.mxu0 %v875
  %7798 = vmatprep.subr.mxu0 %v880
  %7799 = vmatpush1.msra.mxu0 %v879
  %7800 = vmatprep.subr.mxu0 %v884
  %7801 = vmatpush1.msra.mxu0 %v883
  %7802 = vmatprep.subr.mxu0 %v888
  %7803 = vmatpush1.msra.mxu0 %v887
  %7804 = vmatprep.subr.mxu0 %v892
  %7805 = vmatpush1.msra.mxu0 %v891
  %7806 = vmatprep.subr.mxu0 %v896
  %7807 = vmatpush1.msra.mxu0 %v895
  %7808 = vmatprep.subr.mxu0 %v900
  %7809 = vmatpush1.msra.mxu0 %v899
  %7810 = vmatprep.subr.mxu0 %v904
  %7811 = vmatpush1.msra.mxu0 %v903
  %7812 = vmatprep.subr.mxu0 %v908
  %7813 = vmatpush1.msra.mxu0 %v907
  %7814 = vmatprep.subr.mxu0 %v912
  %7815 = vmatpush1.msra.mxu0 %v911
  %7816 = vmatprep.mubr.f32.mxu0 %v7538
  %7817 = vmatmul.mubr.f32.gmra.mrb[0].mxu0 %v7537
  %v7818 = vpop.f32.mrb[0].mxu0
  %v7819 = vadd.f32 %v7748, %v7818
  %v7820 = vpop.f32.mrb[0].mxu0
  %v7821 = vadd.f32 %v7750, %v7820
  %7822 = vdwg.mxu0
  %v7823 = vtanh.pop %v7677
  %v7824 = vtanh.pop %v7679
  %v7825 = vtanh.pop %v7819
  %v7826 = vtanh.pop %v7821
  %7827 = vmatprep.subr.mxu0 %v658
  %7828 = vmatpush1.msra.mxu0 %v657
  %7829 = vmatprep.subr.mxu0 %v662
  %7830 = vmatpush1.msra.mxu0 %v661
  %7831 = vmatprep.subr.mxu0 %v666
  %7832 = vmatpush1.msra.mxu0 %v665
  %7833 = vmatprep.subr.mxu0 %v670
  %7834 = vmatpush1.msra.mxu0 %v669
  %7835 = vmatprep.subr.mxu0 %v674
  %7836 = vmatpush1.msra.mxu0 %v673
  %7837 = vmatprep.subr.mxu0 %v678
  %7838 = vmatpush1.msra.mxu0 %v677
  %7839 = vmatprep.subr.mxu0 %v682
  %7840 = vmatpush1.msra.mxu0 %v681
  %7841 = vmatprep.subr.mxu0 %v686
  %7842 = vmatpush1.msra.mxu0 %v685
  %7843 = vmatprep.subr.mxu0 %v690
  %7844 = vmatpush1.msra.mxu0 %v689
  %7845 = vmatprep.subr.mxu0 %v694
  %7846 = vmatpush1.msra.mxu0 %v693
  %7847 = vmatprep.subr.mxu0 %v698
  %7848 = vmatpush1.msra.mxu0 %v697
  %7849 = vmatprep.subr.mxu0 %v702
  %7850 = vmatpush1.msra.mxu0 %v701
  %7851 = vmatprep.subr.mxu0 %v706
  %7852 = vmatpush1.msra.mxu0 %v705
  %7853 = vmatprep.subr.mxu0 %v710
  %7854 = vmatpush1.msra.mxu0 %v709
  %7855 = vmatprep.subr.mxu0 %v714
  %7856 = vmatpush1.msra.mxu0 %v713
  %7857 = vmatprep.subr.mxu0 %v718
  %7858 = vmatpush1.msra.mxu0 %v717
  %7859 = vmatprep.subr.mxu0 %v722
  %7860 = vmatpush1.msra.mxu0 %v721
  %7861 = vmatprep.subr.mxu0 %v726
  %7862 = vmatpush1.msra.mxu0 %v725
  %7863 = vmatprep.subr.mxu0 %v730
  %7864 = vmatpush1.msra.mxu0 %v729
  %7865 = vmatprep.subr.mxu0 %v734
  %7866 = vmatpush1.msra.mxu0 %v733
  %7867 = vmatprep.subr.mxu0 %v738
  %7868 = vmatpush1.msra.mxu0 %v737
  %7869 = vmatprep.subr.mxu0 %v742
  %7870 = vmatpush1.msra.mxu0 %v741
  %7871 = vmatprep.subr.mxu0 %v746
  %7872 = vmatpush1.msra.mxu0 %v745
  %7873 = vmatprep.subr.mxu0 %v750
  %7874 = vmatpush1.msra.mxu0 %v749
  %7875 = vmatprep.subr.mxu0 %v754
  %7876 = vmatpush1.msra.mxu0 %v753
  %7877 = vmatprep.subr.mxu0 %v758
  %7878 = vmatpush1.msra.mxu0 %v757
  %7879 = vmatprep.subr.mxu0 %v762
  %7880 = vmatpush1.msra.mxu0 %v761
  %7881 = vmatprep.subr.mxu0 %v766
  %7882 = vmatpush1.msra.mxu0 %v765
  %7883 = vmatprep.subr.mxu0 %v770
  %7884 = vmatpush1.msra.mxu0 %v769
  %7885 = vmatprep.subr.mxu0 %v774
  %7886 = vmatpush1.msra.mxu0 %v773
  %7887 = vmatprep.subr.mxu0 %v778
  %7888 = vmatpush1.msra.mxu0 %v777
  %7889 = vmatprep.subr.mxu0 %v782
  %7890 = vmatpush1.msra.mxu0 %v781
  %7891 = vmatprep.mubr.f32.mxu0 %v7824
  %7892 = vmatmul.mubr.f32.gmra.mrb[0].mxu0 %v7823
  %v7893 = vpop.f32.mrb[0].mxu0
  %v7894 = vadd.f32 %v410, %v7893
  %v7895 = vpop.f32.mrb[0].mxu0
  %v7896 = vadd.f32 %v412, %v7895
  %7897 = vdwg.mxu0
  %7898 = vmatprep.subr.mxu0 %v786
  %7899 = vmatpush1.msra.mxu0 %v785
  %7900 = vmatprep.subr.mxu0 %v790
  %7901 = vmatpush1.msra.mxu0 %v789
  %7902 = vmatprep.subr.mxu0 %v794
  %7903 = vmatpush1.msra.mxu0 %v793
  %7904 = vmatprep.subr.mxu0 %v798
  %7905 = vmatpush1.msra.mxu0 %v797
  %7906 = vmatprep.subr.mxu0 %v802
  %7907 = vmatpush1.msra.mxu0 %v801
  %7908 = vmatprep.subr.mxu0 %v806
  %7909 = vmatpush1.msra.mxu0 %v805
  %7910 = vmatprep.subr.mxu0 %v810
  %7911 = vmatpush1.msra.mxu0 %v809
  %7912 = vmatprep.subr.mxu0 %v814
  %7913 = vmatpush1.msra.mxu0 %v813
  %7914 = vmatprep.subr.mxu0 %v818
  %7915 = vmatpush1.msra.mxu0 %v817
  %7916 = vmatprep.subr.mxu0 %v822
  %7917 = vmatpush1.msra.mxu0 %v821
  %7918 = vmatprep.subr.mxu0 %v826
  %7919 = vmatpush1.msra.mxu0 %v825
  %7920 = vmatprep.subr.mxu0 %v830
  %7921 = vmatpush1.msra.mxu0 %v829
  %7922 = vmatprep.subr.mxu0 %v834
  %7923 = vmatpush1.msra.mxu0 %v833
  %7924 = vmatprep.subr.mxu0 %v838
  %7925 = vmatpush1.msra.mxu0 %v837
  %7926 = vmatprep.subr.mxu0 %v842
  %7927 = vmatpush1.msra.mxu0 %v841
  %7928 = vmatprep.subr.mxu0 %v846
  %7929 = vmatpush1.msra.mxu0 %v845
  %7930 = vmatprep.subr.mxu0 %v850
  %7931 = vmatpush1.msra.mxu0 %v849
  %7932 = vmatprep.subr.mxu0 %v854
  %7933 = vmatpush1.msra.mxu0 %v853
  %7934 = vmatprep.subr.mxu0 %v858
  %7935 = vmatpush1.msra.mxu0 %v857
  %7936 = vmatprep.subr.mxu0 %v862
  %7937 = vmatpush1.msra.mxu0 %v861
  %7938 = vmatprep.subr.mxu0 %v866
  %7939 = vmatpush1.msra.mxu0 %v865
  %7940 = vmatprep.subr.mxu0 %v870
  %7941 = vmatpush1.msra.mxu0 %v869
  %7942 = vmatprep.subr.mxu0 %v874
  %7943 = vmatpush1.msra.mxu0 %v873
  %7944 = vmatprep.subr.mxu0 %v878
  %7945 = vmatpush1.msra.mxu0 %v877
  %7946 = vmatprep.subr.mxu0 %v882
  %7947 = vmatpush1.msra.mxu0 %v881
  %7948 = vmatprep.subr.mxu0 %v886
  %7949 = vmatpush1.msra.mxu0 %v885
  %7950 = vmatprep.subr.mxu0 %v890
  %7951 = vmatpush1.msra.mxu0 %v889
  %7952 = vmatprep.subr.mxu0 %v894
  %7953 = vmatpush1.msra.mxu0 %v893
  %7954 = vmatprep.subr.mxu0 %v898
  %7955 = vmatpush1.msra.mxu0 %v897
  %7956 = vmatprep.subr.mxu0 %v902
  %7957 = vmatpush1.msra.mxu0 %v901
  %7958 = vmatprep.subr.mxu0 %v906
  %7959 = vmatpush1.msra.mxu0 %v905
  %7960 = vmatprep.subr.mxu0 %v910
  %7961 = vmatpush1.msra.mxu0 %v909
  %7962 = vmatprep.mubr.f32.mxu0 %v7826
  %7963 = vmatmul.mubr.f32.gmra.mrb[0].mxu0 %v7825
  %v7964 = vpop.f32.mrb[0].mxu0
  %v7965 = vadd.f32 %v7894, %v7964
  %v7966 = vpop.f32.mrb[0].mxu0
  %v7967 = vadd.f32 %v7896, %v7966
  %7968 = vdwg.mxu0
  %7969 = vmatprep.subr.mxu0 %v660
  %7970 = vmatpush1.msra.mxu0 %v659
  %7971 = vmatprep.subr.mxu0 %v664
  %7972 = vmatpush1.msra.mxu0 %v663
  %7973 = vmatprep.subr.mxu0 %v668
  %7974 = vmatpush1.msra.mxu0 %v667
  %7975 = vmatprep.subr.mxu0 %v672
  %7976 = vmatpush1.msra.mxu0 %v671
  %7977 = vmatprep.subr.mxu0 %v676
  %7978 = vmatpush1.msra.mxu0 %v675
  %7979 = vmatprep.subr.mxu0 %v680
  %7980 = vmatpush1.msra.mxu0 %v679
  %7981 = vmatprep.subr.mxu0 %v684
  %7982 = vmatpush1.msra.mxu0 %v683
  %7983 = vmatprep.subr.mxu0 %v688
  %7984 = vmatpush1.msra.mxu0 %v687
  %7985 = vmatprep.subr.mxu0 %v692
  %7986 = vmatpush1.msra.mxu0 %v691
  %7987 = vmatprep.subr.mxu0 %v696
  %7988 = vmatpush1.msra.mxu0 %v695
  %7989 = vmatprep.subr.mxu0 %v700
  %7990 = vmatpush1.msra.mxu0 %v699
  %7991 = vmatprep.subr.mxu0 %v704
  %7992 = vmatpush1.msra.mxu0 %v703
  %7993 = vmatprep.subr.mxu0 %v708
  %7994 = vmatpush1.msra.mxu0 %v707
  %7995 = vmatprep.subr.mxu0 %v712
  %7996 = vmatpush1.msra.mxu0 %v711
  %7997 = vmatprep.subr.mxu0 %v716
  %7998 = vmatpush1.msra.mxu0 %v715
  %7999 = vmatprep.subr.mxu0 %v720
  %8000 = vmatpush1.msra.mxu0 %v719
  %8001 = vmatprep.subr.mxu0 %v724
  %8002 = vmatpush1.msra.mxu0 %v723
  %8003 = vmatprep.subr.mxu0 %v728
  %8004 = vmatpush1.msra.mxu0 %v727
  %8005 = vmatprep.subr.mxu0 %v732
  %8006 = vmatpush1.msra.mxu0 %v731
  %8007 = vmatprep.subr.mxu0 %v736
  %8008 = vmatpush1.msra.mxu0 %v735
  %8009 = vmatprep.subr.mxu0 %v740
  %8010 = vmatpush1.msra.mxu0 %v739
  %8011 = vmatprep.subr.mxu0 %v744
  %8012 = vmatpush1.msra.mxu0 %v743
  %8013 = vmatprep.subr.mxu0 %v748
  %8014 = vmatpush1.msra.mxu0 %v747
  %8015 = vmatprep.subr.mxu0 %v752
  %8016 = vmatpush1.msra.mxu0 %v751
  %8017 = vmatprep.subr.mxu0 %v756
  %8018 = vmatpush1.msra.mxu0 %v755
  %8019 = vmatprep.subr.mxu0 %v760
  %8020 = vmatpush1.msra.mxu0 %v759
  %8021 = vmatprep.subr.mxu0 %v764
  %8022 = vmatpush1.msra.mxu0 %v763
  %8023 = vmatprep.subr.mxu0 %v768
  %8024 = vmatpush1.msra.mxu0 %v767
  %8025 = vmatprep.subr.mxu0 %v772
  %8026 = vmatpush1.msra.mxu0 %v771
  %8027 = vmatprep.subr.mxu0 %v776
  %8028 = vmatpush1.msra.mxu0 %v775
  %8029 = vmatprep.subr.mxu0 %v780
  %8030 = vmatpush1.msra.mxu0 %v779
  %8031 = vmatprep.subr.mxu0 %v784
  %8032 = vmatpush1.msra.mxu0 %v783
  %8033 = vmatprep.mubr.f32.mxu0 %v7824
  %8034 = vmatmul.mubr.f32.gmra.mrb[0].mxu0 %v7823
  %v8035 = vpop.f32.mrb[0].mxu0
  %v8036 = vadd.f32 %v641, %v8035
  %v8037 = vpop.f32.mrb[0].mxu0
  %v8038 = vadd.f32 %v643, %v8037
  %8039 = vdwg.mxu0
  %8040 = vmatprep.subr.mxu0 %v788
  %8041 = vmatpush1.msra.mxu0 %v787
  %8042 = vmatprep.subr.mxu0 %v792
  %8043 = vmatpush1.msra.mxu0 %v791
  %8044 = vmatprep.subr.mxu0 %v796
  %8045 = vmatpush1.msra.mxu0 %v795
  %8046 = vmatprep.subr.mxu0 %v800
  %8047 = vmatpush1.msra.mxu0 %v799
  %8048 = vmatprep.subr.mxu0 %v804
  %8049 = vmatpush1.msra.mxu0 %v803
  %8050 = vmatprep.subr.mxu0 %v808
  %8051 = vmatpush1.msra.mxu0 %v807
  %8052 = vmatprep.subr.mxu0 %v812
  %8053 = vmatpush1.msra.mxu0 %v811
  %8054 = vmatprep.subr.mxu0 %v816
  %8055 = vmatpush1.msra.mxu0 %v815
  %8056 = vmatprep.subr.mxu0 %v820
  %8057 = vmatpush1.msra.mxu0 %v819
  %8058 = vmatprep.subr.mxu0 %v824
  %8059 = vmatpush1.msra.mxu0 %v823
  %8060 = vmatprep.subr.mxu0 %v828
  %8061 = vmatpush1.msra.mxu0 %v827
  %8062 = vmatprep.subr.mxu0 %v832
  %8063 = vmatpush1.msra.mxu0 %v831
  %8064 = vmatprep.subr.mxu0 %v836
  %8065 = vmatpush1.msra.mxu0 %v835
  %8066 = vmatprep.subr.mxu0 %v840
  %8067 = vmatpush1.msra.mxu0 %v839
  %8068 = vmatprep.subr.mxu0 %v844
  %8069 = vmatpush1.msra.mxu0 %v843
  %8070 = vmatprep.subr.mxu0 %v848
  %8071 = vmatpush1.msra.mxu0 %v847
  %8072 = vmatprep.subr.mxu0 %v852
  %8073 = vmatpush1.msra.mxu0 %v851
  %8074 = vmatprep.subr.mxu0 %v856
  %8075 = vmatpush1.msra.mxu0 %v855
  %8076 = vmatprep.subr.mxu0 %v860
  %8077 = vmatpush1.msra.mxu0 %v859
  %8078 = vmatprep.subr.mxu0 %v864
  %8079 = vmatpush1.msra.mxu0 %v863
  %8080 = vmatprep.subr.mxu0 %v868
  %8081 = vmatpush1.msra.mxu0 %v867
  %8082 = vmatprep.subr.mxu0 %v872
  %8083 = vmatpush1.msra.mxu0 %v871
  %8084 = vmatprep.subr.mxu0 %v876
  %8085 = vmatpush1.msra.mxu0 %v875
  %8086 = vmatprep.subr.mxu0 %v880
  %8087 = vmatpush1.msra.mxu0 %v879
  %8088 = vmatprep.subr.mxu0 %v884
  %8089 = vmatpush1.msra.mxu0 %v883
  %8090 = vmatprep.subr.mxu0 %v888
  %8091 = vmatpush1.msra.mxu0 %v887
  %8092 = vmatprep.subr.mxu0 %v892
  %8093 = vmatpush1.msra.mxu0 %v891
  %8094 = vmatprep.subr.mxu0 %v896
  %8095 = vmatpush1.msra.mxu0 %v895
  %8096 = vmatprep.subr.mxu0 %v900
  %8097 = vmatpush1.msra.mxu0 %v899
  %8098 = vmatprep.subr.mxu0 %v904
  %8099 = vmatpush1.msra.mxu0 %v903
  %8100 = vmatprep.subr.mxu0 %v908
  %8101 = vmatpush1.msra.mxu0 %v907
  %8102 = vmatprep.subr.mxu0 %v912
  %8103 = vmatpush1.msra.mxu0 %v911
  %8104 = vmatprep.mubr.f32.mxu0 %v7826
  %8105 = vmatmul.mubr.f32.gmra.mrb[0].mxu0 %v7825
  %v8106 = vpop.f32.mrb[0].mxu0
  %v8107 = vadd.f32 %v8036, %v8106
  %v8108 = vpop.f32.mrb[0].mxu0
  %v8109 = vadd.f32 %v8038, %v8108
  %8110 = vdwg.mxu0
  %v8111 = vtanh.pop %v7965
  %v8112 = vtanh.pop %v7967
  %v8113 = vtanh.pop %v8107
  %v8114 = vtanh.pop %v8109
  %8115 = vmatprep.subr.mxu0 %v658
  %8116 = vmatpush1.msra.mxu0 %v657
  %8117 = vmatprep.subr.mxu0 %v662
  %8118 = vmatpush1.msra.mxu0 %v661
  %8119 = vmatprep.subr.mxu0 %v666
  %8120 = vmatpush1.msra.mxu0 %v665
  %8121 = vmatprep.subr.mxu0 %v670
  %8122 = vmatpush1.msra.mxu0 %v669
  %8123 = vmatprep.subr.mxu0 %v674
  %8124 = vmatpush1.msra.mxu0 %v673
  %8125 = vmatprep.subr.mxu0 %v678
  %8126 = vmatpush1.msra.mxu0 %v677
  %8127 = vmatprep.subr.mxu0 %v682
  %8128 = vmatpush1.msra.mxu0 %v681
  %8129 = vmatprep.subr.mxu0 %v686
  %8130 = vmatpush1.msra.mxu0 %v685
  %8131 = vmatprep.subr.mxu0 %v690
  %8132 = vmatpush1.msra.mxu0 %v689
  %8133 = vmatprep.subr.mxu0 %v694
  %8134 = vmatpush1.msra.mxu0 %v693
  %8135 = vmatprep.subr.mxu0 %v698
  %8136 = vmatpush1.msra.mxu0 %v697
  %8137 = vmatprep.subr.mxu0 %v702
  %8138 = vmatpush1.msra.mxu0 %v701
  %8139 = vmatprep.subr.mxu0 %v706
  %8140 = vmatpush1.msra.mxu0 %v705
  %8141 = vmatprep.subr.mxu0 %v710
  %8142 = vmatpush1.msra.mxu0 %v709
  %8143 = vmatprep.subr.mxu0 %v714
  %8144 = vmatpush1.msra.mxu0 %v713
  %8145 = vmatprep.subr.mxu0 %v718
  %8146 = vmatpush1.msra.mxu0 %v717
  %8147 = vmatprep.subr.mxu0 %v722
  %8148 = vmatpush1.msra.mxu0 %v721
  %8149 = vmatprep.subr.mxu0 %v726
  %8150 = vmatpush1.msra.mxu0 %v725
  %8151 = vmatprep.subr.mxu0 %v730
  %8152 = vmatpush1.msra.mxu0 %v729
  %8153 = vmatprep.subr.mxu0 %v734
  %8154 = vmatpush1.msra.mxu0 %v733
  %8155 = vmatprep.subr.mxu0 %v738
  %8156 = vmatpush1.msra.mxu0 %v737
  %8157 = vmatprep.subr.mxu0 %v742
  %8158 = vmatpush1.msra.mxu0 %v741
  %8159 = vmatprep.subr.mxu0 %v746
  %8160 = vmatpush1.msra.mxu0 %v745
  %8161 = vmatprep.subr.mxu0 %v750
  %8162 = vmatpush1.msra.mxu0 %v749
  %8163 = vmatprep.subr.mxu0 %v754
  %8164 = vmatpush1.msra.mxu0 %v753
  %8165 = vmatprep.subr.mxu0 %v758
  %8166 = vmatpush1.msra.mxu0 %v757
  %8167 = vmatprep.subr.mxu0 %v762
  %8168 = vmatpush1.msra.mxu0 %v761
  %8169 = vmatprep.subr.mxu0 %v766
  %8170 = vmatpush1.msra.mxu0 %v765
  %8171 = vmatprep.subr.mxu0 %v770
  %8172 = vmatpush1.msra.mxu0 %v769
  %8173 = vmatprep.subr.mxu0 %v774
  %8174 = vmatpush1.msra.mxu0 %v773
  %8175 = vmatprep.subr.mxu0 %v778
  %8176 = vmatpush1.msra.mxu0 %v777
  %8177 = vmatprep.subr.mxu0 %v782
  %8178 = vmatpush1.msra.mxu0 %v781
  %8179 = vmatprep.mubr.f32.mxu0 %v8112
  %8180 = vmatmul.mubr.f32.gmra.mrb[0].mxu0 %v8111
  %v8181 = vpop.f32.mrb[0].mxu0
  %v8182 = vadd.f32 %v416, %v8181
  %v8183 = vpop.f32.mrb[0].mxu0
  %v8184 = vadd.f32 %v418, %v8183
  %8185 = vdwg.mxu0
  %8186 = vmatprep.subr.mxu0 %v786
  %8187 = vmatpush1.msra.mxu0 %v785
  %8188 = vmatprep.subr.mxu0 %v790
  %8189 = vmatpush1.msra.mxu0 %v789
  %8190 = vmatprep.subr.mxu0 %v794
  %8191 = vmatpush1.msra.mxu0 %v793
  %8192 = vmatprep.subr.mxu0 %v798
  %8193 = vmatpush1.msra.mxu0 %v797
  %8194 = vmatprep.subr.mxu0 %v802
  %8195 = vmatpush1.msra.mxu0 %v801
  %8196 = vmatprep.subr.mxu0 %v806
  %8197 = vmatpush1.msra.mxu0 %v805
  %8198 = vmatprep.subr.mxu0 %v810
  %8199 = vmatpush1.msra.mxu0 %v809
  %8200 = vmatprep.subr.mxu0 %v814
  %8201 = vmatpush1.msra.mxu0 %v813
  %8202 = vmatprep.subr.mxu0 %v818
  %8203 = vmatpush1.msra.mxu0 %v817
  %8204 = vmatprep.subr.mxu0 %v822
  %8205 = vmatpush1.msra.mxu0 %v821
  %8206 = vmatprep.subr.mxu0 %v826
  %8207 = vmatpush1.msra.mxu0 %v825
  %8208 = vmatprep.subr.mxu0 %v830
  %8209 = vmatpush1.msra.mxu0 %v829
  %8210 = vmatprep.subr.mxu0 %v834
  %8211 = vmatpush1.msra.mxu0 %v833
  %8212 = vmatprep.subr.mxu0 %v838
  %8213 = vmatpush1.msra.mxu0 %v837
  %8214 = vmatprep.subr.mxu0 %v842
  %8215 = vmatpush1.msra.mxu0 %v841
  %8216 = vmatprep.subr.mxu0 %v846
  %8217 = vmatpush1.msra.mxu0 %v845
  %8218 = vmatprep.subr.mxu0 %v850
  %8219 = vmatpush1.msra.mxu0 %v849
  %8220 = vmatprep.subr.mxu0 %v854
  %8221 = vmatpush1.msra.mxu0 %v853
  %8222 = vmatprep.subr.mxu0 %v858
  %8223 = vmatpush1.msra.mxu0 %v857
  %8224 = vmatprep.subr.mxu0 %v862
  %8225 = vmatpush1.msra.mxu0 %v861
  %8226 = vmatprep.subr.mxu0 %v866
  %8227 = vmatpush1.msra.mxu0 %v865
  %8228 = vmatprep.subr.mxu0 %v870
  %8229 = vmatpush1.msra.mxu0 %v869
  %8230 = vmatprep.subr.mxu0 %v874
  %8231 = vmatpush1.msra.mxu0 %v873
  %8232 = vmatprep.subr.mxu0 %v878
  %8233 = vmatpush1.msra.mxu0 %v877
  %8234 = vmatprep.subr.mxu0 %v882
  %8235 = vmatpush1.msra.mxu0 %v881
  %8236 = vmatprep.subr.mxu0 %v886
  %8237 = vmatpush1.msra.mxu0 %v885
  %8238 = vmatprep.subr.mxu0 %v890
  %8239 = vmatpush1.msra.mxu0 %v889
  %8240 = vmatprep.subr.mxu0 %v894
  %8241 = vmatpush1.msra.mxu0 %v893
  %8242 = vmatprep.subr.mxu0 %v898
  %8243 = vmatpush1.msra.mxu0 %v897
  %8244 = vmatprep.subr.mxu0 %v902
  %8245 = vmatpush1.msra.mxu0 %v901
  %8246 = vmatprep.subr.mxu0 %v906
  %8247 = vmatpush1.msra.mxu0 %v905
  %8248 = vmatprep.subr.mxu0 %v910
  %8249 = vmatpush1.msra.mxu0 %v909
  %8250 = vmatprep.mubr.f32.mxu0 %v8114
  %8251 = vmatmul.mubr.f32.gmra.mrb[0].mxu0 %v8113
  %v8252 = vpop.f32.mrb[0].mxu0
  %v8253 = vadd.f32 %v8182, %v8252
  %v8254 = vpop.f32.mrb[0].mxu0
  %v8255 = vadd.f32 %v8184, %v8254
  %8256 = vdwg.mxu0
  %8257 = vmatprep.subr.mxu0 %v660
  %8258 = vmatpush1.msra.mxu0 %v659
  %8259 = vmatprep.subr.mxu0 %v664
  %8260 = vmatpush1.msra.mxu0 %v663
  %8261 = vmatprep.subr.mxu0 %v668
  %8262 = vmatpush1.msra.mxu0 %v667
  %8263 = vmatprep.subr.mxu0 %v672
  %8264 = vmatpush1.msra.mxu0 %v671
  %8265 = vmatprep.subr.mxu0 %v676
  %8266 = vmatpush1.msra.mxu0 %v675
  %8267 = vmatprep.subr.mxu0 %v680
  %8268 = vmatpush1.msra.mxu0 %v679
  %8269 = vmatprep.subr.mxu0 %v684
  %8270 = vmatpush1.msra.mxu0 %v683
  %8271 = vmatprep.subr.mxu0 %v688
  %8272 = vmatpush1.msra.mxu0 %v687
  %8273 = vmatprep.subr.mxu0 %v692
  %8274 = vmatpush1.msra.mxu0 %v691
  %8275 = vmatprep.subr.mxu0 %v696
  %8276 = vmatpush1.msra.mxu0 %v695
  %8277 = vmatprep.subr.mxu0 %v700
  %8278 = vmatpush1.msra.mxu0 %v699
  %8279 = vmatprep.subr.mxu0 %v704
  %8280 = vmatpush1.msra.mxu0 %v703
  %8281 = vmatprep.subr.mxu0 %v708
  %8282 = vmatpush1.msra.mxu0 %v707
  %8283 = vmatprep.subr.mxu0 %v712
  %8284 = vmatpush1.msra.mxu0 %v711
  %8285 = vmatprep.subr.mxu0 %v716
  %8286 = vmatpush1.msra.mxu0 %v715
  %8287 = vmatprep.subr.mxu0 %v720
  %8288 = vmatpush1.msra.mxu0 %v719
  %8289 = vmatprep.subr.mxu0 %v724
  %8290 = vmatpush1.msra.mxu0 %v723
  %8291 = vmatprep.subr.mxu0 %v728
  %8292 = vmatpush1.msra.mxu0 %v727
  %8293 = vmatprep.subr.mxu0 %v732
  %8294 = vmatpush1.msra.mxu0 %v731
  %8295 = vmatprep.subr.mxu0 %v736
  %8296 = vmatpush1.msra.mxu0 %v735
  %8297 = vmatprep.subr.mxu0 %v740
  %8298 = vmatpush1.msra.mxu0 %v739
  %8299 = vmatprep.subr.mxu0 %v744
  %8300 = vmatpush1.msra.mxu0 %v743
  %8301 = vmatprep.subr.mxu0 %v748
  %8302 = vmatpush1.msra.mxu0 %v747
  %8303 = vmatprep.subr.mxu0 %v752
  %8304 = vmatpush1.msra.mxu0 %v751
  %8305 = vmatprep.subr.mxu0 %v756
  %8306 = vmatpush1.msra.mxu0 %v755
  %8307 = vmatprep.subr.mxu0 %v760
  %8308 = vmatpush1.msra.mxu0 %v759
  %8309 = vmatprep.subr.mxu0 %v764
  %8310 = vmatpush1.msra.mxu0 %v763
  %8311 = vmatprep.subr.mxu0 %v768
  %8312 = vmatpush1.msra.mxu0 %v767
  %8313 = vmatprep.subr.mxu0 %v772
  %8314 = vmatpush1.msra.mxu0 %v771
  %8315 = vmatprep.subr.mxu0 %v776
  %8316 = vmatpush1.msra.mxu0 %v775
  %8317 = vmatprep.subr.mxu0 %v780
  %8318 = vmatpush1.msra.mxu0 %v779
  %8319 = vmatprep.subr.mxu0 %v784
  %8320 = vmatpush1.msra.mxu0 %v783
  %8321 = vmatprep.mubr.f32.mxu0 %v8112
  %8322 = vmatmul.mubr.f32.gmra.mrb[0].mxu0 %v8111
  %v8323 = vpop.f32.mrb[0].mxu0
  %v8324 = vadd.f32 %v647, %v8323
  %v8325 = vpop.f32.mrb[0].mxu0
  %v8326 = vadd.f32 %v649, %v8325
  %8327 = vdwg.mxu0
  %8328 = vmatprep.subr.mxu0 %v788
  %8329 = vmatpush1.msra.mxu0 %v787
  %8330 = vmatprep.subr.mxu0 %v792
  %8331 = vmatpush1.msra.mxu0 %v791
  %8332 = vmatprep.subr.mxu0 %v796
  %8333 = vmatpush1.msra.mxu0 %v795
  %8334 = vmatprep.subr.mxu0 %v800
  %8335 = vmatpush1.msra.mxu0 %v799
  %8336 = vmatprep.subr.mxu0 %v804
  %8337 = vmatpush1.msra.mxu0 %v803
  %8338 = vmatprep.subr.mxu0 %v808
  %8339 = vmatpush1.msra.mxu0 %v807
  %8340 = vmatprep.subr.mxu0 %v812
  %8341 = vmatpush1.msra.mxu0 %v811
  %8342 = vmatprep.subr.mxu0 %v816
  %8343 = vmatpush1.msra.mxu0 %v815
  %8344 = vmatprep.subr.mxu0 %v820
  %8345 = vmatpush1.msra.mxu0 %v819
  %8346 = vmatprep.subr.mxu0 %v824
  %8347 = vmatpush1.msra.mxu0 %v823
  %8348 = vmatprep.subr.mxu0 %v828
  %8349 = vmatpush1.msra.mxu0 %v827
  %8350 = vmatprep.subr.mxu0 %v832
  %8351 = vmatpush1.msra.mxu0 %v831
  %8352 = vmatprep.subr.mxu0 %v836
  %8353 = vmatpush1.msra.mxu0 %v835
  %8354 = vmatprep.subr.mxu0 %v840
  %8355 = vmatpush1.msra.mxu0 %v839
  %8356 = vmatprep.subr.mxu0 %v844
  %8357 = vmatpush1.msra.mxu0 %v843
  %8358 = vmatprep.subr.mxu0 %v848
  %8359 = vmatpush1.msra.mxu0 %v847
  %8360 = vmatprep.subr.mxu0 %v852
  %8361 = vmatpush1.msra.mxu0 %v851
  %8362 = vmatprep.subr.mxu0 %v856
  %8363 = vmatpush1.msra.mxu0 %v855
  %8364 = vmatprep.subr.mxu0 %v860
  %8365 = vmatpush1.msra.mxu0 %v859
  %8366 = vmatprep.subr.mxu0 %v864
  %8367 = vmatpush1.msra.mxu0 %v863
  %8368 = vmatprep.subr.mxu0 %v868
  %8369 = vmatpush1.msra.mxu0 %v867
  %8370 = vmatprep.subr.mxu0 %v872
  %8371 = vmatpush1.msra.mxu0 %v871
  %8372 = vmatprep.subr.mxu0 %v876
  %8373 = vmatpush1.msra.mxu0 %v875
  %8374 = vmatprep.subr.mxu0 %v880
  %8375 = vmatpush1.msra.mxu0 %v879
  %8376 = vmatprep.subr.mxu0 %v884
  %8377 = vmatpush1.msra.mxu0 %v883
  %8378 = vmatprep.subr.mxu0 %v888
  %8379 = vmatpush1.msra.mxu0 %v887
  %8380 = vmatprep.subr.mxu0 %v892
  %8381 = vmatpush1.msra.mxu0 %v891
  %8382 = vmatprep.subr.mxu0 %v896
  %8383 = vmatpush1.msra.mxu0 %v895
  %8384 = vmatprep.subr.mxu0 %v900
  %8385 = vmatpush1.msra.mxu0 %v899
  %8386 = vmatprep.subr.mxu0 %v904
  %8387 = vmatpush1.msra.mxu0 %v903
  %8388 = vmatprep.subr.mxu0 %v908
  %8389 = vmatpush1.msra.mxu0 %v907
  %8390 = vmatprep.subr.mxu0 %v912
  %8391 = vmatpush1.msra.mxu0 %v911
  %8392 = vmatprep.mubr.f32.mxu0 %v8114
  %8393 = vmatmul.mubr.f32.gmra.mrb[0].mxu0 %v8113
  %v8394 = vpop.f32.mrb[0].mxu0
  %v8395 = vadd.f32 %v8324, %v8394
  %v8396 = vpop.f32.mrb[0].mxu0
  %v8397 = vadd.f32 %v8326, %v8396
  %8398 = vdwg.mxu0
  %v8399 = vtanh.pop %v8253
  %v8400 = vtanh.pop %v8255
  %v8401 = vtanh.pop %v8395
  %v8402 = vtanh.pop %v8397
  %8403 = vmatprep.subr.mxu0 %v658
  %8404 = vmatpush1.msra.mxu0 %v657
  %8405 = vmatprep.subr.mxu0 %v662
  %8406 = vmatpush1.msra.mxu0 %v661
  %8407 = vmatprep.subr.mxu0 %v666
  %8408 = vmatpush1.msra.mxu0 %v665
  %8409 = vmatprep.subr.mxu0 %v670
  %8410 = vmatpush1.msra.mxu0 %v669
  %8411 = vmatprep.subr.mxu0 %v674
  %8412 = vmatpush1.msra.mxu0 %v673
  %8413 = vmatprep.subr.mxu0 %v678
  %8414 = vmatpush1.msra.mxu0 %v677
  %8415 = vmatprep.subr.mxu0 %v682
  %8416 = vmatpush1.msra.mxu0 %v681
  %8417 = vmatprep.subr.mxu0 %v686
  %8418 = vmatpush1.msra.mxu0 %v685
  %8419 = vmatprep.subr.mxu0 %v690
  %8420 = vmatpush1.msra.mxu0 %v689
  %8421 = vmatprep.subr.mxu0 %v694
  %8422 = vmatpush1.msra.mxu0 %v693
  %8423 = vmatprep.subr.mxu0 %v698
  %8424 = vmatpush1.msra.mxu0 %v697
  %8425 = vmatprep.subr.mxu0 %v702
  %8426 = vmatpush1.msra.mxu0 %v701
  %8427 = vmatprep.subr.mxu0 %v706
  %8428 = vmatpush1.msra.mxu0 %v705
  %8429 = vmatprep.subr.mxu0 %v710
  %8430 = vmatpush1.msra.mxu0 %v709
  %8431 = vmatprep.subr.mxu0 %v714
  %8432 = vmatpush1.msra.mxu0 %v713
  %8433 = vmatprep.subr.mxu0 %v718
  %8434 = vmatpush1.msra.mxu0 %v717
  %8435 = vmatprep.subr.mxu0 %v722
  %8436 = vmatpush1.msra.mxu0 %v721
  %8437 = vmatprep.subr.mxu0 %v726
  %8438 = vmatpush1.msra.mxu0 %v725
  %8439 = vmatprep.subr.mxu0 %v730
  %8440 = vmatpush1.msra.mxu0 %v729
  %8441 = vmatprep.subr.mxu0 %v734
  %8442 = vmatpush1.msra.mxu0 %v733
  %8443 = vmatprep.subr.mxu0 %v738
  %8444 = vmatpush1.msra.mxu0 %v737
  %8445 = vmatprep.subr.mxu0 %v742
  %8446 = vmatpush1.msra.mxu0 %v741
  %8447 = vmatprep.subr.mxu0 %v746
  %8448 = vmatpush1.msra.mxu0 %v745
  %8449 = vmatprep.subr.mxu0 %v750
  %8450 = vmatpush1.msra.mxu0 %v749
  %8451 = vmatprep.subr.mxu0 %v754
  %8452 = vmatpush1.msra.mxu0 %v753
  %8453 = vmatprep.subr.mxu0 %v758
  %8454 = vmatpush1.msra.mxu0 %v757
  %8455 = vmatprep.subr.mxu0 %v762
  %8456 = vmatpush1.msra.mxu0 %v761
  %8457 = vmatprep.subr.mxu0 %v766
  %8458 = vmatpush1.msra.mxu0 %v765
  %8459 = vmatprep.subr.mxu0 %v770
  %8460 = vmatpush1.msra.mxu0 %v769
  %8461 = vmatprep.subr.mxu0 %v774
  %8462 = vmatpush1.msra.mxu0 %v773
  %8463 = vmatprep.subr.mxu0 %v778
  %8464 = vmatpush1.msra.mxu0 %v777
  %8465 = vmatprep.subr.mxu0 %v782
  %8466 = vmatpush1.msra.mxu0 %v781
  %8467 = vmatprep.mubr.f32.mxu0 %v8400
  %8468 = vmatmul.mubr.f32.gmra.mrb[0].mxu0 %v8399
  %v8469 = vpop.f32.mrb[0].mxu0
  %v8470 = vadd.f32 %v422, %v8469
  %v8471 = vpop.f32.mrb[0].mxu0
  %v8472 = vadd.f32 %v424, %v8471
  %8473 = vdwg.mxu0
  %8474 = vmatprep.subr.mxu0 %v786
  %8475 = vmatpush1.msra.mxu0 %v785
  %8476 = vmatprep.subr.mxu0 %v790
  %8477 = vmatpush1.msra.mxu0 %v789
  %8478 = vmatprep.subr.mxu0 %v794
  %8479 = vmatpush1.msra.mxu0 %v793
  %8480 = vmatprep.subr.mxu0 %v798
  %8481 = vmatpush1.msra.mxu0 %v797
  %8482 = vmatprep.subr.mxu0 %v802
  %8483 = vmatpush1.msra.mxu0 %v801
  %8484 = vmatprep.subr.mxu0 %v806
  %8485 = vmatpush1.msra.mxu0 %v805
  %8486 = vmatprep.subr.mxu0 %v810
  %8487 = vmatpush1.msra.mxu0 %v809
  %8488 = vmatprep.subr.mxu0 %v814
  %8489 = vmatpush1.msra.mxu0 %v813
  %8490 = vmatprep.subr.mxu0 %v818
  %8491 = vmatpush1.msra.mxu0 %v817
  %8492 = vmatprep.subr.mxu0 %v822
  %8493 = vmatpush1.msra.mxu0 %v821
  %8494 = vmatprep.subr.mxu0 %v826
  %8495 = vmatpush1.msra.mxu0 %v825
  %8496 = vmatprep.subr.mxu0 %v830
  %8497 = vmatpush1.msra.mxu0 %v829
  %8498 = vmatprep.subr.mxu0 %v834
  %8499 = vmatpush1.msra.mxu0 %v833
  %8500 = vmatprep.subr.mxu0 %v838
  %8501 = vmatpush1.msra.mxu0 %v837
  %8502 = vmatprep.subr.mxu0 %v842
  %8503 = vmatpush1.msra.mxu0 %v841
  %8504 = vmatprep.subr.mxu0 %v846
  %8505 = vmatpush1.msra.mxu0 %v845
  %8506 = vmatprep.subr.mxu0 %v850
  %8507 = vmatpush1.msra.mxu0 %v849
  %8508 = vmatprep.subr.mxu0 %v854
  %8509 = vmatpush1.msra.mxu0 %v853
  %8510 = vmatprep.subr.mxu0 %v858
  %8511 = vmatpush1.msra.mxu0 %v857
  %8512 = vmatprep.subr.mxu0 %v862
  %8513 = vmatpush1.msra.mxu0 %v861
  %8514 = vmatprep.subr.mxu0 %v866
  %8515 = vmatpush1.msra.mxu0 %v865
  %8516 = vmatprep.subr.mxu0 %v870
  %8517 = vmatpush1.msra.mxu0 %v869
  %8518 = vmatprep.subr.mxu0 %v874
  %8519 = vmatpush1.msra.mxu0 %v873
  %8520 = vmatprep.subr.mxu0 %v878
  %8521 = vmatpush1.msra.mxu0 %v877
  %8522 = vmatprep.subr.mxu0 %v882
  %8523 = vmatpush1.msra.mxu0 %v881
  %8524 = vmatprep.subr.mxu0 %v886
  %8525 = vmatpush1.msra.mxu0 %v885
  %8526 = vmatprep.subr.mxu0 %v890
  %8527 = vmatpush1.msra.mxu0 %v889
  %8528 = vmatprep.subr.mxu0 %v894
  %8529 = vmatpush1.msra.mxu0 %v893
  %8530 = vmatprep.subr.mxu0 %v898
  %8531 = vmatpush1.msra.mxu0 %v897
  %8532 = vmatprep.subr.mxu0 %v902
  %8533 = vmatpush1.msra.mxu0 %v901
  %8534 = vmatprep.subr.mxu0 %v906
  %8535 = vmatpush1.msra.mxu0 %v905
  %8536 = vmatprep.subr.mxu0 %v910
  %8537 = vmatpush1.msra.mxu0 %v909
  %8538 = vmatprep.mubr.f32.mxu0 %v8402
  %8539 = vmatmul.mubr.f32.gmra.mrb[0].mxu0 %v8401
  %v8540 = vpop.f32.mrb[0].mxu0
  %v8541 = vadd.f32 %v8470, %v8540
  %v8542 = vpop.f32.mrb[0].mxu0
  %v8543 = vadd.f32 %v8472, %v8542
  %8544 = vdwg.mxu0
  %8545 = vmatprep.subr.mxu0 %v660
  %8546 = vmatpush1.msra.mxu0 %v659
  %8547 = vmatprep.subr.mxu0 %v664
  %8548 = vmatpush1.msra.mxu0 %v663
  %8549 = vmatprep.subr.mxu0 %v668
  %8550 = vmatpush1.msra.mxu0 %v667
  %8551 = vmatprep.subr.mxu0 %v672
  %8552 = vmatpush1.msra.mxu0 %v671
  %8553 = vmatprep.subr.mxu0 %v676
  %8554 = vmatpush1.msra.mxu0 %v675
  %8555 = vmatprep.subr.mxu0 %v680
  %8556 = vmatpush1.msra.mxu0 %v679
  %8557 = vmatprep.subr.mxu0 %v684
  %8558 = vmatpush1.msra.mxu0 %v683
  %8559 = vmatprep.subr.mxu0 %v688
  %8560 = vmatpush1.msra.mxu0 %v687
  %8561 = vmatprep.subr.mxu0 %v692
  %8562 = vmatpush1.msra.mxu0 %v691
  %8563 = vmatprep.subr.mxu0 %v696
  %8564 = vmatpush1.msra.mxu0 %v695
  %8565 = vmatprep.subr.mxu0 %v700
  %8566 = vmatpush1.msra.mxu0 %v699
  %8567 = vmatprep.subr.mxu0 %v704
  %8568 = vmatpush1.msra.mxu0 %v703
  %8569 = vmatprep.subr.mxu0 %v708
  %8570 = vmatpush1.msra.mxu0 %v707
  %8571 = vmatprep.subr.mxu0 %v712
  %8572 = vmatpush1.msra.mxu0 %v711
  %8573 = vmatprep.subr.mxu0 %v716
  %8574 = vmatpush1.msra.mxu0 %v715
  %8575 = vmatprep.subr.mxu0 %v720
  %8576 = vmatpush1.msra.mxu0 %v719
  %8577 = vmatprep.subr.mxu0 %v724
  %8578 = vmatpush1.msra.mxu0 %v723
  %8579 = vmatprep.subr.mxu0 %v728
  %8580 = vmatpush1.msra.mxu0 %v727
  %8581 = vmatprep.subr.mxu0 %v732
  %8582 = vmatpush1.msra.mxu0 %v731
  %8583 = vmatprep.subr.mxu0 %v736
  %8584 = vmatpush1.msra.mxu0 %v735
  %8585 = vmatprep.subr.mxu0 %v740
  %8586 = vmatpush1.msra.mxu0 %v739
  %8587 = vmatprep.subr.mxu0 %v744
  %8588 = vmatpush1.msra.mxu0 %v743
  %8589 = vmatprep.subr.mxu0 %v748
  %8590 = vmatpush1.msra.mxu0 %v747
  %8591 = vmatprep.subr.mxu0 %v752
  %8592 = vmatpush1.msra.mxu0 %v751
  %8593 = vmatprep.subr.mxu0 %v756
  %8594 = vmatpush1.msra.mxu0 %v755
  %8595 = vmatprep.subr.mxu0 %v760
  %8596 = vmatpush1.msra.mxu0 %v759
  %8597 = vmatprep.subr.mxu0 %v764
  %8598 = vmatpush1.msra.mxu0 %v763
  %8599 = vmatprep.subr.mxu0 %v768
  %8600 = vmatpush1.msra.mxu0 %v767
  %8601 = vmatprep.subr.mxu0 %v772
  %8602 = vmatpush1.msra.mxu0 %v771
  %8603 = vmatprep.subr.mxu0 %v776
  %8604 = vmatpush1.msra.mxu0 %v775
  %8605 = vmatprep.subr.mxu0 %v780
  %8606 = vmatpush1.msra.mxu0 %v779
  %8607 = vmatprep.subr.mxu0 %v784
  %8608 = vmatpush1.msra.mxu0 %v783
  %8609 = vmatprep.mubr.f32.mxu0 %v8400
  %8610 = vmatmul.mubr.f32.gmra.mrb[0].mxu0 %v8399
  %v8611 = vpop.f32.mrb[0].mxu0
  %v8612 = vadd.f32 %v653, %v8611
  %v8613 = vpop.f32.mrb[0].mxu0
  %v8614 = vadd.f32 %v655, %v8613
  %8615 = vdwg.mxu0
  %8616 = vmatprep.subr.mxu0 %v788
  %8617 = vmatpush1.msra.mxu0 %v787
  %8618 = vmatprep.subr.mxu0 %v792
  %8619 = vmatpush1.msra.mxu0 %v791
  %8620 = vmatprep.subr.mxu0 %v796
  %8621 = vmatpush1.msra.mxu0 %v795
  %8622 = vmatprep.subr.mxu0 %v800
  %8623 = vmatpush1.msra.mxu0 %v799
  %8624 = vmatprep.subr.mxu0 %v804
  %8625 = vmatpush1.msra.mxu0 %v803
  %8626 = vmatprep.subr.mxu0 %v808
  %8627 = vmatpush1.msra.mxu0 %v807
  %8628 = vmatprep.subr.mxu0 %v812
  %8629 = vmatpush1.msra.mxu0 %v811
  %8630 = vmatprep.subr.mxu0 %v816
  %8631 = vmatpush1.msra.mxu0 %v815
  %8632 = vmatprep.subr.mxu0 %v820
  %8633 = vmatpush1.msra.mxu0 %v819
  %8634 = vmatprep.subr.mxu0 %v824
  %8635 = vmatpush1.msra.mxu0 %v823
  %8636 = vmatprep.subr.mxu0 %v828
  %8637 = vmatpush1.msra.mxu0 %v827
  %8638 = vmatprep.subr.mxu0 %v832
  %8639 = vmatpush1.msra.mxu0 %v831
  %8640 = vmatprep.subr.mxu0 %v836
  %8641 = vmatpush1.msra.mxu0 %v835
  %8642 = vmatprep.subr.mxu0 %v840
  %8643 = vmatpush1.msra.mxu0 %v839
  %8644 = vmatprep.subr.mxu0 %v844
  %8645 = vmatpush1.msra.mxu0 %v843
  %8646 = vmatprep.subr.mxu0 %v848
  %8647 = vmatpush1.msra.mxu0 %v847
  %8648 = vmatprep.subr.mxu0 %v852
  %8649 = vmatpush1.msra.mxu0 %v851
  %8650 = vmatprep.subr.mxu0 %v856
  %8651 = vmatpush1.msra.mxu0 %v855
  %8652 = vmatprep.subr.mxu0 %v860
  %8653 = vmatpush1.msra.mxu0 %v859
  %8654 = vmatprep.subr.mxu0 %v864
  %8655 = vmatpush1.msra.mxu0 %v863
  %8656 = vmatprep.subr.mxu0 %v868
  %8657 = vmatpush1.msra.mxu0 %v867
  %8658 = vmatprep.subr.mxu0 %v872
  %8659 = vmatpush1.msra.mxu0 %v871
  %8660 = vmatprep.subr.mxu0 %v876
  %8661 = vmatpush1.msra.mxu0 %v875
  %8662 = vmatprep.subr.mxu0 %v880
  %8663 = vmatpush1.msra.mxu0 %v879
  %8664 = vmatprep.subr.mxu0 %v884
  %8665 = vmatpush1.msra.mxu0 %v883
  %8666 = vmatprep.subr.mxu0 %v888
  %8667 = vmatpush1.msra.mxu0 %v887
  %8668 = vmatprep.subr.mxu0 %v892
  %8669 = vmatpush1.msra.mxu0 %v891
  %8670 = vmatprep.subr.mxu0 %v896
  %8671 = vmatpush1.msra.mxu0 %v895
  %8672 = vmatprep.subr.mxu0 %v900
  %8673 = vmatpush1.msra.mxu0 %v899
  %8674 = vmatprep.subr.mxu0 %v904
  %8675 = vmatpush1.msra.mxu0 %v903
  %8676 = vmatprep.subr.mxu0 %v908
  %8677 = vmatpush1.msra.mxu0 %v907
  %8678 = vmatprep.subr.mxu0 %v912
  %8679 = vmatpush1.msra.mxu0 %v911
  %8680 = vmatprep.mubr.f32.mxu0 %v8402
  %8681 = vmatmul.mubr.f32.gmra.mrb[0].mxu0 %v8401
  %v8682 = vpop.f32.mrb[0].mxu0
  %v8683 = vadd.f32 %v8612, %v8682
  %v8684 = vpop.f32.mrb[0].mxu0
  %v8685 = vadd.f32 %v8614, %v8684
  %8686 = vdwg.mxu0
  %v8687 = vtanh.pop %v8541
  %v8688 = vtanh.pop %v8543
  %v8689 = vtanh.pop %v8683
  %v8690 = vtanh.pop %v8685
  %v8691 = vld [vmem:[%s4] sm:$0xff]
  %v8692 = vld [vmem:[%s4 + $0x8] sm:$0xff]
  %v8693 = vld [vmem:[%s4 + $0x10] sm:$0xff]
  %v8694 = vld [vmem:[%s4 + $0x18] sm:$0xff]
  %v8695 = vld [vmem:[%s4 + $0x20] sm:$0xff]
  %v8696 = vld [vmem:[%s4 + $0x28] sm:$0xff]
  %v8697 = vld [vmem:[%s4 + $0x30] sm:$0xff]
  %v8698 = vld [vmem:[%s4 + $0x38] sm:$0xff]
  %v8699 = vld [vmem:[%s4 + $0x40] sm:$0xff]
  %v8700 = vld [vmem:[%s4 + $0x48] sm:$0xff]
  %v8701 = vld [vmem:[%s4 + $0x50] sm:$0xff]
  %v8702 = vld [vmem:[%s4 + $0x58] sm:$0xff]
  %v8703 = vld [vmem:[%s4 + $0x60] sm:$0xff]
  %v8704 = vld [vmem:[%s4 + $0x68] sm:$0xff]
  %v8705 = vld [vmem:[%s4 + $0x70] sm:$0xff]
  %v8706 = vld [vmem:[%s4 + $0x78] sm:$0xff]
  %v8707 = vld [vmem:[%s4 + $0x80] sm:$0xff]
  %v8708 = vld [vmem:[%s4 + $0x88] sm:$0xff]
  %v8709 = vld [vmem:[%s4 + $0x90] sm:$0xff]
  %v8710 = vld [vmem:[%s4 + $0x98] sm:$0xff]
  %v8711 = vld [vmem:[%s4 + $0xa0] sm:$0xff]
  %v8712 = vld [vmem:[%s4 + $0xa8] sm:$0xff]
  %v8713 = vld [vmem:[%s4 + $0xb0] sm:$0xff]
  %v8714 = vld [vmem:[%s4 + $0xb8] sm:$0xff]
  %v8715 = vld [vmem:[%s4 + $0xc0] sm:$0xff]
  %v8716 = vld [vmem:[%s4 + $0xc8] sm:$0xff]
  %v8717 = vld [vmem:[%s4 + $0xd0] sm:$0xff]
  %v8718 = vld [vmem:[%s4 + $0xd8] sm:$0xff]
  %v8719 = vld [vmem:[%s4 + $0xe0] sm:$0xff]
  %v8720 = vld [vmem:[%s4 + $0xe8] sm:$0xff]
  %v8721 = vld [vmem:[%s4 + $0xf0] sm:$0xff]
  %v8722 = vld [vmem:[%s4 + $0xf8] sm:$0xff]
  %v8723 = vld [vmem:[%s4 + $0x100] sm:$0xff]
  %v8724 = vld [vmem:[%s4 + $0x108] sm:$0xff]
  %v8725 = vld [vmem:[%s4 + $0x110] sm:$0xff]
  %v8726 = vld [vmem:[%s4 + $0x118] sm:$0xff]
  %v8727 = vld [vmem:[%s4 + $0x120] sm:$0xff]
  %v8728 = vld [vmem:[%s4 + $0x128] sm:$0xff]
  %v8729 = vld [vmem:[%s4 + $0x130] sm:$0xff]
  %v8730 = vld [vmem:[%s4 + $0x138] sm:$0xff]
  %v8731 = vld [vmem:[%s4 + $0x140] sm:$0xff]
  %v8732 = vld [vmem:[%s4 + $0x148] sm:$0xff]
  %v8733 = vld [vmem:[%s4 + $0x150] sm:$0xff]
  %v8734 = vld [vmem:[%s4 + $0x158] sm:$0xff]
  %v8735 = vld [vmem:[%s4 + $0x160] sm:$0xff]
  %v8736 = vld [vmem:[%s4 + $0x168] sm:$0xff]
  %v8737 = vld [vmem:[%s4 + $0x170] sm:$0xff]
  %v8738 = vld [vmem:[%s4 + $0x178] sm:$0xff]
  %v8739 = vld [vmem:[%s4 + $0x180] sm:$0xff]
  %v8740 = vld [vmem:[%s4 + $0x188] sm:$0xff]
  %v8741 = vld [vmem:[%s4 + $0x190] sm:$0xff]
  %v8742 = vld [vmem:[%s4 + $0x198] sm:$0xff]
  %v8743 = vld [vmem:[%s4 + $0x1a0] sm:$0xff]
  %v8744 = vld [vmem:[%s4 + $0x1a8] sm:$0xff]
  %v8745 = vld [vmem:[%s4 + $0x1b0] sm:$0xff]
  %v8746 = vld [vmem:[%s4 + $0x1b8] sm:$0xff]
  %v8747 = vld [vmem:[%s4 + $0x1c0] sm:$0xff]
  %v8748 = vld [vmem:[%s4 + $0x1c8] sm:$0xff]
  %v8749 = vld [vmem:[%s4 + $0x1d0] sm:$0xff]
  %v8750 = vld [vmem:[%s4 + $0x1d8] sm:$0xff]
  %v8751 = vld [vmem:[%s4 + $0x1e0] sm:$0xff]
  %v8752 = vld [vmem:[%s4 + $0x1e8] sm:$0xff]
  %v8753 = vld [vmem:[%s4 + $0x1f0] sm:$0xff]
  %v8754 = vld [vmem:[%s4 + $0x1f8] sm:$0xff]
  %v8755 = vld [vmem:[%s4 + $0x200] sm:$0xff]
  %v8756 = vld [vmem:[%s4 + $0x208] sm:$0xff]
  %v8757 = vld [vmem:[%s4 + $0x210] sm:$0xff]
  %v8758 = vld [vmem:[%s4 + $0x218] sm:$0xff]
  %v8759 = vld [vmem:[%s4 + $0x220] sm:$0xff]
  %v8760 = vld [vmem:[%s4 + $0x228] sm:$0xff]
  %v8761 = vld [vmem:[%s4 + $0x230] sm:$0xff]
  %v8762 = vld [vmem:[%s4 + $0x238] sm:$0xff]
  %v8763 = vld [vmem:[%s4 + $0x240] sm:$0xff]
  %v8764 = vld [vmem:[%s4 + $0x248] sm:$0xff]
  %v8765 = vld [vmem:[%s4 + $0x250] sm:$0xff]
  %v8766 = vld [vmem:[%s4 + $0x258] sm:$0xff]
  %v8767 = vld [vmem:[%s4 + $0x260] sm:$0xff]
  %v8768 = vld [vmem:[%s4 + $0x268] sm:$0xff]
  %v8769 = vld [vmem:[%s4 + $0x270] sm:$0xff]
  %v8770 = vld [vmem:[%s4 + $0x278] sm:$0xff]
  %v8771 = vld [vmem:[%s4 + $0x280] sm:$0xff]
  %v8772 = vld [vmem:[%s4 + $0x288] sm:$0xff]
  %v8773 = vld [vmem:[%s4 + $0x290] sm:$0xff]
  %v8774 = vld [vmem:[%s4 + $0x298] sm:$0xff]
  %v8775 = vld [vmem:[%s4 + $0x2a0] sm:$0xff]
  %v8776 = vld [vmem:[%s4 + $0x2a8] sm:$0xff]
  %v8777 = vld [vmem:[%s4 + $0x2b0] sm:$0xff]
  %v8778 = vld [vmem:[%s4 + $0x2b8] sm:$0xff]
  %v8779 = vld [vmem:[%s4 + $0x2c0] sm:$0xff]
  %v8780 = vld [vmem:[%s4 + $0x2c8] sm:$0xff]
  %v8781 = vld [vmem:[%s4 + $0x2d0] sm:$0xff]
  %v8782 = vld [vmem:[%s4 + $0x2d8] sm:$0xff]
  %v8783 = vld [vmem:[%s4 + $0x2e0] sm:$0xff]
  %v8784 = vld [vmem:[%s4 + $0x2e8] sm:$0xff]
  %v8785 = vld [vmem:[%s4 + $0x2f0] sm:$0xff]
  %v8786 = vld [vmem:[%s4 + $0x2f8] sm:$0xff]
  %v8787 = vld [vmem:[%s4 + $0x300] sm:$0xff]
  %v8788 = vld [vmem:[%s4 + $0x308] sm:$0xff]
  %v8789 = vld [vmem:[%s4 + $0x310] sm:$0xff]
  %v8790 = vld [vmem:[%s4 + $0x318] sm:$0xff]
  %v8791 = vld [vmem:[%s4 + $0x320] sm:$0xff]
  %v8792 = vld [vmem:[%s4 + $0x328] sm:$0xff]
  %v8793 = vld [vmem:[%s4 + $0x330] sm:$0xff]
  %v8794 = vld [vmem:[%s4 + $0x338] sm:$0xff]
  %v8795 = vld [vmem:[%s4 + $0x340] sm:$0xff]
  %v8796 = vld [vmem:[%s4 + $0x348] sm:$0xff]
  %v8797 = vld [vmem:[%s4 + $0x350] sm:$0xff]
  %v8798 = vld [vmem:[%s4 + $0x358] sm:$0xff]
  %v8799 = vld [vmem:[%s4 + $0x360] sm:$0xff]
  %v8800 = vld [vmem:[%s4 + $0x368] sm:$0xff]
  %v8801 = vld [vmem:[%s4 + $0x370] sm:$0xff]
  %v8802 = vld [vmem:[%s4 + $0x378] sm:$0xff]
  %v8803 = vld [vmem:[%s4 + $0x380] sm:$0xff]
  %v8804 = vld [vmem:[%s4 + $0x388] sm:$0xff]
  %v8805 = vld [vmem:[%s4 + $0x390] sm:$0xff]
  %v8806 = vld [vmem:[%s4 + $0x398] sm:$0xff]
  %v8807 = vld [vmem:[%s4 + $0x3a0] sm:$0xff]
  %v8808 = vld [vmem:[%s4 + $0x3a8] sm:$0xff]
  %v8809 = vld [vmem:[%s4 + $0x3b0] sm:$0xff]
  %v8810 = vld [vmem:[%s4 + $0x3b8] sm:$0xff]
  %v8811 = vld [vmem:[%s4 + $0x3c0] sm:$0xff]
  %v8812 = vld [vmem:[%s4 + $0x3c8] sm:$0xff]
  %v8813 = vld [vmem:[%s4 + $0x3d0] sm:$0xff]
  %v8814 = vld [vmem:[%s4 + $0x3d8] sm:$0xff]
  %v8815 = vld [vmem:[%s4 + $0x3e0] sm:$0xff]
  %v8816 = vld [vmem:[%s4 + $0x3e8] sm:$0xff]
  %v8817 = vld [vmem:[%s4 + $0x3f0] sm:$0xff]
  %v8818 = vld [vmem:[%s4 + $0x3f8] sm:$0xff]
  %v8819 = vld [vmem:[%s5] sm:$0x3]
  %v8821 = vlaneseq
  %v8822 = vshrl.u32 %v8821, 7
  %v8823 = vsub.s32 0, %v8822
  %v8824 = vrot.slane %v8819, %v8823
  %v8825 = vlaneseq
  %v8826 = vshrl.u32 %v8825, 7
  %v8827 = vsub.s32 1, %v8826
  %v8828 = vrot.slane %v8819, %v8827
  %8831 = vmatprep.subr.mxu0 %v8692
  %8832 = vmatpush1.msra.mxu0 %v8691
  %8833 = vmatprep.subr.mxu0 %v8694
  %8834 = vmatpush1.msra.mxu0 %v8693
  %8835 = vmatprep.subr.mxu0 %v8696
  %8836 = vmatpush1.msra.mxu0 %v8695
  %8837 = vmatprep.subr.mxu0 %v8698
  %8838 = vmatpush1.msra.mxu0 %v8697
  %8839 = vmatprep.subr.mxu0 %v8700
  %8840 = vmatpush1.msra.mxu0 %v8699
  %8841 = vmatprep.subr.mxu0 %v8702
  %8842 = vmatpush1.msra.mxu0 %v8701
  %8843 = vmatprep.subr.mxu0 %v8704
  %8844 = vmatpush1.msra.mxu0 %v8703
  %8845 = vmatprep.subr.mxu0 %v8706
  %8846 = vmatpush1.msra.mxu0 %v8705
  %8847 = vmatprep.subr.mxu0 %v8708
  %8848 = vmatpush1.msra.mxu0 %v8707
  %8849 = vmatprep.subr.mxu0 %v8710
  %8850 = vmatpush1.msra.mxu0 %v8709
  %8851 = vmatprep.subr.mxu0 %v8712
  %8852 = vmatpush1.msra.mxu0 %v8711
  %8853 = vmatprep.subr.mxu0 %v8714
  %8854 = vmatpush1.msra.mxu0 %v8713
  %8855 = vmatprep.subr.mxu0 %v8716
  %8856 = vmatpush1.msra.mxu0 %v8715
  %8857 = vmatprep.subr.mxu0 %v8718
  %8858 = vmatpush1.msra.mxu0 %v8717
  %8859 = vmatprep.subr.mxu0 %v8720
  %8860 = vmatpush1.msra.mxu0 %v8719
  %8861 = vmatprep.subr.mxu0 %v8722
  %8862 = vmatpush1.msra.mxu0 %v8721
  %8863 = vmatprep.subr.mxu0 %v8724
  %8864 = vmatpush1.msra.mxu0 %v8723
  %8865 = vmatprep.subr.mxu0 %v8726
  %8866 = vmatpush1.msra.mxu0 %v8725
  %8867 = vmatprep.subr.mxu0 %v8728
  %8868 = vmatpush1.msra.mxu0 %v8727
  %8869 = vmatprep.subr.mxu0 %v8730
  %8870 = vmatpush1.msra.mxu0 %v8729
  %8871 = vmatprep.subr.mxu0 %v8732
  %8872 = vmatpush1.msra.mxu0 %v8731
  %8873 = vmatprep.subr.mxu0 %v8734
  %8874 = vmatpush1.msra.mxu0 %v8733
  %8875 = vmatprep.subr.mxu0 %v8736
  %8876 = vmatpush1.msra.mxu0 %v8735
  %8877 = vmatprep.subr.mxu0 %v8738
  %8878 = vmatpush1.msra.mxu0 %v8737
  %8879 = vmatprep.subr.mxu0 %v8740
  %8880 = vmatpush1.msra.mxu0 %v8739
  %8881 = vmatprep.subr.mxu0 %v8742
  %8882 = vmatpush1.msra.mxu0 %v8741
  %8883 = vmatprep.subr.mxu0 %v8744
  %8884 = vmatpush1.msra.mxu0 %v8743
  %8885 = vmatprep.subr.mxu0 %v8746
  %8886 = vmatpush1.msra.mxu0 %v8745
  %8887 = vmatprep.subr.mxu0 %v8748
  %8888 = vmatpush1.msra.mxu0 %v8747
  %8889 = vmatprep.subr.mxu0 %v8750
  %8890 = vmatpush1.msra.mxu0 %v8749
  %8891 = vmatprep.subr.mxu0 %v8752
  %8892 = vmatpush1.msra.mxu0 %v8751
  %8893 = vmatprep.subr.mxu0 %v8754
  %8894 = vmatpush1.msra.mxu0 %v8753
  %8895 = vmatprep.mubr.f32.mxu0 %v8688
  %8896 = vmatmul.mubr.f32.gmra.mrb[0].mxu0 %v8687
  %v8897 = vpop.f32.mrb[0].mxu0
  %v8898 = vadd.f32 %v8824, %v8897
  %v8899 = vpop.f32.mrb[0].mxu0
  %v8900 = vadd.f32 %v8828, %v8899
  %8901 = vdwg.mxu0
  %8902 = vmatprep.subr.mxu0 %v8756
  %8903 = vmatpush1.msra.mxu0 %v8755
  %8904 = vmatprep.subr.mxu0 %v8758
  %8905 = vmatpush1.msra.mxu0 %v8757
  %8906 = vmatprep.subr.mxu0 %v8760
  %8907 = vmatpush1.msra.mxu0 %v8759
  %8908 = vmatprep.subr.mxu0 %v8762
  %8909 = vmatpush1.msra.mxu0 %v8761
  %8910 = vmatprep.subr.mxu0 %v8764
  %8911 = vmatpush1.msra.mxu0 %v8763
  %8912 = vmatprep.subr.mxu0 %v8766
  %8913 = vmatpush1.msra.mxu0 %v8765
  %8914 = vmatprep.subr.mxu0 %v8768
  %8915 = vmatpush1.msra.mxu0 %v8767
  %8916 = vmatprep.subr.mxu0 %v8770
  %8917 = vmatpush1.msra.mxu0 %v8769
  %8918 = vmatprep.subr.mxu0 %v8772
  %8919 = vmatpush1.msra.mxu0 %v8771
  %8920 = vmatprep.subr.mxu0 %v8774
  %8921 = vmatpush1.msra.mxu0 %v8773
  %8922 = vmatprep.subr.mxu0 %v8776
  %8923 = vmatpush1.msra.mxu0 %v8775
  %8924 = vmatprep.subr.mxu0 %v8778
  %8925 = vmatpush1.msra.mxu0 %v8777
  %8926 = vmatprep.subr.mxu0 %v8780
  %8927 = vmatpush1.msra.mxu0 %v8779
  %8928 = vmatprep.subr.mxu0 %v8782
  %8929 = vmatpush1.msra.mxu0 %v8781
  %8930 = vmatprep.subr.mxu0 %v8784
  %8931 = vmatpush1.msra.mxu0 %v8783
  %8932 = vmatprep.subr.mxu0 %v8786
  %8933 = vmatpush1.msra.mxu0 %v8785
  %8934 = vmatprep.subr.mxu0 %v8788
  %8935 = vmatpush1.msra.mxu0 %v8787
  %8936 = vmatprep.subr.mxu0 %v8790
  %8937 = vmatpush1.msra.mxu0 %v8789
  %8938 = vmatprep.subr.mxu0 %v8792
  %8939 = vmatpush1.msra.mxu0 %v8791
  %8940 = vmatprep.subr.mxu0 %v8794
  %8941 = vmatpush1.msra.mxu0 %v8793
  %8942 = vmatprep.subr.mxu0 %v8796
  %8943 = vmatpush1.msra.mxu0 %v8795
  %8944 = vmatprep.subr.mxu0 %v8798
  %8945 = vmatpush1.msra.mxu0 %v8797
  %8946 = vmatprep.subr.mxu0 %v8800
  %8947 = vmatpush1.msra.mxu0 %v8799
  %8948 = vmatprep.subr.mxu0 %v8802
  %8949 = vmatpush1.msra.mxu0 %v8801
  %8950 = vmatprep.subr.mxu0 %v8804
  %8951 = vmatpush1.msra.mxu0 %v8803
  %8952 = vmatprep.subr.mxu0 %v8806
  %8953 = vmatpush1.msra.mxu0 %v8805
  %8954 = vmatprep.subr.mxu0 %v8808
  %8955 = vmatpush1.msra.mxu0 %v8807
  %8956 = vmatprep.subr.mxu0 %v8810
  %8957 = vmatpush1.msra.mxu0 %v8809
  %8958 = vmatprep.subr.mxu0 %v8812
  %8959 = vmatpush1.msra.mxu0 %v8811
  %8960 = vmatprep.subr.mxu0 %v8814
  %8961 = vmatpush1.msra.mxu0 %v8813
  %8962 = vmatprep.subr.mxu0 %v8816
  %8963 = vmatpush1.msra.mxu0 %v8815
  %8964 = vmatprep.subr.mxu0 %v8818
  %8965 = vmatpush1.msra.mxu0 %v8817
  %8966 = vmatprep.mubr.f32.mxu0 %v8690
  %8967 = vmatmul.mubr.f32.gmra.mrb[0].mxu0 %v8689
  %v8968 = vpop.f32.mrb[0].mxu0
  %v8969 = vadd.f32 %v8898, %v8968
  %v8970 = vpop.f32.mrb[0].mxu0
  %v8971 = vadd.f32 %v8900, %v8970
  %8972 = vdwg.mxu0
  %v8973 = vtanh.pop %v8969
  %v8974 = vtanh.pop %v8971
  %v8975 = vld [vmem:[%s6] sm:$0xff]
  %v8976 = vld [vmem:[%s6 + $0x8] sm:$0xff]
  %v8977 = vld [vmem:[%s6 + $0x10] sm:$0xff]
  %v8978 = vld [vmem:[%s6 + $0x18] sm:$0xff]
  %v8979 = vld [vmem:[%s6 + $0x20] sm:$0xff]
  %v8980 = vld [vmem:[%s6 + $0x28] sm:$0xff]
  %v8981 = vld [vmem:[%s6 + $0x30] sm:$0xff]
  %v8982 = vld [vmem:[%s6 + $0x38] sm:$0xff]
  %v8983 = vld [vmem:[%s6 + $0x40] sm:$0xff]
  %v8984 = vld [vmem:[%s6 + $0x48] sm:$0xff]
  %v8985 = vld [vmem:[%s6 + $0x50] sm:$0xff]
  %v8986 = vld [vmem:[%s6 + $0x58] sm:$0xff]
  %v8987 = vld [vmem:[%s6 + $0x60] sm:$0xff]
  %v8988 = vld [vmem:[%s6 + $0x68] sm:$0xff]
  %v8989 = vld [vmem:[%s6 + $0x70] sm:$0xff]
  %v8990 = vld [vmem:[%s6 + $0x78] sm:$0xff]
  %v8991 = vld [vmem:[%s6 + $0x80] sm:$0xff]
  %v8992 = vld [vmem:[%s6 + $0x88] sm:$0xff]
  %v8993 = vld [vmem:[%s6 + $0x90] sm:$0xff]
  %v8994 = vld [vmem:[%s6 + $0x98] sm:$0xff]
  %v8995 = vld [vmem:[%s6 + $0xa0] sm:$0xff]
  %v8996 = vld [vmem:[%s6 + $0xa8] sm:$0xff]
  %v8997 = vld [vmem:[%s6 + $0xb0] sm:$0xff]
  %v8998 = vld [vmem:[%s6 + $0xb8] sm:$0xff]
  %v8999 = vld [vmem:[%s6 + $0xc0] sm:$0xff]
  %v9000 = vld [vmem:[%s6 + $0xc8] sm:$0xff]
  %v9001 = vld [vmem:[%s6 + $0xd0] sm:$0xff]
  %v9002 = vld [vmem:[%s6 + $0xd8] sm:$0xff]
  %v9003 = vld [vmem:[%s6 + $0xe0] sm:$0xff]
  %v9004 = vld [vmem:[%s6 + $0xe8] sm:$0xff]
  %v9005 = vld [vmem:[%s6 + $0xf0] sm:$0xff]
  %v9006 = vld [vmem:[%s6 + $0xf8] sm:$0xff]
  %v9007 = vld [vmem:[%s7] sm:$0x1]
  %v9009 = vlaneseq
  %v9010 = vshrl.u32 %v9009, 7
  %v9011 = vsub.s32 0, %v9010
  %v9012 = vrot.slane %v9007, %v9011
  %9014 = vmatprep.subr.mxu0 0.0
  %9015 = vmatpush1.msra.mxu0 %v8975
  %9016 = vmatprep.subr.mxu0 0.0
  %9017 = vmatpush1.msra.mxu0 %v8976
  %9018 = vmatprep.subr.mxu0 0.0
  %9019 = vmatpush1.msra.mxu0 %v8977
  %9020 = vmatprep.subr.mxu0 0.0
  %9021 = vmatpush1.msra.mxu0 %v8978
  %9022 = vmatprep.subr.mxu0 0.0
  %9023 = vmatpush1.msra.mxu0 %v8979
  %9024 = vmatprep.subr.mxu0 0.0
  %9025 = vmatpush1.msra.mxu0 %v8980
  %9026 = vmatprep.subr.mxu0 0.0
  %9027 = vmatpush1.msra.mxu0 %v8981
  %9028 = vmatprep.subr.mxu0 0.0
  %9029 = vmatpush1.msra.mxu0 %v8982
  %9030 = vmatprep.subr.mxu0 0.0
  %9031 = vmatpush1.msra.mxu0 %v8983
  %9032 = vmatprep.subr.mxu0 0.0
  %9033 = vmatpush1.msra.mxu0 %v8984
  %9034 = vmatprep.subr.mxu0 0.0
  %9035 = vmatpush1.msra.mxu0 %v8985
  %9036 = vmatprep.subr.mxu0 0.0
  %9037 = vmatpush1.msra.mxu0 %v8986
  %9038 = vmatprep.subr.mxu0 0.0
  %9039 = vmatpush1.msra.mxu0 %v8987
  %9040 = vmatprep.subr.mxu0 0.0
  %9041 = vmatpush1.msra.mxu0 %v8988
  %9042 = vmatprep.subr.mxu0 0.0
  %9043 = vmatpush1.msra.mxu0 %v8989
  %9044 = vmatprep.subr.mxu0 0.0
  %9045 = vmatpush1.msra.mxu0 %v8990
  %9046 = vmatprep.subr.mxu0 0.0
  %9047 = vmatpush1.msra.mxu0 %v8991
  %9048 = vmatprep.subr.mxu0 0.0
  %9049 = vmatpush1.msra.mxu0 %v8992
  %9050 = vmatprep.subr.mxu0 0.0
  %9051 = vmatpush1.msra.mxu0 %v8993
  %9052 = vmatprep.subr.mxu0 0.0
  %9053 = vmatpush1.msra.mxu0 %v8994
  %9054 = vmatprep.subr.mxu0 0.0
  %9055 = vmatpush1.msra.mxu0 %v8995
  %9056 = vmatprep.subr.mxu0 0.0
  %9057 = vmatpush1.msra.mxu0 %v8996
  %9058 = vmatprep.subr.mxu0 0.0
  %9059 = vmatpush1.msra.mxu0 %v8997
  %9060 = vmatprep.subr.mxu0 0.0
  %9061 = vmatpush1.msra.mxu0 %v8998
  %9062 = vmatprep.subr.mxu0 0.0
  %9063 = vmatpush1.msra.mxu0 %v8999
  %9064 = vmatprep.subr.mxu0 0.0
  %9065 = vmatpush1.msra.mxu0 %v9000
  %9066 = vmatprep.subr.mxu0 0.0
  %9067 = vmatpush1.msra.mxu0 %v9001
  %9068 = vmatprep.subr.mxu0 0.0
  %9069 = vmatpush1.msra.mxu0 %v9002
  %9070 = vmatprep.subr.mxu0 0.0
  %9071 = vmatpush1.msra.mxu0 %v9003
  %9072 = vmatprep.subr.mxu0 0.0
  %9073 = vmatpush1.msra.mxu0 %v9004
  %9074 = vmatprep.subr.mxu0 0.0
  %9075 = vmatpush1.msra.mxu0 %v9005
  %9076 = vmatprep.subr.mxu0 0.0
  %9077 = vmatpush1.msra.mxu0 %v9006
  %9078 = vmatprep.mubr.f32.mxu0 %v8974
  %9079 = vmatmul.mubr.f32.gmra.mrb[0].mxu0 %v8973
  %v9080 = vpop.f32.mrb[0].mxu0
  %v9081 = vadd.f32 %v9012, %v9080
  %v9082 = vpop.f32.mrb[0].mxu0
  %9083 = vdwg.mxu0
  %9084 = vst [vmem:[%s8] sm:$0xff] %v9081
  // Predicated region
  $region34: #{rnn_forward.1} parent=0 // pred_check
    _
  $region35: #{rnn_forward.1} parent=0 // pred_check_branch
    %9086 = sbr.rel (0) target = $region37
  $region36: #{rnn_forward.1} parent=0 // pred_region
    _
  $region37: #{rnn_forward.1} parent=0 // pred_fallthru
    _
  // Predicated region
  $region38: #{rnn_forward.1} parent=0 // pred_check
    _
  $region39: #{rnn_forward.1} parent=0 // pred_check_branch
    %9088 = sbr.rel (0) target = $region41
  $region40: #{rnn_forward.1} parent=0 // pred_region
    _
  $region41: #{rnn_forward.1} parent=0 // pred_fallthru
    _

</llo_original>
